<compile_context>
chip_gen: v7x
topology: tpu7x:2x2x1
jax: 0.10.0
libtpu: 0.0.40
codegen_flags: <defaults>
</compile_context>

<pallas_src>
import functools

import numpy as np
import jax
import jax.numpy as jnp
from jax.experimental import pallas as pl
from jax.experimental.pallas import tpu as pltpu

CONV1_K, CONV1_S = 8, 4
CONV2_K, CONV2_S = 4, 2
CONV3_K, CONV3_S = 3, 1


# ----------------------------------------------------------------------------
# Pallas kernel: the entire forward pass, all operands whole-array in VMEM.
# ----------------------------------------------------------------------------
def _fused_kernel(p1_ref, w1_ref, w2_ref, w3_ref, wf1_ref, wf2_ref, wh_ref,
                  b_ref, o_ref, a1_ref, a1f_ref, *, batch, n_strips, offs):
    (ob1, nb1), (ob2, nb2), (ob3, nb3), (of1, nf1), (of2, nf2), (obh, nbh) = offs
    n1 = w1_ref.shape[1]

    def mm(x, w_ref):
        # bf16 x bf16 MXU matmul with f32 accumulation; epilogues stay f32.
        return jnp.dot(x.astype(jnp.bfloat16), w_ref[...],
                       preferred_element_type=jnp.float32)

    # conv1: ONE matmul over all (batch * n_strips) input row-strips + ReLU.
    a1_ref[...] = jnp.maximum(mm(p1_ref[...], w1_ref) + b_ref[:, ob1:ob1 + nb1],
                              0.0)

    # Repack conv1 strips into NHWC-flat rows (pure VMEM movement, ~16 KiB):
    # row b of a1f becomes [strip0 | strip1 | ... ] = flat (h, w, c) activation.
    for h in range(n_strips):                       # static unroll (8 iters)
        a1f_ref[:, h * n1:(h + 1) * n1] = a1_ref[h * batch:(h + 1) * batch, :]

    # conv2 / conv3 / fc1 / fc2: one matmul each, f32 bias + ReLU epilogues.
    a2 = jnp.maximum(mm(a1f_ref[...], w2_ref) + b_ref[:, ob2:ob2 + nb2], 0.0)
    a3 = jnp.maximum(mm(a2, w3_ref) + b_ref[:, ob3:ob3 + nb3], 0.0)
    f1 = jnp.maximum(mm(a3, wf1_ref) + b_ref[:, of1:of1 + nf1], 0.0)
    f2 = jnp.maximum(mm(f1, wf2_ref) + b_ref[:, of2:of2 + nf2], 0.0)

    # merged V|A head, lane-dense (columns padded to a multiple of 128).
    o_ref[...] = (mm(f2, wh_ref) + b_ref[:, obh:obh + nbh]).astype(o_ref.dtype)


def _vmem_full(shape):
    nd = len(shape)

    def idx():                                     # no grid -> zero-arg index map
        return (0,) * nd

    return pl.BlockSpec(shape, idx)


def _pad128(n):
    return ((int(n) + 127) // 128) * 128


def _bias_layout(widths):
    """(start, width) pairs for the packed bias blob; every start is 128-aligned."""
    offs, cur = [], 0
    for w in widths:
        offs.append((cur, int(w)))
        cur += _pad128(w)
    return tuple(offs), cur


def _fused_call(p1, pk, batch, n_strips):
    widths = [pk["w1m"].shape[1], pk["w2m"].shape[1], pk["w3m"].shape[1],
              pk["wf1"].shape[1], pk["wf2"].shape[1], pk["wh"].shape[1]]
    offs, _ = _bias_layout(widths)
    n1, head_n = widths[0], widths[-1]

    args = (p1, pk["w1m"], pk["w2m"], pk["w3m"], pk["wf1"], pk["wf2"],
            pk["wh"], pk["bias"])
    kernel = functools.partial(_fused_kernel, batch=batch,
                               n_strips=n_strips, offs=offs)
    return pl.pallas_call(
        kernel,
        out_shape=jax.ShapeDtypeStruct((batch, head_n), jnp.float32),
        in_specs=[_vmem_full(a.shape) for a in args],     # whole-array, no grid
        out_specs=_vmem_full((batch, head_n)),
        scratch_shapes=[pltpu.VMEM((n_strips * batch, n1), jnp.float32),
                        pltpu.VMEM((batch, n_strips * n1), jnp.float32)],
        compiler_params=pltpu.CompilerParams(
            vmem_limit_bytes=32 * 1024 * 1024),
    )(*args)


# ----------------------------------------------------------------------------
# Forward pass (wrapper only builds conv1 input strips and slices V / A).
# ----------------------------------------------------------------------------
def dueling_dqn_forward(packed, state_nchw, n_actions):
    """Returns (V, A) exactly like DuelingDeepQNetwork.forward (NCHW input)."""
    batch = state_nchw.shape[0]
    H = state_nchw.shape[2]
    n_strips = (H - CONV1_K) // CONV1_S + 1
    # conv1 row-strips of the raw NCHW input (strip-major): strip h covers
    # input rows [4h, 4h+8); flatten order (c, dh, w) matches packed conv1.
    strips = [
        state_nchw[:, :, CONV1_S * h:CONV1_S * h + CONV1_K, :].reshape(batch, -1)
        for h in range(n_strips)
    ]
    p1 = jnp.concatenate(strips, axis=0)           # (n_strips*batch, C*8*W)
    head = _fused_call(p1, packed, batch, n_strips)
    V = head[:, 0:1]
    A = head[:, 1:1 + n_actions]
    return V, A


# ----------------------------------------------------------------------------
# One-time host-side weight packing (exact PyTorch numerics, numpy only).
# ----------------------------------------------------------------------------
def _conv_dense_np(w, in_h, in_w, stride):
    """Dense matrix of a VALID conv: NHWC-flat input -> NHWC-flat output."""
    c_out, c_in, kh, kw = w.shape
    oh = (in_h - kh) // stride + 1
    ow = (in_w - kw) // stride + 1
    m = np.zeros((in_h * in_w * c_in, oh * ow * c_out), np.float32)
    for oi in range(oh):
        for oj in range(ow):
            for ki in range(kh):
                for kj in range(kw):
                    hi = oi * stride + ki
                    wi = oj * stride + kj
                    r0 = (hi * in_w + wi) * c_in
                    c0 = (oi * ow + oj) * c_out
                    m[r0:r0 + c_in, c0:c0 + c_out] = w[:, :, ki, kj].T
    return m, oh, ow


def pack_params(params, input_dims):
    """Repack PyTorch-layout params into the fused-kernel layout (run once)."""
    c_in, H, W = input_dims
    w1 = np.asarray(params["conv1_w"], np.float32)   # (32, c_in, 8, 8)
    b1 = np.asarray(params["conv1_b"], np.float32)
    w2 = np.asarray(params["conv2_w"], np.float32)   # (64, 32, 4, 4)
    b2 = np.asarray(params["conv2_b"], np.float32)
    w3 = np.asarray(params["conv3_w"], np.float32)   # (128, 64, 3, 3)
    b3 = np.asarray(params["conv3_b"], np.float32)

    h1 = (H - CONV1_K) // CONV1_S + 1
    w1_out = (W - CONV1_K) // CONV1_S + 1
    c1 = w1.shape[0]                                  # 32

    # conv1 as a matmul on one 8-row NCHW input strip (flatten order c,dh,w),
    # producing one conv1 output row with columns ordered (w1, c1).
    w1m = np.zeros((c_in * CONV1_K * W, w1_out * c1), np.float32)
    for oj in range(w1_out):
        for kh in range(CONV1_K):
            for kw in range(CONV1_K):
                wcol = oj * CONV1_S + kw
                rows = (np.arange(c_in) * CONV1_K + kh) * W + wcol
                w1m[rows, oj * c1:(oj + 1) * c1] = w1[:, :, kh, kw].T
    b1m = np.tile(b1, w1_out)                         # (256,)

    # conv2 as ONE dense map on the NHWC-flat conv1 activation.
    w2m, h2, w2_out = _conv_dense_np(w2, h1, w1_out, CONV2_S)
    b2m = np.tile(b2, h2 * w2_out)

    # conv3 as a dense map (1x1 output spatial for 36x36 inputs).
    w3m, h3, w3_out = _conv_dense_np(w3, h2, w2_out, CONV3_S)
    b3m = np.tile(b3, h3 * w3_out)

    # fc1: permute rows from PyTorch (C,H,W)-flatten order to our (H,W,C)
    # column order (identity when the conv3 output is 1x1, as here).
    fc1_w = np.asarray(params["fc1_w"], np.float32)
    c3 = w3.shape[0]                                   # 128
    fcd = fc1_w.shape[1]
    wf1 = fc1_w.reshape(c3, h3, w3_out, fcd).transpose(1, 2, 0, 3)
    wf1 = wf1.reshape(h3 * w3_out * c3, fcd)
    bf1 = np.asarray(params["fc1_b"], np.float32)
    wf2 = np.asarray(params["fc2_w"], np.float32)
    bf2 = np.asarray(params["fc2_b"], np.float32)

    # merged V|A head, zero-padded to a lane-dense multiple of 128 columns.
    v_w = np.asarray(params["V_w"], np.float32)        # (512, 1)
    a_w = np.asarray(params["A_w"], np.float32)        # (512, n_actions)
    n_actions = a_w.shape[1]
    head_n = _pad128(1 + n_actions)
    wh = np.zeros((v_w.shape[0], head_n), np.float32)
    wh[:, 0:1] = v_w
    wh[:, 1:1 + n_actions] = a_w
    bh = np.zeros((head_n,), np.float32)
    bh[0] = np.asarray(params["V_b"], np.float32)[0]
    bh[1:1 + n_actions] = np.asarray(params["A_b"], np.float32)

    # All biases packed into ONE lane-aligned (1, total) f32 blob (fewer DMAs).
    bias_vecs = [b1m, b2m, b3m, bf1, bf2, bh]
    offs, total = _bias_layout([v.shape[0] for v in bias_vecs])
    blob = np.zeros((1, total), np.float32)
    for (o, n), v in zip(offs, bias_vecs):
        blob[0, o:o + n] = v

    weights = {"w1m": w1m, "w2m": w2m, "w3m": w3m,
               "wf1": wf1, "wf2": wf2, "wh": wh}
    packed = {k: jnp.asarray(v, dtype=jnp.bfloat16) for k, v in weights.items()}
    packed["bias"] = jnp.asarray(blob)                 # biases stay f32
    return packed


# ----------------------------------------------------------------------------
# Parameter init (deterministic, synthetic, PyTorch layout) + plain-JAX ref.
# ----------------------------------------------------------------------------
def _conv_out_hw(hw, k, s):
    return (hw - k) // s + 1


def conv_output_dims(input_dims):
    _, H, W = input_dims
    h = _conv_out_hw(_conv_out_hw(_conv_out_hw(H, 8, 4), 4, 2), 3, 1)
    w = _conv_out_hw(_conv_out_hw(_conv_out_hw(W, 8, 4), 4, 2), 3, 1)
    return 128 * h * w


def init_params(key, input_dims, n_actions, fc_dims=1024):
    c_in = input_dims[0]
    conv_out = conv_output_dims(input_dims)
    ks = jax.random.split(key, 14)

    def w(k, shape, scale=0.05):
        return (scale * jax.random.normal(k, shape)).astype(jnp.float32)

    return {
        "conv1_w": w(ks[0], (32, c_in, 8, 8)),
        "conv1_b": w(ks[1], (32,)),
        "conv2_w": w(ks[2], (64, 32, 4, 4)),
        "conv2_b": w(ks[3], (64,)),
        "conv3_w": w(ks[4], (128, 64, 3, 3)),
        "conv3_b": w(ks[5], (128,)),
        # Linear weights stored as (in, out)  (equivalent to PyTorch W.T)
        "fc1_w": w(ks[6], (conv_out, fc_dims)),
        "fc1_b": w(ks[7], (fc_dims,)),
        "fc2_w": w(ks[8], (fc_dims, fc_dims // 2)),
        "fc2_b": w(ks[9], (fc_dims // 2,)),
        "V_w": w(ks[10], (512, 1)),
        "V_b": w(ks[11], (1,)),
        "A_w": w(ks[12], (512, n_actions)),
        "A_b": w(ks[13], (n_actions,)),
    }


def reference_forward(params, state):
    """Plain-JAX reference with PyTorch Conv2d/Linear semantics (for checking)."""
    hp = jax.lax.Precision.HIGHEST

    def conv(x, w, b, stride):
        y = jax.lax.conv_general_dilated(
            x, w, window_strides=(stride, stride), padding="VALID",
            dimension_numbers=("NCHW", "OIHW", "NCHW"), precision=hp)
        return jax.nn.relu(y + b[None, :, None, None])

    x = conv(state, params["conv1_w"], params["conv1_b"], 4)
    x = conv(x, params["conv2_w"], params["conv2_b"], 2)
    x = conv(x, params["conv3_w"], params["conv3_b"], 1)
    h = x.reshape(x.shape[0], -1)
    h = jax.nn.relu(jnp.dot(h, params["fc1_w"], precision=hp) + params["fc1_b"])
    h = jax.nn.relu(jnp.dot(h, params["fc2_w"], precision=hp) + params["fc2_b"])
    V = jnp.dot(h, params["V_w"], precision=hp) + params["V_b"]
    A = jnp.dot(h, params["A_w"], precision=hp) + params["A_b"]
    return V, A


if __name__ == "__main__":
    # 36x36 input -> conv1 (8,s4): 8x8 -> conv2 (4,s2): 3x3 -> conv3 (3,s1): 1x1
    batch = 2
    input_dims = (4, 36, 36)
    n_actions = 6

    key = jax.random.PRNGKey(0)
    pkey, xkey = jax.random.split(key)
    params = init_params(pkey, input_dims, n_actions, fc_dims=1024)
    state = jax.random.normal(xkey, (batch, *input_dims), dtype=jnp.float32)

    packed = pack_params(params, input_dims)     # one-time host-side repack
    fwd = jax.jit(functools.partial(dueling_dqn_forward, n_actions=n_actions))
    V, A = fwd(packed, state)
    jax.block_until_ready((V, A))

    assert V.shape == (batch, 1), V.shape
    assert A.shape == (batch, n_actions), A.shape

    # Numerical parity against a plain-JAX reference of the PyTorch module
    # (tolerance relaxed for bf16 weights with f32 accumulation).
    V_ref, A_ref = jax.jit(reference_forward)(params, state)
    jax.block_until_ready((V_ref, A_ref))
    assert np.allclose(np.asarray(V), np.asarray(V_ref), atol=1e-2, rtol=2e-2), (
        float(np.max(np.abs(np.asarray(V) - np.asarray(V_ref)))))
    assert np.allclose(np.asarray(A), np.asarray(A_ref), atol=1e-2, rtol=2e-2), (
        float(np.max(np.abs(np.asarray(A) - np.asarray(A_ref)))))

    print("KERNEL_OK")
</pallas_src>

<mosaic_0001>
module attributes {stable_mosaic.version = 11 : i64} {
  func.func @_fused_kernel(%arg0: memref<16x1152xf32, #tpu.memory_space<vmem>>, %arg1: memref<1152x256xbf16, #tpu.memory_space<vmem>>, %arg2: memref<2048x576xbf16, #tpu.memory_space<vmem>>, %arg3: memref<576x128xbf16, #tpu.memory_space<vmem>>, %arg4: memref<128x1024xbf16, #tpu.memory_space<vmem>>, %arg5: memref<1024x512xbf16, #tpu.memory_space<vmem>>, %arg6: memref<512x128xbf16, #tpu.memory_space<vmem>>, %arg7: memref<1x2688xf32, #tpu.memory_space<vmem>>, %arg8: memref<2x128xf32, #tpu.memory_space<vmem>>, %arg9: memref<16x256xf32, #tpu.memory_space<vmem>>, %arg10: memref<2x2048xf32, #tpu.memory_space<vmem>>) attributes {dimension_semantics = [], scalar_prefetch = 0 : i64, scratch_operands = 2 : i64, tpu.core_type = #tpu.core_type<tc>} {
    %c0 = arith.constant 0 : index
    %c0_0 = arith.constant 0 : index
    %0 = vector.load %arg0[%c0, %c0_0] : memref<16x1152xf32, #tpu.memory_space<vmem>>, vector<16x1152xf32>
    %1 = arith.truncf %0 : vector<16x1152xf32> to vector<16x1152xbf16>
    %c0_1 = arith.constant 0 : index
    %c0_2 = arith.constant 0 : index
    %2 = vector.load %arg1[%c0_1, %c0_2] : memref<1152x256xbf16, #tpu.memory_space<vmem>>, vector<1152x256xbf16>
    %cst = arith.constant dense<0.000000e+00> : vector<16x256xf32>
    %3 = tpu.matmul %1, %2, %cst {dimension_numbers = #tpu.dot_dimension_numbers<[1], [0], [0], [1], [0, 0, 1, 1], [], []>} : vector<16x1152xbf16>, vector<1152x256xbf16>, vector<16x256xf32> -> vector<16x256xf32>
    %c0_3 = arith.constant 0 : index
    %c0_4 = arith.constant 0 : index
    %4 = vector.load %arg7[%c0_3, %c0_4] : memref<1x2688xf32, #tpu.memory_space<vmem>>, vector<1x256xf32>
    %5 = vector.broadcast %4 : vector<1x256xf32> to vector<16x256xf32>
    %6 = arith.addf %3, %5 : vector<16x256xf32>
    %cst_5 = arith.constant 0.000000e+00 : f32
    %7 = vector.broadcast %cst_5 : f32 to vector<16x256xf32>
    %8 = arith.maximumf %6, %7 : vector<16x256xf32>
    %c0_6 = arith.constant 0 : index
    %c0_7 = arith.constant 0 : index
    %9 = vector.load %arg9[%c0_6, %c0_7] : memref<16x256xf32, #tpu.memory_space<vmem>>, vector<16x256xf32>
    tpu.vector_store %arg9[%c0_6, %c0_7], %8 {strides = array<i32>} : memref<16x256xf32, #tpu.memory_space<vmem>>, vector<16x256xf32>,
    %c0_8 = arith.constant 0 : index
    %c0_9 = arith.constant 0 : index
    %10 = vector.load %arg9[%c0_8, %c0_9] : memref<16x256xf32, #tpu.memory_space<vmem>>, vector<2x256xf32>
    %c0_10 = arith.constant 0 : index
    %c0_11 = arith.constant 0 : index
    %11 = vector.load %arg10[%c0_10, %c0_11] : memref<2x2048xf32, #tpu.memory_space<vmem>>, vector<2x256xf32>
    tpu.vector_store %arg10[%c0_10, %c0_11], %10 {strides = array<i32>} : memref<2x2048xf32, #tpu.memory_space<vmem>>, vector<2x256xf32>,
    %c2 = arith.constant 2 : index
    %c0_12 = arith.constant 0 : index
    %12 = vector.load %arg9[%c2, %c0_12] : memref<16x256xf32, #tpu.memory_space<vmem>>, vector<2x256xf32>
    %c0_13 = arith.constant 0 : index
    %c256 = arith.constant 256 : index
    %13 = vector.load %arg10[%c0_13, %c256] : memref<2x2048xf32, #tpu.memory_space<vmem>>, vector<2x256xf32>
    tpu.vector_store %arg10[%c0_13, %c256], %12 {strides = array<i32>} : memref<2x2048xf32, #tpu.memory_space<vmem>>, vector<2x256xf32>,
    %c4 = arith.constant 4 : index
    %c0_14 = arith.constant 0 : index
    %14 = vector.load %arg9[%c4, %c0_14] : memref<16x256xf32, #tpu.memory_space<vmem>>, vector<2x256xf32>
    %c0_15 = arith.constant 0 : index
    %c512 = arith.constant 512 : index
    %15 = vector.load %arg10[%c0_15, %c512] : memref<2x2048xf32, #tpu.memory_space<vmem>>, vector<2x256xf32>
    tpu.vector_store %arg10[%c0_15, %c512], %14 {strides = array<i32>} : memref<2x2048xf32, #tpu.memory_space<vmem>>, vector<2x256xf32>,
    %c6 = arith.constant 6 : index
    %c0_16 = arith.constant 0 : index
    %16 = vector.load %arg9[%c6, %c0_16] : memref<16x256xf32, #tpu.memory_space<vmem>>, vector<2x256xf32>
    %c0_17 = arith.constant 0 : index
    %c768 = arith.constant 768 : index
    %17 = vector.load %arg10[%c0_17, %c768] : memref<2x2048xf32, #tpu.memory_space<vmem>>, vector<2x256xf32>
    tpu.vector_store %arg10[%c0_17, %c768], %16 {strides = array<i32>} : memref<2x2048xf32, #tpu.memory_space<vmem>>, vector<2x256xf32>,
    %c8 = arith.constant 8 : index
    %c0_18 = arith.constant 0 : index
    %18 = vector.load %arg9[%c8, %c0_18] : memref<16x256xf32, #tpu.memory_space<vmem>>, vector<2x256xf32>
    %c0_19 = arith.constant 0 : index
    %c1024 = arith.constant 1024 : index
    %19 = vector.load %arg10[%c0_19, %c1024] : memref<2x2048xf32, #tpu.memory_space<vmem>>, vector<2x256xf32>
    tpu.vector_store %arg10[%c0_19, %c1024], %18 {strides = array<i32>} : memref<2x2048xf32, #tpu.memory_space<vmem>>, vector<2x256xf32>,
    %c10 = arith.constant 10 : index
    %c0_20 = arith.constant 0 : index
    %20 = vector.load %arg9[%c10, %c0_20] : memref<16x256xf32, #tpu.memory_space<vmem>>, vector<2x256xf32>
    %c0_21 = arith.constant 0 : index
    %c1280 = arith.constant 1280 : index
    %21 = vector.load %arg10[%c0_21, %c1280] : memref<2x2048xf32, #tpu.memory_space<vmem>>, vector<2x256xf32>
    tpu.vector_store %arg10[%c0_21, %c1280], %20 {strides = array<i32>} : memref<2x2048xf32, #tpu.memory_space<vmem>>, vector<2x256xf32>,
    %c12 = arith.constant 12 : index
    %c0_22 = arith.constant 0 : index
    %22 = vector.load %arg9[%c12, %c0_22] : memref<16x256xf32, #tpu.memory_space<vmem>>, vector<2x256xf32>
    %c0_23 = arith.constant 0 : index
    %c1536 = arith.constant 1536 : index
    %23 = vector.load %arg10[%c0_23, %c1536] : memref<2x2048xf32, #tpu.memory_space<vmem>>, vector<2x256xf32>
    tpu.vector_store %arg10[%c0_23, %c1536], %22 {strides = array<i32>} : memref<2x2048xf32, #tpu.memory_space<vmem>>, vector<2x256xf32>,
    %c14 = arith.constant 14 : index
    %c0_24 = arith.constant 0 : index
    %24 = vector.load %arg9[%c14, %c0_24] : memref<16x256xf32, #tpu.memory_space<vmem>>, vector<2x256xf32>
    %c0_25 = arith.constant 0 : index
    %c1792 = arith.constant 1792 : index
    %25 = vector.load %arg10[%c0_25, %c1792] : memref<2x2048xf32, #tpu.memory_space<vmem>>, vector<2x256xf32>
    tpu.vector_store %arg10[%c0_25, %c1792], %24 {strides = array<i32>} : memref<2x2048xf32, #tpu.memory_space<vmem>>, vector<2x256xf32>,
    %c0_26 = arith.constant 0 : index
    %c0_27 = arith.constant 0 : index
    %26 = vector.load %arg10[%c0_26, %c0_27] : memref<2x2048xf32, #tpu.memory_space<vmem>>, vector<2x2048xf32>
    %27 = arith.truncf %26 : vector<2x2048xf32> to vector<2x2048xbf16>
    %c0_28 = arith.constant 0 : index
    %c0_29 = arith.constant 0 : index
    %28 = vector.load %arg2[%c0_28, %c0_29] : memref<2048x576xbf16, #tpu.memory_space<vmem>>, vector<2048x576xbf16>
    %cst_30 = arith.constant dense<0.000000e+00> : vector<2x576xf32>
    %29 = tpu.matmul %27, %28, %cst_30 {dimension_numbers = #tpu.dot_dimension_numbers<[1], [0], [0], [1], [0, 0, 1, 1], [], []>} : vector<2x2048xbf16>, vector<2048x576xbf16>, vector<2x576xf32> -> vector<2x576xf32>
    %c0_31 = arith.constant 0 : index
    %c256_32 = arith.constant 256 : index
    %30 = vector.load %arg7[%c0_31, %c256_32] : memref<1x2688xf32, #tpu.memory_space<vmem>>, vector<1x576xf32>
    %31 = vector.broadcast %30 : vector<1x576xf32> to vector<2x576xf32>
    %32 = arith.addf %29, %31 : vector<2x576xf32>
    %cst_33 = arith.constant 0.000000e+00 : f32
    %33 = vector.broadcast %cst_33 : f32 to vector<2x576xf32>
    %34 = arith.maximumf %32, %33 : vector<2x576xf32>
    %35 = arith.truncf %34 : vector<2x576xf32> to vector<2x576xbf16>
    %c0_34 = arith.constant 0 : index
    %c0_35 = arith.constant 0 : index
    %36 = vector.load %arg3[%c0_34, %c0_35] : memref<576x128xbf16, #tpu.memory_space<vmem>>, vector<576x128xbf16>
    %cst_36 = arith.constant dense<0.000000e+00> : vector<2x128xf32>
    %37 = tpu.matmul %35, %36, %cst_36 {dimension_numbers = #tpu.dot_dimension_numbers<[1], [0], [0], [1], [0, 0, 1, 1], [], []>} : vector<2x576xbf16>, vector<576x128xbf16>, vector<2x128xf32> -> vector<2x128xf32>
    %c0_37 = arith.constant 0 : index
    %c896 = arith.constant 896 : index
    %38 = vector.load %arg7[%c0_37, %c896] : memref<1x2688xf32, #tpu.memory_space<vmem>>, vector<1x128xf32>
    %39 = vector.broadcast %38 : vector<1x128xf32> to vector<2x128xf32>
    %40 = arith.addf %37, %39 : vector<2x128xf32>
    %cst_38 = arith.constant 0.000000e+00 : f32
    %41 = vector.broadcast %cst_38 : f32 to vector<2x128xf32>
    %42 = arith.maximumf %40, %41 : vector<2x128xf32>
    %43 = arith.truncf %42 : vector<2x128xf32> to vector<2x128xbf16>
    %c0_39 = arith.constant 0 : index
    %c0_40 = arith.constant 0 : index
    %44 = vector.load %arg4[%c0_39, %c0_40] : memref<128x1024xbf16, #tpu.memory_space<vmem>>, vector<128x1024xbf16>
    %cst_41 = arith.constant dense<0.000000e+00> : vector<2x1024xf32>
    %45 = tpu.matmul %43, %44, %cst_41 {dimension_numbers = #tpu.dot_dimension_numbers<[1], [0], [0], [1], [0, 0, 1, 1], [], []>} : vector<2x128xbf16>, vector<128x1024xbf16>, vector<2x1024xf32> -> vector<2x1024xf32>
    %c0_42 = arith.constant 0 : index
    %c1024_43 = arith.constant 1024 : index
    %46 = vector.load %arg7[%c0_42, %c1024_43] : memref<1x2688xf32, #tpu.memory_space<vmem>>, vector<1x1024xf32>
    %47 = vector.broadcast %46 : vector<1x1024xf32> to vector<2x1024xf32>
    %48 = arith.addf %45, %47 : vector<2x1024xf32>
    %cst_44 = arith.constant 0.000000e+00 : f32
    %49 = vector.broadcast %cst_44 : f32 to vector<2x1024xf32>
    %50 = arith.maximumf %48, %49 : vector<2x1024xf32>
    %51 = arith.truncf %50 : vector<2x1024xf32> to vector<2x1024xbf16>
    %c0_45 = arith.constant 0 : index
    %c0_46 = arith.constant 0 : index
    %52 = vector.load %arg5[%c0_45, %c0_46] : memref<1024x512xbf16, #tpu.memory_space<vmem>>, vector<1024x512xbf16>
    %cst_47 = arith.constant dense<0.000000e+00> : vector<2x512xf32>
    %53 = tpu.matmul %51, %52, %cst_47 {dimension_numbers = #tpu.dot_dimension_numbers<[1], [0], [0], [1], [0, 0, 1, 1], [], []>} : vector<2x1024xbf16>, vector<1024x512xbf16>, vector<2x512xf32> -> vector<2x512xf32>
    %c0_48 = arith.constant 0 : index
    %c2048 = arith.constant 2048 : index
    %54 = vector.load %arg7[%c0_48, %c2048] : memref<1x2688xf32, #tpu.memory_space<vmem>>, vector<1x512xf32>
    %55 = vector.broadcast %54 : vector<1x512xf32> to vector<2x512xf32>
    %56 = arith.addf %53, %55 : vector<2x512xf32>
    %cst_49 = arith.constant 0.000000e+00 : f32
    %57 = vector.broadcast %cst_49 : f32 to vector<2x512xf32>
    %58 = arith.maximumf %56, %57 : vector<2x512xf32>
    %59 = arith.truncf %58 : vector<2x512xf32> to vector<2x512xbf16>
    %c0_50 = arith.constant 0 : index
    %c0_51 = arith.constant 0 : index
    %60 = vector.load %arg6[%c0_50, %c0_51] : memref<512x128xbf16, #tpu.memory_space<vmem>>, vector<512x128xbf16>
    %cst_52 = arith.constant dense<0.000000e+00> : vector<2x128xf32>
    %61 = tpu.matmul %59, %60, %cst_52 {dimension_numbers = #tpu.dot_dimension_numbers<[1], [0], [0], [1], [0, 0, 1, 1], [], []>} : vector<2x512xbf16>, vector<512x128xbf16>, vector<2x128xf32> -> vector<2x128xf32>
    %c0_53 = arith.constant 0 : index
    %c2560 = arith.constant 2560 : index
    %62 = vector.load %arg7[%c0_53, %c2560] : memref<1x2688xf32, #tpu.memory_space<vmem>>, vector<1x128xf32>
    %63 = vector.broadcast %62 : vector<1x128xf32> to vector<2x128xf32>
    %64 = arith.addf %61, %63 : vector<2x128xf32>
    %c0_54 = arith.constant 0 : index
    %c0_55 = arith.constant 0 : index
    %65 = vector.load %arg8[%c0_54, %c0_55] : memref<2x128xf32, #tpu.memory_space<vmem>>, vector<2x128xf32>
    tpu.vector_store %arg8[%c0_54, %c0_55], %64 {strides = array<i32>} : memref<2x128xf32, #tpu.memory_space<vmem>>, vector<2x128xf32>,
    return
  }
}

</mosaic_0001>

<llo_original>
// kernel: dueling_dqn_forward.1
$region0: #{dueling_dqn_forward.1}
  #allocation0 [shape = 'u32[]', space=smem, size = 0x4, offset = 0x4, fixed_abs, tag = 'smem constant byte address 0x4 - core index']
  #allocation1 [shape = 'u32[144,128]{1,0:T(1,128)}', space=vmem, size = 0x12000, scoped, tag = 'internal scratch']
  #allocation2 [shape = 'f32[16,256]{1,0:T(8,128)}', space=vmem, size = 0x4000, scoped, tag = 'scratch operand']
  #allocation3 [shape = 'f32[2,2048]{1,0:T(2,128)}', space=vmem, size = 0x4000, scoped, tag = 'scratch operand']
  %s0 = inlined_call_operand.vmem [shape: f32[16,1152], index: 0, kind: input, shape index: {}]
  %s1 = inlined_call_operand.vmem [shape: bf16[1152,256], index: 1, kind: input, shape index: {}]
  %s2 = inlined_call_operand.vmem [shape: bf16[2048,576], index: 2, kind: input, shape index: {}]
  %s3 = inlined_call_operand.vmem [shape: bf16[576,128], index: 3, kind: input, shape index: {}]
  %s4 = inlined_call_operand.vmem [shape: bf16[128,1024], index: 4, kind: input, shape index: {}]
  %s5 = inlined_call_operand.vmem [shape: bf16[1024,512], index: 5, kind: input, shape index: {}]
  %s6 = inlined_call_operand.vmem [shape: bf16[512,128], index: 6, kind: input, shape index: {}]
  %s7 = inlined_call_operand.vmem [shape: f32[1,2688], index: 7, kind: input, shape index: {}]
  %s8 = inlined_call_operand.vmem [shape: f32[2,128], index: 8, kind: output, shape index: {}]
  %s9 = sld [smem:[#allocation0]]
  $region42: #{dueling_dqn_forward.1} parent=0
    _
  %s11 = ssub.s32 1, %s9
  %s12 = scalar_select 0, %s11, %s9
  // Predicated region
  $region2: #{dueling_dqn_forward.1} parent=0 // pred_check
    _
  $region3: #{dueling_dqn_forward.1} parent=0 // pred_check_branch
    %14 = sbr.rel (0) target = $region5
  $region4: #{dueling_dqn_forward.1} parent=0 // pred_region
    _
  $region5: #{dueling_dqn_forward.1} parent=0 // pred_fallthru
    _
  // Predicated region
  $region6: #{dueling_dqn_forward.1} parent=0 // pred_check
    _
  $region7: #{dueling_dqn_forward.1} parent=0 // pred_check_branch
    %16 = sbr.rel (0) target = $region9
  $region8: #{dueling_dqn_forward.1} parent=0 // pred_region
    _
  $region9: #{dueling_dqn_forward.1} parent=0 // pred_fallthru
    _
  // Predicated region
  $region10: #{dueling_dqn_forward.1} parent=0 // pred_check
    _
  $region11: #{dueling_dqn_forward.1} parent=0 // pred_check_branch
    %18 = sbr.rel (0) target = $region13
  $region12: #{dueling_dqn_forward.1} parent=0 // pred_region
    _
  $region13: #{dueling_dqn_forward.1} parent=0 // pred_fallthru
    _
  // Predicated region
  $region14: #{dueling_dqn_forward.1} parent=0 // pred_check
    _
  $region15: #{dueling_dqn_forward.1} parent=0 // pred_check_branch
    %20 = sbr.rel (0) target = $region17
  $region16: #{dueling_dqn_forward.1} parent=0 // pred_region
    _
  $region17: #{dueling_dqn_forward.1} parent=0 // pred_fallthru
    _
  // Predicated region
  $region18: #{dueling_dqn_forward.1} parent=0 // pred_check
    _
  $region19: #{dueling_dqn_forward.1} parent=0 // pred_check_branch
    %22 = sbr.rel (0) target = $region21
  $region20: #{dueling_dqn_forward.1} parent=0 // pred_region
    _
  $region21: #{dueling_dqn_forward.1} parent=0 // pred_fallthru
    _
  // Predicated region
  $region22: #{dueling_dqn_forward.1} parent=0 // pred_check
    _
  $region23: #{dueling_dqn_forward.1} parent=0 // pred_check_branch
    %24 = sbr.rel (0) target = $region25
  $region24: #{dueling_dqn_forward.1} parent=0 // pred_region
    _
  $region25: #{dueling_dqn_forward.1} parent=0 // pred_fallthru
    _
  // Predicated region
  $region26: #{dueling_dqn_forward.1} parent=0 // pred_check
    _
  $region27: #{dueling_dqn_forward.1} parent=0 // pred_check_branch
    %26 = sbr.rel (0) target = $region29
  $region28: #{dueling_dqn_forward.1} parent=0 // pred_region
    _
  $region29: #{dueling_dqn_forward.1} parent=0 // pred_fallthru
    _
  // Predicated region
  $region30: #{dueling_dqn_forward.1} parent=0 // pred_check
    _
  $region31: #{dueling_dqn_forward.1} parent=0 // pred_check_branch
    %28 = sbr.rel (0) target = $region33
  $region32: #{dueling_dqn_forward.1} parent=0 // pred_region
    _
  $region33: #{dueling_dqn_forward.1} parent=0 // pred_fallthru
    _
  %v30 = vld [vmem:[%s0] sm:$0xff]
  %v31 = vld [vmem:[%s0 + $0x8] sm:$0xff]
  %v32 = vld [vmem:[%s0 + $0x10] sm:$0xff]
  %v33 = vld [vmem:[%s0 + $0x18] sm:$0xff]
  %v34 = vld [vmem:[%s0 + $0x20] sm:$0xff]
  %v35 = vld [vmem:[%s0 + $0x28] sm:$0xff]
  %v36 = vld [vmem:[%s0 + $0x30] sm:$0xff]
  %v37 = vld [vmem:[%s0 + $0x38] sm:$0xff]
  %v38 = vld [vmem:[%s0 + $0x40] sm:$0xff]
  %v39 = vld [vmem:[%s0 + $0x48] sm:$0xff]
  %v40 = vld [vmem:[%s0 + $0x50] sm:$0xff]
  %v41 = vld [vmem:[%s0 + $0x58] sm:$0xff]
  %v42 = vld [vmem:[%s0 + $0x60] sm:$0xff]
  %v43 = vld [vmem:[%s0 + $0x68] sm:$0xff]
  %v44 = vld [vmem:[%s0 + $0x70] sm:$0xff]
  %v45 = vld [vmem:[%s0 + $0x78] sm:$0xff]
  %v46 = vld [vmem:[%s0 + $0x80] sm:$0xff]
  %v47 = vld [vmem:[%s0 + $0x88] sm:$0xff]
  %v48 = vpack.c.bf16 %v39, %v30
  %v49 = vpack.c.bf16 %v40, %v31
  %v50 = vpack.c.bf16 %v41, %v32
  %v51 = vpack.c.bf16 %v42, %v33
  %v52 = vpack.c.bf16 %v43, %v34
  %v53 = vpack.c.bf16 %v44, %v35
  %v54 = vpack.c.bf16 %v45, %v36
  %v55 = vpack.c.bf16 %v46, %v37
  %v56 = vpack.c.bf16 %v47, %v38
  %v57 = vld [vmem:[%s1] sm:$0xff]
  %v58 = vld [vmem:[%s1 + $0x8] sm:$0xff]
  %v59 = vld [vmem:[%s1 + $0x10] sm:$0xff]
  %v60 = vld [vmem:[%s1 + $0x18] sm:$0xff]
  %v61 = vld [vmem:[%s1 + $0x20] sm:$0xff]
  %v62 = vld [vmem:[%s1 + $0x28] sm:$0xff]
  %v63 = vld [vmem:[%s1 + $0x30] sm:$0xff]
  %v64 = vld [vmem:[%s1 + $0x38] sm:$0xff]
  %v65 = vld [vmem:[%s1 + $0x40] sm:$0xff]
  %v66 = vld [vmem:[%s1 + $0x48] sm:$0xff]
  %v67 = vld [vmem:[%s1 + $0x50] sm:$0xff]
  %v68 = vld [vmem:[%s1 + $0x58] sm:$0xff]
  %v69 = vld [vmem:[%s1 + $0x60] sm:$0xff]
  %v70 = vld [vmem:[%s1 + $0x68] sm:$0xff]
  %v71 = vld [vmem:[%s1 + $0x70] sm:$0xff]
  %v72 = vld [vmem:[%s1 + $0x78] sm:$0xff]
  %v73 = vld [vmem:[%s1 + $0x80] sm:$0xff]
  %v74 = vld [vmem:[%s1 + $0x88] sm:$0xff]
  %v75 = vld [vmem:[%s1 + $0x90] sm:$0xff]
  %v76 = vld [vmem:[%s1 + $0x98] sm:$0xff]
  %v77 = vld [vmem:[%s1 + $0xa0] sm:$0xff]
  %v78 = vld [vmem:[%s1 + $0xa8] sm:$0xff]
  %v79 = vld [vmem:[%s1 + $0xb0] sm:$0xff]
  %v80 = vld [vmem:[%s1 + $0xb8] sm:$0xff]
  %v81 = vld [vmem:[%s1 + $0xc0] sm:$0xff]
  %v82 = vld [vmem:[%s1 + $0xc8] sm:$0xff]
  %v83 = vld [vmem:[%s1 + $0xd0] sm:$0xff]
  %v84 = vld [vmem:[%s1 + $0xd8] sm:$0xff]
  %v85 = vld [vmem:[%s1 + $0xe0] sm:$0xff]
  %v86 = vld [vmem:[%s1 + $0xe8] sm:$0xff]
  %v87 = vld [vmem:[%s1 + $0xf0] sm:$0xff]
  %v88 = vld [vmem:[%s1 + $0xf8] sm:$0xff]
  %v89 = vld [vmem:[%s1 + $0x100] sm:$0xff]
  %v90 = vld [vmem:[%s1 + $0x108] sm:$0xff]
  %v91 = vld [vmem:[%s1 + $0x110] sm:$0xff]
  %v92 = vld [vmem:[%s1 + $0x118] sm:$0xff]
  %v93 = vld [vmem:[%s1 + $0x120] sm:$0xff]
  %v94 = vld [vmem:[%s1 + $0x128] sm:$0xff]
  %v95 = vld [vmem:[%s1 + $0x130] sm:$0xff]
  %v96 = vld [vmem:[%s1 + $0x138] sm:$0xff]
  %v97 = vld [vmem:[%s1 + $0x140] sm:$0xff]
  %v98 = vld [vmem:[%s1 + $0x148] sm:$0xff]
  %v99 = vld [vmem:[%s1 + $0x150] sm:$0xff]
  %v100 = vld [vmem:[%s1 + $0x158] sm:$0xff]
  %v101 = vld [vmem:[%s1 + $0x160] sm:$0xff]
  %v102 = vld [vmem:[%s1 + $0x168] sm:$0xff]
  %v103 = vld [vmem:[%s1 + $0x170] sm:$0xff]
  %v104 = vld [vmem:[%s1 + $0x178] sm:$0xff]
  %v105 = vld [vmem:[%s1 + $0x180] sm:$0xff]
  %v106 = vld [vmem:[%s1 + $0x188] sm:$0xff]
  %v107 = vld [vmem:[%s1 + $0x190] sm:$0xff]
  %v108 = vld [vmem:[%s1 + $0x198] sm:$0xff]
  %v109 = vld [vmem:[%s1 + $0x1a0] sm:$0xff]
  %v110 = vld [vmem:[%s1 + $0x1a8] sm:$0xff]
  %v111 = vld [vmem:[%s1 + $0x1b0] sm:$0xff]
  %v112 = vld [vmem:[%s1 + $0x1b8] sm:$0xff]
  %v113 = vld [vmem:[%s1 + $0x1c0] sm:$0xff]
  %v114 = vld [vmem:[%s1 + $0x1c8] sm:$0xff]
  %v115 = vld [vmem:[%s1 + $0x1d0] sm:$0xff]
  %v116 = vld [vmem:[%s1 + $0x1d8] sm:$0xff]
  %v117 = vld [vmem:[%s1 + $0x1e0] sm:$0xff]
  %v118 = vld [vmem:[%s1 + $0x1e8] sm:$0xff]
  %v119 = vld [vmem:[%s1 + $0x1f0] sm:$0xff]
  %v120 = vld [vmem:[%s1 + $0x1f8] sm:$0xff]
  %v121 = vld [vmem:[%s1 + $0x200] sm:$0xff]
  %v122 = vld [vmem:[%s1 + $0x208] sm:$0xff]
  %v123 = vld [vmem:[%s1 + $0x210] sm:$0xff]
  %v124 = vld [vmem:[%s1 + $0x218] sm:$0xff]
  %v125 = vld [vmem:[%s1 + $0x220] sm:$0xff]
  %v126 = vld [vmem:[%s1 + $0x228] sm:$0xff]
  %v127 = vld [vmem:[%s1 + $0x230] sm:$0xff]
  %v128 = vld [vmem:[%s1 + $0x238] sm:$0xff]
  %v129 = vld [vmem:[%s1 + $0x240] sm:$0xff]
  %v130 = vld [vmem:[%s1 + $0x248] sm:$0xff]
  %v131 = vld [vmem:[%s1 + $0x250] sm:$0xff]
  %v132 = vld [vmem:[%s1 + $0x258] sm:$0xff]
  %v133 = vld [vmem:[%s1 + $0x260] sm:$0xff]
  %v134 = vld [vmem:[%s1 + $0x268] sm:$0xff]
  %v135 = vld [vmem:[%s1 + $0x270] sm:$0xff]
  %v136 = vld [vmem:[%s1 + $0x278] sm:$0xff]
  %v137 = vld [vmem:[%s1 + $0x280] sm:$0xff]
  %v138 = vld [vmem:[%s1 + $0x288] sm:$0xff]
  %v139 = vld [vmem:[%s1 + $0x290] sm:$0xff]
  %v140 = vld [vmem:[%s1 + $0x298] sm:$0xff]
  %v141 = vld [vmem:[%s1 + $0x2a0] sm:$0xff]
  %v142 = vld [vmem:[%s1 + $0x2a8] sm:$0xff]
  %v143 = vld [vmem:[%s1 + $0x2b0] sm:$0xff]
  %v144 = vld [vmem:[%s1 + $0x2b8] sm:$0xff]
  %v145 = vld [vmem:[%s1 + $0x2c0] sm:$0xff]
  %v146 = vld [vmem:[%s1 + $0x2c8] sm:$0xff]
  %v147 = vld [vmem:[%s1 + $0x2d0] sm:$0xff]
  %v148 = vld [vmem:[%s1 + $0x2d8] sm:$0xff]
  %v149 = vld [vmem:[%s1 + $0x2e0] sm:$0xff]
  %v150 = vld [vmem:[%s1 + $0x2e8] sm:$0xff]
  %v151 = vld [vmem:[%s1 + $0x2f0] sm:$0xff]
  %v152 = vld [vmem:[%s1 + $0x2f8] sm:$0xff]
  %v153 = vld [vmem:[%s1 + $0x300] sm:$0xff]
  %v154 = vld [vmem:[%s1 + $0x308] sm:$0xff]
  %v155 = vld [vmem:[%s1 + $0x310] sm:$0xff]
  %v156 = vld [vmem:[%s1 + $0x318] sm:$0xff]
  %v157 = vld [vmem:[%s1 + $0x320] sm:$0xff]
  %v158 = vld [vmem:[%s1 + $0x328] sm:$0xff]
  %v159 = vld [vmem:[%s1 + $0x330] sm:$0xff]
  %v160 = vld [vmem:[%s1 + $0x338] sm:$0xff]
  %v161 = vld [vmem:[%s1 + $0x340] sm:$0xff]
  %v162 = vld [vmem:[%s1 + $0x348] sm:$0xff]
  %v163 = vld [vmem:[%s1 + $0x350] sm:$0xff]
  %v164 = vld [vmem:[%s1 + $0x358] sm:$0xff]
  %v165 = vld [vmem:[%s1 + $0x360] sm:$0xff]
  %v166 = vld [vmem:[%s1 + $0x368] sm:$0xff]
  %v167 = vld [vmem:[%s1 + $0x370] sm:$0xff]
  %v168 = vld [vmem:[%s1 + $0x378] sm:$0xff]
  %v169 = vld [vmem:[%s1 + $0x380] sm:$0xff]
  %v170 = vld [vmem:[%s1 + $0x388] sm:$0xff]
  %v171 = vld [vmem:[%s1 + $0x390] sm:$0xff]
  %v172 = vld [vmem:[%s1 + $0x398] sm:$0xff]
  %v173 = vld [vmem:[%s1 + $0x3a0] sm:$0xff]
  %v174 = vld [vmem:[%s1 + $0x3a8] sm:$0xff]
  %v175 = vld [vmem:[%s1 + $0x3b0] sm:$0xff]
  %v176 = vld [vmem:[%s1 + $0x3b8] sm:$0xff]
  %v177 = vld [vmem:[%s1 + $0x3c0] sm:$0xff]
  %v178 = vld [vmem:[%s1 + $0x3c8] sm:$0xff]
  %v179 = vld [vmem:[%s1 + $0x3d0] sm:$0xff]
  %v180 = vld [vmem:[%s1 + $0x3d8] sm:$0xff]
  %v181 = vld [vmem:[%s1 + $0x3e0] sm:$0xff]
  %v182 = vld [vmem:[%s1 + $0x3e8] sm:$0xff]
  %v183 = vld [vmem:[%s1 + $0x3f0] sm:$0xff]
  %v184 = vld [vmem:[%s1 + $0x3f8] sm:$0xff]
  %v185 = vld [vmem:[%s1 + $0x400] sm:$0xff]
  %v186 = vld [vmem:[%s1 + $0x408] sm:$0xff]
  %v187 = vld [vmem:[%s1 + $0x410] sm:$0xff]
  %v188 = vld [vmem:[%s1 + $0x418] sm:$0xff]
  %v189 = vld [vmem:[%s1 + $0x420] sm:$0xff]
  %v190 = vld [vmem:[%s1 + $0x428] sm:$0xff]
  %v191 = vld [vmem:[%s1 + $0x430] sm:$0xff]
  %v192 = vld [vmem:[%s1 + $0x438] sm:$0xff]
  %v193 = vld [vmem:[%s1 + $0x440] sm:$0xff]
  %v194 = vld [vmem:[%s1 + $0x448] sm:$0xff]
  %v195 = vld [vmem:[%s1 + $0x450] sm:$0xff]
  %v196 = vld [vmem:[%s1 + $0x458] sm:$0xff]
  %v197 = vld [vmem:[%s1 + $0x460] sm:$0xff]
  %v198 = vld [vmem:[%s1 + $0x468] sm:$0xff]
  %v199 = vld [vmem:[%s1 + $0x470] sm:$0xff]
  %v200 = vld [vmem:[%s1 + $0x478] sm:$0xff]
  %v201 = vld [vmem:[%s7] sm:$0x3]
  %v203 = vlaneseq
  %v204 = vshrl.u32 %v203, 7
  %v205 = vsub.s32 0, %v204
  %v206 = vrot.slane %v201, %v205
  %v207 = vlaneseq
  %v208 = vshrl.u32 %v207, 7
  %v209 = vsub.s32 1, %v208
  %v210 = vrot.slane %v201, %v209
  %v357 = vunpack.c.l.b16 %v57
  %v358 = vunpack.c.h.b16 %v57
  %v359 = vunpack.c.l.b16 %v58
  %v360 = vunpack.c.h.b16 %v58
  %v361 = vunpack.c.l.b16 %v59
  %v362 = vunpack.c.h.b16 %v59
  %v363 = vunpack.c.l.b16 %v60
  %v364 = vunpack.c.h.b16 %v60
  %v365 = vunpack.c.l.b16 %v61
  %v366 = vunpack.c.h.b16 %v61
  %v367 = vunpack.c.l.b16 %v62
  %v368 = vunpack.c.h.b16 %v62
  %v369 = vunpack.c.l.b16 %v63
  %v370 = vunpack.c.h.b16 %v63
  %v371 = vunpack.c.l.b16 %v64
  %v372 = vunpack.c.h.b16 %v64
  %v373 = vunpack.c.l.b16 %v65
  %v374 = vunpack.c.h.b16 %v65
  %v375 = vunpack.c.l.b16 %v66
  %v376 = vunpack.c.h.b16 %v66
  %v377 = vunpack.c.l.b16 %v67
  %v378 = vunpack.c.h.b16 %v67
  %v379 = vunpack.c.l.b16 %v68
  %v380 = vunpack.c.h.b16 %v68
  %v381 = vunpack.c.l.b16 %v69
  %v382 = vunpack.c.h.b16 %v69
  %v383 = vunpack.c.l.b16 %v70
  %v384 = vunpack.c.h.b16 %v70
  %v385 = vunpack.c.l.b16 %v71
  %v386 = vunpack.c.h.b16 %v71
  %v387 = vunpack.c.l.b16 %v72
  %v388 = vunpack.c.h.b16 %v72
  %v389 = vunpack.c.l.b16 %v73
  %v390 = vunpack.c.h.b16 %v73
  %v391 = vunpack.c.l.b16 %v74
  %v392 = vunpack.c.h.b16 %v74
  %v393 = vunpack.c.l.b16 %v75
  %v394 = vunpack.c.h.b16 %v75
  %v395 = vunpack.c.l.b16 %v76
  %v396 = vunpack.c.h.b16 %v76
  %v397 = vunpack.c.l.b16 %v77
  %v398 = vunpack.c.h.b16 %v77
  %v399 = vunpack.c.l.b16 %v78
  %v400 = vunpack.c.h.b16 %v78
  %v401 = vunpack.c.l.b16 %v79
  %v402 = vunpack.c.h.b16 %v79
  %v403 = vunpack.c.l.b16 %v80
  %v404 = vunpack.c.h.b16 %v80
  %v405 = vunpack.c.l.b16 %v81
  %v406 = vunpack.c.h.b16 %v81
  %v407 = vunpack.c.l.b16 %v82
  %v408 = vunpack.c.h.b16 %v82
  %v409 = vunpack.c.l.b16 %v83
  %v410 = vunpack.c.h.b16 %v83
  %v411 = vunpack.c.l.b16 %v84
  %v412 = vunpack.c.h.b16 %v84
  %v413 = vunpack.c.l.b16 %v85
  %v414 = vunpack.c.h.b16 %v85
  %v415 = vunpack.c.l.b16 %v86
  %v416 = vunpack.c.h.b16 %v86
  %v417 = vunpack.c.l.b16 %v87
  %v418 = vunpack.c.h.b16 %v87
  %v419 = vunpack.c.l.b16 %v88
  %v420 = vunpack.c.h.b16 %v88
  %v421 = vunpack.c.l.b16 %v89
  %v422 = vunpack.c.h.b16 %v89
  %v423 = vunpack.c.l.b16 %v90
  %v424 = vunpack.c.h.b16 %v90
  %v425 = vunpack.c.l.b16 %v91
  %v426 = vunpack.c.h.b16 %v91
  %v427 = vunpack.c.l.b16 %v92
  %v428 = vunpack.c.h.b16 %v92
  %v429 = vunpack.c.l.b16 %v93
  %v430 = vunpack.c.h.b16 %v93
  %v431 = vunpack.c.l.b16 %v94
  %v432 = vunpack.c.h.b16 %v94
  %v433 = vunpack.c.l.b16 %v95
  %v434 = vunpack.c.h.b16 %v95
  %v435 = vunpack.c.l.b16 %v96
  %v436 = vunpack.c.h.b16 %v96
  %v437 = vunpack.c.l.b16 %v97
  %v438 = vunpack.c.h.b16 %v97
  %v439 = vunpack.c.l.b16 %v98
  %v440 = vunpack.c.h.b16 %v98
  %v441 = vunpack.c.l.b16 %v99
  %v442 = vunpack.c.h.b16 %v99
  %v443 = vunpack.c.l.b16 %v100
  %v444 = vunpack.c.h.b16 %v100
  %v445 = vunpack.c.l.b16 %v101
  %v446 = vunpack.c.h.b16 %v101
  %v447 = vunpack.c.l.b16 %v102
  %v448 = vunpack.c.h.b16 %v102
  %v449 = vunpack.c.l.b16 %v103
  %v450 = vunpack.c.h.b16 %v103
  %v451 = vunpack.c.l.b16 %v104
  %v452 = vunpack.c.h.b16 %v104
  %v453 = vunpack.c.l.b16 %v105
  %v454 = vunpack.c.h.b16 %v105
  %v455 = vunpack.c.l.b16 %v106
  %v456 = vunpack.c.h.b16 %v106
  %v457 = vunpack.c.l.b16 %v107
  %v458 = vunpack.c.h.b16 %v107
  %v459 = vunpack.c.l.b16 %v108
  %v460 = vunpack.c.h.b16 %v108
  %v461 = vunpack.c.l.b16 %v109
  %v462 = vunpack.c.h.b16 %v109
  %v463 = vunpack.c.l.b16 %v110
  %v464 = vunpack.c.h.b16 %v110
  %v465 = vunpack.c.l.b16 %v111
  %v466 = vunpack.c.h.b16 %v111
  %v467 = vunpack.c.l.b16 %v112
  %v468 = vunpack.c.h.b16 %v112
  %v469 = vunpack.c.l.b16 %v113
  %v470 = vunpack.c.h.b16 %v113
  %v471 = vunpack.c.l.b16 %v114
  %v472 = vunpack.c.h.b16 %v114
  %v473 = vunpack.c.l.b16 %v115
  %v474 = vunpack.c.h.b16 %v115
  %v475 = vunpack.c.l.b16 %v116
  %v476 = vunpack.c.h.b16 %v116
  %v477 = vunpack.c.l.b16 %v117
  %v478 = vunpack.c.h.b16 %v117
  %v479 = vunpack.c.l.b16 %v118
  %v480 = vunpack.c.h.b16 %v118
  %v481 = vunpack.c.l.b16 %v119
  %v482 = vunpack.c.h.b16 %v119
  %v483 = vunpack.c.l.b16 %v120
  %v484 = vunpack.c.h.b16 %v120
  %v485 = vunpack.c.l.b16 %v121
  %v486 = vunpack.c.h.b16 %v121
  %v487 = vunpack.c.l.b16 %v122
  %v488 = vunpack.c.h.b16 %v122
  %v489 = vunpack.c.l.b16 %v123
  %v490 = vunpack.c.h.b16 %v123
  %v491 = vunpack.c.l.b16 %v124
  %v492 = vunpack.c.h.b16 %v124
  %v493 = vunpack.c.l.b16 %v125
  %v494 = vunpack.c.h.b16 %v125
  %v495 = vunpack.c.l.b16 %v126
  %v496 = vunpack.c.h.b16 %v126
  %v497 = vunpack.c.l.b16 %v127
  %v498 = vunpack.c.h.b16 %v127
  %v499 = vunpack.c.l.b16 %v128
  %v500 = vunpack.c.h.b16 %v128
  %v501 = vunpack.c.l.b16 %v129
  %v502 = vunpack.c.h.b16 %v129
  %v503 = vunpack.c.l.b16 %v130
  %v504 = vunpack.c.h.b16 %v130
  %v505 = vunpack.c.l.b16 %v131
  %v506 = vunpack.c.h.b16 %v131
  %v507 = vunpack.c.l.b16 %v132
  %v508 = vunpack.c.h.b16 %v132
  %v509 = vunpack.c.l.b16 %v133
  %v510 = vunpack.c.h.b16 %v133
  %v511 = vunpack.c.l.b16 %v134
  %v512 = vunpack.c.h.b16 %v134
  %v513 = vunpack.c.l.b16 %v135
  %v514 = vunpack.c.h.b16 %v135
  %v515 = vunpack.c.l.b16 %v136
  %v516 = vunpack.c.h.b16 %v136
  %v517 = vunpack.c.l.b16 %v137
  %v518 = vunpack.c.h.b16 %v137
  %v519 = vunpack.c.l.b16 %v138
  %v520 = vunpack.c.h.b16 %v138
  %v521 = vunpack.c.l.b16 %v139
  %v522 = vunpack.c.h.b16 %v139
  %v523 = vunpack.c.l.b16 %v140
  %v524 = vunpack.c.h.b16 %v140
  %v525 = vunpack.c.l.b16 %v141
  %v526 = vunpack.c.h.b16 %v141
  %v527 = vunpack.c.l.b16 %v142
  %v528 = vunpack.c.h.b16 %v142
  %v529 = vunpack.c.l.b16 %v143
  %v530 = vunpack.c.h.b16 %v143
  %v531 = vunpack.c.l.b16 %v144
  %v532 = vunpack.c.h.b16 %v144
  %v533 = vunpack.c.l.b16 %v145
  %v534 = vunpack.c.h.b16 %v145
  %v535 = vunpack.c.l.b16 %v146
  %v536 = vunpack.c.h.b16 %v146
  %v537 = vunpack.c.l.b16 %v147
  %v538 = vunpack.c.h.b16 %v147
  %v539 = vunpack.c.l.b16 %v148
  %v540 = vunpack.c.h.b16 %v148
  %v541 = vunpack.c.l.b16 %v149
  %v542 = vunpack.c.h.b16 %v149
  %v543 = vunpack.c.l.b16 %v150
  %v544 = vunpack.c.h.b16 %v150
  %v545 = vunpack.c.l.b16 %v151
  %v546 = vunpack.c.h.b16 %v151
  %v547 = vunpack.c.l.b16 %v152
  %v548 = vunpack.c.h.b16 %v152
  %v549 = vunpack.c.l.b16 %v153
  %v550 = vunpack.c.h.b16 %v153
  %v551 = vunpack.c.l.b16 %v154
  %v552 = vunpack.c.h.b16 %v154
  %v553 = vunpack.c.l.b16 %v155
  %v554 = vunpack.c.h.b16 %v155
  %v555 = vunpack.c.l.b16 %v156
  %v556 = vunpack.c.h.b16 %v156
  %v557 = vunpack.c.l.b16 %v157
  %v558 = vunpack.c.h.b16 %v157
  %v559 = vunpack.c.l.b16 %v158
  %v560 = vunpack.c.h.b16 %v158
  %v561 = vunpack.c.l.b16 %v159
  %v562 = vunpack.c.h.b16 %v159
  %v563 = vunpack.c.l.b16 %v160
  %v564 = vunpack.c.h.b16 %v160
  %v565 = vunpack.c.l.b16 %v161
  %v566 = vunpack.c.h.b16 %v161
  %v567 = vunpack.c.l.b16 %v162
  %v568 = vunpack.c.h.b16 %v162
  %v569 = vunpack.c.l.b16 %v163
  %v570 = vunpack.c.h.b16 %v163
  %v571 = vunpack.c.l.b16 %v164
  %v572 = vunpack.c.h.b16 %v164
  %v573 = vunpack.c.l.b16 %v165
  %v574 = vunpack.c.h.b16 %v165
  %v575 = vunpack.c.l.b16 %v166
  %v576 = vunpack.c.h.b16 %v166
  %v577 = vunpack.c.l.b16 %v167
  %v578 = vunpack.c.h.b16 %v167
  %v579 = vunpack.c.l.b16 %v168
  %v580 = vunpack.c.h.b16 %v168
  %v581 = vunpack.c.l.b16 %v169
  %v582 = vunpack.c.h.b16 %v169
  %v583 = vunpack.c.l.b16 %v170
  %v584 = vunpack.c.h.b16 %v170
  %v585 = vunpack.c.l.b16 %v171
  %v586 = vunpack.c.h.b16 %v171
  %v587 = vunpack.c.l.b16 %v172
  %v588 = vunpack.c.h.b16 %v172
  %v589 = vunpack.c.l.b16 %v173
  %v590 = vunpack.c.h.b16 %v173
  %v591 = vunpack.c.l.b16 %v174
  %v592 = vunpack.c.h.b16 %v174
  %v593 = vunpack.c.l.b16 %v175
  %v594 = vunpack.c.h.b16 %v175
  %v595 = vunpack.c.l.b16 %v176
  %v596 = vunpack.c.h.b16 %v176
  %v597 = vunpack.c.l.b16 %v177
  %v598 = vunpack.c.h.b16 %v177
  %v599 = vunpack.c.l.b16 %v178
  %v600 = vunpack.c.h.b16 %v178
  %v601 = vunpack.c.l.b16 %v179
  %v602 = vunpack.c.h.b16 %v179
  %v603 = vunpack.c.l.b16 %v180
  %v604 = vunpack.c.h.b16 %v180
  %v605 = vunpack.c.l.b16 %v181
  %v606 = vunpack.c.h.b16 %v181
  %v607 = vunpack.c.l.b16 %v182
  %v608 = vunpack.c.h.b16 %v182
  %v609 = vunpack.c.l.b16 %v183
  %v610 = vunpack.c.h.b16 %v183
  %v611 = vunpack.c.l.b16 %v184
  %v612 = vunpack.c.h.b16 %v184
  %v613 = vunpack.c.l.b16 %v185
  %v614 = vunpack.c.h.b16 %v185
  %v615 = vunpack.c.l.b16 %v186
  %v616 = vunpack.c.h.b16 %v186
  %v617 = vunpack.c.l.b16 %v187
  %v618 = vunpack.c.h.b16 %v187
  %v619 = vunpack.c.l.b16 %v188
  %v620 = vunpack.c.h.b16 %v188
  %v621 = vunpack.c.l.b16 %v189
  %v622 = vunpack.c.h.b16 %v189
  %v623 = vunpack.c.l.b16 %v190
  %v624 = vunpack.c.h.b16 %v190
  %v625 = vunpack.c.l.b16 %v191
  %v626 = vunpack.c.h.b16 %v191
  %v627 = vunpack.c.l.b16 %v192
  %v628 = vunpack.c.h.b16 %v192
  %v629 = vunpack.c.l.b16 %v193
  %v630 = vunpack.c.h.b16 %v193
  %v631 = vunpack.c.l.b16 %v194
  %v632 = vunpack.c.h.b16 %v194
  %v633 = vunpack.c.l.b16 %v195
  %v634 = vunpack.c.h.b16 %v195
  %v635 = vunpack.c.l.b16 %v196
  %v636 = vunpack.c.h.b16 %v196
  %v637 = vunpack.c.l.b16 %v197
  %v638 = vunpack.c.h.b16 %v197
  %v639 = vunpack.c.l.b16 %v198
  %v640 = vunpack.c.h.b16 %v198
  %v641 = vunpack.c.l.b16 %v199
  %v642 = vunpack.c.h.b16 %v199
  %v643 = vunpack.c.l.b16 %v200
  %v644 = vunpack.c.h.b16 %v200
  %v645 = vpack.c.b16 %v359, %v357
  %v646 = vpack.c.b16 %v360, %v358
  %v647 = vpack.c.b16 %v363, %v361
  %v648 = vpack.c.b16 %v364, %v362
  %v649 = vpack.c.b16 %v367, %v365
  %v650 = vpack.c.b16 %v368, %v366
  %v651 = vpack.c.b16 %v371, %v369
  %v652 = vpack.c.b16 %v372, %v370
  %v653 = vpack.c.b16 %v375, %v373
  %v654 = vpack.c.b16 %v376, %v374
  %v655 = vpack.c.b16 %v379, %v377
  %v656 = vpack.c.b16 %v380, %v378
  %v657 = vpack.c.b16 %v383, %v381
  %v658 = vpack.c.b16 %v384, %v382
  %v659 = vpack.c.b16 %v387, %v385
  %v660 = vpack.c.b16 %v388, %v386
  %v661 = vpack.c.b16 %v391, %v389
  %v662 = vpack.c.b16 %v392, %v390
  %v663 = vpack.c.b16 %v395, %v393
  %v664 = vpack.c.b16 %v396, %v394
  %v665 = vpack.c.b16 %v399, %v397
  %v666 = vpack.c.b16 %v400, %v398
  %v667 = vpack.c.b16 %v403, %v401
  %v668 = vpack.c.b16 %v404, %v402
  %v669 = vpack.c.b16 %v407, %v405
  %v670 = vpack.c.b16 %v408, %v406
  %v671 = vpack.c.b16 %v411, %v409
  %v672 = vpack.c.b16 %v412, %v410
  %v673 = vpack.c.b16 %v415, %v413
  %v674 = vpack.c.b16 %v416, %v414
  %v675 = vpack.c.b16 %v419, %v417
  %v676 = vpack.c.b16 %v420, %v418
  %v677 = vpack.c.b16 %v423, %v421
  %v678 = vpack.c.b16 %v424, %v422
  %v679 = vpack.c.b16 %v427, %v425
  %v680 = vpack.c.b16 %v428, %v426
  %v681 = vpack.c.b16 %v431, %v429
  %v682 = vpack.c.b16 %v432, %v430
  %v683 = vpack.c.b16 %v435, %v433
  %v684 = vpack.c.b16 %v436, %v434
  %v685 = vpack.c.b16 %v439, %v437
  %v686 = vpack.c.b16 %v440, %v438
  %v687 = vpack.c.b16 %v443, %v441
  %v688 = vpack.c.b16 %v444, %v442
  %v689 = vpack.c.b16 %v447, %v445
  %v690 = vpack.c.b16 %v448, %v446
  %v691 = vpack.c.b16 %v451, %v449
  %v692 = vpack.c.b16 %v452, %v450
  %v693 = vpack.c.b16 %v455, %v453
  %v694 = vpack.c.b16 %v456, %v454
  %v695 = vpack.c.b16 %v459, %v457
  %v696 = vpack.c.b16 %v460, %v458
  %v697 = vpack.c.b16 %v463, %v461
  %v698 = vpack.c.b16 %v464, %v462
  %v699 = vpack.c.b16 %v467, %v465
  %v700 = vpack.c.b16 %v468, %v466
  %v701 = vpack.c.b16 %v471, %v469
  %v702 = vpack.c.b16 %v472, %v470
  %v703 = vpack.c.b16 %v475, %v473
  %v704 = vpack.c.b16 %v476, %v474
  %v705 = vpack.c.b16 %v479, %v477
  %v706 = vpack.c.b16 %v480, %v478
  %v707 = vpack.c.b16 %v483, %v481
  %v708 = vpack.c.b16 %v484, %v482
  %v709 = vpack.c.b16 %v487, %v485
  %v710 = vpack.c.b16 %v488, %v486
  %v711 = vpack.c.b16 %v491, %v489
  %v712 = vpack.c.b16 %v492, %v490
  %v713 = vpack.c.b16 %v495, %v493
  %v714 = vpack.c.b16 %v496, %v494
  %v715 = vpack.c.b16 %v499, %v497
  %v716 = vpack.c.b16 %v500, %v498
  %v717 = vpack.c.b16 %v503, %v501
  %v718 = vpack.c.b16 %v504, %v502
  %v719 = vpack.c.b16 %v507, %v505
  %v720 = vpack.c.b16 %v508, %v506
  %v721 = vpack.c.b16 %v511, %v509
  %v722 = vpack.c.b16 %v512, %v510
  %v723 = vpack.c.b16 %v515, %v513
  %v724 = vpack.c.b16 %v516, %v514
  %v725 = vpack.c.b16 %v519, %v517
  %v726 = vpack.c.b16 %v520, %v518
  %v727 = vpack.c.b16 %v523, %v521
  %v728 = vpack.c.b16 %v524, %v522
  %v729 = vpack.c.b16 %v527, %v525
  %v730 = vpack.c.b16 %v528, %v526
  %v731 = vpack.c.b16 %v531, %v529
  %v732 = vpack.c.b16 %v532, %v530
  %v733 = vpack.c.b16 %v535, %v533
  %v734 = vpack.c.b16 %v536, %v534
  %v735 = vpack.c.b16 %v539, %v537
  %v736 = vpack.c.b16 %v540, %v538
  %v737 = vpack.c.b16 %v543, %v541
  %v738 = vpack.c.b16 %v544, %v542
  %v739 = vpack.c.b16 %v547, %v545
  %v740 = vpack.c.b16 %v548, %v546
  %v741 = vpack.c.b16 %v551, %v549
  %v742 = vpack.c.b16 %v552, %v550
  %v743 = vpack.c.b16 %v555, %v553
  %v744 = vpack.c.b16 %v556, %v554
  %v745 = vpack.c.b16 %v559, %v557
  %v746 = vpack.c.b16 %v560, %v558
  %v747 = vpack.c.b16 %v563, %v561
  %v748 = vpack.c.b16 %v564, %v562
  %v749 = vpack.c.b16 %v567, %v565
  %v750 = vpack.c.b16 %v568, %v566
  %v751 = vpack.c.b16 %v571, %v569
  %v752 = vpack.c.b16 %v572, %v570
  %v753 = vpack.c.b16 %v575, %v573
  %v754 = vpack.c.b16 %v576, %v574
  %v755 = vpack.c.b16 %v579, %v577
  %v756 = vpack.c.b16 %v580, %v578
  %v757 = vpack.c.b16 %v583, %v581
  %v758 = vpack.c.b16 %v584, %v582
  %v759 = vpack.c.b16 %v587, %v585
  %v760 = vpack.c.b16 %v588, %v586
  %v761 = vpack.c.b16 %v591, %v589
  %v762 = vpack.c.b16 %v592, %v590
  %v763 = vpack.c.b16 %v595, %v593
  %v764 = vpack.c.b16 %v596, %v594
  %v765 = vpack.c.b16 %v599, %v597
  %v766 = vpack.c.b16 %v600, %v598
  %v767 = vpack.c.b16 %v603, %v601
  %v768 = vpack.c.b16 %v604, %v602
  %v769 = vpack.c.b16 %v607, %v605
  %v770 = vpack.c.b16 %v608, %v606
  %v771 = vpack.c.b16 %v611, %v609
  %v772 = vpack.c.b16 %v612, %v610
  %v773 = vpack.c.b16 %v615, %v613
  %v774 = vpack.c.b16 %v616, %v614
  %v775 = vpack.c.b16 %v619, %v617
  %v776 = vpack.c.b16 %v620, %v618
  %v777 = vpack.c.b16 %v623, %v621
  %v778 = vpack.c.b16 %v624, %v622
  %v779 = vpack.c.b16 %v627, %v625
  %v780 = vpack.c.b16 %v628, %v626
  %v781 = vpack.c.b16 %v631, %v629
  %v782 = vpack.c.b16 %v632, %v630
  %v783 = vpack.c.b16 %v635, %v633
  %v784 = vpack.c.b16 %v636, %v634
  %v785 = vpack.c.b16 %v639, %v637
  %v786 = vpack.c.b16 %v640, %v638
  %v787 = vpack.c.b16 %v643, %v641
  %v788 = vpack.c.b16 %v644, %v642
  %933 = vmatprep.subr.bf16.mxu0 %v646
  %934 = vmatpush1.bf16.msra.mxu0 %v645
  %935 = vmatprep.subr.bf16.mxu0 %v648
  %936 = vmatpush1.bf16.msra.mxu0 %v647
  %937 = vmatprep.subr.bf16.mxu0 %v650
  %938 = vmatpush1.bf16.msra.mxu0 %v649
  %939 = vmatprep.subr.bf16.mxu0 %v652
  %940 = vmatpush1.bf16.msra.mxu0 %v651
  %941 = vmatprep.subr.bf16.mxu0 %v654
  %942 = vmatpush1.bf16.msra.mxu0 %v653
  %943 = vmatprep.subr.bf16.mxu0 %v656
  %944 = vmatpush1.bf16.msra.mxu0 %v655
  %945 = vmatprep.subr.bf16.mxu0 %v658
  %946 = vmatpush1.bf16.msra.mxu0 %v657
  %947 = vmatprep.subr.bf16.mxu0 %v660
  %948 = vmatpush1.bf16.msra.mxu0 %v659
  %949 = vmatprep.subr.bf16.mxu0 %v662
  %950 = vmatpush1.bf16.msra.mxu0 %v661
  %951 = vmatprep.subr.bf16.mxu0 %v664
  %952 = vmatpush1.bf16.msra.mxu0 %v663
  %953 = vmatprep.subr.bf16.mxu0 %v666
  %954 = vmatpush1.bf16.msra.mxu0 %v665
  %955 = vmatprep.subr.bf16.mxu0 %v668
  %956 = vmatpush1.bf16.msra.mxu0 %v667
  %957 = vmatprep.subr.bf16.mxu0 %v670
  %958 = vmatpush1.bf16.msra.mxu0 %v669
  %959 = vmatprep.subr.bf16.mxu0 %v672
  %960 = vmatpush1.bf16.msra.mxu0 %v671
  %961 = vmatprep.subr.bf16.mxu0 %v674
  %962 = vmatpush1.bf16.msra.mxu0 %v673
  %963 = vmatprep.subr.bf16.mxu0 %v676
  %964 = vmatpush1.bf16.msra.mxu0 %v675
  %965 = vmatprep.mubr.bf16.mxu0 %v49
  %966 = vmatmul.mubr.bf16.gmra.mrb[0].mxu0 %v48
  %v967 = vpop.f32.mrb[0].mxu0
  %v968 = vadd.f32 %v206, %v967
  %v969 = vpop.f32.mrb[0].mxu0
  %v970 = vadd.f32 %v210, %v969
  %v971 = vpop.f32.mrb[0].mxu0
  %v972 = vadd.f32 %v206, %v971
  %v973 = vpop.f32.mrb[0].mxu0
  %v974 = vadd.f32 %v210, %v973
  %975 = vdwg.mxu0
  %976 = vmatprep.subr.bf16.mxu0 %v678
  %977 = vmatpush1.bf16.msra.mxu0 %v677
  %978 = vmatprep.subr.bf16.mxu0 %v680
  %979 = vmatpush1.bf16.msra.mxu0 %v679
  %980 = vmatprep.subr.bf16.mxu0 %v682
  %981 = vmatpush1.bf16.msra.mxu0 %v681
  %982 = vmatprep.subr.bf16.mxu0 %v684
  %983 = vmatpush1.bf16.msra.mxu0 %v683
  %984 = vmatprep.subr.bf16.mxu0 %v686
  %985 = vmatpush1.bf16.msra.mxu0 %v685
  %986 = vmatprep.subr.bf16.mxu0 %v688
  %987 = vmatpush1.bf16.msra.mxu0 %v687
  %988 = vmatprep.subr.bf16.mxu0 %v690
  %989 = vmatpush1.bf16.msra.mxu0 %v689
  %990 = vmatprep.subr.bf16.mxu0 %v692
  %991 = vmatpush1.bf16.msra.mxu0 %v691
  %992 = vmatprep.subr.bf16.mxu0 %v694
  %993 = vmatpush1.bf16.msra.mxu0 %v693
  %994 = vmatprep.subr.bf16.mxu0 %v696
  %995 = vmatpush1.bf16.msra.mxu0 %v695
  %996 = vmatprep.subr.bf16.mxu0 %v698
  %997 = vmatpush1.bf16.msra.mxu0 %v697
  %998 = vmatprep.subr.bf16.mxu0 %v700
  %999 = vmatpush1.bf16.msra.mxu0 %v699
  %1000 = vmatprep.subr.bf16.mxu0 %v702
  %1001 = vmatpush1.bf16.msra.mxu0 %v701
  %1002 = vmatprep.subr.bf16.mxu0 %v704
  %1003 = vmatpush1.bf16.msra.mxu0 %v703
  %1004 = vmatprep.subr.bf16.mxu0 %v706
  %1005 = vmatpush1.bf16.msra.mxu0 %v705
  %1006 = vmatprep.subr.bf16.mxu0 %v708
  %1007 = vmatpush1.bf16.msra.mxu0 %v707
  %1008 = vmatprep.mubr.bf16.mxu0 %v51
  %1009 = vmatmul.mubr.bf16.gmra.mrb[0].mxu0 %v50
  %v1010 = vpop.f32.mrb[0].mxu0
  %v1011 = vadd.f32 %v968, %v1010
  %v1012 = vpop.f32.mrb[0].mxu0
  %v1013 = vadd.f32 %v970, %v1012
  %v1014 = vpop.f32.mrb[0].mxu0
  %v1015 = vadd.f32 %v972, %v1014
  %v1016 = vpop.f32.mrb[0].mxu0
  %v1017 = vadd.f32 %v974, %v1016
  %1018 = vdwg.mxu0
  %1019 = vmatprep.subr.bf16.mxu0 %v710
  %1020 = vmatpush1.bf16.msra.mxu0 %v709
  %1021 = vmatprep.subr.bf16.mxu0 %v712
  %1022 = vmatpush1.bf16.msra.mxu0 %v711
  %1023 = vmatprep.subr.bf16.mxu0 %v714
  %1024 = vmatpush1.bf16.msra.mxu0 %v713
  %1025 = vmatprep.subr.bf16.mxu0 %v716
  %1026 = vmatpush1.bf16.msra.mxu0 %v715
  %1027 = vmatprep.subr.bf16.mxu0 %v718
  %1028 = vmatpush1.bf16.msra.mxu0 %v717
  %1029 = vmatprep.subr.bf16.mxu0 %v720
  %1030 = vmatpush1.bf16.msra.mxu0 %v719
  %1031 = vmatprep.subr.bf16.mxu0 %v722
  %1032 = vmatpush1.bf16.msra.mxu0 %v721
  %1033 = vmatprep.subr.bf16.mxu0 %v724
  %1034 = vmatpush1.bf16.msra.mxu0 %v723
  %1035 = vmatprep.subr.bf16.mxu0 %v726
  %1036 = vmatpush1.bf16.msra.mxu0 %v725
  %1037 = vmatprep.subr.bf16.mxu0 %v728
  %1038 = vmatpush1.bf16.msra.mxu0 %v727
  %1039 = vmatprep.subr.bf16.mxu0 %v730
  %1040 = vmatpush1.bf16.msra.mxu0 %v729
  %1041 = vmatprep.subr.bf16.mxu0 %v732
  %1042 = vmatpush1.bf16.msra.mxu0 %v731
  %1043 = vmatprep.subr.bf16.mxu0 %v734
  %1044 = vmatpush1.bf16.msra.mxu0 %v733
  %1045 = vmatprep.subr.bf16.mxu0 %v736
  %1046 = vmatpush1.bf16.msra.mxu0 %v735
  %1047 = vmatprep.subr.bf16.mxu0 %v738
  %1048 = vmatpush1.bf16.msra.mxu0 %v737
  %1049 = vmatprep.subr.bf16.mxu0 %v740
  %1050 = vmatpush1.bf16.msra.mxu0 %v739
  %1051 = vmatprep.mubr.bf16.mxu0 %v53
  %1052 = vmatmul.mubr.bf16.gmra.mrb[0].mxu0 %v52
  %v1053 = vpop.f32.mrb[0].mxu0
  %v1054 = vadd.f32 %v1011, %v1053
  %v1055 = vpop.f32.mrb[0].mxu0
  %v1056 = vadd.f32 %v1013, %v1055
  %v1057 = vpop.f32.mrb[0].mxu0
  %v1058 = vadd.f32 %v1015, %v1057
  %v1059 = vpop.f32.mrb[0].mxu0
  %v1060 = vadd.f32 %v1017, %v1059
  %1061 = vdwg.mxu0
  %1062 = vmatprep.subr.bf16.mxu0 %v742
  %1063 = vmatpush1.bf16.msra.mxu0 %v741
  %1064 = vmatprep.subr.bf16.mxu0 %v744
  %1065 = vmatpush1.bf16.msra.mxu0 %v743
  %1066 = vmatprep.subr.bf16.mxu0 %v746
  %1067 = vmatpush1.bf16.msra.mxu0 %v745
  %1068 = vmatprep.subr.bf16.mxu0 %v748
  %1069 = vmatpush1.bf16.msra.mxu0 %v747
  %1070 = vmatprep.subr.bf16.mxu0 %v750
  %1071 = vmatpush1.bf16.msra.mxu0 %v749
  %1072 = vmatprep.subr.bf16.mxu0 %v752
  %1073 = vmatpush1.bf16.msra.mxu0 %v751
  %1074 = vmatprep.subr.bf16.mxu0 %v754
  %1075 = vmatpush1.bf16.msra.mxu0 %v753
  %1076 = vmatprep.subr.bf16.mxu0 %v756
  %1077 = vmatpush1.bf16.msra.mxu0 %v755
  %1078 = vmatprep.subr.bf16.mxu0 %v758
  %1079 = vmatpush1.bf16.msra.mxu0 %v757
  %1080 = vmatprep.subr.bf16.mxu0 %v760
  %1081 = vmatpush1.bf16.msra.mxu0 %v759
  %1082 = vmatprep.subr.bf16.mxu0 %v762
  %1083 = vmatpush1.bf16.msra.mxu0 %v761
  %1084 = vmatprep.subr.bf16.mxu0 %v764
  %1085 = vmatpush1.bf16.msra.mxu0 %v763
  %1086 = vmatprep.subr.bf16.mxu0 %v766
  %1087 = vmatpush1.bf16.msra.mxu0 %v765
  %1088 = vmatprep.subr.bf16.mxu0 %v768
  %1089 = vmatpush1.bf16.msra.mxu0 %v767
  %1090 = vmatprep.subr.bf16.mxu0 %v770
  %1091 = vmatpush1.bf16.msra.mxu0 %v769
  %1092 = vmatprep.subr.bf16.mxu0 %v772
  %1093 = vmatpush1.bf16.msra.mxu0 %v771
  %1094 = vmatprep.mubr.bf16.mxu0 %v55
  %1095 = vmatmul.mubr.bf16.gmra.mrb[0].mxu0 %v54
  %v1096 = vpop.f32.mrb[0].mxu0
  %v1097 = vadd.f32 %v1054, %v1096
  %v1098 = vpop.f32.mrb[0].mxu0
  %v1099 = vadd.f32 %v1056, %v1098
  %v1100 = vpop.f32.mrb[0].mxu0
  %v1101 = vadd.f32 %v1058, %v1100
  %v1102 = vpop.f32.mrb[0].mxu0
  %v1103 = vadd.f32 %v1060, %v1102
  %1104 = vdwg.mxu0
  %1105 = vmatprep.subr.bf16.mxu0 %v774
  %1106 = vmatpush1.bf16.msra.mxu0 %v773
  %1107 = vmatprep.subr.bf16.mxu0 %v776
  %1108 = vmatpush1.bf16.msra.mxu0 %v775
  %1109 = vmatprep.subr.bf16.mxu0 %v778
  %1110 = vmatpush1.bf16.msra.mxu0 %v777
  %1111 = vmatprep.subr.bf16.mxu0 %v780
  %1112 = vmatpush1.bf16.msra.mxu0 %v779
  %1113 = vmatprep.subr.bf16.mxu0 %v782
  %1114 = vmatpush1.bf16.msra.mxu0 %v781
  %1115 = vmatprep.subr.bf16.mxu0 %v784
  %1116 = vmatpush1.bf16.msra.mxu0 %v783
  %1117 = vmatprep.subr.bf16.mxu0 %v786
  %1118 = vmatpush1.bf16.msra.mxu0 %v785
  %1119 = vmatprep.subr.bf16.mxu0 %v788
  %1120 = vmatpush1.bf16.msra.mxu0 %v787
  %1121 = vmatprep.subr.bf16.mxu0 0
  %1122 = vmatpush1.bf16.msra.mxu0 0
  %1123 = vmatprep.subr.bf16.mxu0 0
  %1124 = vmatpush1.bf16.msra.mxu0 0
  %1125 = vmatprep.subr.bf16.mxu0 0
  %1126 = vmatpush1.bf16.msra.mxu0 0
  %1127 = vmatprep.subr.bf16.mxu0 0
  %1128 = vmatpush1.bf16.msra.mxu0 0
  %1129 = vmatprep.subr.bf16.mxu0 0
  %1130 = vmatpush1.bf16.msra.mxu0 0
  %1131 = vmatprep.subr.bf16.mxu0 0
  %1132 = vmatpush1.bf16.msra.mxu0 0
  %1133 = vmatprep.subr.bf16.mxu0 0
  %1134 = vmatpush1.bf16.msra.mxu0 0
  %1135 = vmatprep.subr.bf16.mxu0 0
  %1136 = vmatpush1.bf16.msra.mxu0 0
  %1137 = vmatprep.mubr.bf16.mxu0 0
  %1138 = vmatmul.mubr.bf16.gmra.mrb[0].mxu0 %v56
  %v1139 = vpop.f32.mrb[0].mxu0
  %v1140 = vadd.f32 %v1097, %v1139
  %v1141 = vpop.f32.mrb[0].mxu0
  %v1142 = vadd.f32 %v1099, %v1141
  %v1143 = vpop.f32.mrb[0].mxu0
  %v1144 = vadd.f32 %v1101, %v1143
  %v1145 = vpop.f32.mrb[0].mxu0
  %v1146 = vadd.f32 %v1103, %v1145
  %1147 = vdwg.mxu0
  %v1148 = vmax.f32 %v1140, 0.0
  %v1149 = vmax.f32 %v1142, 0.0
  %v1150 = vmax.f32 %v1144, 0.0
  %v1151 = vmax.f32 %v1146, 0.0
  %1152 = vst [vmem:[#allocation2] sm:$0xff] %v1148
  %1153 = vst [vmem:[#allocation2 + $0x8] sm:$0xff] %v1149
  %1154 = vst [vmem:[#allocation2 + $0x10] sm:$0xff] %v1150
  %1155 = vst [vmem:[#allocation2 + $0x18] sm:$0xff] %v1151
  %v1156 = vld [vmem:[#allocation2] sm:$0x3]
  %v1157 = vld [vmem:[#allocation2 + $0x8] sm:$0x3]
  %v1160 = vcombine.low %v1156, %v1157
  %v1162 = vunpack.c.l.s4 1983009808
  %v1163 = vunpack.c.0.s8 %v1162
  %v1164 = vlaneseq
  %v1165 = vshrl.u32 %v1164, 7
  %v1166 = vsub.s32 %v1163, %v1165
  %v1167 = vrot.slane %v1160, %v1166
  %1169 = vst [vmem:[#allocation3] sm:$0xf] %v1167
  %v1170 = vld [vmem:[#allocation2] sm:$0xc]
  %v1171 = vld [vmem:[#allocation2 + $0x8] sm:$0xc]
  %v1174 = vcombine.low %v1170, %v1171
  %v1176 = vunpack.c.l.s4 1983009808
  %v1177 = vunpack.c.0.s8 %v1176
  %v1178 = vlaneseq
  %v1179 = vshrl.u32 %v1178, 7
  %v1180 = vsub.s32 %v1177, %v1179
  %v1181 = vrot.slane %v1174, %v1180
  %v1182 = vcombine.high %v1181, %v1181
  %1184 = vst [vmem:[#allocation3 + $0x4] sm:$0xf] %v1182
  %v1185 = vld [vmem:[#allocation2] sm:$0x30]
  %v1186 = vld [vmem:[#allocation2 + $0x8] sm:$0x30]
  %v1189 = vcombine.high %v1185, %v1186
  %v1191 = vunpack.c.l.s4 1983009808
  %v1192 = vunpack.c.0.s8 %v1191
  %v1193 = vlaneseq
  %v1194 = vshrl.u32 %v1193, 7
  %v1195 = vsub.s32 %v1192, %v1194
  %v1196 = vrot.slane %v1189, %v1195
  %1198 = vst [vmem:[#allocation3 + $0x8] sm:$0xf] %v1196
  %v1199 = vld [vmem:[#allocation2] sm:$0xc0]
  %v1200 = vld [vmem:[#allocation2 + $0x8] sm:$0xc0]
  %v1203 = vcombine.high %v1199, %v1200
  %v1205 = vunpack.c.l.s4 1983009808
  %v1206 = vunpack.c.0.s8 %v1205
  %v1207 = vlaneseq
  %v1208 = vshrl.u32 %v1207, 7
  %v1209 = vsub.s32 %v1206, %v1208
  %v1210 = vrot.slane %v1203, %v1209
  %v1211 = vcombine.high %v1210, %v1210
  %1213 = vst [vmem:[#allocation3 + $0xc] sm:$0xf] %v1211
  %v1214 = vld [vmem:[#allocation2 + $0x10] sm:$0x3]
  %v1215 = vld [vmem:[#allocation2 + $0x18] sm:$0x3]
  %v1218 = vcombine.low %v1214, %v1215
  %v1220 = vunpack.c.l.s4 1983009808
  %v1221 = vunpack.c.0.s8 %v1220
  %v1222 = vlaneseq
  %v1223 = vshrl.u32 %v1222, 7
  %v1224 = vsub.s32 %v1221, %v1223
  %v1225 = vrot.slane %v1218, %v1224
  %1227 = vst [vmem:[#allocation3 + $0x10] sm:$0xf] %v1225
  %v1228 = vld [vmem:[#allocation2 + $0x10] sm:$0xc]
  %v1229 = vld [vmem:[#allocation2 + $0x18] sm:$0xc]
  %v1232 = vcombine.low %v1228, %v1229
  %v1234 = vunpack.c.l.s4 1983009808
  %v1235 = vunpack.c.0.s8 %v1234
  %v1236 = vlaneseq
  %v1237 = vshrl.u32 %v1236, 7
  %v1238 = vsub.s32 %v1235, %v1237
  %v1239 = vrot.slane %v1232, %v1238
  %v1240 = vcombine.high %v1239, %v1239
  %1242 = vst [vmem:[#allocation3 + $0x14] sm:$0xf] %v1240
  %v1243 = vld [vmem:[#allocation2 + $0x10] sm:$0x30]
  %v1244 = vld [vmem:[#allocation2 + $0x18] sm:$0x30]
  %v1247 = vcombine.high %v1243, %v1244
  %v1249 = vunpack.c.l.s4 1983009808
  %v1250 = vunpack.c.0.s8 %v1249
  %v1251 = vlaneseq
  %v1252 = vshrl.u32 %v1251, 7
  %v1253 = vsub.s32 %v1250, %v1252
  %v1254 = vrot.slane %v1247, %v1253
  %1256 = vst [vmem:[#allocation3 + $0x18] sm:$0xf] %v1254
  %v1257 = vld [vmem:[#allocation2 + $0x10] sm:$0xc0]
  %v1258 = vld [vmem:[#allocation2 + $0x18] sm:$0xc0]
  %v1261 = vcombine.high %v1257, %v1258
  %v1263 = vunpack.c.l.s4 1983009808
  %v1264 = vunpack.c.0.s8 %v1263
  %v1265 = vlaneseq
  %v1266 = vshrl.u32 %v1265, 7
  %v1267 = vsub.s32 %v1264, %v1266
  %v1268 = vrot.slane %v1261, %v1267
  %v1269 = vcombine.high %v1268, %v1268
  %1271 = vst [vmem:[#allocation3 + $0x1c] sm:$0xf] %v1269
  %v1272 = vld [vmem:[#allocation3] sm:$0xff]
  %v1273 = vld [vmem:[#allocation3 + $0x8] sm:$0xff]
  %v1274 = vld [vmem:[#allocation3 + $0x10] sm:$0xff]
  %v1275 = vld [vmem:[#allocation3 + $0x18] sm:$0xff]
  %v1280 = vcombine.high %v1272, %v1272
  %v1282 = vunpack.c.l.s4 1983009808
  %v1283 = vunpack.c.0.s8 %v1282
  %v1284 = vlaneseq
  %v1285 = vshrl.u32 %v1284, 7
  %v1286 = vsub.s32 %v1283, %v1285
  %v1287 = vrot.slane %v1272, %v1286
  %v1289 = vunpack.c.l.s4 1983009808
  %v1290 = vunpack.c.0.s8 %v1289
  %v1291 = vlaneseq
  %v1292 = vshrl.u32 %v1291, 7
  %v1293 = vsub.s32 %v1290, %v1292
  %v1294 = vrot.slane %v1280, %v1293
  %v1295 = vcombine.high %v1287, %v1287
  %v1296 = vcombine.high %v1294, %v1294
  %v1297 = vcombine.high %v1273, %v1273
  %v1299 = vunpack.c.l.s4 1983009808
  %v1300 = vunpack.c.0.s8 %v1299
  %v1301 = vlaneseq
  %v1302 = vshrl.u32 %v1301, 7
  %v1303 = vsub.s32 %v1300, %v1302
  %v1304 = vrot.slane %v1273, %v1303
  %v1306 = vunpack.c.l.s4 1983009808
  %v1307 = vunpack.c.0.s8 %v1306
  %v1308 = vlaneseq
  %v1309 = vshrl.u32 %v1308, 7
  %v1310 = vsub.s32 %v1307, %v1309
  %v1311 = vrot.slane %v1297, %v1310
  %v1312 = vcombine.high %v1304, %v1304
  %v1313 = vcombine.high %v1311, %v1311
  %v1314 = vcombine.high %v1274, %v1274
  %v1316 = vunpack.c.l.s4 1983009808
  %v1317 = vunpack.c.0.s8 %v1316
  %v1318 = vlaneseq
  %v1319 = vshrl.u32 %v1318, 7
  %v1320 = vsub.s32 %v1317, %v1319
  %v1321 = vrot.slane %v1274, %v1320
  %v1323 = vunpack.c.l.s4 1983009808
  %v1324 = vunpack.c.0.s8 %v1323
  %v1325 = vlaneseq
  %v1326 = vshrl.u32 %v1325, 7
  %v1327 = vsub.s32 %v1324, %v1326
  %v1328 = vrot.slane %v1314, %v1327
  %v1329 = vcombine.high %v1321, %v1321
  %v1330 = vcombine.high %v1328, %v1328
  %v1331 = vcombine.high %v1275, %v1275
  %v1333 = vunpack.c.l.s4 1983009808
  %v1334 = vunpack.c.0.s8 %v1333
  %v1335 = vlaneseq
  %v1336 = vshrl.u32 %v1335, 7
  %v1337 = vsub.s32 %v1334, %v1336
  %v1338 = vrot.slane %v1275, %v1337
  %v1340 = vunpack.c.l.s4 1983009808
  %v1341 = vunpack.c.0.s8 %v1340
  %v1342 = vlaneseq
  %v1343 = vshrl.u32 %v1342, 7
  %v1344 = vsub.s32 %v1341, %v1343
  %v1345 = vrot.slane %v1331, %v1344
  %v1346 = vcombine.high %v1338, %v1338
  %v1347 = vcombine.high %v1345, %v1345
  %v1364 = vpack.c.bf16 %v1287, %v1287
  %v1365 = vpack.c.bf16 %v1295, %v1295
  %v1366 = vpack.c.bf16 %v1294, %v1294
  %v1367 = vpack.c.bf16 %v1296, %v1296
  %v1368 = vpack.c.bf16 %v1304, %v1304
  %v1369 = vpack.c.bf16 %v1312, %v1312
  %v1370 = vpack.c.bf16 %v1311, %v1311
  %v1371 = vpack.c.bf16 %v1313, %v1313
  %v1372 = vpack.c.bf16 %v1321, %v1321
  %v1373 = vpack.c.bf16 %v1329, %v1329
  %v1374 = vpack.c.bf16 %v1328, %v1328
  %v1375 = vpack.c.bf16 %v1330, %v1330
  %v1376 = vpack.c.bf16 %v1338, %v1338
  %v1377 = vpack.c.bf16 %v1346, %v1346
  %v1378 = vpack.c.bf16 %v1345, %v1345
  %v1379 = vpack.c.bf16 %v1347, %v1347
  %v1380 = vld [vmem:[%s2] sm:$0xff]
  %v1381 = vld [vmem:[%s2 + $0x8] sm:$0xff]
  %v1382 = vld [vmem:[%s2 + $0x10] sm:$0xf]
  %v1383 = vld [vmem:[%s2 + $0x14] sm:$0xff]
  %v1384 = vld [vmem:[%s2 + $0x1c] sm:$0xff]
  %v1385 = vld [vmem:[%s2 + $0x24] sm:$0xf]
  %v1386 = vld [vmem:[%s2 + $0x28] sm:$0xff]
  %v1387 = vld [vmem:[%s2 + $0x30] sm:$0xff]
  %v1388 = vld [vmem:[%s2 + $0x38] sm:$0xf]
  %v1389 = vld [vmem:[%s2 + $0x3c] sm:$0xff]
  %v1390 = vld [vmem:[%s2 + $0x44] sm:$0xff]
  %v1391 = vld [vmem:[%s2 + $0x4c] sm:$0xf]
  %v1392 = vld [vmem:[%s2 + $0x50] sm:$0xff]
  %v1393 = vld [vmem:[%s2 + $0x58] sm:$0xff]
  %v1394 = vld [vmem:[%s2 + $0x60] sm:$0xf]
  %v1395 = vld [vmem:[%s2 + $0x64] sm:$0xff]
  %v1396 = vld [vmem:[%s2 + $0x6c] sm:$0xff]
  %v1397 = vld [vmem:[%s2 + $0x74] sm:$0xf]
  %v1398 = vld [vmem:[%s2 + $0x78] sm:$0xff]
  %v1399 = vld [vmem:[%s2 + $0x80] sm:$0xff]
  %v1400 = vld [vmem:[%s2 + $0x88] sm:$0xf]
  %v1401 = vld [vmem:[%s2 + $0x8c] sm:$0xff]
  %v1402 = vld [vmem:[%s2 + $0x94] sm:$0xff]
  %v1403 = vld [vmem:[%s2 + $0x9c] sm:$0xf]
  %v1404 = vld [vmem:[%s2 + $0xa0] sm:$0xff]
  %v1405 = vld [vmem:[%s2 + $0xa8] sm:$0xff]
  %v1406 = vld [vmem:[%s2 + $0xb0] sm:$0xf]
  %v1407 = vld [vmem:[%s2 + $0xb4] sm:$0xff]
  %v1408 = vld [vmem:[%s2 + $0xbc] sm:$0xff]
  %v1409 = vld [vmem:[%s2 + $0xc4] sm:$0xf]
  %v1410 = vld [vmem:[%s2 + $0xc8] sm:$0xff]
  %v1411 = vld [vmem:[%s2 + $0xd0] sm:$0xff]
  %v1412 = vld [vmem:[%s2 + $0xd8] sm:$0xf]
  %v1413 = vld [vmem:[%s2 + $0xdc] sm:$0xff]
  %v1414 = vld [vmem:[%s2 + $0xe4] sm:$0xff]
  %v1415 = vld [vmem:[%s2 + $0xec] sm:$0xf]
  %v1416 = vld [vmem:[%s2 + $0xf0] sm:$0xff]
  %v1417 = vld [vmem:[%s2 + $0xf8] sm:$0xff]
  %v1418 = vld [vmem:[%s2 + $0x100] sm:$0xf]
  %v1419 = vld [vmem:[%s2 + $0x104] sm:$0xff]
  %v1420 = vld [vmem:[%s2 + $0x10c] sm:$0xff]
  %v1421 = vld [vmem:[%s2 + $0x114] sm:$0xf]
  %v1422 = vld [vmem:[%s2 + $0x118] sm:$0xff]
  %v1423 = vld [vmem:[%s2 + $0x120] sm:$0xff]
  %v1424 = vld [vmem:[%s2 + $0x128] sm:$0xf]
  %v1425 = vld [vmem:[%s2 + $0x12c] sm:$0xff]
  %v1426 = vld [vmem:[%s2 + $0x134] sm:$0xff]
  %v1427 = vld [vmem:[%s2 + $0x13c] sm:$0xf]
  %v1428 = vld [vmem:[%s2 + $0x140] sm:$0xff]
  %v1429 = vld [vmem:[%s2 + $0x148] sm:$0xff]
  %v1430 = vld [vmem:[%s2 + $0x150] sm:$0xf]
  %v1431 = vld [vmem:[%s2 + $0x154] sm:$0xff]
  %v1432 = vld [vmem:[%s2 + $0x15c] sm:$0xff]
  %v1433 = vld [vmem:[%s2 + $0x164] sm:$0xf]
  %v1434 = vld [vmem:[%s2 + $0x168] sm:$0xff]
  %v1435 = vld [vmem:[%s2 + $0x170] sm:$0xff]
  %v1436 = vld [vmem:[%s2 + $0x178] sm:$0xf]
  %v1437 = vld [vmem:[%s2 + $0x17c] sm:$0xff]
  %v1438 = vld [vmem:[%s2 + $0x184] sm:$0xff]
  %v1439 = vld [vmem:[%s2 + $0x18c] sm:$0xf]
  %v1440 = vld [vmem:[%s2 + $0x190] sm:$0xff]
  %v1441 = vld [vmem:[%s2 + $0x198] sm:$0xff]
  %v1442 = vld [vmem:[%s2 + $0x1a0] sm:$0xf]
  %v1443 = vld [vmem:[%s2 + $0x1a4] sm:$0xff]
  %v1444 = vld [vmem:[%s2 + $0x1ac] sm:$0xff]
  %v1445 = vld [vmem:[%s2 + $0x1b4] sm:$0xf]
  %v1446 = vld [vmem:[%s2 + $0x1b8] sm:$0xff]
  %v1447 = vld [vmem:[%s2 + $0x1c0] sm:$0xff]
  %v1448 = vld [vmem:[%s2 + $0x1c8] sm:$0xf]
  %v1449 = vld [vmem:[%s2 + $0x1cc] sm:$0xff]
  %v1450 = vld [vmem:[%s2 + $0x1d4] sm:$0xff]
  %v1451 = vld [vmem:[%s2 + $0x1dc] sm:$0xf]
  %v1452 = vld [vmem:[%s2 + $0x1e0] sm:$0xff]
  %v1453 = vld [vmem:[%s2 + $0x1e8] sm:$0xff]
  %v1454 = vld [vmem:[%s2 + $0x1f0] sm:$0xf]
  %v1455 = vld [vmem:[%s2 + $0x1f4] sm:$0xff]
  %v1456 = vld [vmem:[%s2 + $0x1fc] sm:$0xff]
  %v1457 = vld [vmem:[%s2 + $0x204] sm:$0xf]
  %v1458 = vld [vmem:[%s2 + $0x208] sm:$0xff]
  %v1459 = vld [vmem:[%s2 + $0x210] sm:$0xff]
  %v1460 = vld [vmem:[%s2 + $0x218] sm:$0xf]
  %v1461 = vld [vmem:[%s2 + $0x21c] sm:$0xff]
  %v1462 = vld [vmem:[%s2 + $0x224] sm:$0xff]
  %v1463 = vld [vmem:[%s2 + $0x22c] sm:$0xf]
  %v1464 = vld [vmem:[%s2 + $0x230] sm:$0xff]
  %v1465 = vld [vmem:[%s2 + $0x238] sm:$0xff]
  %v1466 = vld [vmem:[%s2 + $0x240] sm:$0xf]
  %v1467 = vld [vmem:[%s2 + $0x244] sm:$0xff]
  %v1468 = vld [vmem:[%s2 + $0x24c] sm:$0xff]
  %v1469 = vld [vmem:[%s2 + $0x254] sm:$0xf]
  %v1470 = vld [vmem:[%s2 + $0x258] sm:$0xff]
  %v1471 = vld [vmem:[%s2 + $0x260] sm:$0xff]
  %v1472 = vld [vmem:[%s2 + $0x268] sm:$0xf]
  %v1473 = vld [vmem:[%s2 + $0x26c] sm:$0xff]
  %v1474 = vld [vmem:[%s2 + $0x274] sm:$0xff]
  %v1475 = vld [vmem:[%s2 + $0x27c] sm:$0xf]
  %v1476 = vld [vmem:[%s2 + $0x280] sm:$0xff]
  %v1477 = vld [vmem:[%s2 + $0x288] sm:$0xff]
  %v1478 = vld [vmem:[%s2 + $0x290] sm:$0xf]
  %v1479 = vld [vmem:[%s2 + $0x294] sm:$0xff]
  %v1480 = vld [vmem:[%s2 + $0x29c] sm:$0xff]
  %v1481 = vld [vmem:[%s2 + $0x2a4] sm:$0xf]
  %v1482 = vld [vmem:[%s2 + $0x2a8] sm:$0xff]
  %v1483 = vld [vmem:[%s2 + $0x2b0] sm:$0xff]
  %v1484 = vld [vmem:[%s2 + $0x2b8] sm:$0xf]
  %v1485 = vld [vmem:[%s2 + $0x2bc] sm:$0xff]
  %v1486 = vld [vmem:[%s2 + $0x2c4] sm:$0xff]
  %v1487 = vld [vmem:[%s2 + $0x2cc] sm:$0xf]
  %v1488 = vld [vmem:[%s2 + $0x2d0] sm:$0xff]
  %v1489 = vld [vmem:[%s2 + $0x2d8] sm:$0xff]
  %v1490 = vld [vmem:[%s2 + $0x2e0] sm:$0xf]
  %v1491 = vld [vmem:[%s2 + $0x2e4] sm:$0xff]
  %v1492 = vld [vmem:[%s2 + $0x2ec] sm:$0xff]
  %v1493 = vld [vmem:[%s2 + $0x2f4] sm:$0xf]
  %v1494 = vld [vmem:[%s2 + $0x2f8] sm:$0xff]
  %v1495 = vld [vmem:[%s2 + $0x300] sm:$0xff]
  %v1496 = vld [vmem:[%s2 + $0x308] sm:$0xf]
  %v1497 = vld [vmem:[%s2 + $0x30c] sm:$0xff]
  %v1498 = vld [vmem:[%s2 + $0x314] sm:$0xff]
  %v1499 = vld [vmem:[%s2 + $0x31c] sm:$0xf]
  %v1500 = vld [vmem:[%s2 + $0x320] sm:$0xff]
  %v1501 = vld [vmem:[%s2 + $0x328] sm:$0xff]
  %v1502 = vld [vmem:[%s2 + $0x330] sm:$0xf]
  %v1503 = vld [vmem:[%s2 + $0x334] sm:$0xff]
  %v1504 = vld [vmem:[%s2 + $0x33c] sm:$0xff]
  %v1505 = vld [vmem:[%s2 + $0x344] sm:$0xf]
  %v1506 = vld [vmem:[%s2 + $0x348] sm:$0xff]
  %v1507 = vld [vmem:[%s2 + $0x350] sm:$0xff]
  %v1508 = vld [vmem:[%s2 + $0x358] sm:$0xf]
  %v1509 = vld [vmem:[%s2 + $0x35c] sm:$0xff]
  %v1510 = vld [vmem:[%s2 + $0x364] sm:$0xff]
  %v1511 = vld [vmem:[%s2 + $0x36c] sm:$0xf]
  %v1512 = vld [vmem:[%s2 + $0x370] sm:$0xff]
  %v1513 = vld [vmem:[%s2 + $0x378] sm:$0xff]
  %v1514 = vld [vmem:[%s2 + $0x380] sm:$0xf]
  %v1515 = vld [vmem:[%s2 + $0x384] sm:$0xff]
  %v1516 = vld [vmem:[%s2 + $0x38c] sm:$0xff]
  %v1517 = vld [vmem:[%s2 + $0x394] sm:$0xf]
  %v1518 = vld [vmem:[%s2 + $0x398] sm:$0xff]
  %v1519 = vld [vmem:[%s2 + $0x3a0] sm:$0xff]
  %v1520 = vld [vmem:[%s2 + $0x3a8] sm:$0xf]
  %v1521 = vld [vmem:[%s2 + $0x3ac] sm:$0xff]
  %v1522 = vld [vmem:[%s2 + $0x3b4] sm:$0xff]
  %v1523 = vld [vmem:[%s2 + $0x3bc] sm:$0xf]
  %v1524 = vld [vmem:[%s2 + $0x3c0] sm:$0xff]
  %v1525 = vld [vmem:[%s2 + $0x3c8] sm:$0xff]
  %v1526 = vld [vmem:[%s2 + $0x3d0] sm:$0xf]
  %v1527 = vld [vmem:[%s2 + $0x3d4] sm:$0xff]
  %v1528 = vld [vmem:[%s2 + $0x3dc] sm:$0xff]
  %v1529 = vld [vmem:[%s2 + $0x3e4] sm:$0xf]
  %v1530 = vld [vmem:[%s2 + $0x3e8] sm:$0xff]
  %v1531 = vld [vmem:[%s2 + $0x3f0] sm:$0xff]
  %v1532 = vld [vmem:[%s2 + $0x3f8] sm:$0xf]
  %v1533 = vld [vmem:[%s2 + $0x3fc] sm:$0xff]
  %v1534 = vld [vmem:[%s2 + $0x404] sm:$0xff]
  %v1535 = vld [vmem:[%s2 + $0x40c] sm:$0xf]
  %v1536 = vld [vmem:[%s2 + $0x410] sm:$0xff]
  %v1537 = vld [vmem:[%s2 + $0x418] sm:$0xff]
  %v1538 = vld [vmem:[%s2 + $0x420] sm:$0xf]
  %v1539 = vld [vmem:[%s2 + $0x424] sm:$0xff]
  %v1540 = vld [vmem:[%s2 + $0x42c] sm:$0xff]
  %v1541 = vld [vmem:[%s2 + $0x434] sm:$0xf]
  %v1542 = vld [vmem:[%s2 + $0x438] sm:$0xff]
  %v1543 = vld [vmem:[%s2 + $0x440] sm:$0xff]
  %v1544 = vld [vmem:[%s2 + $0x448] sm:$0xf]
  %v1545 = vld [vmem:[%s2 + $0x44c] sm:$0xff]
  %v1546 = vld [vmem:[%s2 + $0x454] sm:$0xff]
  %v1547 = vld [vmem:[%s2 + $0x45c] sm:$0xf]
  %v1548 = vld [vmem:[%s2 + $0x460] sm:$0xff]
  %v1549 = vld [vmem:[%s2 + $0x468] sm:$0xff]
  %v1550 = vld [vmem:[%s2 + $0x470] sm:$0xf]
  %v1551 = vld [vmem:[%s2 + $0x474] sm:$0xff]
  %v1552 = vld [vmem:[%s2 + $0x47c] sm:$0xff]
  %v1553 = vld [vmem:[%s2 + $0x484] sm:$0xf]
  %v1554 = vld [vmem:[%s2 + $0x488] sm:$0xff]
  %v1555 = vld [vmem:[%s2 + $0x490] sm:$0xff]
  %v1556 = vld [vmem:[%s2 + $0x498] sm:$0xf]
  %v1557 = vld [vmem:[%s2 + $0x49c] sm:$0xff]
  %v1558 = vld [vmem:[%s2 + $0x4a4] sm:$0xff]
  %v1559 = vld [vmem:[%s2 + $0x4ac] sm:$0xf]
  %v1560 = vld [vmem:[%s2 + $0x4b0] sm:$0xff]
  %v1561 = vld [vmem:[%s2 + $0x4b8] sm:$0xff]
  %v1562 = vld [vmem:[%s2 + $0x4c0] sm:$0xf]
  %v1563 = vld [vmem:[%s2 + $0x4c4] sm:$0xff]
  %v1564 = vld [vmem:[%s2 + $0x4cc] sm:$0xff]
  %v1565 = vld [vmem:[%s2 + $0x4d4] sm:$0xf]
  %v1566 = vld [vmem:[%s2 + $0x4d8] sm:$0xff]
  %v1567 = vld [vmem:[%s2 + $0x4e0] sm:$0xff]
  %v1568 = vld [vmem:[%s2 + $0x4e8] sm:$0xf]
  %v1569 = vld [vmem:[%s2 + $0x4ec] sm:$0xff]
  %v1570 = vld [vmem:[%s2 + $0x4f4] sm:$0xff]
  %v1571 = vld [vmem:[%s2 + $0x4fc] sm:$0xf]
  %v1572 = vld [vmem:[%s2 + $0x500] sm:$0xff]
  %v1573 = vld [vmem:[%s2 + $0x508] sm:$0xff]
  %v1574 = vld [vmem:[%s2 + $0x510] sm:$0xf]
  %v1575 = vld [vmem:[%s2 + $0x514] sm:$0xff]
  %v1576 = vld [vmem:[%s2 + $0x51c] sm:$0xff]
  %v1577 = vld [vmem:[%s2 + $0x524] sm:$0xf]
  %v1578 = vld [vmem:[%s2 + $0x528] sm:$0xff]
  %v1579 = vld [vmem:[%s2 + $0x530] sm:$0xff]
  %v1580 = vld [vmem:[%s2 + $0x538] sm:$0xf]
  %v1581 = vld [vmem:[%s2 + $0x53c] sm:$0xff]
  %v1582 = vld [vmem:[%s2 + $0x544] sm:$0xff]
  %v1583 = vld [vmem:[%s2 + $0x54c] sm:$0xf]
  %v1584 = vld [vmem:[%s2 + $0x550] sm:$0xff]
  %v1585 = vld [vmem:[%s2 + $0x558] sm:$0xff]
  %v1586 = vld [vmem:[%s2 + $0x560] sm:$0xf]
  %v1587 = vld [vmem:[%s2 + $0x564] sm:$0xff]
  %v1588 = vld [vmem:[%s2 + $0x56c] sm:$0xff]
  %v1589 = vld [vmem:[%s2 + $0x574] sm:$0xf]
  %v1590 = vld [vmem:[%s2 + $0x578] sm:$0xff]
  %v1591 = vld [vmem:[%s2 + $0x580] sm:$0xff]
  %v1592 = vld [vmem:[%s2 + $0x588] sm:$0xf]
  %v1593 = vld [vmem:[%s2 + $0x58c] sm:$0xff]
  %v1594 = vld [vmem:[%s2 + $0x594] sm:$0xff]
  %v1595 = vld [vmem:[%s2 + $0x59c] sm:$0xf]
  %v1596 = vld [vmem:[%s2 + $0x5a0] sm:$0xff]
  %v1597 = vld [vmem:[%s2 + $0x5a8] sm:$0xff]
  %v1598 = vld [vmem:[%s2 + $0x5b0] sm:$0xf]
  %v1599 = vld [vmem:[%s2 + $0x5b4] sm:$0xff]
  %v1600 = vld [vmem:[%s2 + $0x5bc] sm:$0xff]
  %v1601 = vld [vmem:[%s2 + $0x5c4] sm:$0xf]
  %v1602 = vld [vmem:[%s2 + $0x5c8] sm:$0xff]
  %v1603 = vld [vmem:[%s2 + $0x5d0] sm:$0xff]
  %v1604 = vld [vmem:[%s2 + $0x5d8] sm:$0xf]
  %v1605 = vld [vmem:[%s2 + $0x5dc] sm:$0xff]
  %v1606 = vld [vmem:[%s2 + $0x5e4] sm:$0xff]
  %v1607 = vld [vmem:[%s2 + $0x5ec] sm:$0xf]
  %v1608 = vld [vmem:[%s2 + $0x5f0] sm:$0xff]
  %v1609 = vld [vmem:[%s2 + $0x5f8] sm:$0xff]
  %v1610 = vld [vmem:[%s2 + $0x600] sm:$0xf]
  %v1611 = vld [vmem:[%s2 + $0x604] sm:$0xff]
  %v1612 = vld [vmem:[%s2 + $0x60c] sm:$0xff]
  %v1613 = vld [vmem:[%s2 + $0x614] sm:$0xf]
  %v1614 = vld [vmem:[%s2 + $0x618] sm:$0xff]
  %v1615 = vld [vmem:[%s2 + $0x620] sm:$0xff]
  %v1616 = vld [vmem:[%s2 + $0x628] sm:$0xf]
  %v1617 = vld [vmem:[%s2 + $0x62c] sm:$0xff]
  %v1618 = vld [vmem:[%s2 + $0x634] sm:$0xff]
  %v1619 = vld [vmem:[%s2 + $0x63c] sm:$0xf]
  %v1620 = vld [vmem:[%s2 + $0x640] sm:$0xff]
  %v1621 = vld [vmem:[%s2 + $0x648] sm:$0xff]
  %v1622 = vld [vmem:[%s2 + $0x650] sm:$0xf]
  %v1623 = vld [vmem:[%s2 + $0x654] sm:$0xff]
  %v1624 = vld [vmem:[%s2 + $0x65c] sm:$0xff]
  %v1625 = vld [vmem:[%s2 + $0x664] sm:$0xf]
  %v1626 = vld [vmem:[%s2 + $0x668] sm:$0xff]
  %v1627 = vld [vmem:[%s2 + $0x670] sm:$0xff]
  %v1628 = vld [vmem:[%s2 + $0x678] sm:$0xf]
  %v1629 = vld [vmem:[%s2 + $0x67c] sm:$0xff]
  %v1630 = vld [vmem:[%s2 + $0x684] sm:$0xff]
  %v1631 = vld [vmem:[%s2 + $0x68c] sm:$0xf]
  %v1632 = vld [vmem:[%s2 + $0x690] sm:$0xff]
  %v1633 = vld [vmem:[%s2 + $0x698] sm:$0xff]
  %v1634 = vld [vmem:[%s2 + $0x6a0] sm:$0xf]
  %v1635 = vld [vmem:[%s2 + $0x6a4] sm:$0xff]
  %v1636 = vld [vmem:[%s2 + $0x6ac] sm:$0xff]
  %v1637 = vld [vmem:[%s2 + $0x6b4] sm:$0xf]
  %v1638 = vld [vmem:[%s2 + $0x6b8] sm:$0xff]
  %v1639 = vld [vmem:[%s2 + $0x6c0] sm:$0xff]
  %v1640 = vld [vmem:[%s2 + $0x6c8] sm:$0xf]
  %v1641 = vld [vmem:[%s2 + $0x6cc] sm:$0xff]
  %v1642 = vld [vmem:[%s2 + $0x6d4] sm:$0xff]
  %v1643 = vld [vmem:[%s2 + $0x6dc] sm:$0xf]
  %v1644 = vld [vmem:[%s2 + $0x6e0] sm:$0xff]
  %v1645 = vld [vmem:[%s2 + $0x6e8] sm:$0xff]
  %v1646 = vld [vmem:[%s2 + $0x6f0] sm:$0xf]
  %v1647 = vld [vmem:[%s2 + $0x6f4] sm:$0xff]
  %v1648 = vld [vmem:[%s2 + $0x6fc] sm:$0xff]
  %v1649 = vld [vmem:[%s2 + $0x704] sm:$0xf]
  %v1650 = vld [vmem:[%s2 + $0x708] sm:$0xff]
  %v1651 = vld [vmem:[%s2 + $0x710] sm:$0xff]
  %v1652 = vld [vmem:[%s2 + $0x718] sm:$0xf]
  %v1653 = vld [vmem:[%s2 + $0x71c] sm:$0xff]
  %v1654 = vld [vmem:[%s2 + $0x724] sm:$0xff]
  %v1655 = vld [vmem:[%s2 + $0x72c] sm:$0xf]
  %v1656 = vld [vmem:[%s2 + $0x730] sm:$0xff]
  %v1657 = vld [vmem:[%s2 + $0x738] sm:$0xff]
  %v1658 = vld [vmem:[%s2 + $0x740] sm:$0xf]
  %v1659 = vld [vmem:[%s2 + $0x744] sm:$0xff]
  %v1660 = vld [vmem:[%s2 + $0x74c] sm:$0xff]
  %v1661 = vld [vmem:[%s2 + $0x754] sm:$0xf]
  %v1662 = vld [vmem:[%s2 + $0x758] sm:$0xff]
  %v1663 = vld [vmem:[%s2 + $0x760] sm:$0xff]
  %v1664 = vld [vmem:[%s2 + $0x768] sm:$0xf]
  %v1665 = vld [vmem:[%s2 + $0x76c] sm:$0xff]
  %v1666 = vld [vmem:[%s2 + $0x774] sm:$0xff]
  %v1667 = vld [vmem:[%s2 + $0x77c] sm:$0xf]
  %v1668 = vld [vmem:[%s2 + $0x780] sm:$0xff]
  %v1669 = vld [vmem:[%s2 + $0x788] sm:$0xff]
  %v1670 = vld [vmem:[%s2 + $0x790] sm:$0xf]
  %v1671 = vld [vmem:[%s2 + $0x794] sm:$0xff]
  %v1672 = vld [vmem:[%s2 + $0x79c] sm:$0xff]
  %v1673 = vld [vmem:[%s2 + $0x7a4] sm:$0xf]
  %v1674 = vld [vmem:[%s2 + $0x7a8] sm:$0xff]
  %v1675 = vld [vmem:[%s2 + $0x7b0] sm:$0xff]
  %v1676 = vld [vmem:[%s2 + $0x7b8] sm:$0xf]
  %v1677 = vld [vmem:[%s2 + $0x7bc] sm:$0xff]
  %v1678 = vld [vmem:[%s2 + $0x7c4] sm:$0xff]
  %v1679 = vld [vmem:[%s2 + $0x7cc] sm:$0xf]
  %v1680 = vld [vmem:[%s2 + $0x7d0] sm:$0xff]
  %v1681 = vld [vmem:[%s2 + $0x7d8] sm:$0xff]
  %v1682 = vld [vmem:[%s2 + $0x7e0] sm:$0xf]
  %v1683 = vld [vmem:[%s2 + $0x7e4] sm:$0xff]
  %v1684 = vld [vmem:[%s2 + $0x7ec] sm:$0xff]
  %v1685 = vld [vmem:[%s2 + $0x7f4] sm:$0xf]
  %v1686 = vld [vmem:[%s2 + $0x7f8] sm:$0xff]
  %v1687 = vld [vmem:[%s2 + $0x800] sm:$0xff]
  %v1688 = vld [vmem:[%s2 + $0x808] sm:$0xf]
  %v1689 = vld [vmem:[%s2 + $0x80c] sm:$0xff]
  %v1690 = vld [vmem:[%s2 + $0x814] sm:$0xff]
  %v1691 = vld [vmem:[%s2 + $0x81c] sm:$0xf]
  %v1692 = vld [vmem:[%s2 + $0x820] sm:$0xff]
  %v1693 = vld [vmem:[%s2 + $0x828] sm:$0xff]
  %v1694 = vld [vmem:[%s2 + $0x830] sm:$0xf]
  %v1695 = vld [vmem:[%s2 + $0x834] sm:$0xff]
  %v1696 = vld [vmem:[%s2 + $0x83c] sm:$0xff]
  %v1697 = vld [vmem:[%s2 + $0x844] sm:$0xf]
  %v1698 = vld [vmem:[%s2 + $0x848] sm:$0xff]
  %v1699 = vld [vmem:[%s2 + $0x850] sm:$0xff]
  %v1700 = vld [vmem:[%s2 + $0x858] sm:$0xf]
  %v1701 = vld [vmem:[%s2 + $0x85c] sm:$0xff]
  %v1702 = vld [vmem:[%s2 + $0x864] sm:$0xff]
  %v1703 = vld [vmem:[%s2 + $0x86c] sm:$0xf]
  %v1704 = vld [vmem:[%s2 + $0x870] sm:$0xff]
  %v1705 = vld [vmem:[%s2 + $0x878] sm:$0xff]
  %v1706 = vld [vmem:[%s2 + $0x880] sm:$0xf]
  %v1707 = vld [vmem:[%s2 + $0x884] sm:$0xff]
  %v1708 = vld [vmem:[%s2 + $0x88c] sm:$0xff]
  %v1709 = vld [vmem:[%s2 + $0x894] sm:$0xf]
  %v1710 = vld [vmem:[%s2 + $0x898] sm:$0xff]
  %v1711 = vld [vmem:[%s2 + $0x8a0] sm:$0xff]
  %v1712 = vld [vmem:[%s2 + $0x8a8] sm:$0xf]
  %v1713 = vld [vmem:[%s2 + $0x8ac] sm:$0xff]
  %v1714 = vld [vmem:[%s2 + $0x8b4] sm:$0xff]
  %v1715 = vld [vmem:[%s2 + $0x8bc] sm:$0xf]
  %v1716 = vld [vmem:[%s2 + $0x8c0] sm:$0xff]
  %v1717 = vld [vmem:[%s2 + $0x8c8] sm:$0xff]
  %v1718 = vld [vmem:[%s2 + $0x8d0] sm:$0xf]
  %v1719 = vld [vmem:[%s2 + $0x8d4] sm:$0xff]
  %v1720 = vld [vmem:[%s2 + $0x8dc] sm:$0xff]
  %v1721 = vld [vmem:[%s2 + $0x8e4] sm:$0xf]
  %v1722 = vld [vmem:[%s2 + $0x8e8] sm:$0xff]
  %v1723 = vld [vmem:[%s2 + $0x8f0] sm:$0xff]
  %v1724 = vld [vmem:[%s2 + $0x8f8] sm:$0xf]
  %v1725 = vld [vmem:[%s2 + $0x8fc] sm:$0xff]
  %v1726 = vld [vmem:[%s2 + $0x904] sm:$0xff]
  %v1727 = vld [vmem:[%s2 + $0x90c] sm:$0xf]
  %v1728 = vld [vmem:[%s2 + $0x910] sm:$0xff]
  %v1729 = vld [vmem:[%s2 + $0x918] sm:$0xff]
  %v1730 = vld [vmem:[%s2 + $0x920] sm:$0xf]
  %v1731 = vld [vmem:[%s2 + $0x924] sm:$0xff]
  %v1732 = vld [vmem:[%s2 + $0x92c] sm:$0xff]
  %v1733 = vld [vmem:[%s2 + $0x934] sm:$0xf]
  %v1734 = vld [vmem:[%s2 + $0x938] sm:$0xff]
  %v1735 = vld [vmem:[%s2 + $0x940] sm:$0xff]
  %v1736 = vld [vmem:[%s2 + $0x948] sm:$0xf]
  %v1737 = vld [vmem:[%s2 + $0x94c] sm:$0xff]
  %v1738 = vld [vmem:[%s2 + $0x954] sm:$0xff]
  %v1739 = vld [vmem:[%s2 + $0x95c] sm:$0xf]
  %v1740 = vld [vmem:[%s2 + $0x960] sm:$0xff]
  %v1741 = vld [vmem:[%s2 + $0x968] sm:$0xff]
  %v1742 = vld [vmem:[%s2 + $0x970] sm:$0xf]
  %v1743 = vld [vmem:[%s2 + $0x974] sm:$0xff]
  %v1744 = vld [vmem:[%s2 + $0x97c] sm:$0xff]
  %v1745 = vld [vmem:[%s2 + $0x984] sm:$0xf]
  %v1746 = vld [vmem:[%s2 + $0x988] sm:$0xff]
  %v1747 = vld [vmem:[%s2 + $0x990] sm:$0xff]
  %v1748 = vld [vmem:[%s2 + $0x998] sm:$0xf]
  %v1749 = vld [vmem:[%s2 + $0x99c] sm:$0xff]
  %v1750 = vld [vmem:[%s2 + $0x9a4] sm:$0xff]
  %v1751 = vld [vmem:[%s2 + $0x9ac] sm:$0xf]
  %v1752 = vld [vmem:[%s2 + $0x9b0] sm:$0xff]
  %v1753 = vld [vmem:[%s2 + $0x9b8] sm:$0xff]
  %v1754 = vld [vmem:[%s2 + $0x9c0] sm:$0xf]
  %v1755 = vld [vmem:[%s2 + $0x9c4] sm:$0xff]
  %v1756 = vld [vmem:[%s2 + $0x9cc] sm:$0xff]
  %v1757 = vld [vmem:[%s2 + $0x9d4] sm:$0xf]
  %v1758 = vld [vmem:[%s2 + $0x9d8] sm:$0xff]
  %v1759 = vld [vmem:[%s2 + $0x9e0] sm:$0xff]
  %v1760 = vld [vmem:[%s2 + $0x9e8] sm:$0xf]
  %v1761 = vld [vmem:[%s2 + $0x9ec] sm:$0xff]
  %v1762 = vld [vmem:[%s2 + $0x9f4] sm:$0xff]
  %v1763 = vld [vmem:[%s2 + $0x9fc] sm:$0xf]
  %v1764 = vld [vmem:[%s2 + $0xa00] sm:$0xff]
  %v1765 = vld [vmem:[%s2 + $0xa08] sm:$0xff]
  %v1766 = vld [vmem:[%s2 + $0xa10] sm:$0xf]
  %v1767 = vld [vmem:[%s2 + $0xa14] sm:$0xff]
  %v1768 = vld [vmem:[%s2 + $0xa1c] sm:$0xff]
  %v1769 = vld [vmem:[%s2 + $0xa24] sm:$0xf]
  %v1770 = vld [vmem:[%s2 + $0xa28] sm:$0xff]
  %v1771 = vld [vmem:[%s2 + $0xa30] sm:$0xff]
  %v1772 = vld [vmem:[%s2 + $0xa38] sm:$0xf]
  %v1773 = vld [vmem:[%s2 + $0xa3c] sm:$0xff]
  %v1774 = vld [vmem:[%s2 + $0xa44] sm:$0xff]
  %v1775 = vld [vmem:[%s2 + $0xa4c] sm:$0xf]
  %v1776 = vld [vmem:[%s2 + $0xa50] sm:$0xff]
  %v1777 = vld [vmem:[%s2 + $0xa58] sm:$0xff]
  %v1778 = vld [vmem:[%s2 + $0xa60] sm:$0xf]
  %v1779 = vld [vmem:[%s2 + $0xa64] sm:$0xff]
  %v1780 = vld [vmem:[%s2 + $0xa6c] sm:$0xff]
  %v1781 = vld [vmem:[%s2 + $0xa74] sm:$0xf]
  %v1782 = vld [vmem:[%s2 + $0xa78] sm:$0xff]
  %v1783 = vld [vmem:[%s2 + $0xa80] sm:$0xff]
  %v1784 = vld [vmem:[%s2 + $0xa88] sm:$0xf]
  %v1785 = vld [vmem:[%s2 + $0xa8c] sm:$0xff]
  %v1786 = vld [vmem:[%s2 + $0xa94] sm:$0xff]
  %v1787 = vld [vmem:[%s2 + $0xa9c] sm:$0xf]
  %v1788 = vld [vmem:[%s2 + $0xaa0] sm:$0xff]
  %v1789 = vld [vmem:[%s2 + $0xaa8] sm:$0xff]
  %v1790 = vld [vmem:[%s2 + $0xab0] sm:$0xf]
  %v1791 = vld [vmem:[%s2 + $0xab4] sm:$0xff]
  %v1792 = vld [vmem:[%s2 + $0xabc] sm:$0xff]
  %v1793 = vld [vmem:[%s2 + $0xac4] sm:$0xf]
  %v1794 = vld [vmem:[%s2 + $0xac8] sm:$0xff]
  %v1795 = vld [vmem:[%s2 + $0xad0] sm:$0xff]
  %v1796 = vld [vmem:[%s2 + $0xad8] sm:$0xf]
  %v1797 = vld [vmem:[%s2 + $0xadc] sm:$0xff]
  %v1798 = vld [vmem:[%s2 + $0xae4] sm:$0xff]
  %v1799 = vld [vmem:[%s2 + $0xaec] sm:$0xf]
  %v1800 = vld [vmem:[%s2 + $0xaf0] sm:$0xff]
  %v1801 = vld [vmem:[%s2 + $0xaf8] sm:$0xff]
  %v1802 = vld [vmem:[%s2 + $0xb00] sm:$0xf]
  %v1803 = vld [vmem:[%s2 + $0xb04] sm:$0xff]
  %v1804 = vld [vmem:[%s2 + $0xb0c] sm:$0xff]
  %v1805 = vld [vmem:[%s2 + $0xb14] sm:$0xf]
  %v1806 = vld [vmem:[%s2 + $0xb18] sm:$0xff]
  %v1807 = vld [vmem:[%s2 + $0xb20] sm:$0xff]
  %v1808 = vld [vmem:[%s2 + $0xb28] sm:$0xf]
  %v1809 = vld [vmem:[%s2 + $0xb2c] sm:$0xff]
  %v1810 = vld [vmem:[%s2 + $0xb34] sm:$0xff]
  %v1811 = vld [vmem:[%s2 + $0xb3c] sm:$0xf]
  %v1812 = vld [vmem:[%s2 + $0xb40] sm:$0xff]
  %v1813 = vld [vmem:[%s2 + $0xb48] sm:$0xff]
  %v1814 = vld [vmem:[%s2 + $0xb50] sm:$0xf]
  %v1815 = vld [vmem:[%s2 + $0xb54] sm:$0xff]
  %v1816 = vld [vmem:[%s2 + $0xb5c] sm:$0xff]
  %v1817 = vld [vmem:[%s2 + $0xb64] sm:$0xf]
  %v1818 = vld [vmem:[%s2 + $0xb68] sm:$0xff]
  %v1819 = vld [vmem:[%s2 + $0xb70] sm:$0xff]
  %v1820 = vld [vmem:[%s2 + $0xb78] sm:$0xf]
  %v1821 = vld [vmem:[%s2 + $0xb7c] sm:$0xff]
  %v1822 = vld [vmem:[%s2 + $0xb84] sm:$0xff]
  %v1823 = vld [vmem:[%s2 + $0xb8c] sm:$0xf]
  %v1824 = vld [vmem:[%s2 + $0xb90] sm:$0xff]
  %v1825 = vld [vmem:[%s2 + $0xb98] sm:$0xff]
  %v1826 = vld [vmem:[%s2 + $0xba0] sm:$0xf]
  %v1827 = vld [vmem:[%s2 + $0xba4] sm:$0xff]
  %v1828 = vld [vmem:[%s2 + $0xbac] sm:$0xff]
  %v1829 = vld [vmem:[%s2 + $0xbb4] sm:$0xf]
  %v1830 = vld [vmem:[%s2 + $0xbb8] sm:$0xff]
  %v1831 = vld [vmem:[%s2 + $0xbc0] sm:$0xff]
  %v1832 = vld [vmem:[%s2 + $0xbc8] sm:$0xf]
  %v1833 = vld [vmem:[%s2 + $0xbcc] sm:$0xff]
  %v1834 = vld [vmem:[%s2 + $0xbd4] sm:$0xff]
  %v1835 = vld [vmem:[%s2 + $0xbdc] sm:$0xf]
  %v1836 = vld [vmem:[%s2 + $0xbe0] sm:$0xff]
  %v1837 = vld [vmem:[%s2 + $0xbe8] sm:$0xff]
  %v1838 = vld [vmem:[%s2 + $0xbf0] sm:$0xf]
  %v1839 = vld [vmem:[%s2 + $0xbf4] sm:$0xff]
  %v1840 = vld [vmem:[%s2 + $0xbfc] sm:$0xff]
  %v1841 = vld [vmem:[%s2 + $0xc04] sm:$0xf]
  %v1842 = vld [vmem:[%s2 + $0xc08] sm:$0xff]
  %v1843 = vld [vmem:[%s2 + $0xc10] sm:$0xff]
  %v1844 = vld [vmem:[%s2 + $0xc18] sm:$0xf]
  %v1845 = vld [vmem:[%s2 + $0xc1c] sm:$0xff]
  %v1846 = vld [vmem:[%s2 + $0xc24] sm:$0xff]
  %v1847 = vld [vmem:[%s2 + $0xc2c] sm:$0xf]
  %v1848 = vld [vmem:[%s2 + $0xc30] sm:$0xff]
  %v1849 = vld [vmem:[%s2 + $0xc38] sm:$0xff]
  %v1850 = vld [vmem:[%s2 + $0xc40] sm:$0xf]
  %v1851 = vld [vmem:[%s2 + $0xc44] sm:$0xff]
  %v1852 = vld [vmem:[%s2 + $0xc4c] sm:$0xff]
  %v1853 = vld [vmem:[%s2 + $0xc54] sm:$0xf]
  %v1854 = vld [vmem:[%s2 + $0xc58] sm:$0xff]
  %v1855 = vld [vmem:[%s2 + $0xc60] sm:$0xff]
  %v1856 = vld [vmem:[%s2 + $0xc68] sm:$0xf]
  %v1857 = vld [vmem:[%s2 + $0xc6c] sm:$0xff]
  %v1858 = vld [vmem:[%s2 + $0xc74] sm:$0xff]
  %v1859 = vld [vmem:[%s2 + $0xc7c] sm:$0xf]
  %v1860 = vld [vmem:[%s2 + $0xc80] sm:$0xff]
  %v1861 = vld [vmem:[%s2 + $0xc88] sm:$0xff]
  %v1862 = vld [vmem:[%s2 + $0xc90] sm:$0xf]
  %v1863 = vld [vmem:[%s2 + $0xc94] sm:$0xff]
  %v1864 = vld [vmem:[%s2 + $0xc9c] sm:$0xff]
  %v1865 = vld [vmem:[%s2 + $0xca4] sm:$0xf]
  %v1866 = vld [vmem:[%s2 + $0xca8] sm:$0xff]
  %v1867 = vld [vmem:[%s2 + $0xcb0] sm:$0xff]
  %v1868 = vld [vmem:[%s2 + $0xcb8] sm:$0xf]
  %v1869 = vld [vmem:[%s2 + $0xcbc] sm:$0xff]
  %v1870 = vld [vmem:[%s2 + $0xcc4] sm:$0xff]
  %v1871 = vld [vmem:[%s2 + $0xccc] sm:$0xf]
  %v1872 = vld [vmem:[%s2 + $0xcd0] sm:$0xff]
  %v1873 = vld [vmem:[%s2 + $0xcd8] sm:$0xff]
  %v1874 = vld [vmem:[%s2 + $0xce0] sm:$0xf]
  %v1875 = vld [vmem:[%s2 + $0xce4] sm:$0xff]
  %v1876 = vld [vmem:[%s2 + $0xcec] sm:$0xff]
  %v1877 = vld [vmem:[%s2 + $0xcf4] sm:$0xf]
  %v1878 = vld [vmem:[%s2 + $0xcf8] sm:$0xff]
  %v1879 = vld [vmem:[%s2 + $0xd00] sm:$0xff]
  %v1880 = vld [vmem:[%s2 + $0xd08] sm:$0xf]
  %v1881 = vld [vmem:[%s2 + $0xd0c] sm:$0xff]
  %v1882 = vld [vmem:[%s2 + $0xd14] sm:$0xff]
  %v1883 = vld [vmem:[%s2 + $0xd1c] sm:$0xf]
  %v1884 = vld [vmem:[%s2 + $0xd20] sm:$0xff]
  %v1885 = vld [vmem:[%s2 + $0xd28] sm:$0xff]
  %v1886 = vld [vmem:[%s2 + $0xd30] sm:$0xf]
  %v1887 = vld [vmem:[%s2 + $0xd34] sm:$0xff]
  %v1888 = vld [vmem:[%s2 + $0xd3c] sm:$0xff]
  %v1889 = vld [vmem:[%s2 + $0xd44] sm:$0xf]
  %v1890 = vld [vmem:[%s2 + $0xd48] sm:$0xff]
  %v1891 = vld [vmem:[%s2 + $0xd50] sm:$0xff]
  %v1892 = vld [vmem:[%s2 + $0xd58] sm:$0xf]
  %v1893 = vld [vmem:[%s2 + $0xd5c] sm:$0xff]
  %v1894 = vld [vmem:[%s2 + $0xd64] sm:$0xff]
  %v1895 = vld [vmem:[%s2 + $0xd6c] sm:$0xf]
  %v1896 = vld [vmem:[%s2 + $0xd70] sm:$0xff]
  %v1897 = vld [vmem:[%s2 + $0xd78] sm:$0xff]
  %v1898 = vld [vmem:[%s2 + $0xd80] sm:$0xf]
  %v1899 = vld [vmem:[%s2 + $0xd84] sm:$0xff]
  %v1900 = vld [vmem:[%s2 + $0xd8c] sm:$0xff]
  %v1901 = vld [vmem:[%s2 + $0xd94] sm:$0xf]
  %v1902 = vld [vmem:[%s2 + $0xd98] sm:$0xff]
  %v1903 = vld [vmem:[%s2 + $0xda0] sm:$0xff]
  %v1904 = vld [vmem:[%s2 + $0xda8] sm:$0xf]
  %v1905 = vld [vmem:[%s2 + $0xdac] sm:$0xff]
  %v1906 = vld [vmem:[%s2 + $0xdb4] sm:$0xff]
  %v1907 = vld [vmem:[%s2 + $0xdbc] sm:$0xf]
  %v1908 = vld [vmem:[%s2 + $0xdc0] sm:$0xff]
  %v1909 = vld [vmem:[%s2 + $0xdc8] sm:$0xff]
  %v1910 = vld [vmem:[%s2 + $0xdd0] sm:$0xf]
  %v1911 = vld [vmem:[%s2 + $0xdd4] sm:$0xff]
  %v1912 = vld [vmem:[%s2 + $0xddc] sm:$0xff]
  %v1913 = vld [vmem:[%s2 + $0xde4] sm:$0xf]
  %v1914 = vld [vmem:[%s2 + $0xde8] sm:$0xff]
  %v1915 = vld [vmem:[%s2 + $0xdf0] sm:$0xff]
  %v1916 = vld [vmem:[%s2 + $0xdf8] sm:$0xf]
  %v1917 = vld [vmem:[%s2 + $0xdfc] sm:$0xff]
  %v1918 = vld [vmem:[%s2 + $0xe04] sm:$0xff]
  %v1919 = vld [vmem:[%s2 + $0xe0c] sm:$0xf]
  %v1920 = vld [vmem:[%s2 + $0xe10] sm:$0xff]
  %v1921 = vld [vmem:[%s2 + $0xe18] sm:$0xff]
  %v1922 = vld [vmem:[%s2 + $0xe20] sm:$0xf]
  %v1923 = vld [vmem:[%s2 + $0xe24] sm:$0xff]
  %v1924 = vld [vmem:[%s2 + $0xe2c] sm:$0xff]
  %v1925 = vld [vmem:[%s2 + $0xe34] sm:$0xf]
  %v1926 = vld [vmem:[%s2 + $0xe38] sm:$0xff]
  %v1927 = vld [vmem:[%s2 + $0xe40] sm:$0xff]
  %v1928 = vld [vmem:[%s2 + $0xe48] sm:$0xf]
  %v1929 = vld [vmem:[%s2 + $0xe4c] sm:$0xff]
  %v1930 = vld [vmem:[%s2 + $0xe54] sm:$0xff]
  %v1931 = vld [vmem:[%s2 + $0xe5c] sm:$0xf]
  %v1932 = vld [vmem:[%s2 + $0xe60] sm:$0xff]
  %v1933 = vld [vmem:[%s2 + $0xe68] sm:$0xff]
  %v1934 = vld [vmem:[%s2 + $0xe70] sm:$0xf]
  %v1935 = vld [vmem:[%s2 + $0xe74] sm:$0xff]
  %v1936 = vld [vmem:[%s2 + $0xe7c] sm:$0xff]
  %v1937 = vld [vmem:[%s2 + $0xe84] sm:$0xf]
  %v1938 = vld [vmem:[%s2 + $0xe88] sm:$0xff]
  %v1939 = vld [vmem:[%s2 + $0xe90] sm:$0xff]
  %v1940 = vld [vmem:[%s2 + $0xe98] sm:$0xf]
  %v1941 = vld [vmem:[%s2 + $0xe9c] sm:$0xff]
  %v1942 = vld [vmem:[%s2 + $0xea4] sm:$0xff]
  %v1943 = vld [vmem:[%s2 + $0xeac] sm:$0xf]
  %v1944 = vld [vmem:[%s2 + $0xeb0] sm:$0xff]
  %v1945 = vld [vmem:[%s2 + $0xeb8] sm:$0xff]
  %v1946 = vld [vmem:[%s2 + $0xec0] sm:$0xf]
  %v1947 = vld [vmem:[%s2 + $0xec4] sm:$0xff]
  %v1948 = vld [vmem:[%s2 + $0xecc] sm:$0xff]
  %v1949 = vld [vmem:[%s2 + $0xed4] sm:$0xf]
  %v1950 = vld [vmem:[%s2 + $0xed8] sm:$0xff]
  %v1951 = vld [vmem:[%s2 + $0xee0] sm:$0xff]
  %v1952 = vld [vmem:[%s2 + $0xee8] sm:$0xf]
  %v1953 = vld [vmem:[%s2 + $0xeec] sm:$0xff]
  %v1954 = vld [vmem:[%s2 + $0xef4] sm:$0xff]
  %v1955 = vld [vmem:[%s2 + $0xefc] sm:$0xf]
  %v1956 = vld [vmem:[%s2 + $0xf00] sm:$0xff]
  %v1957 = vld [vmem:[%s2 + $0xf08] sm:$0xff]
  %v1958 = vld [vmem:[%s2 + $0xf10] sm:$0xf]
  %v1959 = vld [vmem:[%s2 + $0xf14] sm:$0xff]
  %v1960 = vld [vmem:[%s2 + $0xf1c] sm:$0xff]
  %v1961 = vld [vmem:[%s2 + $0xf24] sm:$0xf]
  %v1962 = vld [vmem:[%s2 + $0xf28] sm:$0xff]
  %v1963 = vld [vmem:[%s2 + $0xf30] sm:$0xff]
  %v1964 = vld [vmem:[%s2 + $0xf38] sm:$0xf]
  %v1965 = vld [vmem:[%s2 + $0xf3c] sm:$0xff]
  %v1966 = vld [vmem:[%s2 + $0xf44] sm:$0xff]
  %v1967 = vld [vmem:[%s2 + $0xf4c] sm:$0xf]
  %v1968 = vld [vmem:[%s2 + $0xf50] sm:$0xff]
  %v1969 = vld [vmem:[%s2 + $0xf58] sm:$0xff]
  %v1970 = vld [vmem:[%s2 + $0xf60] sm:$0xf]
  %v1971 = vld [vmem:[%s2 + $0xf64] sm:$0xff]
  %v1972 = vld [vmem:[%s2 + $0xf6c] sm:$0xff]
  %v1973 = vld [vmem:[%s2 + $0xf74] sm:$0xf]
  %v1974 = vld [vmem:[%s2 + $0xf78] sm:$0xff]
  %v1975 = vld [vmem:[%s2 + $0xf80] sm:$0xff]
  %v1976 = vld [vmem:[%s2 + $0xf88] sm:$0xf]
  %v1977 = vld [vmem:[%s2 + $0xf8c] sm:$0xff]
  %v1978 = vld [vmem:[%s2 + $0xf94] sm:$0xff]
  %v1979 = vld [vmem:[%s2 + $0xf9c] sm:$0xf]
  %v1980 = vld [vmem:[%s2 + $0xfa0] sm:$0xff]
  %v1981 = vld [vmem:[%s2 + $0xfa8] sm:$0xff]
  %v1982 = vld [vmem:[%s2 + $0xfb0] sm:$0xf]
  %v1983 = vld [vmem:[%s2 + $0xfb4] sm:$0xff]
  %v1984 = vld [vmem:[%s2 + $0xfbc] sm:$0xff]
  %v1985 = vld [vmem:[%s2 + $0xfc4] sm:$0xf]
  %v1986 = vld [vmem:[%s2 + $0xfc8] sm:$0xff]
  %v1987 = vld [vmem:[%s2 + $0xfd0] sm:$0xff]
  %v1988 = vld [vmem:[%s2 + $0xfd8] sm:$0xf]
  %v1989 = vld [vmem:[%s2 + $0xfdc] sm:$0xff]
  %v1990 = vld [vmem:[%s2 + $0xfe4] sm:$0xff]
  %v1991 = vld [vmem:[%s2 + $0xfec] sm:$0xf]
  %v1992 = vld [vmem:[%s2 + $0xff0] sm:$0xff]
  %v1993 = vld [vmem:[%s2 + $0xff8] sm:$0xff]
  %v1994 = vld [vmem:[%s2 + $0x1000] sm:$0xf]
  %v1995 = vld [vmem:[%s2 + $0x1004] sm:$0xff]
  %v1996 = vld [vmem:[%s2 + $0x100c] sm:$0xff]
  %v1997 = vld [vmem:[%s2 + $0x1014] sm:$0xf]
  %v1998 = vld [vmem:[%s2 + $0x1018] sm:$0xff]
  %v1999 = vld [vmem:[%s2 + $0x1020] sm:$0xff]
  %v2000 = vld [vmem:[%s2 + $0x1028] sm:$0xf]
  %v2001 = vld [vmem:[%s2 + $0x102c] sm:$0xff]
  %v2002 = vld [vmem:[%s2 + $0x1034] sm:$0xff]
  %v2003 = vld [vmem:[%s2 + $0x103c] sm:$0xf]
  %v2004 = vld [vmem:[%s2 + $0x1040] sm:$0xff]
  %v2005 = vld [vmem:[%s2 + $0x1048] sm:$0xff]
  %v2006 = vld [vmem:[%s2 + $0x1050] sm:$0xf]
  %v2007 = vld [vmem:[%s2 + $0x1054] sm:$0xff]
  %v2008 = vld [vmem:[%s2 + $0x105c] sm:$0xff]
  %v2009 = vld [vmem:[%s2 + $0x1064] sm:$0xf]
  %v2010 = vld [vmem:[%s2 + $0x1068] sm:$0xff]
  %v2011 = vld [vmem:[%s2 + $0x1070] sm:$0xff]
  %v2012 = vld [vmem:[%s2 + $0x1078] sm:$0xf]
  %v2013 = vld [vmem:[%s2 + $0x107c] sm:$0xff]
  %v2014 = vld [vmem:[%s2 + $0x1084] sm:$0xff]
  %v2015 = vld [vmem:[%s2 + $0x108c] sm:$0xf]
  %v2016 = vld [vmem:[%s2 + $0x1090] sm:$0xff]
  %v2017 = vld [vmem:[%s2 + $0x1098] sm:$0xff]
  %v2018 = vld [vmem:[%s2 + $0x10a0] sm:$0xf]
  %v2019 = vld [vmem:[%s2 + $0x10a4] sm:$0xff]
  %v2020 = vld [vmem:[%s2 + $0x10ac] sm:$0xff]
  %v2021 = vld [vmem:[%s2 + $0x10b4] sm:$0xf]
  %v2022 = vld [vmem:[%s2 + $0x10b8] sm:$0xff]
  %v2023 = vld [vmem:[%s2 + $0x10c0] sm:$0xff]
  %v2024 = vld [vmem:[%s2 + $0x10c8] sm:$0xf]
  %v2025 = vld [vmem:[%s2 + $0x10cc] sm:$0xff]
  %v2026 = vld [vmem:[%s2 + $0x10d4] sm:$0xff]
  %v2027 = vld [vmem:[%s2 + $0x10dc] sm:$0xf]
  %v2028 = vld [vmem:[%s2 + $0x10e0] sm:$0xff]
  %v2029 = vld [vmem:[%s2 + $0x10e8] sm:$0xff]
  %v2030 = vld [vmem:[%s2 + $0x10f0] sm:$0xf]
  %v2031 = vld [vmem:[%s2 + $0x10f4] sm:$0xff]
  %v2032 = vld [vmem:[%s2 + $0x10fc] sm:$0xff]
  %v2033 = vld [vmem:[%s2 + $0x1104] sm:$0xf]
  %v2034 = vld [vmem:[%s2 + $0x1108] sm:$0xff]
  %v2035 = vld [vmem:[%s2 + $0x1110] sm:$0xff]
  %v2036 = vld [vmem:[%s2 + $0x1118] sm:$0xf]
  %v2037 = vld [vmem:[%s2 + $0x111c] sm:$0xff]
  %v2038 = vld [vmem:[%s2 + $0x1124] sm:$0xff]
  %v2039 = vld [vmem:[%s2 + $0x112c] sm:$0xf]
  %v2040 = vld [vmem:[%s2 + $0x1130] sm:$0xff]
  %v2041 = vld [vmem:[%s2 + $0x1138] sm:$0xff]
  %v2042 = vld [vmem:[%s2 + $0x1140] sm:$0xf]
  %v2043 = vld [vmem:[%s2 + $0x1144] sm:$0xff]
  %v2044 = vld [vmem:[%s2 + $0x114c] sm:$0xff]
  %v2045 = vld [vmem:[%s2 + $0x1154] sm:$0xf]
  %v2046 = vld [vmem:[%s2 + $0x1158] sm:$0xff]
  %v2047 = vld [vmem:[%s2 + $0x1160] sm:$0xff]
  %v2048 = vld [vmem:[%s2 + $0x1168] sm:$0xf]
  %v2049 = vld [vmem:[%s2 + $0x116c] sm:$0xff]
  %v2050 = vld [vmem:[%s2 + $0x1174] sm:$0xff]
  %v2051 = vld [vmem:[%s2 + $0x117c] sm:$0xf]
  %v2052 = vld [vmem:[%s2 + $0x1180] sm:$0xff]
  %v2053 = vld [vmem:[%s2 + $0x1188] sm:$0xff]
  %v2054 = vld [vmem:[%s2 + $0x1190] sm:$0xf]
  %v2055 = vld [vmem:[%s2 + $0x1194] sm:$0xff]
  %v2056 = vld [vmem:[%s2 + $0x119c] sm:$0xff]
  %v2057 = vld [vmem:[%s2 + $0x11a4] sm:$0xf]
  %v2058 = vld [vmem:[%s2 + $0x11a8] sm:$0xff]
  %v2059 = vld [vmem:[%s2 + $0x11b0] sm:$0xff]
  %v2060 = vld [vmem:[%s2 + $0x11b8] sm:$0xf]
  %v2061 = vld [vmem:[%s2 + $0x11bc] sm:$0xff]
  %v2062 = vld [vmem:[%s2 + $0x11c4] sm:$0xff]
  %v2063 = vld [vmem:[%s2 + $0x11cc] sm:$0xf]
  %v2064 = vld [vmem:[%s2 + $0x11d0] sm:$0xff]
  %v2065 = vld [vmem:[%s2 + $0x11d8] sm:$0xff]
  %v2066 = vld [vmem:[%s2 + $0x11e0] sm:$0xf]
  %v2067 = vld [vmem:[%s2 + $0x11e4] sm:$0xff]
  %v2068 = vld [vmem:[%s2 + $0x11ec] sm:$0xff]
  %v2069 = vld [vmem:[%s2 + $0x11f4] sm:$0xf]
  %v2070 = vld [vmem:[%s2 + $0x11f8] sm:$0xff]
  %v2071 = vld [vmem:[%s2 + $0x1200] sm:$0xff]
  %v2072 = vld [vmem:[%s2 + $0x1208] sm:$0xf]
  %v2073 = vld [vmem:[%s2 + $0x120c] sm:$0xff]
  %v2074 = vld [vmem:[%s2 + $0x1214] sm:$0xff]
  %v2075 = vld [vmem:[%s2 + $0x121c] sm:$0xf]
  %v2076 = vld [vmem:[%s2 + $0x1220] sm:$0xff]
  %v2077 = vld [vmem:[%s2 + $0x1228] sm:$0xff]
  %v2078 = vld [vmem:[%s2 + $0x1230] sm:$0xf]
  %v2079 = vld [vmem:[%s2 + $0x1234] sm:$0xff]
  %v2080 = vld [vmem:[%s2 + $0x123c] sm:$0xff]
  %v2081 = vld [vmem:[%s2 + $0x1244] sm:$0xf]
  %v2082 = vld [vmem:[%s2 + $0x1248] sm:$0xff]
  %v2083 = vld [vmem:[%s2 + $0x1250] sm:$0xff]
  %v2084 = vld [vmem:[%s2 + $0x1258] sm:$0xf]
  %v2085 = vld [vmem:[%s2 + $0x125c] sm:$0xff]
  %v2086 = vld [vmem:[%s2 + $0x1264] sm:$0xff]
  %v2087 = vld [vmem:[%s2 + $0x126c] sm:$0xf]
  %v2088 = vld [vmem:[%s2 + $0x1270] sm:$0xff]
  %v2089 = vld [vmem:[%s2 + $0x1278] sm:$0xff]
  %v2090 = vld [vmem:[%s2 + $0x1280] sm:$0xf]
  %v2091 = vld [vmem:[%s2 + $0x1284] sm:$0xff]
  %v2092 = vld [vmem:[%s2 + $0x128c] sm:$0xff]
  %v2093 = vld [vmem:[%s2 + $0x1294] sm:$0xf]
  %v2094 = vld [vmem:[%s2 + $0x1298] sm:$0xff]
  %v2095 = vld [vmem:[%s2 + $0x12a0] sm:$0xff]
  %v2096 = vld [vmem:[%s2 + $0x12a8] sm:$0xf]
  %v2097 = vld [vmem:[%s2 + $0x12ac] sm:$0xff]
  %v2098 = vld [vmem:[%s2 + $0x12b4] sm:$0xff]
  %v2099 = vld [vmem:[%s2 + $0x12bc] sm:$0xf]
  %v2100 = vld [vmem:[%s2 + $0x12c0] sm:$0xff]
  %v2101 = vld [vmem:[%s2 + $0x12c8] sm:$0xff]
  %v2102 = vld [vmem:[%s2 + $0x12d0] sm:$0xf]
  %v2103 = vld [vmem:[%s2 + $0x12d4] sm:$0xff]
  %v2104 = vld [vmem:[%s2 + $0x12dc] sm:$0xff]
  %v2105 = vld [vmem:[%s2 + $0x12e4] sm:$0xf]
  %v2106 = vld [vmem:[%s2 + $0x12e8] sm:$0xff]
  %v2107 = vld [vmem:[%s2 + $0x12f0] sm:$0xff]
  %v2108 = vld [vmem:[%s2 + $0x12f8] sm:$0xf]
  %v2109 = vld [vmem:[%s2 + $0x12fc] sm:$0xff]
  %v2110 = vld [vmem:[%s2 + $0x1304] sm:$0xff]
  %v2111 = vld [vmem:[%s2 + $0x130c] sm:$0xf]
  %v2112 = vld [vmem:[%s2 + $0x1310] sm:$0xff]
  %v2113 = vld [vmem:[%s2 + $0x1318] sm:$0xff]
  %v2114 = vld [vmem:[%s2 + $0x1320] sm:$0xf]
  %v2115 = vld [vmem:[%s2 + $0x1324] sm:$0xff]
  %v2116 = vld [vmem:[%s2 + $0x132c] sm:$0xff]
  %v2117 = vld [vmem:[%s2 + $0x1334] sm:$0xf]
  %v2118 = vld [vmem:[%s2 + $0x1338] sm:$0xff]
  %v2119 = vld [vmem:[%s2 + $0x1340] sm:$0xff]
  %v2120 = vld [vmem:[%s2 + $0x1348] sm:$0xf]
  %v2121 = vld [vmem:[%s2 + $0x134c] sm:$0xff]
  %v2122 = vld [vmem:[%s2 + $0x1354] sm:$0xff]
  %v2123 = vld [vmem:[%s2 + $0x135c] sm:$0xf]
  %v2124 = vld [vmem:[%s2 + $0x1360] sm:$0xff]
  %v2125 = vld [vmem:[%s2 + $0x1368] sm:$0xff]
  %v2126 = vld [vmem:[%s2 + $0x1370] sm:$0xf]
  %v2127 = vld [vmem:[%s2 + $0x1374] sm:$0xff]
  %v2128 = vld [vmem:[%s2 + $0x137c] sm:$0xff]
  %v2129 = vld [vmem:[%s2 + $0x1384] sm:$0xf]
  %v2130 = vld [vmem:[%s2 + $0x1388] sm:$0xff]
  %v2131 = vld [vmem:[%s2 + $0x1390] sm:$0xff]
  %v2132 = vld [vmem:[%s2 + $0x1398] sm:$0xf]
  %v2133 = vld [vmem:[%s2 + $0x139c] sm:$0xff]
  %v2134 = vld [vmem:[%s2 + $0x13a4] sm:$0xff]
  %v2135 = vld [vmem:[%s2 + $0x13ac] sm:$0xf]
  %v2136 = vld [vmem:[%s2 + $0x13b0] sm:$0xff]
  %v2137 = vld [vmem:[%s2 + $0x13b8] sm:$0xff]
  %v2138 = vld [vmem:[%s2 + $0x13c0] sm:$0xf]
  %v2139 = vld [vmem:[%s2 + $0x13c4] sm:$0xff]
  %v2140 = vld [vmem:[%s2 + $0x13cc] sm:$0xff]
  %v2141 = vld [vmem:[%s2 + $0x13d4] sm:$0xf]
  %v2142 = vld [vmem:[%s2 + $0x13d8] sm:$0xff]
  %v2143 = vld [vmem:[%s2 + $0x13e0] sm:$0xff]
  %v2144 = vld [vmem:[%s2 + $0x13e8] sm:$0xf]
  %v2145 = vld [vmem:[%s2 + $0x13ec] sm:$0xff]
  %v2146 = vld [vmem:[%s2 + $0x13f4] sm:$0xff]
  %v2147 = vld [vmem:[%s2 + $0x13fc] sm:$0xf]
  %v2148 = vld [vmem:[%s7 + $0x2] sm:$0x1f]
  %v2150 = vlaneseq
  %v2151 = vshrl.u32 %v2150, 7
  %v2152 = vsub.s32 0, %v2151
  %v2153 = vrot.slane %v2148, %v2152
  %v2154 = vlaneseq
  %v2155 = vshrl.u32 %v2154, 7
  %v2156 = vsub.s32 1, %v2155
  %v2157 = vrot.slane %v2148, %v2156
  %v2158 = vlaneseq
  %v2159 = vshrl.u32 %v2158, 7
  %v2160 = vsub.s32 2, %v2159
  %v2161 = vrot.slane %v2148, %v2160
  %v2162 = vlaneseq
  %v2163 = vshrl.u32 %v2162, 7
  %v2164 = vsub.s32 3, %v2163
  %v2165 = vrot.slane %v2148, %v2164
  %v2166 = vlaneseq
  %v2167 = vshrl.u32 %v2166, 7
  %v2168 = vsub.s32 4, %v2167
  %v2169 = vrot.slane %v2148, %v2168
  %v2943 = vunpack.c.l.b16 %v1380
  %v2944 = vunpack.c.h.b16 %v1380
  %v2945 = vunpack.c.l.b16 %v1381
  %v2946 = vunpack.c.h.b16 %v1381
  %v2947 = vunpack.c.l.b16 %v1382
  %v2948 = vunpack.c.l.b16 %v1383
  %v2949 = vunpack.c.h.b16 %v1383
  %v2950 = vunpack.c.l.b16 %v1384
  %v2951 = vunpack.c.h.b16 %v1384
  %v2952 = vunpack.c.l.b16 %v1385
  %v2953 = vunpack.c.l.b16 %v1386
  %v2954 = vunpack.c.h.b16 %v1386
  %v2955 = vunpack.c.l.b16 %v1387
  %v2956 = vunpack.c.h.b16 %v1387
  %v2957 = vunpack.c.l.b16 %v1388
  %v2958 = vunpack.c.l.b16 %v1389
  %v2959 = vunpack.c.h.b16 %v1389
  %v2960 = vunpack.c.l.b16 %v1390
  %v2961 = vunpack.c.h.b16 %v1390
  %v2962 = vunpack.c.l.b16 %v1391
  %v2963 = vunpack.c.l.b16 %v1392
  %v2964 = vunpack.c.h.b16 %v1392
  %v2965 = vunpack.c.l.b16 %v1393
  %v2966 = vunpack.c.h.b16 %v1393
  %v2967 = vunpack.c.l.b16 %v1394
  %v2968 = vunpack.c.l.b16 %v1395
  %v2969 = vunpack.c.h.b16 %v1395
  %v2970 = vunpack.c.l.b16 %v1396
  %v2971 = vunpack.c.h.b16 %v1396
  %v2972 = vunpack.c.l.b16 %v1397
  %v2973 = vunpack.c.l.b16 %v1398
  %v2974 = vunpack.c.h.b16 %v1398
  %v2975 = vunpack.c.l.b16 %v1399
  %v2976 = vunpack.c.h.b16 %v1399
  %v2977 = vunpack.c.l.b16 %v1400
  %v2978 = vunpack.c.l.b16 %v1401
  %v2979 = vunpack.c.h.b16 %v1401
  %v2980 = vunpack.c.l.b16 %v1402
  %v2981 = vunpack.c.h.b16 %v1402
  %v2982 = vunpack.c.l.b16 %v1403
  %v2983 = vunpack.c.l.b16 %v1404
  %v2984 = vunpack.c.h.b16 %v1404
  %v2985 = vunpack.c.l.b16 %v1405
  %v2986 = vunpack.c.h.b16 %v1405
  %v2987 = vunpack.c.l.b16 %v1406
  %v2988 = vunpack.c.l.b16 %v1407
  %v2989 = vunpack.c.h.b16 %v1407
  %v2990 = vunpack.c.l.b16 %v1408
  %v2991 = vunpack.c.h.b16 %v1408
  %v2992 = vunpack.c.l.b16 %v1409
  %v2993 = vunpack.c.l.b16 %v1410
  %v2994 = vunpack.c.h.b16 %v1410
  %v2995 = vunpack.c.l.b16 %v1411
  %v2996 = vunpack.c.h.b16 %v1411
  %v2997 = vunpack.c.l.b16 %v1412
  %v2998 = vunpack.c.l.b16 %v1413
  %v2999 = vunpack.c.h.b16 %v1413
  %v3000 = vunpack.c.l.b16 %v1414
  %v3001 = vunpack.c.h.b16 %v1414
  %v3002 = vunpack.c.l.b16 %v1415
  %v3003 = vunpack.c.l.b16 %v1416
  %v3004 = vunpack.c.h.b16 %v1416
  %v3005 = vunpack.c.l.b16 %v1417
  %v3006 = vunpack.c.h.b16 %v1417
  %v3007 = vunpack.c.l.b16 %v1418
  %v3008 = vunpack.c.l.b16 %v1419
  %v3009 = vunpack.c.h.b16 %v1419
  %v3010 = vunpack.c.l.b16 %v1420
  %v3011 = vunpack.c.h.b16 %v1420
  %v3012 = vunpack.c.l.b16 %v1421
  %v3013 = vunpack.c.l.b16 %v1422
  %v3014 = vunpack.c.h.b16 %v1422
  %v3015 = vunpack.c.l.b16 %v1423
  %v3016 = vunpack.c.h.b16 %v1423
  %v3017 = vunpack.c.l.b16 %v1424
  %v3018 = vunpack.c.l.b16 %v1425
  %v3019 = vunpack.c.h.b16 %v1425
  %v3020 = vunpack.c.l.b16 %v1426
  %v3021 = vunpack.c.h.b16 %v1426
  %v3022 = vunpack.c.l.b16 %v1427
  %v3023 = vunpack.c.l.b16 %v1428
  %v3024 = vunpack.c.h.b16 %v1428
  %v3025 = vunpack.c.l.b16 %v1429
  %v3026 = vunpack.c.h.b16 %v1429
  %v3027 = vunpack.c.l.b16 %v1430
  %v3028 = vunpack.c.l.b16 %v1431
  %v3029 = vunpack.c.h.b16 %v1431
  %v3030 = vunpack.c.l.b16 %v1432
  %v3031 = vunpack.c.h.b16 %v1432
  %v3032 = vunpack.c.l.b16 %v1433
  %v3033 = vunpack.c.l.b16 %v1434
  %v3034 = vunpack.c.h.b16 %v1434
  %v3035 = vunpack.c.l.b16 %v1435
  %v3036 = vunpack.c.h.b16 %v1435
  %v3037 = vunpack.c.l.b16 %v1436
  %v3038 = vunpack.c.l.b16 %v1437
  %v3039 = vunpack.c.h.b16 %v1437
  %v3040 = vunpack.c.l.b16 %v1438
  %v3041 = vunpack.c.h.b16 %v1438
  %v3042 = vunpack.c.l.b16 %v1439
  %v3043 = vunpack.c.l.b16 %v1440
  %v3044 = vunpack.c.h.b16 %v1440
  %v3045 = vunpack.c.l.b16 %v1441
  %v3046 = vunpack.c.h.b16 %v1441
  %v3047 = vunpack.c.l.b16 %v1442
  %v3048 = vunpack.c.l.b16 %v1443
  %v3049 = vunpack.c.h.b16 %v1443
  %v3050 = vunpack.c.l.b16 %v1444
  %v3051 = vunpack.c.h.b16 %v1444
  %v3052 = vunpack.c.l.b16 %v1445
  %v3053 = vunpack.c.l.b16 %v1446
  %v3054 = vunpack.c.h.b16 %v1446
  %v3055 = vunpack.c.l.b16 %v1447
  %v3056 = vunpack.c.h.b16 %v1447
  %v3057 = vunpack.c.l.b16 %v1448
  %v3058 = vunpack.c.l.b16 %v1449
  %v3059 = vunpack.c.h.b16 %v1449
  %v3060 = vunpack.c.l.b16 %v1450
  %v3061 = vunpack.c.h.b16 %v1450
  %v3062 = vunpack.c.l.b16 %v1451
  %v3063 = vunpack.c.l.b16 %v1452
  %v3064 = vunpack.c.h.b16 %v1452
  %v3065 = vunpack.c.l.b16 %v1453
  %v3066 = vunpack.c.h.b16 %v1453
  %v3067 = vunpack.c.l.b16 %v1454
  %v3068 = vunpack.c.l.b16 %v1455
  %v3069 = vunpack.c.h.b16 %v1455
  %v3070 = vunpack.c.l.b16 %v1456
  %v3071 = vunpack.c.h.b16 %v1456
  %v3072 = vunpack.c.l.b16 %v1457
  %v3073 = vunpack.c.l.b16 %v1458
  %v3074 = vunpack.c.h.b16 %v1458
  %v3075 = vunpack.c.l.b16 %v1459
  %v3076 = vunpack.c.h.b16 %v1459
  %v3077 = vunpack.c.l.b16 %v1460
  %v3078 = vunpack.c.l.b16 %v1461
  %v3079 = vunpack.c.h.b16 %v1461
  %v3080 = vunpack.c.l.b16 %v1462
  %v3081 = vunpack.c.h.b16 %v1462
  %v3082 = vunpack.c.l.b16 %v1463
  %v3083 = vunpack.c.l.b16 %v1464
  %v3084 = vunpack.c.h.b16 %v1464
  %v3085 = vunpack.c.l.b16 %v1465
  %v3086 = vunpack.c.h.b16 %v1465
  %v3087 = vunpack.c.l.b16 %v1466
  %v3088 = vunpack.c.l.b16 %v1467
  %v3089 = vunpack.c.h.b16 %v1467
  %v3090 = vunpack.c.l.b16 %v1468
  %v3091 = vunpack.c.h.b16 %v1468
  %v3092 = vunpack.c.l.b16 %v1469
  %v3093 = vunpack.c.l.b16 %v1470
  %v3094 = vunpack.c.h.b16 %v1470
  %v3095 = vunpack.c.l.b16 %v1471
  %v3096 = vunpack.c.h.b16 %v1471
  %v3097 = vunpack.c.l.b16 %v1472
  %v3098 = vunpack.c.l.b16 %v1473
  %v3099 = vunpack.c.h.b16 %v1473
  %v3100 = vunpack.c.l.b16 %v1474
  %v3101 = vunpack.c.h.b16 %v1474
  %v3102 = vunpack.c.l.b16 %v1475
  %v3103 = vunpack.c.l.b16 %v1476
  %v3104 = vunpack.c.h.b16 %v1476
  %v3105 = vunpack.c.l.b16 %v1477
  %v3106 = vunpack.c.h.b16 %v1477
  %v3107 = vunpack.c.l.b16 %v1478
  %v3108 = vunpack.c.l.b16 %v1479
  %v3109 = vunpack.c.h.b16 %v1479
  %v3110 = vunpack.c.l.b16 %v1480
  %v3111 = vunpack.c.h.b16 %v1480
  %v3112 = vunpack.c.l.b16 %v1481
  %v3113 = vunpack.c.l.b16 %v1482
  %v3114 = vunpack.c.h.b16 %v1482
  %v3115 = vunpack.c.l.b16 %v1483
  %v3116 = vunpack.c.h.b16 %v1483
  %v3117 = vunpack.c.l.b16 %v1484
  %v3118 = vunpack.c.l.b16 %v1485
  %v3119 = vunpack.c.h.b16 %v1485
  %v3120 = vunpack.c.l.b16 %v1486
  %v3121 = vunpack.c.h.b16 %v1486
  %v3122 = vunpack.c.l.b16 %v1487
  %v3123 = vunpack.c.l.b16 %v1488
  %v3124 = vunpack.c.h.b16 %v1488
  %v3125 = vunpack.c.l.b16 %v1489
  %v3126 = vunpack.c.h.b16 %v1489
  %v3127 = vunpack.c.l.b16 %v1490
  %v3128 = vunpack.c.l.b16 %v1491
  %v3129 = vunpack.c.h.b16 %v1491
  %v3130 = vunpack.c.l.b16 %v1492
  %v3131 = vunpack.c.h.b16 %v1492
  %v3132 = vunpack.c.l.b16 %v1493
  %v3133 = vunpack.c.l.b16 %v1494
  %v3134 = vunpack.c.h.b16 %v1494
  %v3135 = vunpack.c.l.b16 %v1495
  %v3136 = vunpack.c.h.b16 %v1495
  %v3137 = vunpack.c.l.b16 %v1496
  %v3138 = vunpack.c.l.b16 %v1497
  %v3139 = vunpack.c.h.b16 %v1497
  %v3140 = vunpack.c.l.b16 %v1498
  %v3141 = vunpack.c.h.b16 %v1498
  %v3142 = vunpack.c.l.b16 %v1499
  %v3143 = vunpack.c.l.b16 %v1500
  %v3144 = vunpack.c.h.b16 %v1500
  %v3145 = vunpack.c.l.b16 %v1501
  %v3146 = vunpack.c.h.b16 %v1501
  %v3147 = vunpack.c.l.b16 %v1502
  %v3148 = vunpack.c.l.b16 %v1503
  %v3149 = vunpack.c.h.b16 %v1503
  %v3150 = vunpack.c.l.b16 %v1504
  %v3151 = vunpack.c.h.b16 %v1504
  %v3152 = vunpack.c.l.b16 %v1505
  %v3153 = vunpack.c.l.b16 %v1506
  %v3154 = vunpack.c.h.b16 %v1506
  %v3155 = vunpack.c.l.b16 %v1507
  %v3156 = vunpack.c.h.b16 %v1507
  %v3157 = vunpack.c.l.b16 %v1508
  %v3158 = vunpack.c.l.b16 %v1509
  %v3159 = vunpack.c.h.b16 %v1509
  %v3160 = vunpack.c.l.b16 %v1510
  %v3161 = vunpack.c.h.b16 %v1510
  %v3162 = vunpack.c.l.b16 %v1511
  %v3163 = vunpack.c.l.b16 %v1512
  %v3164 = vunpack.c.h.b16 %v1512
  %v3165 = vunpack.c.l.b16 %v1513
  %v3166 = vunpack.c.h.b16 %v1513
  %v3167 = vunpack.c.l.b16 %v1514
  %v3168 = vunpack.c.l.b16 %v1515
  %v3169 = vunpack.c.h.b16 %v1515
  %v3170 = vunpack.c.l.b16 %v1516
  %v3171 = vunpack.c.h.b16 %v1516
  %v3172 = vunpack.c.l.b16 %v1517
  %v3173 = vunpack.c.l.b16 %v1518
  %v3174 = vunpack.c.h.b16 %v1518
  %v3175 = vunpack.c.l.b16 %v1519
  %v3176 = vunpack.c.h.b16 %v1519
  %v3177 = vunpack.c.l.b16 %v1520
  %v3178 = vunpack.c.l.b16 %v1521
  %v3179 = vunpack.c.h.b16 %v1521
  %v3180 = vunpack.c.l.b16 %v1522
  %v3181 = vunpack.c.h.b16 %v1522
  %v3182 = vunpack.c.l.b16 %v1523
  %v3183 = vunpack.c.l.b16 %v1524
  %v3184 = vunpack.c.h.b16 %v1524
  %v3185 = vunpack.c.l.b16 %v1525
  %v3186 = vunpack.c.h.b16 %v1525
  %v3187 = vunpack.c.l.b16 %v1526
  %v3188 = vunpack.c.l.b16 %v1527
  %v3189 = vunpack.c.h.b16 %v1527
  %v3190 = vunpack.c.l.b16 %v1528
  %v3191 = vunpack.c.h.b16 %v1528
  %v3192 = vunpack.c.l.b16 %v1529
  %v3193 = vunpack.c.l.b16 %v1530
  %v3194 = vunpack.c.h.b16 %v1530
  %v3195 = vunpack.c.l.b16 %v1531
  %v3196 = vunpack.c.h.b16 %v1531
  %v3197 = vunpack.c.l.b16 %v1532
  %v3198 = vunpack.c.l.b16 %v1533
  %v3199 = vunpack.c.h.b16 %v1533
  %v3200 = vunpack.c.l.b16 %v1534
  %v3201 = vunpack.c.h.b16 %v1534
  %v3202 = vunpack.c.l.b16 %v1535
  %v3203 = vunpack.c.l.b16 %v1536
  %v3204 = vunpack.c.h.b16 %v1536
  %v3205 = vunpack.c.l.b16 %v1537
  %v3206 = vunpack.c.h.b16 %v1537
  %v3207 = vunpack.c.l.b16 %v1538
  %v3208 = vunpack.c.l.b16 %v1539
  %v3209 = vunpack.c.h.b16 %v1539
  %v3210 = vunpack.c.l.b16 %v1540
  %v3211 = vunpack.c.h.b16 %v1540
  %v3212 = vunpack.c.l.b16 %v1541
  %v3213 = vunpack.c.l.b16 %v1542
  %v3214 = vunpack.c.h.b16 %v1542
  %v3215 = vunpack.c.l.b16 %v1543
  %v3216 = vunpack.c.h.b16 %v1543
  %v3217 = vunpack.c.l.b16 %v1544
  %v3218 = vunpack.c.l.b16 %v1545
  %v3219 = vunpack.c.h.b16 %v1545
  %v3220 = vunpack.c.l.b16 %v1546
  %v3221 = vunpack.c.h.b16 %v1546
  %v3222 = vunpack.c.l.b16 %v1547
  %v3223 = vunpack.c.l.b16 %v1548
  %v3224 = vunpack.c.h.b16 %v1548
  %v3225 = vunpack.c.l.b16 %v1549
  %v3226 = vunpack.c.h.b16 %v1549
  %v3227 = vunpack.c.l.b16 %v1550
  %v3228 = vunpack.c.l.b16 %v1551
  %v3229 = vunpack.c.h.b16 %v1551
  %v3230 = vunpack.c.l.b16 %v1552
  %v3231 = vunpack.c.h.b16 %v1552
  %v3232 = vunpack.c.l.b16 %v1553
  %v3233 = vunpack.c.l.b16 %v1554
  %v3234 = vunpack.c.h.b16 %v1554
  %v3235 = vunpack.c.l.b16 %v1555
  %v3236 = vunpack.c.h.b16 %v1555
  %v3237 = vunpack.c.l.b16 %v1556
  %v3238 = vunpack.c.l.b16 %v1557
  %v3239 = vunpack.c.h.b16 %v1557
  %v3240 = vunpack.c.l.b16 %v1558
  %v3241 = vunpack.c.h.b16 %v1558
  %v3242 = vunpack.c.l.b16 %v1559
  %v3243 = vunpack.c.l.b16 %v1560
  %v3244 = vunpack.c.h.b16 %v1560
  %v3245 = vunpack.c.l.b16 %v1561
  %v3246 = vunpack.c.h.b16 %v1561
  %v3247 = vunpack.c.l.b16 %v1562
  %v3248 = vunpack.c.l.b16 %v1563
  %v3249 = vunpack.c.h.b16 %v1563
  %v3250 = vunpack.c.l.b16 %v1564
  %v3251 = vunpack.c.h.b16 %v1564
  %v3252 = vunpack.c.l.b16 %v1565
  %v3253 = vunpack.c.l.b16 %v1566
  %v3254 = vunpack.c.h.b16 %v1566
  %v3255 = vunpack.c.l.b16 %v1567
  %v3256 = vunpack.c.h.b16 %v1567
  %v3257 = vunpack.c.l.b16 %v1568
  %v3258 = vunpack.c.l.b16 %v1569
  %v3259 = vunpack.c.h.b16 %v1569
  %v3260 = vunpack.c.l.b16 %v1570
  %v3261 = vunpack.c.h.b16 %v1570
  %v3262 = vunpack.c.l.b16 %v1571
  %v3263 = vunpack.c.l.b16 %v1572
  %v3264 = vunpack.c.h.b16 %v1572
  %v3265 = vunpack.c.l.b16 %v1573
  %v3266 = vunpack.c.h.b16 %v1573
  %v3267 = vunpack.c.l.b16 %v1574
  %v3268 = vunpack.c.l.b16 %v1575
  %v3269 = vunpack.c.h.b16 %v1575
  %v3270 = vunpack.c.l.b16 %v1576
  %v3271 = vunpack.c.h.b16 %v1576
  %v3272 = vunpack.c.l.b16 %v1577
  %v3273 = vunpack.c.l.b16 %v1578
  %v3274 = vunpack.c.h.b16 %v1578
  %v3275 = vunpack.c.l.b16 %v1579
  %v3276 = vunpack.c.h.b16 %v1579
  %v3277 = vunpack.c.l.b16 %v1580
  %v3278 = vunpack.c.l.b16 %v1581
  %v3279 = vunpack.c.h.b16 %v1581
  %v3280 = vunpack.c.l.b16 %v1582
  %v3281 = vunpack.c.h.b16 %v1582
  %v3282 = vunpack.c.l.b16 %v1583
  %v3283 = vunpack.c.l.b16 %v1584
  %v3284 = vunpack.c.h.b16 %v1584
  %v3285 = vunpack.c.l.b16 %v1585
  %v3286 = vunpack.c.h.b16 %v1585
  %v3287 = vunpack.c.l.b16 %v1586
  %v3288 = vunpack.c.l.b16 %v1587
  %v3289 = vunpack.c.h.b16 %v1587
  %v3290 = vunpack.c.l.b16 %v1588
  %v3291 = vunpack.c.h.b16 %v1588
  %v3292 = vunpack.c.l.b16 %v1589
  %v3293 = vunpack.c.l.b16 %v1590
  %v3294 = vunpack.c.h.b16 %v1590
  %v3295 = vunpack.c.l.b16 %v1591
  %v3296 = vunpack.c.h.b16 %v1591
  %v3297 = vunpack.c.l.b16 %v1592
  %v3298 = vunpack.c.l.b16 %v1593
  %v3299 = vunpack.c.h.b16 %v1593
  %v3300 = vunpack.c.l.b16 %v1594
  %v3301 = vunpack.c.h.b16 %v1594
  %v3302 = vunpack.c.l.b16 %v1595
  %v3303 = vunpack.c.l.b16 %v1596
  %v3304 = vunpack.c.h.b16 %v1596
  %v3305 = vunpack.c.l.b16 %v1597
  %v3306 = vunpack.c.h.b16 %v1597
  %v3307 = vunpack.c.l.b16 %v1598
  %v3308 = vunpack.c.l.b16 %v1599
  %v3309 = vunpack.c.h.b16 %v1599
  %v3310 = vunpack.c.l.b16 %v1600
  %v3311 = vunpack.c.h.b16 %v1600
  %v3312 = vunpack.c.l.b16 %v1601
  %v3313 = vunpack.c.l.b16 %v1602
  %v3314 = vunpack.c.h.b16 %v1602
  %v3315 = vunpack.c.l.b16 %v1603
  %v3316 = vunpack.c.h.b16 %v1603
  %v3317 = vunpack.c.l.b16 %v1604
  %v3318 = vunpack.c.l.b16 %v1605
  %v3319 = vunpack.c.h.b16 %v1605
  %v3320 = vunpack.c.l.b16 %v1606
  %v3321 = vunpack.c.h.b16 %v1606
  %v3322 = vunpack.c.l.b16 %v1607
  %v3323 = vunpack.c.l.b16 %v1608
  %v3324 = vunpack.c.h.b16 %v1608
  %v3325 = vunpack.c.l.b16 %v1609
  %v3326 = vunpack.c.h.b16 %v1609
  %v3327 = vunpack.c.l.b16 %v1610
  %v3328 = vunpack.c.l.b16 %v1611
  %v3329 = vunpack.c.h.b16 %v1611
  %v3330 = vunpack.c.l.b16 %v1612
  %v3331 = vunpack.c.h.b16 %v1612
  %v3332 = vunpack.c.l.b16 %v1613
  %v3333 = vunpack.c.l.b16 %v1614
  %v3334 = vunpack.c.h.b16 %v1614
  %v3335 = vunpack.c.l.b16 %v1615
  %v3336 = vunpack.c.h.b16 %v1615
  %v3337 = vunpack.c.l.b16 %v1616
  %v3338 = vunpack.c.l.b16 %v1617
  %v3339 = vunpack.c.h.b16 %v1617
  %v3340 = vunpack.c.l.b16 %v1618
  %v3341 = vunpack.c.h.b16 %v1618
  %v3342 = vunpack.c.l.b16 %v1619
  %v3343 = vunpack.c.l.b16 %v1620
  %v3344 = vunpack.c.h.b16 %v1620
  %v3345 = vunpack.c.l.b16 %v1621
  %v3346 = vunpack.c.h.b16 %v1621
  %v3347 = vunpack.c.l.b16 %v1622
  %v3348 = vunpack.c.l.b16 %v1623
  %v3349 = vunpack.c.h.b16 %v1623
  %v3350 = vunpack.c.l.b16 %v1624
  %v3351 = vunpack.c.h.b16 %v1624
  %v3352 = vunpack.c.l.b16 %v1625
  %v3353 = vunpack.c.l.b16 %v1626
  %v3354 = vunpack.c.h.b16 %v1626
  %v3355 = vunpack.c.l.b16 %v1627
  %v3356 = vunpack.c.h.b16 %v1627
  %v3357 = vunpack.c.l.b16 %v1628
  %v3358 = vunpack.c.l.b16 %v1629
  %v3359 = vunpack.c.h.b16 %v1629
  %v3360 = vunpack.c.l.b16 %v1630
  %v3361 = vunpack.c.h.b16 %v1630
  %v3362 = vunpack.c.l.b16 %v1631
  %v3363 = vunpack.c.l.b16 %v1632
  %v3364 = vunpack.c.h.b16 %v1632
  %v3365 = vunpack.c.l.b16 %v1633
  %v3366 = vunpack.c.h.b16 %v1633
  %v3367 = vunpack.c.l.b16 %v1634
  %v3368 = vunpack.c.l.b16 %v1635
  %v3369 = vunpack.c.h.b16 %v1635
  %v3370 = vunpack.c.l.b16 %v1636
  %v3371 = vunpack.c.h.b16 %v1636
  %v3372 = vunpack.c.l.b16 %v1637
  %v3373 = vunpack.c.l.b16 %v1638
  %v3374 = vunpack.c.h.b16 %v1638
  %v3375 = vunpack.c.l.b16 %v1639
  %v3376 = vunpack.c.h.b16 %v1639
  %v3377 = vunpack.c.l.b16 %v1640
  %v3378 = vunpack.c.l.b16 %v1641
  %v3379 = vunpack.c.h.b16 %v1641
  %v3380 = vunpack.c.l.b16 %v1642
  %v3381 = vunpack.c.h.b16 %v1642
  %v3382 = vunpack.c.l.b16 %v1643
  %v3383 = vunpack.c.l.b16 %v1644
  %v3384 = vunpack.c.h.b16 %v1644
  %v3385 = vunpack.c.l.b16 %v1645
  %v3386 = vunpack.c.h.b16 %v1645
  %v3387 = vunpack.c.l.b16 %v1646
  %v3388 = vunpack.c.l.b16 %v1647
  %v3389 = vunpack.c.h.b16 %v1647
  %v3390 = vunpack.c.l.b16 %v1648
  %v3391 = vunpack.c.h.b16 %v1648
  %v3392 = vunpack.c.l.b16 %v1649
  %v3393 = vunpack.c.l.b16 %v1650
  %v3394 = vunpack.c.h.b16 %v1650
  %v3395 = vunpack.c.l.b16 %v1651
  %v3396 = vunpack.c.h.b16 %v1651
  %v3397 = vunpack.c.l.b16 %v1652
  %v3398 = vunpack.c.l.b16 %v1653
  %v3399 = vunpack.c.h.b16 %v1653
  %v3400 = vunpack.c.l.b16 %v1654
  %v3401 = vunpack.c.h.b16 %v1654
  %v3402 = vunpack.c.l.b16 %v1655
  %v3403 = vunpack.c.l.b16 %v1656
  %v3404 = vunpack.c.h.b16 %v1656
  %v3405 = vunpack.c.l.b16 %v1657
  %v3406 = vunpack.c.h.b16 %v1657
  %v3407 = vunpack.c.l.b16 %v1658
  %v3408 = vunpack.c.l.b16 %v1659
  %v3409 = vunpack.c.h.b16 %v1659
  %v3410 = vunpack.c.l.b16 %v1660
  %v3411 = vunpack.c.h.b16 %v1660
  %v3412 = vunpack.c.l.b16 %v1661
  %v3413 = vunpack.c.l.b16 %v1662
  %v3414 = vunpack.c.h.b16 %v1662
  %v3415 = vunpack.c.l.b16 %v1663
  %v3416 = vunpack.c.h.b16 %v1663
  %v3417 = vunpack.c.l.b16 %v1664
  %v3418 = vunpack.c.l.b16 %v1665
  %v3419 = vunpack.c.h.b16 %v1665
  %v3420 = vunpack.c.l.b16 %v1666
  %v3421 = vunpack.c.h.b16 %v1666
  %v3422 = vunpack.c.l.b16 %v1667
  %v3423 = vunpack.c.l.b16 %v1668
  %v3424 = vunpack.c.h.b16 %v1668
  %v3425 = vunpack.c.l.b16 %v1669
  %v3426 = vunpack.c.h.b16 %v1669
  %v3427 = vunpack.c.l.b16 %v1670
  %v3428 = vunpack.c.l.b16 %v1671
  %v3429 = vunpack.c.h.b16 %v1671
  %v3430 = vunpack.c.l.b16 %v1672
  %v3431 = vunpack.c.h.b16 %v1672
  %v3432 = vunpack.c.l.b16 %v1673
  %v3433 = vunpack.c.l.b16 %v1674
  %v3434 = vunpack.c.h.b16 %v1674
  %v3435 = vunpack.c.l.b16 %v1675
  %v3436 = vunpack.c.h.b16 %v1675
  %v3437 = vunpack.c.l.b16 %v1676
  %v3438 = vunpack.c.l.b16 %v1677
  %v3439 = vunpack.c.h.b16 %v1677
  %v3440 = vunpack.c.l.b16 %v1678
  %v3441 = vunpack.c.h.b16 %v1678
  %v3442 = vunpack.c.l.b16 %v1679
  %v3443 = vunpack.c.l.b16 %v1680
  %v3444 = vunpack.c.h.b16 %v1680
  %v3445 = vunpack.c.l.b16 %v1681
  %v3446 = vunpack.c.h.b16 %v1681
  %v3447 = vunpack.c.l.b16 %v1682
  %v3448 = vunpack.c.l.b16 %v1683
  %v3449 = vunpack.c.h.b16 %v1683
  %v3450 = vunpack.c.l.b16 %v1684
  %v3451 = vunpack.c.h.b16 %v1684
  %v3452 = vunpack.c.l.b16 %v1685
  %v3453 = vunpack.c.l.b16 %v1686
  %v3454 = vunpack.c.h.b16 %v1686
  %v3455 = vunpack.c.l.b16 %v1687
  %v3456 = vunpack.c.h.b16 %v1687
  %v3457 = vunpack.c.l.b16 %v1688
  %v3458 = vunpack.c.l.b16 %v1689
  %v3459 = vunpack.c.h.b16 %v1689
  %v3460 = vunpack.c.l.b16 %v1690
  %v3461 = vunpack.c.h.b16 %v1690
  %v3462 = vunpack.c.l.b16 %v1691
  %v3463 = vunpack.c.l.b16 %v1692
  %v3464 = vunpack.c.h.b16 %v1692
  %v3465 = vunpack.c.l.b16 %v1693
  %v3466 = vunpack.c.h.b16 %v1693
  %v3467 = vunpack.c.l.b16 %v1694
  %v3468 = vunpack.c.l.b16 %v1695
  %v3469 = vunpack.c.h.b16 %v1695
  %v3470 = vunpack.c.l.b16 %v1696
  %v3471 = vunpack.c.h.b16 %v1696
  %v3472 = vunpack.c.l.b16 %v1697
  %v3473 = vunpack.c.l.b16 %v1698
  %v3474 = vunpack.c.h.b16 %v1698
  %v3475 = vunpack.c.l.b16 %v1699
  %v3476 = vunpack.c.h.b16 %v1699
  %v3477 = vunpack.c.l.b16 %v1700
  %v3478 = vunpack.c.l.b16 %v1701
  %v3479 = vunpack.c.h.b16 %v1701
  %v3480 = vunpack.c.l.b16 %v1702
  %v3481 = vunpack.c.h.b16 %v1702
  %v3482 = vunpack.c.l.b16 %v1703
  %v3483 = vunpack.c.l.b16 %v1704
  %v3484 = vunpack.c.h.b16 %v1704
  %v3485 = vunpack.c.l.b16 %v1705
  %v3486 = vunpack.c.h.b16 %v1705
  %v3487 = vunpack.c.l.b16 %v1706
  %v3488 = vunpack.c.l.b16 %v1707
  %v3489 = vunpack.c.h.b16 %v1707
  %v3490 = vunpack.c.l.b16 %v1708
  %v3491 = vunpack.c.h.b16 %v1708
  %v3492 = vunpack.c.l.b16 %v1709
  %v3493 = vunpack.c.l.b16 %v1710
  %v3494 = vunpack.c.h.b16 %v1710
  %v3495 = vunpack.c.l.b16 %v1711
  %v3496 = vunpack.c.h.b16 %v1711
  %v3497 = vunpack.c.l.b16 %v1712
  %v3498 = vunpack.c.l.b16 %v1713
  %v3499 = vunpack.c.h.b16 %v1713
  %v3500 = vunpack.c.l.b16 %v1714
  %v3501 = vunpack.c.h.b16 %v1714
  %v3502 = vunpack.c.l.b16 %v1715
  %v3503 = vunpack.c.l.b16 %v1716
  %v3504 = vunpack.c.h.b16 %v1716
  %v3505 = vunpack.c.l.b16 %v1717
  %v3506 = vunpack.c.h.b16 %v1717
  %v3507 = vunpack.c.l.b16 %v1718
  %v3508 = vunpack.c.l.b16 %v1719
  %v3509 = vunpack.c.h.b16 %v1719
  %v3510 = vunpack.c.l.b16 %v1720
  %v3511 = vunpack.c.h.b16 %v1720
  %v3512 = vunpack.c.l.b16 %v1721
  %v3513 = vunpack.c.l.b16 %v1722
  %v3514 = vunpack.c.h.b16 %v1722
  %v3515 = vunpack.c.l.b16 %v1723
  %v3516 = vunpack.c.h.b16 %v1723
  %v3517 = vunpack.c.l.b16 %v1724
  %v3518 = vunpack.c.l.b16 %v1725
  %v3519 = vunpack.c.h.b16 %v1725
  %v3520 = vunpack.c.l.b16 %v1726
  %v3521 = vunpack.c.h.b16 %v1726
  %v3522 = vunpack.c.l.b16 %v1727
  %v3523 = vunpack.c.l.b16 %v1728
  %v3524 = vunpack.c.h.b16 %v1728
  %v3525 = vunpack.c.l.b16 %v1729
  %v3526 = vunpack.c.h.b16 %v1729
  %v3527 = vunpack.c.l.b16 %v1730
  %v3528 = vunpack.c.l.b16 %v1731
  %v3529 = vunpack.c.h.b16 %v1731
  %v3530 = vunpack.c.l.b16 %v1732
  %v3531 = vunpack.c.h.b16 %v1732
  %v3532 = vunpack.c.l.b16 %v1733
  %v3533 = vunpack.c.l.b16 %v1734
  %v3534 = vunpack.c.h.b16 %v1734
  %v3535 = vunpack.c.l.b16 %v1735
  %v3536 = vunpack.c.h.b16 %v1735
  %v3537 = vunpack.c.l.b16 %v1736
  %v3538 = vunpack.c.l.b16 %v1737
  %v3539 = vunpack.c.h.b16 %v1737
  %v3540 = vunpack.c.l.b16 %v1738
  %v3541 = vunpack.c.h.b16 %v1738
  %v3542 = vunpack.c.l.b16 %v1739
  %v3543 = vunpack.c.l.b16 %v1740
  %v3544 = vunpack.c.h.b16 %v1740
  %v3545 = vunpack.c.l.b16 %v1741
  %v3546 = vunpack.c.h.b16 %v1741
  %v3547 = vunpack.c.l.b16 %v1742
  %v3548 = vunpack.c.l.b16 %v1743
  %v3549 = vunpack.c.h.b16 %v1743
  %v3550 = vunpack.c.l.b16 %v1744
  %v3551 = vunpack.c.h.b16 %v1744
  %v3552 = vunpack.c.l.b16 %v1745
  %v3553 = vunpack.c.l.b16 %v1746
  %v3554 = vunpack.c.h.b16 %v1746
  %v3555 = vunpack.c.l.b16 %v1747
  %v3556 = vunpack.c.h.b16 %v1747
  %v3557 = vunpack.c.l.b16 %v1748
  %v3558 = vunpack.c.l.b16 %v1749
  %v3559 = vunpack.c.h.b16 %v1749
  %v3560 = vunpack.c.l.b16 %v1750
  %v3561 = vunpack.c.h.b16 %v1750
  %v3562 = vunpack.c.l.b16 %v1751
  %v3563 = vunpack.c.l.b16 %v1752
  %v3564 = vunpack.c.h.b16 %v1752
  %v3565 = vunpack.c.l.b16 %v1753
  %v3566 = vunpack.c.h.b16 %v1753
  %v3567 = vunpack.c.l.b16 %v1754
  %v3568 = vunpack.c.l.b16 %v1755
  %v3569 = vunpack.c.h.b16 %v1755
  %v3570 = vunpack.c.l.b16 %v1756
  %v3571 = vunpack.c.h.b16 %v1756
  %v3572 = vunpack.c.l.b16 %v1757
  %v3573 = vunpack.c.l.b16 %v1758
  %v3574 = vunpack.c.h.b16 %v1758
  %v3575 = vunpack.c.l.b16 %v1759
  %v3576 = vunpack.c.h.b16 %v1759
  %v3577 = vunpack.c.l.b16 %v1760
  %v3578 = vunpack.c.l.b16 %v1761
  %v3579 = vunpack.c.h.b16 %v1761
  %v3580 = vunpack.c.l.b16 %v1762
  %v3581 = vunpack.c.h.b16 %v1762
  %v3582 = vunpack.c.l.b16 %v1763
  %v3583 = vunpack.c.l.b16 %v1764
  %v3584 = vunpack.c.h.b16 %v1764
  %v3585 = vunpack.c.l.b16 %v1765
  %v3586 = vunpack.c.h.b16 %v1765
  %v3587 = vunpack.c.l.b16 %v1766
  %v3588 = vunpack.c.l.b16 %v1767
  %v3589 = vunpack.c.h.b16 %v1767
  %v3590 = vunpack.c.l.b16 %v1768
  %v3591 = vunpack.c.h.b16 %v1768
  %v3592 = vunpack.c.l.b16 %v1769
  %v3593 = vunpack.c.l.b16 %v1770
  %v3594 = vunpack.c.h.b16 %v1770
  %v3595 = vunpack.c.l.b16 %v1771
  %v3596 = vunpack.c.h.b16 %v1771
  %v3597 = vunpack.c.l.b16 %v1772
  %v3598 = vunpack.c.l.b16 %v1773
  %v3599 = vunpack.c.h.b16 %v1773
  %v3600 = vunpack.c.l.b16 %v1774
  %v3601 = vunpack.c.h.b16 %v1774
  %v3602 = vunpack.c.l.b16 %v1775
  %v3603 = vunpack.c.l.b16 %v1776
  %v3604 = vunpack.c.h.b16 %v1776
  %v3605 = vunpack.c.l.b16 %v1777
  %v3606 = vunpack.c.h.b16 %v1777
  %v3607 = vunpack.c.l.b16 %v1778
  %v3608 = vunpack.c.l.b16 %v1779
  %v3609 = vunpack.c.h.b16 %v1779
  %v3610 = vunpack.c.l.b16 %v1780
  %v3611 = vunpack.c.h.b16 %v1780
  %v3612 = vunpack.c.l.b16 %v1781
  %v3613 = vunpack.c.l.b16 %v1782
  %v3614 = vunpack.c.h.b16 %v1782
  %v3615 = vunpack.c.l.b16 %v1783
  %v3616 = vunpack.c.h.b16 %v1783
  %v3617 = vunpack.c.l.b16 %v1784
  %v3618 = vunpack.c.l.b16 %v1785
  %v3619 = vunpack.c.h.b16 %v1785
  %v3620 = vunpack.c.l.b16 %v1786
  %v3621 = vunpack.c.h.b16 %v1786
  %v3622 = vunpack.c.l.b16 %v1787
  %v3623 = vunpack.c.l.b16 %v1788
  %v3624 = vunpack.c.h.b16 %v1788
  %v3625 = vunpack.c.l.b16 %v1789
  %v3626 = vunpack.c.h.b16 %v1789
  %v3627 = vunpack.c.l.b16 %v1790
  %v3628 = vunpack.c.l.b16 %v1791
  %v3629 = vunpack.c.h.b16 %v1791
  %v3630 = vunpack.c.l.b16 %v1792
  %v3631 = vunpack.c.h.b16 %v1792
  %v3632 = vunpack.c.l.b16 %v1793
  %v3633 = vunpack.c.l.b16 %v1794
  %v3634 = vunpack.c.h.b16 %v1794
  %v3635 = vunpack.c.l.b16 %v1795
  %v3636 = vunpack.c.h.b16 %v1795
  %v3637 = vunpack.c.l.b16 %v1796
  %v3638 = vunpack.c.l.b16 %v1797
  %v3639 = vunpack.c.h.b16 %v1797
  %v3640 = vunpack.c.l.b16 %v1798
  %v3641 = vunpack.c.h.b16 %v1798
  %v3642 = vunpack.c.l.b16 %v1799
  %v3643 = vunpack.c.l.b16 %v1800
  %v3644 = vunpack.c.h.b16 %v1800
  %v3645 = vunpack.c.l.b16 %v1801
  %v3646 = vunpack.c.h.b16 %v1801
  %v3647 = vunpack.c.l.b16 %v1802
  %v3648 = vunpack.c.l.b16 %v1803
  %v3649 = vunpack.c.h.b16 %v1803
  %v3650 = vunpack.c.l.b16 %v1804
  %v3651 = vunpack.c.h.b16 %v1804
  %v3652 = vunpack.c.l.b16 %v1805
  %v3653 = vunpack.c.l.b16 %v1806
  %v3654 = vunpack.c.h.b16 %v1806
  %v3655 = vunpack.c.l.b16 %v1807
  %v3656 = vunpack.c.h.b16 %v1807
  %v3657 = vunpack.c.l.b16 %v1808
  %v3658 = vunpack.c.l.b16 %v1809
  %v3659 = vunpack.c.h.b16 %v1809
  %v3660 = vunpack.c.l.b16 %v1810
  %v3661 = vunpack.c.h.b16 %v1810
  %v3662 = vunpack.c.l.b16 %v1811
  %v3663 = vunpack.c.l.b16 %v1812
  %v3664 = vunpack.c.h.b16 %v1812
  %v3665 = vunpack.c.l.b16 %v1813
  %v3666 = vunpack.c.h.b16 %v1813
  %v3667 = vunpack.c.l.b16 %v1814
  %v3668 = vunpack.c.l.b16 %v1815
  %v3669 = vunpack.c.h.b16 %v1815
  %v3670 = vunpack.c.l.b16 %v1816
  %v3671 = vunpack.c.h.b16 %v1816
  %v3672 = vunpack.c.l.b16 %v1817
  %v3673 = vunpack.c.l.b16 %v1818
  %v3674 = vunpack.c.h.b16 %v1818
  %v3675 = vunpack.c.l.b16 %v1819
  %v3676 = vunpack.c.h.b16 %v1819
  %v3677 = vunpack.c.l.b16 %v1820
  %v3678 = vunpack.c.l.b16 %v1821
  %v3679 = vunpack.c.h.b16 %v1821
  %v3680 = vunpack.c.l.b16 %v1822
  %v3681 = vunpack.c.h.b16 %v1822
  %v3682 = vunpack.c.l.b16 %v1823
  %v3683 = vunpack.c.l.b16 %v1824
  %v3684 = vunpack.c.h.b16 %v1824
  %v3685 = vunpack.c.l.b16 %v1825
  %v3686 = vunpack.c.h.b16 %v1825
  %v3687 = vunpack.c.l.b16 %v1826
  %v3688 = vunpack.c.l.b16 %v1827
  %v3689 = vunpack.c.h.b16 %v1827
  %v3690 = vunpack.c.l.b16 %v1828
  %v3691 = vunpack.c.h.b16 %v1828
  %v3692 = vunpack.c.l.b16 %v1829
  %v3693 = vunpack.c.l.b16 %v1830
  %v3694 = vunpack.c.h.b16 %v1830
  %v3695 = vunpack.c.l.b16 %v1831
  %v3696 = vunpack.c.h.b16 %v1831
  %v3697 = vunpack.c.l.b16 %v1832
  %v3698 = vunpack.c.l.b16 %v1833
  %v3699 = vunpack.c.h.b16 %v1833
  %v3700 = vunpack.c.l.b16 %v1834
  %v3701 = vunpack.c.h.b16 %v1834
  %v3702 = vunpack.c.l.b16 %v1835
  %v3703 = vunpack.c.l.b16 %v1836
  %v3704 = vunpack.c.h.b16 %v1836
  %v3705 = vunpack.c.l.b16 %v1837
  %v3706 = vunpack.c.h.b16 %v1837
  %v3707 = vunpack.c.l.b16 %v1838
  %v3708 = vunpack.c.l.b16 %v1839
  %v3709 = vunpack.c.h.b16 %v1839
  %v3710 = vunpack.c.l.b16 %v1840
  %v3711 = vunpack.c.h.b16 %v1840
  %v3712 = vunpack.c.l.b16 %v1841
  %v3713 = vunpack.c.l.b16 %v1842
  %v3714 = vunpack.c.h.b16 %v1842
  %v3715 = vunpack.c.l.b16 %v1843
  %v3716 = vunpack.c.h.b16 %v1843
  %v3717 = vunpack.c.l.b16 %v1844
  %v3718 = vunpack.c.l.b16 %v1845
  %v3719 = vunpack.c.h.b16 %v1845
  %v3720 = vunpack.c.l.b16 %v1846
  %v3721 = vunpack.c.h.b16 %v1846
  %v3722 = vunpack.c.l.b16 %v1847
  %v3723 = vunpack.c.l.b16 %v1848
  %v3724 = vunpack.c.h.b16 %v1848
  %v3725 = vunpack.c.l.b16 %v1849
  %v3726 = vunpack.c.h.b16 %v1849
  %v3727 = vunpack.c.l.b16 %v1850
  %v3728 = vunpack.c.l.b16 %v1851
  %v3729 = vunpack.c.h.b16 %v1851
  %v3730 = vunpack.c.l.b16 %v1852
  %v3731 = vunpack.c.h.b16 %v1852
  %v3732 = vunpack.c.l.b16 %v1853
  %v3733 = vunpack.c.l.b16 %v1854
  %v3734 = vunpack.c.h.b16 %v1854
  %v3735 = vunpack.c.l.b16 %v1855
  %v3736 = vunpack.c.h.b16 %v1855
  %v3737 = vunpack.c.l.b16 %v1856
  %v3738 = vunpack.c.l.b16 %v1857
  %v3739 = vunpack.c.h.b16 %v1857
  %v3740 = vunpack.c.l.b16 %v1858
  %v3741 = vunpack.c.h.b16 %v1858
  %v3742 = vunpack.c.l.b16 %v1859
  %v3743 = vunpack.c.l.b16 %v1860
  %v3744 = vunpack.c.h.b16 %v1860
  %v3745 = vunpack.c.l.b16 %v1861
  %v3746 = vunpack.c.h.b16 %v1861
  %v3747 = vunpack.c.l.b16 %v1862
  %v3748 = vunpack.c.l.b16 %v1863
  %v3749 = vunpack.c.h.b16 %v1863
  %v3750 = vunpack.c.l.b16 %v1864
  %v3751 = vunpack.c.h.b16 %v1864
  %v3752 = vunpack.c.l.b16 %v1865
  %v3753 = vunpack.c.l.b16 %v1866
  %v3754 = vunpack.c.h.b16 %v1866
  %v3755 = vunpack.c.l.b16 %v1867
  %v3756 = vunpack.c.h.b16 %v1867
  %v3757 = vunpack.c.l.b16 %v1868
  %v3758 = vunpack.c.l.b16 %v1869
  %v3759 = vunpack.c.h.b16 %v1869
  %v3760 = vunpack.c.l.b16 %v1870
  %v3761 = vunpack.c.h.b16 %v1870
  %v3762 = vunpack.c.l.b16 %v1871
  %v3763 = vunpack.c.l.b16 %v1872
  %v3764 = vunpack.c.h.b16 %v1872
  %v3765 = vunpack.c.l.b16 %v1873
  %v3766 = vunpack.c.h.b16 %v1873
  %v3767 = vunpack.c.l.b16 %v1874
  %v3768 = vunpack.c.l.b16 %v1875
  %v3769 = vunpack.c.h.b16 %v1875
  %v3770 = vunpack.c.l.b16 %v1876
  %v3771 = vunpack.c.h.b16 %v1876
  %v3772 = vunpack.c.l.b16 %v1877
  %v3773 = vunpack.c.l.b16 %v1878
  %v3774 = vunpack.c.h.b16 %v1878
  %v3775 = vunpack.c.l.b16 %v1879
  %v3776 = vunpack.c.h.b16 %v1879
  %v3777 = vunpack.c.l.b16 %v1880
  %v3778 = vunpack.c.l.b16 %v1881
  %v3779 = vunpack.c.h.b16 %v1881
  %v3780 = vunpack.c.l.b16 %v1882
  %v3781 = vunpack.c.h.b16 %v1882
  %v3782 = vunpack.c.l.b16 %v1883
  %v3783 = vunpack.c.l.b16 %v1884
  %v3784 = vunpack.c.h.b16 %v1884
  %v3785 = vunpack.c.l.b16 %v1885
  %v3786 = vunpack.c.h.b16 %v1885
  %v3787 = vunpack.c.l.b16 %v1886
  %v3788 = vunpack.c.l.b16 %v1887
  %v3789 = vunpack.c.h.b16 %v1887
  %v3790 = vunpack.c.l.b16 %v1888
  %v3791 = vunpack.c.h.b16 %v1888
  %v3792 = vunpack.c.l.b16 %v1889
  %v3793 = vunpack.c.l.b16 %v1890
  %v3794 = vunpack.c.h.b16 %v1890
  %v3795 = vunpack.c.l.b16 %v1891
  %v3796 = vunpack.c.h.b16 %v1891
  %v3797 = vunpack.c.l.b16 %v1892
  %v3798 = vunpack.c.l.b16 %v1893
  %v3799 = vunpack.c.h.b16 %v1893
  %v3800 = vunpack.c.l.b16 %v1894
  %v3801 = vunpack.c.h.b16 %v1894
  %v3802 = vunpack.c.l.b16 %v1895
  %v3803 = vunpack.c.l.b16 %v1896
  %v3804 = vunpack.c.h.b16 %v1896
  %v3805 = vunpack.c.l.b16 %v1897
  %v3806 = vunpack.c.h.b16 %v1897
  %v3807 = vunpack.c.l.b16 %v1898
  %v3808 = vunpack.c.l.b16 %v1899
  %v3809 = vunpack.c.h.b16 %v1899
  %v3810 = vunpack.c.l.b16 %v1900
  %v3811 = vunpack.c.h.b16 %v1900
  %v3812 = vunpack.c.l.b16 %v1901
  %v3813 = vunpack.c.l.b16 %v1902
  %v3814 = vunpack.c.h.b16 %v1902
  %v3815 = vunpack.c.l.b16 %v1903
  %v3816 = vunpack.c.h.b16 %v1903
  %v3817 = vunpack.c.l.b16 %v1904
  %v3818 = vunpack.c.l.b16 %v1905
  %v3819 = vunpack.c.h.b16 %v1905
  %v3820 = vunpack.c.l.b16 %v1906
  %v3821 = vunpack.c.h.b16 %v1906
  %v3822 = vunpack.c.l.b16 %v1907
  %v3823 = vunpack.c.l.b16 %v1908
  %v3824 = vunpack.c.h.b16 %v1908
  %v3825 = vunpack.c.l.b16 %v1909
  %v3826 = vunpack.c.h.b16 %v1909
  %v3827 = vunpack.c.l.b16 %v1910
  %v3828 = vunpack.c.l.b16 %v1911
  %v3829 = vunpack.c.h.b16 %v1911
  %v3830 = vunpack.c.l.b16 %v1912
  %v3831 = vunpack.c.h.b16 %v1912
  %v3832 = vunpack.c.l.b16 %v1913
  %v3833 = vunpack.c.l.b16 %v1914
  %v3834 = vunpack.c.h.b16 %v1914
  %v3835 = vunpack.c.l.b16 %v1915
  %v3836 = vunpack.c.h.b16 %v1915
  %v3837 = vunpack.c.l.b16 %v1916
  %v3838 = vunpack.c.l.b16 %v1917
  %v3839 = vunpack.c.h.b16 %v1917
  %v3840 = vunpack.c.l.b16 %v1918
  %v3841 = vunpack.c.h.b16 %v1918
  %v3842 = vunpack.c.l.b16 %v1919
  %v3843 = vunpack.c.l.b16 %v1920
  %v3844 = vunpack.c.h.b16 %v1920
  %v3845 = vunpack.c.l.b16 %v1921
  %v3846 = vunpack.c.h.b16 %v1921
  %v3847 = vunpack.c.l.b16 %v1922
  %v3848 = vunpack.c.l.b16 %v1923
  %v3849 = vunpack.c.h.b16 %v1923
  %v3850 = vunpack.c.l.b16 %v1924
  %v3851 = vunpack.c.h.b16 %v1924
  %v3852 = vunpack.c.l.b16 %v1925
  %v3853 = vunpack.c.l.b16 %v1926
  %v3854 = vunpack.c.h.b16 %v1926
  %v3855 = vunpack.c.l.b16 %v1927
  %v3856 = vunpack.c.h.b16 %v1927
  %v3857 = vunpack.c.l.b16 %v1928
  %v3858 = vunpack.c.l.b16 %v1929
  %v3859 = vunpack.c.h.b16 %v1929
  %v3860 = vunpack.c.l.b16 %v1930
  %v3861 = vunpack.c.h.b16 %v1930
  %v3862 = vunpack.c.l.b16 %v1931
  %v3863 = vunpack.c.l.b16 %v1932
  %v3864 = vunpack.c.h.b16 %v1932
  %v3865 = vunpack.c.l.b16 %v1933
  %v3866 = vunpack.c.h.b16 %v1933
  %v3867 = vunpack.c.l.b16 %v1934
  %v3868 = vunpack.c.l.b16 %v1935
  %v3869 = vunpack.c.h.b16 %v1935
  %v3870 = vunpack.c.l.b16 %v1936
  %v3871 = vunpack.c.h.b16 %v1936
  %v3872 = vunpack.c.l.b16 %v1937
  %v3873 = vunpack.c.l.b16 %v1938
  %v3874 = vunpack.c.h.b16 %v1938
  %v3875 = vunpack.c.l.b16 %v1939
  %v3876 = vunpack.c.h.b16 %v1939
  %v3877 = vunpack.c.l.b16 %v1940
  %v3878 = vunpack.c.l.b16 %v1941
  %v3879 = vunpack.c.h.b16 %v1941
  %v3880 = vunpack.c.l.b16 %v1942
  %v3881 = vunpack.c.h.b16 %v1942
  %v3882 = vunpack.c.l.b16 %v1943
  %v3883 = vunpack.c.l.b16 %v1944
  %v3884 = vunpack.c.h.b16 %v1944
  %v3885 = vunpack.c.l.b16 %v1945
  %v3886 = vunpack.c.h.b16 %v1945
  %v3887 = vunpack.c.l.b16 %v1946
  %v3888 = vunpack.c.l.b16 %v1947
  %v3889 = vunpack.c.h.b16 %v1947
  %v3890 = vunpack.c.l.b16 %v1948
  %v3891 = vunpack.c.h.b16 %v1948
  %v3892 = vunpack.c.l.b16 %v1949
  %v3893 = vunpack.c.l.b16 %v1950
  %v3894 = vunpack.c.h.b16 %v1950
  %v3895 = vunpack.c.l.b16 %v1951
  %v3896 = vunpack.c.h.b16 %v1951
  %v3897 = vunpack.c.l.b16 %v1952
  %v3898 = vunpack.c.l.b16 %v1953
  %v3899 = vunpack.c.h.b16 %v1953
  %v3900 = vunpack.c.l.b16 %v1954
  %v3901 = vunpack.c.h.b16 %v1954
  %v3902 = vunpack.c.l.b16 %v1955
  %v3903 = vunpack.c.l.b16 %v1956
  %v3904 = vunpack.c.h.b16 %v1956
  %v3905 = vunpack.c.l.b16 %v1957
  %v3906 = vunpack.c.h.b16 %v1957
  %v3907 = vunpack.c.l.b16 %v1958
  %v3908 = vunpack.c.l.b16 %v1959
  %v3909 = vunpack.c.h.b16 %v1959
  %v3910 = vunpack.c.l.b16 %v1960
  %v3911 = vunpack.c.h.b16 %v1960
  %v3912 = vunpack.c.l.b16 %v1961
  %v3913 = vunpack.c.l.b16 %v1962
  %v3914 = vunpack.c.h.b16 %v1962
  %v3915 = vunpack.c.l.b16 %v1963
  %v3916 = vunpack.c.h.b16 %v1963
  %v3917 = vunpack.c.l.b16 %v1964
  %v3918 = vunpack.c.l.b16 %v1965
  %v3919 = vunpack.c.h.b16 %v1965
  %v3920 = vunpack.c.l.b16 %v1966
  %v3921 = vunpack.c.h.b16 %v1966
  %v3922 = vunpack.c.l.b16 %v1967
  %v3923 = vunpack.c.l.b16 %v1968
  %v3924 = vunpack.c.h.b16 %v1968
  %v3925 = vunpack.c.l.b16 %v1969
  %v3926 = vunpack.c.h.b16 %v1969
  %v3927 = vunpack.c.l.b16 %v1970
  %v3928 = vunpack.c.l.b16 %v1971
  %v3929 = vunpack.c.h.b16 %v1971
  %v3930 = vunpack.c.l.b16 %v1972
  %v3931 = vunpack.c.h.b16 %v1972
  %v3932 = vunpack.c.l.b16 %v1973
  %v3933 = vunpack.c.l.b16 %v1974
  %v3934 = vunpack.c.h.b16 %v1974
  %v3935 = vunpack.c.l.b16 %v1975
  %v3936 = vunpack.c.h.b16 %v1975
  %v3937 = vunpack.c.l.b16 %v1976
  %v3938 = vunpack.c.l.b16 %v1977
  %v3939 = vunpack.c.h.b16 %v1977
  %v3940 = vunpack.c.l.b16 %v1978
  %v3941 = vunpack.c.h.b16 %v1978
  %v3942 = vunpack.c.l.b16 %v1979
  %v3943 = vunpack.c.l.b16 %v1980
  %v3944 = vunpack.c.h.b16 %v1980
  %v3945 = vunpack.c.l.b16 %v1981
  %v3946 = vunpack.c.h.b16 %v1981
  %v3947 = vunpack.c.l.b16 %v1982
  %v3948 = vunpack.c.l.b16 %v1983
  %v3949 = vunpack.c.h.b16 %v1983
  %v3950 = vunpack.c.l.b16 %v1984
  %v3951 = vunpack.c.h.b16 %v1984
  %v3952 = vunpack.c.l.b16 %v1985
  %v3953 = vunpack.c.l.b16 %v1986
  %v3954 = vunpack.c.h.b16 %v1986
  %v3955 = vunpack.c.l.b16 %v1987
  %v3956 = vunpack.c.h.b16 %v1987
  %v3957 = vunpack.c.l.b16 %v1988
  %v3958 = vunpack.c.l.b16 %v1989
  %v3959 = vunpack.c.h.b16 %v1989
  %v3960 = vunpack.c.l.b16 %v1990
  %v3961 = vunpack.c.h.b16 %v1990
  %v3962 = vunpack.c.l.b16 %v1991
  %v3963 = vunpack.c.l.b16 %v1992
  %v3964 = vunpack.c.h.b16 %v1992
  %v3965 = vunpack.c.l.b16 %v1993
  %v3966 = vunpack.c.h.b16 %v1993
  %v3967 = vunpack.c.l.b16 %v1994
  %v3968 = vunpack.c.l.b16 %v1995
  %v3969 = vunpack.c.h.b16 %v1995
  %v3970 = vunpack.c.l.b16 %v1996
  %v3971 = vunpack.c.h.b16 %v1996
  %v3972 = vunpack.c.l.b16 %v1997
  %v3973 = vunpack.c.l.b16 %v1998
  %v3974 = vunpack.c.h.b16 %v1998
  %v3975 = vunpack.c.l.b16 %v1999
  %v3976 = vunpack.c.h.b16 %v1999
  %v3977 = vunpack.c.l.b16 %v2000
  %v3978 = vunpack.c.l.b16 %v2001
  %v3979 = vunpack.c.h.b16 %v2001
  %v3980 = vunpack.c.l.b16 %v2002
  %v3981 = vunpack.c.h.b16 %v2002
  %v3982 = vunpack.c.l.b16 %v2003
  %v3983 = vunpack.c.l.b16 %v2004
  %v3984 = vunpack.c.h.b16 %v2004
  %v3985 = vunpack.c.l.b16 %v2005
  %v3986 = vunpack.c.h.b16 %v2005
  %v3987 = vunpack.c.l.b16 %v2006
  %v3988 = vunpack.c.l.b16 %v2007
  %v3989 = vunpack.c.h.b16 %v2007
  %v3990 = vunpack.c.l.b16 %v2008
  %v3991 = vunpack.c.h.b16 %v2008
  %v3992 = vunpack.c.l.b16 %v2009
  %v3993 = vunpack.c.l.b16 %v2010
  %v3994 = vunpack.c.h.b16 %v2010
  %v3995 = vunpack.c.l.b16 %v2011
  %v3996 = vunpack.c.h.b16 %v2011
  %v3997 = vunpack.c.l.b16 %v2012
  %v3998 = vunpack.c.l.b16 %v2013
  %v3999 = vunpack.c.h.b16 %v2013
  %v4000 = vunpack.c.l.b16 %v2014
  %v4001 = vunpack.c.h.b16 %v2014
  %v4002 = vunpack.c.l.b16 %v2015
  %v4003 = vunpack.c.l.b16 %v2016
  %v4004 = vunpack.c.h.b16 %v2016
  %v4005 = vunpack.c.l.b16 %v2017
  %v4006 = vunpack.c.h.b16 %v2017
  %v4007 = vunpack.c.l.b16 %v2018
  %v4008 = vunpack.c.l.b16 %v2019
  %v4009 = vunpack.c.h.b16 %v2019
  %v4010 = vunpack.c.l.b16 %v2020
  %v4011 = vunpack.c.h.b16 %v2020
  %v4012 = vunpack.c.l.b16 %v2021
  %v4013 = vunpack.c.l.b16 %v2022
  %v4014 = vunpack.c.h.b16 %v2022
  %v4015 = vunpack.c.l.b16 %v2023
  %v4016 = vunpack.c.h.b16 %v2023
  %v4017 = vunpack.c.l.b16 %v2024
  %v4018 = vunpack.c.l.b16 %v2025
  %v4019 = vunpack.c.h.b16 %v2025
  %v4020 = vunpack.c.l.b16 %v2026
  %v4021 = vunpack.c.h.b16 %v2026
  %v4022 = vunpack.c.l.b16 %v2027
  %v4023 = vunpack.c.l.b16 %v2028
  %v4024 = vunpack.c.h.b16 %v2028
  %v4025 = vunpack.c.l.b16 %v2029
  %v4026 = vunpack.c.h.b16 %v2029
  %v4027 = vunpack.c.l.b16 %v2030
  %v4028 = vunpack.c.l.b16 %v2031
  %v4029 = vunpack.c.h.b16 %v2031
  %v4030 = vunpack.c.l.b16 %v2032
  %v4031 = vunpack.c.h.b16 %v2032
  %v4032 = vunpack.c.l.b16 %v2033
  %v4033 = vunpack.c.l.b16 %v2034
  %v4034 = vunpack.c.h.b16 %v2034
  %v4035 = vunpack.c.l.b16 %v2035
  %v4036 = vunpack.c.h.b16 %v2035
  %v4037 = vunpack.c.l.b16 %v2036
  %v4038 = vunpack.c.l.b16 %v2037
  %v4039 = vunpack.c.h.b16 %v2037
  %v4040 = vunpack.c.l.b16 %v2038
  %v4041 = vunpack.c.h.b16 %v2038
  %v4042 = vunpack.c.l.b16 %v2039
  %v4043 = vunpack.c.l.b16 %v2040
  %v4044 = vunpack.c.h.b16 %v2040
  %v4045 = vunpack.c.l.b16 %v2041
  %v4046 = vunpack.c.h.b16 %v2041
  %v4047 = vunpack.c.l.b16 %v2042
  %v4048 = vunpack.c.l.b16 %v2043
  %v4049 = vunpack.c.h.b16 %v2043
  %v4050 = vunpack.c.l.b16 %v2044
  %v4051 = vunpack.c.h.b16 %v2044
  %v4052 = vunpack.c.l.b16 %v2045
  %v4053 = vunpack.c.l.b16 %v2046
  %v4054 = vunpack.c.h.b16 %v2046
  %v4055 = vunpack.c.l.b16 %v2047
  %v4056 = vunpack.c.h.b16 %v2047
  %v4057 = vunpack.c.l.b16 %v2048
  %v4058 = vunpack.c.l.b16 %v2049
  %v4059 = vunpack.c.h.b16 %v2049
  %v4060 = vunpack.c.l.b16 %v2050
  %v4061 = vunpack.c.h.b16 %v2050
  %v4062 = vunpack.c.l.b16 %v2051
  %v4063 = vunpack.c.l.b16 %v2052
  %v4064 = vunpack.c.h.b16 %v2052
  %v4065 = vunpack.c.l.b16 %v2053
  %v4066 = vunpack.c.h.b16 %v2053
  %v4067 = vunpack.c.l.b16 %v2054
  %v4068 = vunpack.c.l.b16 %v2055
  %v4069 = vunpack.c.h.b16 %v2055
  %v4070 = vunpack.c.l.b16 %v2056
  %v4071 = vunpack.c.h.b16 %v2056
  %v4072 = vunpack.c.l.b16 %v2057
  %v4073 = vunpack.c.l.b16 %v2058
  %v4074 = vunpack.c.h.b16 %v2058
  %v4075 = vunpack.c.l.b16 %v2059
  %v4076 = vunpack.c.h.b16 %v2059
  %v4077 = vunpack.c.l.b16 %v2060
  %v4078 = vunpack.c.l.b16 %v2061
  %v4079 = vunpack.c.h.b16 %v2061
  %v4080 = vunpack.c.l.b16 %v2062
  %v4081 = vunpack.c.h.b16 %v2062
  %v4082 = vunpack.c.l.b16 %v2063
  %v4083 = vunpack.c.l.b16 %v2064
  %v4084 = vunpack.c.h.b16 %v2064
  %v4085 = vunpack.c.l.b16 %v2065
  %v4086 = vunpack.c.h.b16 %v2065
  %v4087 = vunpack.c.l.b16 %v2066
  %v4088 = vunpack.c.l.b16 %v2067
  %v4089 = vunpack.c.h.b16 %v2067
  %v4090 = vunpack.c.l.b16 %v2068
  %v4091 = vunpack.c.h.b16 %v2068
  %v4092 = vunpack.c.l.b16 %v2069
  %v4093 = vunpack.c.l.b16 %v2070
  %v4094 = vunpack.c.h.b16 %v2070
  %v4095 = vunpack.c.l.b16 %v2071
  %v4096 = vunpack.c.h.b16 %v2071
  %v4097 = vunpack.c.l.b16 %v2072
  %v4098 = vunpack.c.l.b16 %v2073
  %v4099 = vunpack.c.h.b16 %v2073
  %v4100 = vunpack.c.l.b16 %v2074
  %v4101 = vunpack.c.h.b16 %v2074
  %v4102 = vunpack.c.l.b16 %v2075
  %v4103 = vunpack.c.l.b16 %v2076
  %v4104 = vunpack.c.h.b16 %v2076
  %v4105 = vunpack.c.l.b16 %v2077
  %v4106 = vunpack.c.h.b16 %v2077
  %v4107 = vunpack.c.l.b16 %v2078
  %v4108 = vunpack.c.l.b16 %v2079
  %v4109 = vunpack.c.h.b16 %v2079
  %v4110 = vunpack.c.l.b16 %v2080
  %v4111 = vunpack.c.h.b16 %v2080
  %v4112 = vunpack.c.l.b16 %v2081
  %v4113 = vunpack.c.l.b16 %v2082
  %v4114 = vunpack.c.h.b16 %v2082
  %v4115 = vunpack.c.l.b16 %v2083
  %v4116 = vunpack.c.h.b16 %v2083
  %v4117 = vunpack.c.l.b16 %v2084
  %v4118 = vunpack.c.l.b16 %v2085
  %v4119 = vunpack.c.h.b16 %v2085
  %v4120 = vunpack.c.l.b16 %v2086
  %v4121 = vunpack.c.h.b16 %v2086
  %v4122 = vunpack.c.l.b16 %v2087
  %v4123 = vunpack.c.l.b16 %v2088
  %v4124 = vunpack.c.h.b16 %v2088
  %v4125 = vunpack.c.l.b16 %v2089
  %v4126 = vunpack.c.h.b16 %v2089
  %v4127 = vunpack.c.l.b16 %v2090
  %v4128 = vunpack.c.l.b16 %v2091
  %v4129 = vunpack.c.h.b16 %v2091
  %v4130 = vunpack.c.l.b16 %v2092
  %v4131 = vunpack.c.h.b16 %v2092
  %v4132 = vunpack.c.l.b16 %v2093
  %v4133 = vunpack.c.l.b16 %v2094
  %v4134 = vunpack.c.h.b16 %v2094
  %v4135 = vunpack.c.l.b16 %v2095
  %v4136 = vunpack.c.h.b16 %v2095
  %v4137 = vunpack.c.l.b16 %v2096
  %v4138 = vunpack.c.l.b16 %v2097
  %v4139 = vunpack.c.h.b16 %v2097
  %v4140 = vunpack.c.l.b16 %v2098
  %v4141 = vunpack.c.h.b16 %v2098
  %v4142 = vunpack.c.l.b16 %v2099
  %v4143 = vunpack.c.l.b16 %v2100
  %v4144 = vunpack.c.h.b16 %v2100
  %v4145 = vunpack.c.l.b16 %v2101
  %v4146 = vunpack.c.h.b16 %v2101
  %v4147 = vunpack.c.l.b16 %v2102
  %v4148 = vunpack.c.l.b16 %v2103
  %v4149 = vunpack.c.h.b16 %v2103
  %v4150 = vunpack.c.l.b16 %v2104
  %v4151 = vunpack.c.h.b16 %v2104
  %v4152 = vunpack.c.l.b16 %v2105
  %v4153 = vunpack.c.l.b16 %v2106
  %v4154 = vunpack.c.h.b16 %v2106
  %v4155 = vunpack.c.l.b16 %v2107
  %v4156 = vunpack.c.h.b16 %v2107
  %v4157 = vunpack.c.l.b16 %v2108
  %v4158 = vunpack.c.l.b16 %v2109
  %v4159 = vunpack.c.h.b16 %v2109
  %v4160 = vunpack.c.l.b16 %v2110
  %v4161 = vunpack.c.h.b16 %v2110
  %v4162 = vunpack.c.l.b16 %v2111
  %v4163 = vunpack.c.l.b16 %v2112
  %v4164 = vunpack.c.h.b16 %v2112
  %v4165 = vunpack.c.l.b16 %v2113
  %v4166 = vunpack.c.h.b16 %v2113
  %v4167 = vunpack.c.l.b16 %v2114
  %v4168 = vunpack.c.l.b16 %v2115
  %v4169 = vunpack.c.h.b16 %v2115
  %v4170 = vunpack.c.l.b16 %v2116
  %v4171 = vunpack.c.h.b16 %v2116
  %v4172 = vunpack.c.l.b16 %v2117
  %v4173 = vunpack.c.l.b16 %v2118
  %v4174 = vunpack.c.h.b16 %v2118
  %v4175 = vunpack.c.l.b16 %v2119
  %v4176 = vunpack.c.h.b16 %v2119
  %v4177 = vunpack.c.l.b16 %v2120
  %v4178 = vunpack.c.l.b16 %v2121
  %v4179 = vunpack.c.h.b16 %v2121
  %v4180 = vunpack.c.l.b16 %v2122
  %v4181 = vunpack.c.h.b16 %v2122
  %v4182 = vunpack.c.l.b16 %v2123
  %v4183 = vunpack.c.l.b16 %v2124
  %v4184 = vunpack.c.h.b16 %v2124
  %v4185 = vunpack.c.l.b16 %v2125
  %v4186 = vunpack.c.h.b16 %v2125
  %v4187 = vunpack.c.l.b16 %v2126
  %v4188 = vunpack.c.l.b16 %v2127
  %v4189 = vunpack.c.h.b16 %v2127
  %v4190 = vunpack.c.l.b16 %v2128
  %v4191 = vunpack.c.h.b16 %v2128
  %v4192 = vunpack.c.l.b16 %v2129
  %v4193 = vunpack.c.l.b16 %v2130
  %v4194 = vunpack.c.h.b16 %v2130
  %v4195 = vunpack.c.l.b16 %v2131
  %v4196 = vunpack.c.h.b16 %v2131
  %v4197 = vunpack.c.l.b16 %v2132
  %v4198 = vunpack.c.l.b16 %v2133
  %v4199 = vunpack.c.h.b16 %v2133
  %v4200 = vunpack.c.l.b16 %v2134
  %v4201 = vunpack.c.h.b16 %v2134
  %v4202 = vunpack.c.l.b16 %v2135
  %v4203 = vunpack.c.l.b16 %v2136
  %v4204 = vunpack.c.h.b16 %v2136
  %v4205 = vunpack.c.l.b16 %v2137
  %v4206 = vunpack.c.h.b16 %v2137
  %v4207 = vunpack.c.l.b16 %v2138
  %v4208 = vunpack.c.l.b16 %v2139
  %v4209 = vunpack.c.h.b16 %v2139
  %v4210 = vunpack.c.l.b16 %v2140
  %v4211 = vunpack.c.h.b16 %v2140
  %v4212 = vunpack.c.l.b16 %v2141
  %v4213 = vunpack.c.l.b16 %v2142
  %v4214 = vunpack.c.h.b16 %v2142
  %v4215 = vunpack.c.l.b16 %v2143
  %v4216 = vunpack.c.h.b16 %v2143
  %v4217 = vunpack.c.l.b16 %v2144
  %v4218 = vunpack.c.l.b16 %v2145
  %v4219 = vunpack.c.h.b16 %v2145
  %v4220 = vunpack.c.l.b16 %v2146
  %v4221 = vunpack.c.h.b16 %v2146
  %v4222 = vunpack.c.l.b16 %v2147
  %v4223 = vpack.c.b16 %v2948, %v2943
  %v4224 = vpack.c.b16 %v2949, %v2944
  %v4225 = vpack.c.b16 %v2950, %v2945
  %v4226 = vpack.c.b16 %v2951, %v2946
  %v4227 = vpack.c.b16 %v2952, %v2947
  %v4228 = vpack.c.b16 %v2958, %v2953
  %v4229 = vpack.c.b16 %v2959, %v2954
  %v4230 = vpack.c.b16 %v2960, %v2955
  %v4231 = vpack.c.b16 %v2961, %v2956
  %v4232 = vpack.c.b16 %v2962, %v2957
  %v4233 = vpack.c.b16 %v2968, %v2963
  %v4234 = vpack.c.b16 %v2969, %v2964
  %v4235 = vpack.c.b16 %v2970, %v2965
  %v4236 = vpack.c.b16 %v2971, %v2966
  %v4237 = vpack.c.b16 %v2972, %v2967
  %v4238 = vpack.c.b16 %v2978, %v2973
  %v4239 = vpack.c.b16 %v2979, %v2974
  %v4240 = vpack.c.b16 %v2980, %v2975
  %v4241 = vpack.c.b16 %v2981, %v2976
  %v4242 = vpack.c.b16 %v2982, %v2977
  %v4243 = vpack.c.b16 %v2988, %v2983
  %v4244 = vpack.c.b16 %v2989, %v2984
  %v4245 = vpack.c.b16 %v2990, %v2985
  %v4246 = vpack.c.b16 %v2991, %v2986
  %v4247 = vpack.c.b16 %v2992, %v2987
  %v4248 = vpack.c.b16 %v2998, %v2993
  %v4249 = vpack.c.b16 %v2999, %v2994
  %v4250 = vpack.c.b16 %v3000, %v2995
  %v4251 = vpack.c.b16 %v3001, %v2996
  %v4252 = vpack.c.b16 %v3002, %v2997
  %v4253 = vpack.c.b16 %v3008, %v3003
  %v4254 = vpack.c.b16 %v3009, %v3004
  %v4255 = vpack.c.b16 %v3010, %v3005
  %v4256 = vpack.c.b16 %v3011, %v3006
  %v4257 = vpack.c.b16 %v3012, %v3007
  %v4258 = vpack.c.b16 %v3018, %v3013
  %v4259 = vpack.c.b16 %v3019, %v3014
  %v4260 = vpack.c.b16 %v3020, %v3015
  %v4261 = vpack.c.b16 %v3021, %v3016
  %v4262 = vpack.c.b16 %v3022, %v3017
  %v4263 = vpack.c.b16 %v3028, %v3023
  %v4264 = vpack.c.b16 %v3029, %v3024
  %v4265 = vpack.c.b16 %v3030, %v3025
  %v4266 = vpack.c.b16 %v3031, %v3026
  %v4267 = vpack.c.b16 %v3032, %v3027
  %v4268 = vpack.c.b16 %v3038, %v3033
  %v4269 = vpack.c.b16 %v3039, %v3034
  %v4270 = vpack.c.b16 %v3040, %v3035
  %v4271 = vpack.c.b16 %v3041, %v3036
  %v4272 = vpack.c.b16 %v3042, %v3037
  %v4273 = vpack.c.b16 %v3048, %v3043
  %v4274 = vpack.c.b16 %v3049, %v3044
  %v4275 = vpack.c.b16 %v3050, %v3045
  %v4276 = vpack.c.b16 %v3051, %v3046
  %v4277 = vpack.c.b16 %v3052, %v3047
  %v4278 = vpack.c.b16 %v3058, %v3053
  %v4279 = vpack.c.b16 %v3059, %v3054
  %v4280 = vpack.c.b16 %v3060, %v3055
  %v4281 = vpack.c.b16 %v3061, %v3056
  %v4282 = vpack.c.b16 %v3062, %v3057
  %v4283 = vpack.c.b16 %v3068, %v3063
  %v4284 = vpack.c.b16 %v3069, %v3064
  %v4285 = vpack.c.b16 %v3070, %v3065
  %v4286 = vpack.c.b16 %v3071, %v3066
  %v4287 = vpack.c.b16 %v3072, %v3067
  %v4288 = vpack.c.b16 %v3078, %v3073
  %v4289 = vpack.c.b16 %v3079, %v3074
  %v4290 = vpack.c.b16 %v3080, %v3075
  %v4291 = vpack.c.b16 %v3081, %v3076
  %v4292 = vpack.c.b16 %v3082, %v3077
  %v4293 = vpack.c.b16 %v3088, %v3083
  %v4294 = vpack.c.b16 %v3089, %v3084
  %v4295 = vpack.c.b16 %v3090, %v3085
  %v4296 = vpack.c.b16 %v3091, %v3086
  %v4297 = vpack.c.b16 %v3092, %v3087
  %v4298 = vpack.c.b16 %v3098, %v3093
  %v4299 = vpack.c.b16 %v3099, %v3094
  %v4300 = vpack.c.b16 %v3100, %v3095
  %v4301 = vpack.c.b16 %v3101, %v3096
  %v4302 = vpack.c.b16 %v3102, %v3097
  %v4303 = vpack.c.b16 %v3108, %v3103
  %v4304 = vpack.c.b16 %v3109, %v3104
  %v4305 = vpack.c.b16 %v3110, %v3105
  %v4306 = vpack.c.b16 %v3111, %v3106
  %v4307 = vpack.c.b16 %v3112, %v3107
  %v4308 = vpack.c.b16 %v3118, %v3113
  %v4309 = vpack.c.b16 %v3119, %v3114
  %v4310 = vpack.c.b16 %v3120, %v3115
  %v4311 = vpack.c.b16 %v3121, %v3116
  %v4312 = vpack.c.b16 %v3122, %v3117
  %v4313 = vpack.c.b16 %v3128, %v3123
  %v4314 = vpack.c.b16 %v3129, %v3124
  %v4315 = vpack.c.b16 %v3130, %v3125
  %v4316 = vpack.c.b16 %v3131, %v3126
  %v4317 = vpack.c.b16 %v3132, %v3127
  %v4318 = vpack.c.b16 %v3138, %v3133
  %v4319 = vpack.c.b16 %v3139, %v3134
  %v4320 = vpack.c.b16 %v3140, %v3135
  %v4321 = vpack.c.b16 %v3141, %v3136
  %v4322 = vpack.c.b16 %v3142, %v3137
  %v4323 = vpack.c.b16 %v3148, %v3143
  %v4324 = vpack.c.b16 %v3149, %v3144
  %v4325 = vpack.c.b16 %v3150, %v3145
  %v4326 = vpack.c.b16 %v3151, %v3146
  %v4327 = vpack.c.b16 %v3152, %v3147
  %v4328 = vpack.c.b16 %v3158, %v3153
  %v4329 = vpack.c.b16 %v3159, %v3154
  %v4330 = vpack.c.b16 %v3160, %v3155
  %v4331 = vpack.c.b16 %v3161, %v3156
  %v4332 = vpack.c.b16 %v3162, %v3157
  %v4333 = vpack.c.b16 %v3168, %v3163
  %v4334 = vpack.c.b16 %v3169, %v3164
  %v4335 = vpack.c.b16 %v3170, %v3165
  %v4336 = vpack.c.b16 %v3171, %v3166
  %v4337 = vpack.c.b16 %v3172, %v3167
  %v4338 = vpack.c.b16 %v3178, %v3173
  %v4339 = vpack.c.b16 %v3179, %v3174
  %v4340 = vpack.c.b16 %v3180, %v3175
  %v4341 = vpack.c.b16 %v3181, %v3176
  %v4342 = vpack.c.b16 %v3182, %v3177
  %v4343 = vpack.c.b16 %v3188, %v3183
  %v4344 = vpack.c.b16 %v3189, %v3184
  %v4345 = vpack.c.b16 %v3190, %v3185
  %v4346 = vpack.c.b16 %v3191, %v3186
  %v4347 = vpack.c.b16 %v3192, %v3187
  %v4348 = vpack.c.b16 %v3198, %v3193
  %v4349 = vpack.c.b16 %v3199, %v3194
  %v4350 = vpack.c.b16 %v3200, %v3195
  %v4351 = vpack.c.b16 %v3201, %v3196
  %v4352 = vpack.c.b16 %v3202, %v3197
  %v4353 = vpack.c.b16 %v3208, %v3203
  %v4354 = vpack.c.b16 %v3209, %v3204
  %v4355 = vpack.c.b16 %v3210, %v3205
  %v4356 = vpack.c.b16 %v3211, %v3206
  %v4357 = vpack.c.b16 %v3212, %v3207
  %v4358 = vpack.c.b16 %v3218, %v3213
  %v4359 = vpack.c.b16 %v3219, %v3214
  %v4360 = vpack.c.b16 %v3220, %v3215
  %v4361 = vpack.c.b16 %v3221, %v3216
  %v4362 = vpack.c.b16 %v3222, %v3217
  %v4363 = vpack.c.b16 %v3228, %v3223
  %v4364 = vpack.c.b16 %v3229, %v3224
  %v4365 = vpack.c.b16 %v3230, %v3225
  %v4366 = vpack.c.b16 %v3231, %v3226
  %v4367 = vpack.c.b16 %v3232, %v3227
  %v4368 = vpack.c.b16 %v3238, %v3233
  %v4369 = vpack.c.b16 %v3239, %v3234
  %v4370 = vpack.c.b16 %v3240, %v3235
  %v4371 = vpack.c.b16 %v3241, %v3236
  %v4372 = vpack.c.b16 %v3242, %v3237
  %v4373 = vpack.c.b16 %v3248, %v3243
  %v4374 = vpack.c.b16 %v3249, %v3244
  %v4375 = vpack.c.b16 %v3250, %v3245
  %v4376 = vpack.c.b16 %v3251, %v3246
  %v4377 = vpack.c.b16 %v3252, %v3247
  %v4378 = vpack.c.b16 %v3258, %v3253
  %v4379 = vpack.c.b16 %v3259, %v3254
  %v4380 = vpack.c.b16 %v3260, %v3255
  %v4381 = vpack.c.b16 %v3261, %v3256
  %v4382 = vpack.c.b16 %v3262, %v3257
  %v4383 = vpack.c.b16 %v3268, %v3263
  %v4384 = vpack.c.b16 %v3269, %v3264
  %v4385 = vpack.c.b16 %v3270, %v3265
  %v4386 = vpack.c.b16 %v3271, %v3266
  %v4387 = vpack.c.b16 %v3272, %v3267
  %v4388 = vpack.c.b16 %v3278, %v3273
  %v4389 = vpack.c.b16 %v3279, %v3274
  %v4390 = vpack.c.b16 %v3280, %v3275
  %v4391 = vpack.c.b16 %v3281, %v3276
  %v4392 = vpack.c.b16 %v3282, %v3277
  %v4393 = vpack.c.b16 %v3288, %v3283
  %v4394 = vpack.c.b16 %v3289, %v3284
  %v4395 = vpack.c.b16 %v3290, %v3285
  %v4396 = vpack.c.b16 %v3291, %v3286
  %v4397 = vpack.c.b16 %v3292, %v3287
  %v4398 = vpack.c.b16 %v3298, %v3293
  %v4399 = vpack.c.b16 %v3299, %v3294
  %v4400 = vpack.c.b16 %v3300, %v3295
  %v4401 = vpack.c.b16 %v3301, %v3296
  %v4402 = vpack.c.b16 %v3302, %v3297
  %v4403 = vpack.c.b16 %v3308, %v3303
  %v4404 = vpack.c.b16 %v3309, %v3304
  %v4405 = vpack.c.b16 %v3310, %v3305
  %v4406 = vpack.c.b16 %v3311, %v3306
  %v4407 = vpack.c.b16 %v3312, %v3307
  %v4408 = vpack.c.b16 %v3318, %v3313
  %v4409 = vpack.c.b16 %v3319, %v3314
  %v4410 = vpack.c.b16 %v3320, %v3315
  %v4411 = vpack.c.b16 %v3321, %v3316
  %v4412 = vpack.c.b16 %v3322, %v3317
  %v4413 = vpack.c.b16 %v3328, %v3323
  %v4414 = vpack.c.b16 %v3329, %v3324
  %v4415 = vpack.c.b16 %v3330, %v3325
  %v4416 = vpack.c.b16 %v3331, %v3326
  %v4417 = vpack.c.b16 %v3332, %v3327
  %v4418 = vpack.c.b16 %v3338, %v3333
  %v4419 = vpack.c.b16 %v3339, %v3334
  %v4420 = vpack.c.b16 %v3340, %v3335
  %v4421 = vpack.c.b16 %v3341, %v3336
  %v4422 = vpack.c.b16 %v3342, %v3337
  %v4423 = vpack.c.b16 %v3348, %v3343
  %v4424 = vpack.c.b16 %v3349, %v3344
  %v4425 = vpack.c.b16 %v3350, %v3345
  %v4426 = vpack.c.b16 %v3351, %v3346
  %v4427 = vpack.c.b16 %v3352, %v3347
  %v4428 = vpack.c.b16 %v3358, %v3353
  %v4429 = vpack.c.b16 %v3359, %v3354
  %v4430 = vpack.c.b16 %v3360, %v3355
  %v4431 = vpack.c.b16 %v3361, %v3356
  %v4432 = vpack.c.b16 %v3362, %v3357
  %v4433 = vpack.c.b16 %v3368, %v3363
  %v4434 = vpack.c.b16 %v3369, %v3364
  %v4435 = vpack.c.b16 %v3370, %v3365
  %v4436 = vpack.c.b16 %v3371, %v3366
  %v4437 = vpack.c.b16 %v3372, %v3367
  %v4438 = vpack.c.b16 %v3378, %v3373
  %v4439 = vpack.c.b16 %v3379, %v3374
  %v4440 = vpack.c.b16 %v3380, %v3375
  %v4441 = vpack.c.b16 %v3381, %v3376
  %v4442 = vpack.c.b16 %v3382, %v3377
  %v4443 = vpack.c.b16 %v3388, %v3383
  %v4444 = vpack.c.b16 %v3389, %v3384
  %v4445 = vpack.c.b16 %v3390, %v3385
  %v4446 = vpack.c.b16 %v3391, %v3386
  %v4447 = vpack.c.b16 %v3392, %v3387
  %v4448 = vpack.c.b16 %v3398, %v3393
  %v4449 = vpack.c.b16 %v3399, %v3394
  %v4450 = vpack.c.b16 %v3400, %v3395
  %v4451 = vpack.c.b16 %v3401, %v3396
  %v4452 = vpack.c.b16 %v3402, %v3397
  %v4453 = vpack.c.b16 %v3408, %v3403
  %v4454 = vpack.c.b16 %v3409, %v3404
  %v4455 = vpack.c.b16 %v3410, %v3405
  %v4456 = vpack.c.b16 %v3411, %v3406
  %v4457 = vpack.c.b16 %v3412, %v3407
  %v4458 = vpack.c.b16 %v3418, %v3413
  %v4459 = vpack.c.b16 %v3419, %v3414
  %v4460 = vpack.c.b16 %v3420, %v3415
  %v4461 = vpack.c.b16 %v3421, %v3416
  %v4462 = vpack.c.b16 %v3422, %v3417
  %v4463 = vpack.c.b16 %v3428, %v3423
  %v4464 = vpack.c.b16 %v3429, %v3424
  %v4465 = vpack.c.b16 %v3430, %v3425
  %v4466 = vpack.c.b16 %v3431, %v3426
  %v4467 = vpack.c.b16 %v3432, %v3427
  %v4468 = vpack.c.b16 %v3438, %v3433
  %v4469 = vpack.c.b16 %v3439, %v3434
  %v4470 = vpack.c.b16 %v3440, %v3435
  %v4471 = vpack.c.b16 %v3441, %v3436
  %v4472 = vpack.c.b16 %v3442, %v3437
  %v4473 = vpack.c.b16 %v3448, %v3443
  %v4474 = vpack.c.b16 %v3449, %v3444
  %v4475 = vpack.c.b16 %v3450, %v3445
  %v4476 = vpack.c.b16 %v3451, %v3446
  %v4477 = vpack.c.b16 %v3452, %v3447
  %v4478 = vpack.c.b16 %v3458, %v3453
  %v4479 = vpack.c.b16 %v3459, %v3454
  %v4480 = vpack.c.b16 %v3460, %v3455
  %v4481 = vpack.c.b16 %v3461, %v3456
  %v4482 = vpack.c.b16 %v3462, %v3457
  %v4483 = vpack.c.b16 %v3468, %v3463
  %v4484 = vpack.c.b16 %v3469, %v3464
  %v4485 = vpack.c.b16 %v3470, %v3465
  %v4486 = vpack.c.b16 %v3471, %v3466
  %v4487 = vpack.c.b16 %v3472, %v3467
  %v4488 = vpack.c.b16 %v3478, %v3473
  %v4489 = vpack.c.b16 %v3479, %v3474
  %v4490 = vpack.c.b16 %v3480, %v3475
  %v4491 = vpack.c.b16 %v3481, %v3476
  %v4492 = vpack.c.b16 %v3482, %v3477
  %v4493 = vpack.c.b16 %v3488, %v3483
  %v4494 = vpack.c.b16 %v3489, %v3484
  %v4495 = vpack.c.b16 %v3490, %v3485
  %v4496 = vpack.c.b16 %v3491, %v3486
  %v4497 = vpack.c.b16 %v3492, %v3487
  %v4498 = vpack.c.b16 %v3498, %v3493
  %v4499 = vpack.c.b16 %v3499, %v3494
  %v4500 = vpack.c.b16 %v3500, %v3495
  %v4501 = vpack.c.b16 %v3501, %v3496
  %v4502 = vpack.c.b16 %v3502, %v3497
  %v4503 = vpack.c.b16 %v3508, %v3503
  %v4504 = vpack.c.b16 %v3509, %v3504
  %v4505 = vpack.c.b16 %v3510, %v3505
  %v4506 = vpack.c.b16 %v3511, %v3506
  %v4507 = vpack.c.b16 %v3512, %v3507
  %v4508 = vpack.c.b16 %v3518, %v3513
  %v4509 = vpack.c.b16 %v3519, %v3514
  %v4510 = vpack.c.b16 %v3520, %v3515
  %v4511 = vpack.c.b16 %v3521, %v3516
  %v4512 = vpack.c.b16 %v3522, %v3517
  %v4513 = vpack.c.b16 %v3528, %v3523
  %v4514 = vpack.c.b16 %v3529, %v3524
  %v4515 = vpack.c.b16 %v3530, %v3525
  %v4516 = vpack.c.b16 %v3531, %v3526
  %v4517 = vpack.c.b16 %v3532, %v3527
  %v4518 = vpack.c.b16 %v3538, %v3533
  %v4519 = vpack.c.b16 %v3539, %v3534
  %v4520 = vpack.c.b16 %v3540, %v3535
  %v4521 = vpack.c.b16 %v3541, %v3536
  %v4522 = vpack.c.b16 %v3542, %v3537
  %v4523 = vpack.c.b16 %v3548, %v3543
  %v4524 = vpack.c.b16 %v3549, %v3544
  %v4525 = vpack.c.b16 %v3550, %v3545
  %v4526 = vpack.c.b16 %v3551, %v3546
  %v4527 = vpack.c.b16 %v3552, %v3547
  %v4528 = vpack.c.b16 %v3558, %v3553
  %v4529 = vpack.c.b16 %v3559, %v3554
  %v4530 = vpack.c.b16 %v3560, %v3555
  %v4531 = vpack.c.b16 %v3561, %v3556
  %v4532 = vpack.c.b16 %v3562, %v3557
  %v4533 = vpack.c.b16 %v3568, %v3563
  %v4534 = vpack.c.b16 %v3569, %v3564
  %v4535 = vpack.c.b16 %v3570, %v3565
  %v4536 = vpack.c.b16 %v3571, %v3566
  %v4537 = vpack.c.b16 %v3572, %v3567
  %v4538 = vpack.c.b16 %v3578, %v3573
  %v4539 = vpack.c.b16 %v3579, %v3574
  %v4540 = vpack.c.b16 %v3580, %v3575
  %v4541 = vpack.c.b16 %v3581, %v3576
  %v4542 = vpack.c.b16 %v3582, %v3577
  %v4543 = vpack.c.b16 %v3588, %v3583
  %v4544 = vpack.c.b16 %v3589, %v3584
  %v4545 = vpack.c.b16 %v3590, %v3585
  %v4546 = vpack.c.b16 %v3591, %v3586
  %v4547 = vpack.c.b16 %v3592, %v3587
  %v4548 = vpack.c.b16 %v3598, %v3593
  %v4549 = vpack.c.b16 %v3599, %v3594
  %v4550 = vpack.c.b16 %v3600, %v3595
  %v4551 = vpack.c.b16 %v3601, %v3596
  %v4552 = vpack.c.b16 %v3602, %v3597
  %v4553 = vpack.c.b16 %v3608, %v3603
  %v4554 = vpack.c.b16 %v3609, %v3604
  %v4555 = vpack.c.b16 %v3610, %v3605
  %v4556 = vpack.c.b16 %v3611, %v3606
  %v4557 = vpack.c.b16 %v3612, %v3607
  %v4558 = vpack.c.b16 %v3618, %v3613
  %v4559 = vpack.c.b16 %v3619, %v3614
  %v4560 = vpack.c.b16 %v3620, %v3615
  %v4561 = vpack.c.b16 %v3621, %v3616
  %v4562 = vpack.c.b16 %v3622, %v3617
  %v4563 = vpack.c.b16 %v3628, %v3623
  %v4564 = vpack.c.b16 %v3629, %v3624
  %v4565 = vpack.c.b16 %v3630, %v3625
  %v4566 = vpack.c.b16 %v3631, %v3626
  %v4567 = vpack.c.b16 %v3632, %v3627
  %v4568 = vpack.c.b16 %v3638, %v3633
  %v4569 = vpack.c.b16 %v3639, %v3634
  %v4570 = vpack.c.b16 %v3640, %v3635
  %v4571 = vpack.c.b16 %v3641, %v3636
  %v4572 = vpack.c.b16 %v3642, %v3637
  %v4573 = vpack.c.b16 %v3648, %v3643
  %v4574 = vpack.c.b16 %v3649, %v3644
  %v4575 = vpack.c.b16 %v3650, %v3645
  %v4576 = vpack.c.b16 %v3651, %v3646
  %v4577 = vpack.c.b16 %v3652, %v3647
  %v4578 = vpack.c.b16 %v3658, %v3653
  %v4579 = vpack.c.b16 %v3659, %v3654
  %v4580 = vpack.c.b16 %v3660, %v3655
  %v4581 = vpack.c.b16 %v3661, %v3656
  %v4582 = vpack.c.b16 %v3662, %v3657
  %v4583 = vpack.c.b16 %v3668, %v3663
  %v4584 = vpack.c.b16 %v3669, %v3664
  %v4585 = vpack.c.b16 %v3670, %v3665
  %v4586 = vpack.c.b16 %v3671, %v3666
  %v4587 = vpack.c.b16 %v3672, %v3667
  %v4588 = vpack.c.b16 %v3678, %v3673
  %v4589 = vpack.c.b16 %v3679, %v3674
  %v4590 = vpack.c.b16 %v3680, %v3675
  %v4591 = vpack.c.b16 %v3681, %v3676
  %v4592 = vpack.c.b16 %v3682, %v3677
  %v4593 = vpack.c.b16 %v3688, %v3683
  %v4594 = vpack.c.b16 %v3689, %v3684
  %v4595 = vpack.c.b16 %v3690, %v3685
  %v4596 = vpack.c.b16 %v3691, %v3686
  %v4597 = vpack.c.b16 %v3692, %v3687
  %v4598 = vpack.c.b16 %v3698, %v3693
  %v4599 = vpack.c.b16 %v3699, %v3694
  %v4600 = vpack.c.b16 %v3700, %v3695
  %v4601 = vpack.c.b16 %v3701, %v3696
  %v4602 = vpack.c.b16 %v3702, %v3697
  %v4603 = vpack.c.b16 %v3708, %v3703
  %v4604 = vpack.c.b16 %v3709, %v3704
  %v4605 = vpack.c.b16 %v3710, %v3705
  %v4606 = vpack.c.b16 %v3711, %v3706
  %v4607 = vpack.c.b16 %v3712, %v3707
  %v4608 = vpack.c.b16 %v3718, %v3713
  %v4609 = vpack.c.b16 %v3719, %v3714
  %v4610 = vpack.c.b16 %v3720, %v3715
  %v4611 = vpack.c.b16 %v3721, %v3716
  %v4612 = vpack.c.b16 %v3722, %v3717
  %v4613 = vpack.c.b16 %v3728, %v3723
  %v4614 = vpack.c.b16 %v3729, %v3724
  %v4615 = vpack.c.b16 %v3730, %v3725
  %v4616 = vpack.c.b16 %v3731, %v3726
  %v4617 = vpack.c.b16 %v3732, %v3727
  %v4618 = vpack.c.b16 %v3738, %v3733
  %v4619 = vpack.c.b16 %v3739, %v3734
  %v4620 = vpack.c.b16 %v3740, %v3735
  %v4621 = vpack.c.b16 %v3741, %v3736
  %v4622 = vpack.c.b16 %v3742, %v3737
  %v4623 = vpack.c.b16 %v3748, %v3743
  %v4624 = vpack.c.b16 %v3749, %v3744
  %v4625 = vpack.c.b16 %v3750, %v3745
  %v4626 = vpack.c.b16 %v3751, %v3746
  %v4627 = vpack.c.b16 %v3752, %v3747
  %v4628 = vpack.c.b16 %v3758, %v3753
  %v4629 = vpack.c.b16 %v3759, %v3754
  %v4630 = vpack.c.b16 %v3760, %v3755
  %v4631 = vpack.c.b16 %v3761, %v3756
  %v4632 = vpack.c.b16 %v3762, %v3757
  %v4633 = vpack.c.b16 %v3768, %v3763
  %v4634 = vpack.c.b16 %v3769, %v3764
  %v4635 = vpack.c.b16 %v3770, %v3765
  %v4636 = vpack.c.b16 %v3771, %v3766
  %v4637 = vpack.c.b16 %v3772, %v3767
  %v4638 = vpack.c.b16 %v3778, %v3773
  %v4639 = vpack.c.b16 %v3779, %v3774
  %v4640 = vpack.c.b16 %v3780, %v3775
  %v4641 = vpack.c.b16 %v3781, %v3776
  %v4642 = vpack.c.b16 %v3782, %v3777
  %v4643 = vpack.c.b16 %v3788, %v3783
  %v4644 = vpack.c.b16 %v3789, %v3784
  %v4645 = vpack.c.b16 %v3790, %v3785
  %v4646 = vpack.c.b16 %v3791, %v3786
  %v4647 = vpack.c.b16 %v3792, %v3787
  %v4648 = vpack.c.b16 %v3798, %v3793
  %v4649 = vpack.c.b16 %v3799, %v3794
  %v4650 = vpack.c.b16 %v3800, %v3795
  %v4651 = vpack.c.b16 %v3801, %v3796
  %v4652 = vpack.c.b16 %v3802, %v3797
  %v4653 = vpack.c.b16 %v3808, %v3803
  %v4654 = vpack.c.b16 %v3809, %v3804
  %v4655 = vpack.c.b16 %v3810, %v3805
  %v4656 = vpack.c.b16 %v3811, %v3806
  %v4657 = vpack.c.b16 %v3812, %v3807
  %v4658 = vpack.c.b16 %v3818, %v3813
  %v4659 = vpack.c.b16 %v3819, %v3814
  %v4660 = vpack.c.b16 %v3820, %v3815
  %v4661 = vpack.c.b16 %v3821, %v3816
  %v4662 = vpack.c.b16 %v3822, %v3817
  %v4663 = vpack.c.b16 %v3828, %v3823
  %v4664 = vpack.c.b16 %v3829, %v3824
  %v4665 = vpack.c.b16 %v3830, %v3825
  %v4666 = vpack.c.b16 %v3831, %v3826
  %v4667 = vpack.c.b16 %v3832, %v3827
  %v4668 = vpack.c.b16 %v3838, %v3833
  %v4669 = vpack.c.b16 %v3839, %v3834
  %v4670 = vpack.c.b16 %v3840, %v3835
  %v4671 = vpack.c.b16 %v3841, %v3836
  %v4672 = vpack.c.b16 %v3842, %v3837
  %v4673 = vpack.c.b16 %v3848, %v3843
  %v4674 = vpack.c.b16 %v3849, %v3844
  %v4675 = vpack.c.b16 %v3850, %v3845
  %v4676 = vpack.c.b16 %v3851, %v3846
  %v4677 = vpack.c.b16 %v3852, %v3847
  %v4678 = vpack.c.b16 %v3858, %v3853
  %v4679 = vpack.c.b16 %v3859, %v3854
  %v4680 = vpack.c.b16 %v3860, %v3855
  %v4681 = vpack.c.b16 %v3861, %v3856
  %v4682 = vpack.c.b16 %v3862, %v3857
  %v4683 = vpack.c.b16 %v3868, %v3863
  %v4684 = vpack.c.b16 %v3869, %v3864
  %v4685 = vpack.c.b16 %v3870, %v3865
  %v4686 = vpack.c.b16 %v3871, %v3866
  %v4687 = vpack.c.b16 %v3872, %v3867
  %v4688 = vpack.c.b16 %v3878, %v3873
  %v4689 = vpack.c.b16 %v3879, %v3874
  %v4690 = vpack.c.b16 %v3880, %v3875
  %v4691 = vpack.c.b16 %v3881, %v3876
  %v4692 = vpack.c.b16 %v3882, %v3877
  %v4693 = vpack.c.b16 %v3888, %v3883
  %v4694 = vpack.c.b16 %v3889, %v3884
  %v4695 = vpack.c.b16 %v3890, %v3885
  %v4696 = vpack.c.b16 %v3891, %v3886
  %v4697 = vpack.c.b16 %v3892, %v3887
  %v4698 = vpack.c.b16 %v3898, %v3893
  %v4699 = vpack.c.b16 %v3899, %v3894
  %v4700 = vpack.c.b16 %v3900, %v3895
  %v4701 = vpack.c.b16 %v3901, %v3896
  %v4702 = vpack.c.b16 %v3902, %v3897
  %v4703 = vpack.c.b16 %v3908, %v3903
  %v4704 = vpack.c.b16 %v3909, %v3904
  %v4705 = vpack.c.b16 %v3910, %v3905
  %v4706 = vpack.c.b16 %v3911, %v3906
  %v4707 = vpack.c.b16 %v3912, %v3907
  %v4708 = vpack.c.b16 %v3918, %v3913
  %v4709 = vpack.c.b16 %v3919, %v3914
  %v4710 = vpack.c.b16 %v3920, %v3915
  %v4711 = vpack.c.b16 %v3921, %v3916
  %v4712 = vpack.c.b16 %v3922, %v3917
  %v4713 = vpack.c.b16 %v3928, %v3923
  %v4714 = vpack.c.b16 %v3929, %v3924
  %v4715 = vpack.c.b16 %v3930, %v3925
  %v4716 = vpack.c.b16 %v3931, %v3926
  %v4717 = vpack.c.b16 %v3932, %v3927
  %v4718 = vpack.c.b16 %v3938, %v3933
  %v4719 = vpack.c.b16 %v3939, %v3934
  %v4720 = vpack.c.b16 %v3940, %v3935
  %v4721 = vpack.c.b16 %v3941, %v3936
  %v4722 = vpack.c.b16 %v3942, %v3937
  %v4723 = vpack.c.b16 %v3948, %v3943
  %v4724 = vpack.c.b16 %v3949, %v3944
  %v4725 = vpack.c.b16 %v3950, %v3945
  %v4726 = vpack.c.b16 %v3951, %v3946
  %v4727 = vpack.c.b16 %v3952, %v3947
  %v4728 = vpack.c.b16 %v3958, %v3953
  %v4729 = vpack.c.b16 %v3959, %v3954
  %v4730 = vpack.c.b16 %v3960, %v3955
  %v4731 = vpack.c.b16 %v3961, %v3956
  %v4732 = vpack.c.b16 %v3962, %v3957
  %v4733 = vpack.c.b16 %v3968, %v3963
  %v4734 = vpack.c.b16 %v3969, %v3964
  %v4735 = vpack.c.b16 %v3970, %v3965
  %v4736 = vpack.c.b16 %v3971, %v3966
  %v4737 = vpack.c.b16 %v3972, %v3967
  %v4738 = vpack.c.b16 %v3978, %v3973
  %v4739 = vpack.c.b16 %v3979, %v3974
  %v4740 = vpack.c.b16 %v3980, %v3975
  %v4741 = vpack.c.b16 %v3981, %v3976
  %v4742 = vpack.c.b16 %v3982, %v3977
  %v4743 = vpack.c.b16 %v3988, %v3983
  %v4744 = vpack.c.b16 %v3989, %v3984
  %v4745 = vpack.c.b16 %v3990, %v3985
  %v4746 = vpack.c.b16 %v3991, %v3986
  %v4747 = vpack.c.b16 %v3992, %v3987
  %v4748 = vpack.c.b16 %v3998, %v3993
  %v4749 = vpack.c.b16 %v3999, %v3994
  %v4750 = vpack.c.b16 %v4000, %v3995
  %v4751 = vpack.c.b16 %v4001, %v3996
  %v4752 = vpack.c.b16 %v4002, %v3997
  %v4753 = vpack.c.b16 %v4008, %v4003
  %v4754 = vpack.c.b16 %v4009, %v4004
  %v4755 = vpack.c.b16 %v4010, %v4005
  %v4756 = vpack.c.b16 %v4011, %v4006
  %v4757 = vpack.c.b16 %v4012, %v4007
  %v4758 = vpack.c.b16 %v4018, %v4013
  %v4759 = vpack.c.b16 %v4019, %v4014
  %v4760 = vpack.c.b16 %v4020, %v4015
  %v4761 = vpack.c.b16 %v4021, %v4016
  %v4762 = vpack.c.b16 %v4022, %v4017
  %v4763 = vpack.c.b16 %v4028, %v4023
  %v4764 = vpack.c.b16 %v4029, %v4024
  %v4765 = vpack.c.b16 %v4030, %v4025
  %v4766 = vpack.c.b16 %v4031, %v4026
  %v4767 = vpack.c.b16 %v4032, %v4027
  %v4768 = vpack.c.b16 %v4038, %v4033
  %v4769 = vpack.c.b16 %v4039, %v4034
  %v4770 = vpack.c.b16 %v4040, %v4035
  %v4771 = vpack.c.b16 %v4041, %v4036
  %v4772 = vpack.c.b16 %v4042, %v4037
  %v4773 = vpack.c.b16 %v4048, %v4043
  %v4774 = vpack.c.b16 %v4049, %v4044
  %v4775 = vpack.c.b16 %v4050, %v4045
  %v4776 = vpack.c.b16 %v4051, %v4046
  %v4777 = vpack.c.b16 %v4052, %v4047
  %v4778 = vpack.c.b16 %v4058, %v4053
  %v4779 = vpack.c.b16 %v4059, %v4054
  %v4780 = vpack.c.b16 %v4060, %v4055
  %v4781 = vpack.c.b16 %v4061, %v4056
  %v4782 = vpack.c.b16 %v4062, %v4057
  %v4783 = vpack.c.b16 %v4068, %v4063
  %v4784 = vpack.c.b16 %v4069, %v4064
  %v4785 = vpack.c.b16 %v4070, %v4065
  %v4786 = vpack.c.b16 %v4071, %v4066
  %v4787 = vpack.c.b16 %v4072, %v4067
  %v4788 = vpack.c.b16 %v4078, %v4073
  %v4789 = vpack.c.b16 %v4079, %v4074
  %v4790 = vpack.c.b16 %v4080, %v4075
  %v4791 = vpack.c.b16 %v4081, %v4076
  %v4792 = vpack.c.b16 %v4082, %v4077
  %v4793 = vpack.c.b16 %v4088, %v4083
  %v4794 = vpack.c.b16 %v4089, %v4084
  %v4795 = vpack.c.b16 %v4090, %v4085
  %v4796 = vpack.c.b16 %v4091, %v4086
  %v4797 = vpack.c.b16 %v4092, %v4087
  %v4798 = vpack.c.b16 %v4098, %v4093
  %v4799 = vpack.c.b16 %v4099, %v4094
  %v4800 = vpack.c.b16 %v4100, %v4095
  %v4801 = vpack.c.b16 %v4101, %v4096
  %v4802 = vpack.c.b16 %v4102, %v4097
  %v4803 = vpack.c.b16 %v4108, %v4103
  %v4804 = vpack.c.b16 %v4109, %v4104
  %v4805 = vpack.c.b16 %v4110, %v4105
  %v4806 = vpack.c.b16 %v4111, %v4106
  %v4807 = vpack.c.b16 %v4112, %v4107
  %v4808 = vpack.c.b16 %v4118, %v4113
  %v4809 = vpack.c.b16 %v4119, %v4114
  %v4810 = vpack.c.b16 %v4120, %v4115
  %v4811 = vpack.c.b16 %v4121, %v4116
  %v4812 = vpack.c.b16 %v4122, %v4117
  %v4813 = vpack.c.b16 %v4128, %v4123
  %v4814 = vpack.c.b16 %v4129, %v4124
  %v4815 = vpack.c.b16 %v4130, %v4125
  %v4816 = vpack.c.b16 %v4131, %v4126
  %v4817 = vpack.c.b16 %v4132, %v4127
  %v4818 = vpack.c.b16 %v4138, %v4133
  %v4819 = vpack.c.b16 %v4139, %v4134
  %v4820 = vpack.c.b16 %v4140, %v4135
  %v4821 = vpack.c.b16 %v4141, %v4136
  %v4822 = vpack.c.b16 %v4142, %v4137
  %v4823 = vpack.c.b16 %v4148, %v4143
  %v4824 = vpack.c.b16 %v4149, %v4144
  %v4825 = vpack.c.b16 %v4150, %v4145
  %v4826 = vpack.c.b16 %v4151, %v4146
  %v4827 = vpack.c.b16 %v4152, %v4147
  %v4828 = vpack.c.b16 %v4158, %v4153
  %v4829 = vpack.c.b16 %v4159, %v4154
  %v4830 = vpack.c.b16 %v4160, %v4155
  %v4831 = vpack.c.b16 %v4161, %v4156
  %v4832 = vpack.c.b16 %v4162, %v4157
  %v4833 = vpack.c.b16 %v4168, %v4163
  %v4834 = vpack.c.b16 %v4169, %v4164
  %v4835 = vpack.c.b16 %v4170, %v4165
  %v4836 = vpack.c.b16 %v4171, %v4166
  %v4837 = vpack.c.b16 %v4172, %v4167
  %v4838 = vpack.c.b16 %v4178, %v4173
  %v4839 = vpack.c.b16 %v4179, %v4174
  %v4840 = vpack.c.b16 %v4180, %v4175
  %v4841 = vpack.c.b16 %v4181, %v4176
  %v4842 = vpack.c.b16 %v4182, %v4177
  %v4843 = vpack.c.b16 %v4188, %v4183
  %v4844 = vpack.c.b16 %v4189, %v4184
  %v4845 = vpack.c.b16 %v4190, %v4185
  %v4846 = vpack.c.b16 %v4191, %v4186
  %v4847 = vpack.c.b16 %v4192, %v4187
  %v4848 = vpack.c.b16 %v4198, %v4193
  %v4849 = vpack.c.b16 %v4199, %v4194
  %v4850 = vpack.c.b16 %v4200, %v4195
  %v4851 = vpack.c.b16 %v4201, %v4196
  %v4852 = vpack.c.b16 %v4202, %v4197
  %v4853 = vpack.c.b16 %v4208, %v4203
  %v4854 = vpack.c.b16 %v4209, %v4204
  %v4855 = vpack.c.b16 %v4210, %v4205
  %v4856 = vpack.c.b16 %v4211, %v4206
  %v4857 = vpack.c.b16 %v4212, %v4207
  %v4858 = vpack.c.b16 %v4218, %v4213
  %v4859 = vpack.c.b16 %v4219, %v4214
  %v4860 = vpack.c.b16 %v4220, %v4215
  %v4861 = vpack.c.b16 %v4221, %v4216
  %v4862 = vpack.c.b16 %v4222, %v4217
  %5503 = vmatprep.subr.bf16.mxu0 %v4224
  %5504 = vmatpush1.bf16.msra.mxu0 %v4223
  %5505 = vmatprep.subr.bf16.mxu0 %v4229
  %5506 = vmatpush1.bf16.msra.mxu0 %v4228
  %5507 = vmatprep.subr.bf16.mxu0 %v4234
  %5508 = vmatpush1.bf16.msra.mxu0 %v4233
  %5509 = vmatprep.subr.bf16.mxu0 %v4239
  %5510 = vmatpush1.bf16.msra.mxu0 %v4238
  %5511 = vmatprep.subr.bf16.mxu0 %v4244
  %5512 = vmatpush1.bf16.msra.mxu0 %v4243
  %5513 = vmatprep.subr.bf16.mxu0 %v4249
  %5514 = vmatpush1.bf16.msra.mxu0 %v4248
  %5515 = vmatprep.subr.bf16.mxu0 %v4254
  %5516 = vmatpush1.bf16.msra.mxu0 %v4253
  %5517 = vmatprep.subr.bf16.mxu0 %v4259
  %5518 = vmatpush1.bf16.msra.mxu0 %v4258
  %5519 = vmatprep.subr.bf16.mxu0 %v4264
  %5520 = vmatpush1.bf16.msra.mxu0 %v4263
  %5521 = vmatprep.subr.bf16.mxu0 %v4269
  %5522 = vmatpush1.bf16.msra.mxu0 %v4268
  %5523 = vmatprep.subr.bf16.mxu0 %v4274
  %5524 = vmatpush1.bf16.msra.mxu0 %v4273
  %5525 = vmatprep.subr.bf16.mxu0 %v4279
  %5526 = vmatpush1.bf16.msra.mxu0 %v4278
  %5527 = vmatprep.subr.bf16.mxu0 %v4284
  %5528 = vmatpush1.bf16.msra.mxu0 %v4283
  %5529 = vmatprep.subr.bf16.mxu0 %v4289
  %5530 = vmatpush1.bf16.msra.mxu0 %v4288
  %5531 = vmatprep.subr.bf16.mxu0 %v4294
  %5532 = vmatpush1.bf16.msra.mxu0 %v4293
  %5533 = vmatprep.subr.bf16.mxu0 %v4299
  %5534 = vmatpush1.bf16.msra.mxu0 %v4298
  %5535 = vmatprep.mubr.bf16.mxu0 %v1365
  %5536 = vmatmul.mubr.bf16.gmra.mrb[0].mxu0 %v1364
  %v5537 = vpop.f32.mrb[0].mxu0
  %v5538 = vadd.f32 %v2153, %v5537
  %v5539 = vpop.f32.mrb[0].mxu0
  %v5540 = vadd.f32 %v2157, %v5539
  %v5541 = vpop.f32.mrb[0].mxu0
  %v5542 = vpop.f32.mrb[0].mxu0
  %5543 = vdwg.mxu0
  %5544 = vmatprep.subr.bf16.mxu0 %v4304
  %5545 = vmatpush1.bf16.msra.mxu0 %v4303
  %5546 = vmatprep.subr.bf16.mxu0 %v4309
  %5547 = vmatpush1.bf16.msra.mxu0 %v4308
  %5548 = vmatprep.subr.bf16.mxu0 %v4314
  %5549 = vmatpush1.bf16.msra.mxu0 %v4313
  %5550 = vmatprep.subr.bf16.mxu0 %v4319
  %5551 = vmatpush1.bf16.msra.mxu0 %v4318
  %5552 = vmatprep.subr.bf16.mxu0 %v4324
  %5553 = vmatpush1.bf16.msra.mxu0 %v4323
  %5554 = vmatprep.subr.bf16.mxu0 %v4329
  %5555 = vmatpush1.bf16.msra.mxu0 %v4328
  %5556 = vmatprep.subr.bf16.mxu0 %v4334
  %5557 = vmatpush1.bf16.msra.mxu0 %v4333
  %5558 = vmatprep.subr.bf16.mxu0 %v4339
  %5559 = vmatpush1.bf16.msra.mxu0 %v4338
  %5560 = vmatprep.subr.bf16.mxu0 %v4344
  %5561 = vmatpush1.bf16.msra.mxu0 %v4343
  %5562 = vmatprep.subr.bf16.mxu0 %v4349
  %5563 = vmatpush1.bf16.msra.mxu0 %v4348
  %5564 = vmatprep.subr.bf16.mxu0 %v4354
  %5565 = vmatpush1.bf16.msra.mxu0 %v4353
  %5566 = vmatprep.subr.bf16.mxu0 %v4359
  %5567 = vmatpush1.bf16.msra.mxu0 %v4358
  %5568 = vmatprep.subr.bf16.mxu0 %v4364
  %5569 = vmatpush1.bf16.msra.mxu0 %v4363
  %5570 = vmatprep.subr.bf16.mxu0 %v4369
  %5571 = vmatpush1.bf16.msra.mxu0 %v4368
  %5572 = vmatprep.subr.bf16.mxu0 %v4374
  %5573 = vmatpush1.bf16.msra.mxu0 %v4373
  %5574 = vmatprep.subr.bf16.mxu0 %v4379
  %5575 = vmatpush1.bf16.msra.mxu0 %v4378
  %5576 = vmatprep.mubr.bf16.mxu0 %v1367
  %5577 = vmatmul.mubr.bf16.gmra.mrb[0].mxu0 %v1366
  %v5578 = vpop.f32.mrb[0].mxu0
  %v5579 = vadd.f32 %v5538, %v5578
  %v5580 = vpop.f32.mrb[0].mxu0
  %v5581 = vadd.f32 %v5540, %v5580
  %v5582 = vpop.f32.mrb[0].mxu0
  %v5583 = vpop.f32.mrb[0].mxu0
  %5584 = vdwg.mxu0
  %5585 = vmatprep.subr.bf16.mxu0 %v4384
  %5586 = vmatpush1.bf16.msra.mxu0 %v4383
  %5587 = vmatprep.subr.bf16.mxu0 %v4389
  %5588 = vmatpush1.bf16.msra.mxu0 %v4388
  %5589 = vmatprep.subr.bf16.mxu0 %v4394
  %5590 = vmatpush1.bf16.msra.mxu0 %v4393
  %5591 = vmatprep.subr.bf16.mxu0 %v4399
  %5592 = vmatpush1.bf16.msra.mxu0 %v4398
  %5593 = vmatprep.subr.bf16.mxu0 %v4404
  %5594 = vmatpush1.bf16.msra.mxu0 %v4403
  %5595 = vmatprep.subr.bf16.mxu0 %v4409
  %5596 = vmatpush1.bf16.msra.mxu0 %v4408
  %5597 = vmatprep.subr.bf16.mxu0 %v4414
  %5598 = vmatpush1.bf16.msra.mxu0 %v4413
  %5599 = vmatprep.subr.bf16.mxu0 %v4419
  %5600 = vmatpush1.bf16.msra.mxu0 %v4418
  %5601 = vmatprep.subr.bf16.mxu0 %v4424
  %5602 = vmatpush1.bf16.msra.mxu0 %v4423
  %5603 = vmatprep.subr.bf16.mxu0 %v4429
  %5604 = vmatpush1.bf16.msra.mxu0 %v4428
  %5605 = vmatprep.subr.bf16.mxu0 %v4434
  %5606 = vmatpush1.bf16.msra.mxu0 %v4433
  %5607 = vmatprep.subr.bf16.mxu0 %v4439
  %5608 = vmatpush1.bf16.msra.mxu0 %v4438
  %5609 = vmatprep.subr.bf16.mxu0 %v4444
  %5610 = vmatpush1.bf16.msra.mxu0 %v4443
  %5611 = vmatprep.subr.bf16.mxu0 %v4449
  %5612 = vmatpush1.bf16.msra.mxu0 %v4448
  %5613 = vmatprep.subr.bf16.mxu0 %v4454
  %5614 = vmatpush1.bf16.msra.mxu0 %v4453
  %5615 = vmatprep.subr.bf16.mxu0 %v4459
  %5616 = vmatpush1.bf16.msra.mxu0 %v4458
  %5617 = vmatprep.mubr.bf16.mxu0 %v1369
  %5618 = vmatmul.mubr.bf16.gmra.mrb[0].mxu0 %v1368
  %v5619 = vpop.f32.mrb[0].mxu0
  %v5620 = vadd.f32 %v5579, %v5619
  %v5621 = vpop.f32.mrb[0].mxu0
  %v5622 = vadd.f32 %v5581, %v5621
  %v5623 = vpop.f32.mrb[0].mxu0
  %v5624 = vpop.f32.mrb[0].mxu0
  %5625 = vdwg.mxu0
  %5626 = vmatprep.subr.bf16.mxu0 %v4464
  %5627 = vmatpush1.bf16.msra.mxu0 %v4463
  %5628 = vmatprep.subr.bf16.mxu0 %v4469
  %5629 = vmatpush1.bf16.msra.mxu0 %v4468
  %5630 = vmatprep.subr.bf16.mxu0 %v4474
  %5631 = vmatpush1.bf16.msra.mxu0 %v4473
  %5632 = vmatprep.subr.bf16.mxu0 %v4479
  %5633 = vmatpush1.bf16.msra.mxu0 %v4478
  %5634 = vmatprep.subr.bf16.mxu0 %v4484
  %5635 = vmatpush1.bf16.msra.mxu0 %v4483
  %5636 = vmatprep.subr.bf16.mxu0 %v4489
  %5637 = vmatpush1.bf16.msra.mxu0 %v4488
  %5638 = vmatprep.subr.bf16.mxu0 %v4494
  %5639 = vmatpush1.bf16.msra.mxu0 %v4493
  %5640 = vmatprep.subr.bf16.mxu0 %v4499
  %5641 = vmatpush1.bf16.msra.mxu0 %v4498
  %5642 = vmatprep.subr.bf16.mxu0 %v4504
  %5643 = vmatpush1.bf16.msra.mxu0 %v4503
  %5644 = vmatprep.subr.bf16.mxu0 %v4509
  %5645 = vmatpush1.bf16.msra.mxu0 %v4508
  %5646 = vmatprep.subr.bf16.mxu0 %v4514
  %5647 = vmatpush1.bf16.msra.mxu0 %v4513
  %5648 = vmatprep.subr.bf16.mxu0 %v4519
  %5649 = vmatpush1.bf16.msra.mxu0 %v4518
  %5650 = vmatprep.subr.bf16.mxu0 %v4524
  %5651 = vmatpush1.bf16.msra.mxu0 %v4523
  %5652 = vmatprep.subr.bf16.mxu0 %v4529
  %5653 = vmatpush1.bf16.msra.mxu0 %v4528
  %5654 = vmatprep.subr.bf16.mxu0 %v4534
  %5655 = vmatpush1.bf16.msra.mxu0 %v4533
  %5656 = vmatprep.subr.bf16.mxu0 %v4539
  %5657 = vmatpush1.bf16.msra.mxu0 %v4538
  %5658 = vmatprep.mubr.bf16.mxu0 %v1371
  %5659 = vmatmul.mubr.bf16.gmra.mrb[0].mxu0 %v1370
  %v5660 = vpop.f32.mrb[0].mxu0
  %v5661 = vadd.f32 %v5620, %v5660
  %v5662 = vpop.f32.mrb[0].mxu0
  %v5663 = vadd.f32 %v5622, %v5662
  %v5664 = vpop.f32.mrb[0].mxu0
  %v5665 = vpop.f32.mrb[0].mxu0
  %5666 = vdwg.mxu0
  %5667 = vmatprep.subr.bf16.mxu0 %v4544
  %5668 = vmatpush1.bf16.msra.mxu0 %v4543
  %5669 = vmatprep.subr.bf16.mxu0 %v4549
  %5670 = vmatpush1.bf16.msra.mxu0 %v4548
  %5671 = vmatprep.subr.bf16.mxu0 %v4554
  %5672 = vmatpush1.bf16.msra.mxu0 %v4553
  %5673 = vmatprep.subr.bf16.mxu0 %v4559
  %5674 = vmatpush1.bf16.msra.mxu0 %v4558
  %5675 = vmatprep.subr.bf16.mxu0 %v4564
  %5676 = vmatpush1.bf16.msra.mxu0 %v4563
  %5677 = vmatprep.subr.bf16.mxu0 %v4569
  %5678 = vmatpush1.bf16.msra.mxu0 %v4568
  %5679 = vmatprep.subr.bf16.mxu0 %v4574
  %5680 = vmatpush1.bf16.msra.mxu0 %v4573
  %5681 = vmatprep.subr.bf16.mxu0 %v4579
  %5682 = vmatpush1.bf16.msra.mxu0 %v4578
  %5683 = vmatprep.subr.bf16.mxu0 %v4584
  %5684 = vmatpush1.bf16.msra.mxu0 %v4583
  %5685 = vmatprep.subr.bf16.mxu0 %v4589
  %5686 = vmatpush1.bf16.msra.mxu0 %v4588
  %5687 = vmatprep.subr.bf16.mxu0 %v4594
  %5688 = vmatpush1.bf16.msra.mxu0 %v4593
  %5689 = vmatprep.subr.bf16.mxu0 %v4599
  %5690 = vmatpush1.bf16.msra.mxu0 %v4598
  %5691 = vmatprep.subr.bf16.mxu0 %v4604
  %5692 = vmatpush1.bf16.msra.mxu0 %v4603
  %5693 = vmatprep.subr.bf16.mxu0 %v4609
  %5694 = vmatpush1.bf16.msra.mxu0 %v4608
  %5695 = vmatprep.subr.bf16.mxu0 %v4614
  %5696 = vmatpush1.bf16.msra.mxu0 %v4613
  %5697 = vmatprep.subr.bf16.mxu0 %v4619
  %5698 = vmatpush1.bf16.msra.mxu0 %v4618
  %5699 = vmatprep.mubr.bf16.mxu0 %v1373
  %5700 = vmatmul.mubr.bf16.gmra.mrb[0].mxu0 %v1372
  %v5701 = vpop.f32.mrb[0].mxu0
  %v5702 = vadd.f32 %v5661, %v5701
  %v5703 = vpop.f32.mrb[0].mxu0
  %v5704 = vadd.f32 %v5663, %v5703
  %v5705 = vpop.f32.mrb[0].mxu0
  %v5706 = vpop.f32.mrb[0].mxu0
  %5707 = vdwg.mxu0
  %5708 = vmatprep.subr.bf16.mxu0 %v4624
  %5709 = vmatpush1.bf16.msra.mxu0 %v4623
  %5710 = vmatprep.subr.bf16.mxu0 %v4629
  %5711 = vmatpush1.bf16.msra.mxu0 %v4628
  %5712 = vmatprep.subr.bf16.mxu0 %v4634
  %5713 = vmatpush1.bf16.msra.mxu0 %v4633
  %5714 = vmatprep.subr.bf16.mxu0 %v4639
  %5715 = vmatpush1.bf16.msra.mxu0 %v4638
  %5716 = vmatprep.subr.bf16.mxu0 %v4644
  %5717 = vmatpush1.bf16.msra.mxu0 %v4643
  %5718 = vmatprep.subr.bf16.mxu0 %v4649
  %5719 = vmatpush1.bf16.msra.mxu0 %v4648
  %5720 = vmatprep.subr.bf16.mxu0 %v4654
  %5721 = vmatpush1.bf16.msra.mxu0 %v4653
  %5722 = vmatprep.subr.bf16.mxu0 %v4659
  %5723 = vmatpush1.bf16.msra.mxu0 %v4658
  %5724 = vmatprep.subr.bf16.mxu0 %v4664
  %5725 = vmatpush1.bf16.msra.mxu0 %v4663
  %5726 = vmatprep.subr.bf16.mxu0 %v4669
  %5727 = vmatpush1.bf16.msra.mxu0 %v4668
  %5728 = vmatprep.subr.bf16.mxu0 %v4674
  %5729 = vmatpush1.bf16.msra.mxu0 %v4673
  %5730 = vmatprep.subr.bf16.mxu0 %v4679
  %5731 = vmatpush1.bf16.msra.mxu0 %v4678
  %5732 = vmatprep.subr.bf16.mxu0 %v4684
  %5733 = vmatpush1.bf16.msra.mxu0 %v4683
  %5734 = vmatprep.subr.bf16.mxu0 %v4689
  %5735 = vmatpush1.bf16.msra.mxu0 %v4688
  %5736 = vmatprep.subr.bf16.mxu0 %v4694
  %5737 = vmatpush1.bf16.msra.mxu0 %v4693
  %5738 = vmatprep.subr.bf16.mxu0 %v4699
  %5739 = vmatpush1.bf16.msra.mxu0 %v4698
  %5740 = vmatprep.mubr.bf16.mxu0 %v1375
  %5741 = vmatmul.mubr.bf16.gmra.mrb[0].mxu0 %v1374
  %v5742 = vpop.f32.mrb[0].mxu0
  %v5743 = vadd.f32 %v5702, %v5742
  %v5744 = vpop.f32.mrb[0].mxu0
  %v5745 = vadd.f32 %v5704, %v5744
  %v5746 = vpop.f32.mrb[0].mxu0
  %v5747 = vpop.f32.mrb[0].mxu0
  %5748 = vdwg.mxu0
  %5749 = vmatprep.subr.bf16.mxu0 %v4704
  %5750 = vmatpush1.bf16.msra.mxu0 %v4703
  %5751 = vmatprep.subr.bf16.mxu0 %v4709
  %5752 = vmatpush1.bf16.msra.mxu0 %v4708
  %5753 = vmatprep.subr.bf16.mxu0 %v4714
  %5754 = vmatpush1.bf16.msra.mxu0 %v4713
  %5755 = vmatprep.subr.bf16.mxu0 %v4719
  %5756 = vmatpush1.bf16.msra.mxu0 %v4718
  %5757 = vmatprep.subr.bf16.mxu0 %v4724
  %5758 = vmatpush1.bf16.msra.mxu0 %v4723
  %5759 = vmatprep.subr.bf16.mxu0 %v4729
  %5760 = vmatpush1.bf16.msra.mxu0 %v4728
  %5761 = vmatprep.subr.bf16.mxu0 %v4734
  %5762 = vmatpush1.bf16.msra.mxu0 %v4733
  %5763 = vmatprep.subr.bf16.mxu0 %v4739
  %5764 = vmatpush1.bf16.msra.mxu0 %v4738
  %5765 = vmatprep.subr.bf16.mxu0 %v4744
  %5766 = vmatpush1.bf16.msra.mxu0 %v4743
  %5767 = vmatprep.subr.bf16.mxu0 %v4749
  %5768 = vmatpush1.bf16.msra.mxu0 %v4748
  %5769 = vmatprep.subr.bf16.mxu0 %v4754
  %5770 = vmatpush1.bf16.msra.mxu0 %v4753
  %5771 = vmatprep.subr.bf16.mxu0 %v4759
  %5772 = vmatpush1.bf16.msra.mxu0 %v4758
  %5773 = vmatprep.subr.bf16.mxu0 %v4764
  %5774 = vmatpush1.bf16.msra.mxu0 %v4763
  %5775 = vmatprep.subr.bf16.mxu0 %v4769
  %5776 = vmatpush1.bf16.msra.mxu0 %v4768
  %5777 = vmatprep.subr.bf16.mxu0 %v4774
  %5778 = vmatpush1.bf16.msra.mxu0 %v4773
  %5779 = vmatprep.subr.bf16.mxu0 %v4779
  %5780 = vmatpush1.bf16.msra.mxu0 %v4778
  %5781 = vmatprep.mubr.bf16.mxu0 %v1377
  %5782 = vmatmul.mubr.bf16.gmra.mrb[0].mxu0 %v1376
  %v5783 = vpop.f32.mrb[0].mxu0
  %v5784 = vadd.f32 %v5743, %v5783
  %v5785 = vpop.f32.mrb[0].mxu0
  %v5786 = vadd.f32 %v5745, %v5785
  %v5787 = vpop.f32.mrb[0].mxu0
  %v5788 = vpop.f32.mrb[0].mxu0
  %5789 = vdwg.mxu0
  %5790 = vmatprep.subr.bf16.mxu0 %v4784
  %5791 = vmatpush1.bf16.msra.mxu0 %v4783
  %5792 = vmatprep.subr.bf16.mxu0 %v4789
  %5793 = vmatpush1.bf16.msra.mxu0 %v4788
  %5794 = vmatprep.subr.bf16.mxu0 %v4794
  %5795 = vmatpush1.bf16.msra.mxu0 %v4793
  %5796 = vmatprep.subr.bf16.mxu0 %v4799
  %5797 = vmatpush1.bf16.msra.mxu0 %v4798
  %5798 = vmatprep.subr.bf16.mxu0 %v4804
  %5799 = vmatpush1.bf16.msra.mxu0 %v4803
  %5800 = vmatprep.subr.bf16.mxu0 %v4809
  %5801 = vmatpush1.bf16.msra.mxu0 %v4808
  %5802 = vmatprep.subr.bf16.mxu0 %v4814
  %5803 = vmatpush1.bf16.msra.mxu0 %v4813
  %5804 = vmatprep.subr.bf16.mxu0 %v4819
  %5805 = vmatpush1.bf16.msra.mxu0 %v4818
  %5806 = vmatprep.subr.bf16.mxu0 %v4824
  %5807 = vmatpush1.bf16.msra.mxu0 %v4823
  %5808 = vmatprep.subr.bf16.mxu0 %v4829
  %5809 = vmatpush1.bf16.msra.mxu0 %v4828
  %5810 = vmatprep.subr.bf16.mxu0 %v4834
  %5811 = vmatpush1.bf16.msra.mxu0 %v4833
  %5812 = vmatprep.subr.bf16.mxu0 %v4839
  %5813 = vmatpush1.bf16.msra.mxu0 %v4838
  %5814 = vmatprep.subr.bf16.mxu0 %v4844
  %5815 = vmatpush1.bf16.msra.mxu0 %v4843
  %5816 = vmatprep.subr.bf16.mxu0 %v4849
  %5817 = vmatpush1.bf16.msra.mxu0 %v4848
  %5818 = vmatprep.subr.bf16.mxu0 %v4854
  %5819 = vmatpush1.bf16.msra.mxu0 %v4853
  %5820 = vmatprep.subr.bf16.mxu0 %v4859
  %5821 = vmatpush1.bf16.msra.mxu0 %v4858
  %5822 = vmatprep.mubr.bf16.mxu0 %v1379
  %5823 = vmatmul.mubr.bf16.gmra.mrb[0].mxu0 %v1378
  %v5824 = vpop.f32.mrb[0].mxu0
  %v5825 = vadd.f32 %v5784, %v5824
  %v5826 = vpop.f32.mrb[0].mxu0
  %v5827 = vadd.f32 %v5786, %v5826
  %v5828 = vpop.f32.mrb[0].mxu0
  %v5829 = vpop.f32.mrb[0].mxu0
  %5830 = vdwg.mxu0
  %5831 = vmatprep.subr.bf16.mxu0 %v4226
  %5832 = vmatpush1.bf16.msra.mxu0 %v4225
  %5833 = vmatprep.subr.bf16.mxu0 %v4231
  %5834 = vmatpush1.bf16.msra.mxu0 %v4230
  %5835 = vmatprep.subr.bf16.mxu0 %v4236
  %5836 = vmatpush1.bf16.msra.mxu0 %v4235
  %5837 = vmatprep.subr.bf16.mxu0 %v4241
  %5838 = vmatpush1.bf16.msra.mxu0 %v4240
  %5839 = vmatprep.subr.bf16.mxu0 %v4246
  %5840 = vmatpush1.bf16.msra.mxu0 %v4245
  %5841 = vmatprep.subr.bf16.mxu0 %v4251
  %5842 = vmatpush1.bf16.msra.mxu0 %v4250
  %5843 = vmatprep.subr.bf16.mxu0 %v4256
  %5844 = vmatpush1.bf16.msra.mxu0 %v4255
  %5845 = vmatprep.subr.bf16.mxu0 %v4261
  %5846 = vmatpush1.bf16.msra.mxu0 %v4260
  %5847 = vmatprep.subr.bf16.mxu0 %v4266
  %5848 = vmatpush1.bf16.msra.mxu0 %v4265
  %5849 = vmatprep.subr.bf16.mxu0 %v4271
  %5850 = vmatpush1.bf16.msra.mxu0 %v4270
  %5851 = vmatprep.subr.bf16.mxu0 %v4276
  %5852 = vmatpush1.bf16.msra.mxu0 %v4275
  %5853 = vmatprep.subr.bf16.mxu0 %v4281
  %5854 = vmatpush1.bf16.msra.mxu0 %v4280
  %5855 = vmatprep.subr.bf16.mxu0 %v4286
  %5856 = vmatpush1.bf16.msra.mxu0 %v4285
  %5857 = vmatprep.subr.bf16.mxu0 %v4291
  %5858 = vmatpush1.bf16.msra.mxu0 %v4290
  %5859 = vmatprep.subr.bf16.mxu0 %v4296
  %5860 = vmatpush1.bf16.msra.mxu0 %v4295
  %5861 = vmatprep.subr.bf16.mxu0 %v4301
  %5862 = vmatpush1.bf16.msra.mxu0 %v4300
  %5863 = vmatprep.mubr.bf16.mxu0 %v1365
  %5864 = vmatmul.mubr.bf16.gmra.mrb[0].mxu0 %v1364
  %v5865 = vpop.f32.mrb[0].mxu0
  %v5866 = vadd.f32 %v2161, %v5865
  %v5867 = vpop.f32.mrb[0].mxu0
  %v5868 = vadd.f32 %v2165, %v5867
  %v5869 = vpop.f32.mrb[0].mxu0
  %v5870 = vpop.f32.mrb[0].mxu0
  %5871 = vdwg.mxu0
  %5872 = vmatprep.subr.bf16.mxu0 %v4306
  %5873 = vmatpush1.bf16.msra.mxu0 %v4305
  %5874 = vmatprep.subr.bf16.mxu0 %v4311
  %5875 = vmatpush1.bf16.msra.mxu0 %v4310
  %5876 = vmatprep.subr.bf16.mxu0 %v4316
  %5877 = vmatpush1.bf16.msra.mxu0 %v4315
  %5878 = vmatprep.subr.bf16.mxu0 %v4321
  %5879 = vmatpush1.bf16.msra.mxu0 %v4320
  %5880 = vmatprep.subr.bf16.mxu0 %v4326
  %5881 = vmatpush1.bf16.msra.mxu0 %v4325
  %5882 = vmatprep.subr.bf16.mxu0 %v4331
  %5883 = vmatpush1.bf16.msra.mxu0 %v4330
  %5884 = vmatprep.subr.bf16.mxu0 %v4336
  %5885 = vmatpush1.bf16.msra.mxu0 %v4335
  %5886 = vmatprep.subr.bf16.mxu0 %v4341
  %5887 = vmatpush1.bf16.msra.mxu0 %v4340
  %5888 = vmatprep.subr.bf16.mxu0 %v4346
  %5889 = vmatpush1.bf16.msra.mxu0 %v4345
  %5890 = vmatprep.subr.bf16.mxu0 %v4351
  %5891 = vmatpush1.bf16.msra.mxu0 %v4350
  %5892 = vmatprep.subr.bf16.mxu0 %v4356
  %5893 = vmatpush1.bf16.msra.mxu0 %v4355
  %5894 = vmatprep.subr.bf16.mxu0 %v4361
  %5895 = vmatpush1.bf16.msra.mxu0 %v4360
  %5896 = vmatprep.subr.bf16.mxu0 %v4366
  %5897 = vmatpush1.bf16.msra.mxu0 %v4365
  %5898 = vmatprep.subr.bf16.mxu0 %v4371
  %5899 = vmatpush1.bf16.msra.mxu0 %v4370
  %5900 = vmatprep.subr.bf16.mxu0 %v4376
  %5901 = vmatpush1.bf16.msra.mxu0 %v4375
  %5902 = vmatprep.subr.bf16.mxu0 %v4381
  %5903 = vmatpush1.bf16.msra.mxu0 %v4380
  %5904 = vmatprep.mubr.bf16.mxu0 %v1367
  %5905 = vmatmul.mubr.bf16.gmra.mrb[0].mxu0 %v1366
  %v5906 = vpop.f32.mrb[0].mxu0
  %v5907 = vadd.f32 %v5866, %v5906
  %v5908 = vpop.f32.mrb[0].mxu0
  %v5909 = vadd.f32 %v5868, %v5908
  %v5910 = vpop.f32.mrb[0].mxu0
  %v5911 = vpop.f32.mrb[0].mxu0
  %5912 = vdwg.mxu0
  %5913 = vmatprep.subr.bf16.mxu0 %v4386
  %5914 = vmatpush1.bf16.msra.mxu0 %v4385
  %5915 = vmatprep.subr.bf16.mxu0 %v4391
  %5916 = vmatpush1.bf16.msra.mxu0 %v4390
  %5917 = vmatprep.subr.bf16.mxu0 %v4396
  %5918 = vmatpush1.bf16.msra.mxu0 %v4395
  %5919 = vmatprep.subr.bf16.mxu0 %v4401
  %5920 = vmatpush1.bf16.msra.mxu0 %v4400
  %5921 = vmatprep.subr.bf16.mxu0 %v4406
  %5922 = vmatpush1.bf16.msra.mxu0 %v4405
  %5923 = vmatprep.subr.bf16.mxu0 %v4411
  %5924 = vmatpush1.bf16.msra.mxu0 %v4410
  %5925 = vmatprep.subr.bf16.mxu0 %v4416
  %5926 = vmatpush1.bf16.msra.mxu0 %v4415
  %5927 = vmatprep.subr.bf16.mxu0 %v4421
  %5928 = vmatpush1.bf16.msra.mxu0 %v4420
  %5929 = vmatprep.subr.bf16.mxu0 %v4426
  %5930 = vmatpush1.bf16.msra.mxu0 %v4425
  %5931 = vmatprep.subr.bf16.mxu0 %v4431
  %5932 = vmatpush1.bf16.msra.mxu0 %v4430
  %5933 = vmatprep.subr.bf16.mxu0 %v4436
  %5934 = vmatpush1.bf16.msra.mxu0 %v4435
  %5935 = vmatprep.subr.bf16.mxu0 %v4441
  %5936 = vmatpush1.bf16.msra.mxu0 %v4440
  %5937 = vmatprep.subr.bf16.mxu0 %v4446
  %5938 = vmatpush1.bf16.msra.mxu0 %v4445
  %5939 = vmatprep.subr.bf16.mxu0 %v4451
  %5940 = vmatpush1.bf16.msra.mxu0 %v4450
  %5941 = vmatprep.subr.bf16.mxu0 %v4456
  %5942 = vmatpush1.bf16.msra.mxu0 %v4455
  %5943 = vmatprep.subr.bf16.mxu0 %v4461
  %5944 = vmatpush1.bf16.msra.mxu0 %v4460
  %5945 = vmatprep.mubr.bf16.mxu0 %v1369
  %5946 = vmatmul.mubr.bf16.gmra.mrb[0].mxu0 %v1368
  %v5947 = vpop.f32.mrb[0].mxu0
  %v5948 = vadd.f32 %v5907, %v5947
  %v5949 = vpop.f32.mrb[0].mxu0
  %v5950 = vadd.f32 %v5909, %v5949
  %v5951 = vpop.f32.mrb[0].mxu0
  %v5952 = vpop.f32.mrb[0].mxu0
  %5953 = vdwg.mxu0
  %5954 = vmatprep.subr.bf16.mxu0 %v4466
  %5955 = vmatpush1.bf16.msra.mxu0 %v4465
  %5956 = vmatprep.subr.bf16.mxu0 %v4471
  %5957 = vmatpush1.bf16.msra.mxu0 %v4470
  %5958 = vmatprep.subr.bf16.mxu0 %v4476
  %5959 = vmatpush1.bf16.msra.mxu0 %v4475
  %5960 = vmatprep.subr.bf16.mxu0 %v4481
  %5961 = vmatpush1.bf16.msra.mxu0 %v4480
  %5962 = vmatprep.subr.bf16.mxu0 %v4486
  %5963 = vmatpush1.bf16.msra.mxu0 %v4485
  %5964 = vmatprep.subr.bf16.mxu0 %v4491
  %5965 = vmatpush1.bf16.msra.mxu0 %v4490
  %5966 = vmatprep.subr.bf16.mxu0 %v4496
  %5967 = vmatpush1.bf16.msra.mxu0 %v4495
  %5968 = vmatprep.subr.bf16.mxu0 %v4501
  %5969 = vmatpush1.bf16.msra.mxu0 %v4500
  %5970 = vmatprep.subr.bf16.mxu0 %v4506
  %5971 = vmatpush1.bf16.msra.mxu0 %v4505
  %5972 = vmatprep.subr.bf16.mxu0 %v4511
  %5973 = vmatpush1.bf16.msra.mxu0 %v4510
  %5974 = vmatprep.subr.bf16.mxu0 %v4516
  %5975 = vmatpush1.bf16.msra.mxu0 %v4515
  %5976 = vmatprep.subr.bf16.mxu0 %v4521
  %5977 = vmatpush1.bf16.msra.mxu0 %v4520
  %5978 = vmatprep.subr.bf16.mxu0 %v4526
  %5979 = vmatpush1.bf16.msra.mxu0 %v4525
  %5980 = vmatprep.subr.bf16.mxu0 %v4531
  %5981 = vmatpush1.bf16.msra.mxu0 %v4530
  %5982 = vmatprep.subr.bf16.mxu0 %v4536
  %5983 = vmatpush1.bf16.msra.mxu0 %v4535
  %5984 = vmatprep.subr.bf16.mxu0 %v4541
  %5985 = vmatpush1.bf16.msra.mxu0 %v4540
  %5986 = vmatprep.mubr.bf16.mxu0 %v1371
  %5987 = vmatmul.mubr.bf16.gmra.mrb[0].mxu0 %v1370
  %v5988 = vpop.f32.mrb[0].mxu0
  %v5989 = vadd.f32 %v5948, %v5988
  %v5990 = vpop.f32.mrb[0].mxu0
  %v5991 = vadd.f32 %v5950, %v5990
  %v5992 = vpop.f32.mrb[0].mxu0
  %v5993 = vpop.f32.mrb[0].mxu0
  %5994 = vdwg.mxu0
  %5995 = vmatprep.subr.bf16.mxu0 %v4546
  %5996 = vmatpush1.bf16.msra.mxu0 %v4545
  %5997 = vmatprep.subr.bf16.mxu0 %v4551
  %5998 = vmatpush1.bf16.msra.mxu0 %v4550
  %5999 = vmatprep.subr.bf16.mxu0 %v4556
  %6000 = vmatpush1.bf16.msra.mxu0 %v4555
  %6001 = vmatprep.subr.bf16.mxu0 %v4561
  %6002 = vmatpush1.bf16.msra.mxu0 %v4560
  %6003 = vmatprep.subr.bf16.mxu0 %v4566
  %6004 = vmatpush1.bf16.msra.mxu0 %v4565
  %6005 = vmatprep.subr.bf16.mxu0 %v4571
  %6006 = vmatpush1.bf16.msra.mxu0 %v4570
  %6007 = vmatprep.subr.bf16.mxu0 %v4576
  %6008 = vmatpush1.bf16.msra.mxu0 %v4575
  %6009 = vmatprep.subr.bf16.mxu0 %v4581
  %6010 = vmatpush1.bf16.msra.mxu0 %v4580
  %6011 = vmatprep.subr.bf16.mxu0 %v4586
  %6012 = vmatpush1.bf16.msra.mxu0 %v4585
  %6013 = vmatprep.subr.bf16.mxu0 %v4591
  %6014 = vmatpush1.bf16.msra.mxu0 %v4590
  %6015 = vmatprep.subr.bf16.mxu0 %v4596
  %6016 = vmatpush1.bf16.msra.mxu0 %v4595
  %6017 = vmatprep.subr.bf16.mxu0 %v4601
  %6018 = vmatpush1.bf16.msra.mxu0 %v4600
  %6019 = vmatprep.subr.bf16.mxu0 %v4606
  %6020 = vmatpush1.bf16.msra.mxu0 %v4605
  %6021 = vmatprep.subr.bf16.mxu0 %v4611
  %6022 = vmatpush1.bf16.msra.mxu0 %v4610
  %6023 = vmatprep.subr.bf16.mxu0 %v4616
  %6024 = vmatpush1.bf16.msra.mxu0 %v4615
  %6025 = vmatprep.subr.bf16.mxu0 %v4621
  %6026 = vmatpush1.bf16.msra.mxu0 %v4620
  %6027 = vmatprep.mubr.bf16.mxu0 %v1373
  %6028 = vmatmul.mubr.bf16.gmra.mrb[0].mxu0 %v1372
  %v6029 = vpop.f32.mrb[0].mxu0
  %v6030 = vadd.f32 %v5989, %v6029
  %v6031 = vpop.f32.mrb[0].mxu0
  %v6032 = vadd.f32 %v5991, %v6031
  %v6033 = vpop.f32.mrb[0].mxu0
  %v6034 = vpop.f32.mrb[0].mxu0
  %6035 = vdwg.mxu0
  %6036 = vmatprep.subr.bf16.mxu0 %v4626
  %6037 = vmatpush1.bf16.msra.mxu0 %v4625
  %6038 = vmatprep.subr.bf16.mxu0 %v4631
  %6039 = vmatpush1.bf16.msra.mxu0 %v4630
  %6040 = vmatprep.subr.bf16.mxu0 %v4636
  %6041 = vmatpush1.bf16.msra.mxu0 %v4635
  %6042 = vmatprep.subr.bf16.mxu0 %v4641
  %6043 = vmatpush1.bf16.msra.mxu0 %v4640
  %6044 = vmatprep.subr.bf16.mxu0 %v4646
  %6045 = vmatpush1.bf16.msra.mxu0 %v4645
  %6046 = vmatprep.subr.bf16.mxu0 %v4651
  %6047 = vmatpush1.bf16.msra.mxu0 %v4650
  %6048 = vmatprep.subr.bf16.mxu0 %v4656
  %6049 = vmatpush1.bf16.msra.mxu0 %v4655
  %6050 = vmatprep.subr.bf16.mxu0 %v4661
  %6051 = vmatpush1.bf16.msra.mxu0 %v4660
  %6052 = vmatprep.subr.bf16.mxu0 %v4666
  %6053 = vmatpush1.bf16.msra.mxu0 %v4665
  %6054 = vmatprep.subr.bf16.mxu0 %v4671
  %6055 = vmatpush1.bf16.msra.mxu0 %v4670
  %6056 = vmatprep.subr.bf16.mxu0 %v4676
  %6057 = vmatpush1.bf16.msra.mxu0 %v4675
  %6058 = vmatprep.subr.bf16.mxu0 %v4681
  %6059 = vmatpush1.bf16.msra.mxu0 %v4680
  %6060 = vmatprep.subr.bf16.mxu0 %v4686
  %6061 = vmatpush1.bf16.msra.mxu0 %v4685
  %6062 = vmatprep.subr.bf16.mxu0 %v4691
  %6063 = vmatpush1.bf16.msra.mxu0 %v4690
  %6064 = vmatprep.subr.bf16.mxu0 %v4696
  %6065 = vmatpush1.bf16.msra.mxu0 %v4695
  %6066 = vmatprep.subr.bf16.mxu0 %v4701
  %6067 = vmatpush1.bf16.msra.mxu0 %v4700
  %6068 = vmatprep.mubr.bf16.mxu0 %v1375
  %6069 = vmatmul.mubr.bf16.gmra.mrb[0].mxu0 %v1374
  %v6070 = vpop.f32.mrb[0].mxu0
  %v6071 = vadd.f32 %v6030, %v6070
  %v6072 = vpop.f32.mrb[0].mxu0
  %v6073 = vadd.f32 %v6032, %v6072
  %v6074 = vpop.f32.mrb[0].mxu0
  %v6075 = vpop.f32.mrb[0].mxu0
  %6076 = vdwg.mxu0
  %6077 = vmatprep.subr.bf16.mxu0 %v4706
  %6078 = vmatpush1.bf16.msra.mxu0 %v4705
  %6079 = vmatprep.subr.bf16.mxu0 %v4711
  %6080 = vmatpush1.bf16.msra.mxu0 %v4710
  %6081 = vmatprep.subr.bf16.mxu0 %v4716
  %6082 = vmatpush1.bf16.msra.mxu0 %v4715
  %6083 = vmatprep.subr.bf16.mxu0 %v4721
  %6084 = vmatpush1.bf16.msra.mxu0 %v4720
  %6085 = vmatprep.subr.bf16.mxu0 %v4726
  %6086 = vmatpush1.bf16.msra.mxu0 %v4725
  %6087 = vmatprep.subr.bf16.mxu0 %v4731
  %6088 = vmatpush1.bf16.msra.mxu0 %v4730
  %6089 = vmatprep.subr.bf16.mxu0 %v4736
  %6090 = vmatpush1.bf16.msra.mxu0 %v4735
  %6091 = vmatprep.subr.bf16.mxu0 %v4741
  %6092 = vmatpush1.bf16.msra.mxu0 %v4740
  %6093 = vmatprep.subr.bf16.mxu0 %v4746
  %6094 = vmatpush1.bf16.msra.mxu0 %v4745
  %6095 = vmatprep.subr.bf16.mxu0 %v4751
  %6096 = vmatpush1.bf16.msra.mxu0 %v4750
  %6097 = vmatprep.subr.bf16.mxu0 %v4756
  %6098 = vmatpush1.bf16.msra.mxu0 %v4755
  %6099 = vmatprep.subr.bf16.mxu0 %v4761
  %6100 = vmatpush1.bf16.msra.mxu0 %v4760
  %6101 = vmatprep.subr.bf16.mxu0 %v4766
  %6102 = vmatpush1.bf16.msra.mxu0 %v4765
  %6103 = vmatprep.subr.bf16.mxu0 %v4771
  %6104 = vmatpush1.bf16.msra.mxu0 %v4770
  %6105 = vmatprep.subr.bf16.mxu0 %v4776
  %6106 = vmatpush1.bf16.msra.mxu0 %v4775
  %6107 = vmatprep.subr.bf16.mxu0 %v4781
  %6108 = vmatpush1.bf16.msra.mxu0 %v4780
  %6109 = vmatprep.mubr.bf16.mxu0 %v1377
  %6110 = vmatmul.mubr.bf16.gmra.mrb[0].mxu0 %v1376
  %v6111 = vpop.f32.mrb[0].mxu0
  %v6112 = vadd.f32 %v6071, %v6111
  %v6113 = vpop.f32.mrb[0].mxu0
  %v6114 = vadd.f32 %v6073, %v6113
  %v6115 = vpop.f32.mrb[0].mxu0
  %v6116 = vpop.f32.mrb[0].mxu0
  %6117 = vdwg.mxu0
  %6118 = vmatprep.subr.bf16.mxu0 %v4786
  %6119 = vmatpush1.bf16.msra.mxu0 %v4785
  %6120 = vmatprep.subr.bf16.mxu0 %v4791
  %6121 = vmatpush1.bf16.msra.mxu0 %v4790
  %6122 = vmatprep.subr.bf16.mxu0 %v4796
  %6123 = vmatpush1.bf16.msra.mxu0 %v4795
  %6124 = vmatprep.subr.bf16.mxu0 %v4801
  %6125 = vmatpush1.bf16.msra.mxu0 %v4800
  %6126 = vmatprep.subr.bf16.mxu0 %v4806
  %6127 = vmatpush1.bf16.msra.mxu0 %v4805
  %6128 = vmatprep.subr.bf16.mxu0 %v4811
  %6129 = vmatpush1.bf16.msra.mxu0 %v4810
  %6130 = vmatprep.subr.bf16.mxu0 %v4816
  %6131 = vmatpush1.bf16.msra.mxu0 %v4815
  %6132 = vmatprep.subr.bf16.mxu0 %v4821
  %6133 = vmatpush1.bf16.msra.mxu0 %v4820
  %6134 = vmatprep.subr.bf16.mxu0 %v4826
  %6135 = vmatpush1.bf16.msra.mxu0 %v4825
  %6136 = vmatprep.subr.bf16.mxu0 %v4831
  %6137 = vmatpush1.bf16.msra.mxu0 %v4830
  %6138 = vmatprep.subr.bf16.mxu0 %v4836
  %6139 = vmatpush1.bf16.msra.mxu0 %v4835
  %6140 = vmatprep.subr.bf16.mxu0 %v4841
  %6141 = vmatpush1.bf16.msra.mxu0 %v4840
  %6142 = vmatprep.subr.bf16.mxu0 %v4846
  %6143 = vmatpush1.bf16.msra.mxu0 %v4845
  %6144 = vmatprep.subr.bf16.mxu0 %v4851
  %6145 = vmatpush1.bf16.msra.mxu0 %v4850
  %6146 = vmatprep.subr.bf16.mxu0 %v4856
  %6147 = vmatpush1.bf16.msra.mxu0 %v4855
  %6148 = vmatprep.subr.bf16.mxu0 %v4861
  %6149 = vmatpush1.bf16.msra.mxu0 %v4860
  %6150 = vmatprep.mubr.bf16.mxu0 %v1379
  %6151 = vmatmul.mubr.bf16.gmra.mrb[0].mxu0 %v1378
  %v6152 = vpop.f32.mrb[0].mxu0
  %v6153 = vadd.f32 %v6112, %v6152
  %v6154 = vpop.f32.mrb[0].mxu0
  %v6155 = vadd.f32 %v6114, %v6154
  %v6156 = vpop.f32.mrb[0].mxu0
  %v6157 = vpop.f32.mrb[0].mxu0
  %6158 = vdwg.mxu0
  %6159 = vmatprep.subr.bf16.mxu0 0
  %6160 = vmatpush1.bf16.msra.mxu0 %v4227
  %6161 = vmatprep.subr.bf16.mxu0 0
  %6162 = vmatpush1.bf16.msra.mxu0 %v4232
  %6163 = vmatprep.subr.bf16.mxu0 0
  %6164 = vmatpush1.bf16.msra.mxu0 %v4237
  %6165 = vmatprep.subr.bf16.mxu0 0
  %6166 = vmatpush1.bf16.msra.mxu0 %v4242
  %6167 = vmatprep.subr.bf16.mxu0 0
  %6168 = vmatpush1.bf16.msra.mxu0 %v4247
  %6169 = vmatprep.subr.bf16.mxu0 0
  %6170 = vmatpush1.bf16.msra.mxu0 %v4252
  %6171 = vmatprep.subr.bf16.mxu0 0
  %6172 = vmatpush1.bf16.msra.mxu0 %v4257
  %6173 = vmatprep.subr.bf16.mxu0 0
  %6174 = vmatpush1.bf16.msra.mxu0 %v4262
  %6175 = vmatprep.subr.bf16.mxu0 0
  %6176 = vmatpush1.bf16.msra.mxu0 %v4267
  %6177 = vmatprep.subr.bf16.mxu0 0
  %6178 = vmatpush1.bf16.msra.mxu0 %v4272
  %6179 = vmatprep.subr.bf16.mxu0 0
  %6180 = vmatpush1.bf16.msra.mxu0 %v4277
  %6181 = vmatprep.subr.bf16.mxu0 0
  %6182 = vmatpush1.bf16.msra.mxu0 %v4282
  %6183 = vmatprep.subr.bf16.mxu0 0
  %6184 = vmatpush1.bf16.msra.mxu0 %v4287
  %6185 = vmatprep.subr.bf16.mxu0 0
  %6186 = vmatpush1.bf16.msra.mxu0 %v4292
  %6187 = vmatprep.subr.bf16.mxu0 0
  %6188 = vmatpush1.bf16.msra.mxu0 %v4297
  %6189 = vmatprep.subr.bf16.mxu0 0
  %6190 = vmatpush1.bf16.msra.mxu0 %v4302
  %6191 = vmatprep.mubr.bf16.mxu0 %v1365
  %6192 = vmatmul.mubr.bf16.gmra.mrb[0].mxu0 %v1364
  %v6193 = vpop.f32.mrb[0].mxu0
  %v6194 = vadd.f32 %v2169, %v6193
  %v6195 = vpop.f32.mrb[0].mxu0
  %v6196 = vpop.f32.mrb[0].mxu0
  %v6197 = vpop.f32.mrb[0].mxu0
  %6198 = vdwg.mxu0
  %6199 = vmatprep.subr.bf16.mxu0 0
  %6200 = vmatpush1.bf16.msra.mxu0 %v4307
  %6201 = vmatprep.subr.bf16.mxu0 0
  %6202 = vmatpush1.bf16.msra.mxu0 %v4312
  %6203 = vmatprep.subr.bf16.mxu0 0
  %6204 = vmatpush1.bf16.msra.mxu0 %v4317
  %6205 = vmatprep.subr.bf16.mxu0 0
  %6206 = vmatpush1.bf16.msra.mxu0 %v4322
  %6207 = vmatprep.subr.bf16.mxu0 0
  %6208 = vmatpush1.bf16.msra.mxu0 %v4327
  %6209 = vmatprep.subr.bf16.mxu0 0
  %6210 = vmatpush1.bf16.msra.mxu0 %v4332
  %6211 = vmatprep.subr.bf16.mxu0 0
  %6212 = vmatpush1.bf16.msra.mxu0 %v4337
  %6213 = vmatprep.subr.bf16.mxu0 0
  %6214 = vmatpush1.bf16.msra.mxu0 %v4342
  %6215 = vmatprep.subr.bf16.mxu0 0
  %6216 = vmatpush1.bf16.msra.mxu0 %v4347
  %6217 = vmatprep.subr.bf16.mxu0 0
  %6218 = vmatpush1.bf16.msra.mxu0 %v4352
  %6219 = vmatprep.subr.bf16.mxu0 0
  %6220 = vmatpush1.bf16.msra.mxu0 %v4357
  %6221 = vmatprep.subr.bf16.mxu0 0
  %6222 = vmatpush1.bf16.msra.mxu0 %v4362
  %6223 = vmatprep.subr.bf16.mxu0 0
  %6224 = vmatpush1.bf16.msra.mxu0 %v4367
  %6225 = vmatprep.subr.bf16.mxu0 0
  %6226 = vmatpush1.bf16.msra.mxu0 %v4372
  %6227 = vmatprep.subr.bf16.mxu0 0
  %6228 = vmatpush1.bf16.msra.mxu0 %v4377
  %6229 = vmatprep.subr.bf16.mxu0 0
  %6230 = vmatpush1.bf16.msra.mxu0 %v4382
  %6231 = vmatprep.mubr.bf16.mxu0 %v1367
  %6232 = vmatmul.mubr.bf16.gmra.mrb[0].mxu0 %v1366
  %v6233 = vpop.f32.mrb[0].mxu0
  %v6234 = vadd.f32 %v6194, %v6233
  %v6235 = vpop.f32.mrb[0].mxu0
  %v6236 = vpop.f32.mrb[0].mxu0
  %v6237 = vpop.f32.mrb[0].mxu0
  %6238 = vdwg.mxu0
  %6239 = vmatprep.subr.bf16.mxu0 0
  %6240 = vmatpush1.bf16.msra.mxu0 %v4387
  %6241 = vmatprep.subr.bf16.mxu0 0
  %6242 = vmatpush1.bf16.msra.mxu0 %v4392
  %6243 = vmatprep.subr.bf16.mxu0 0
  %6244 = vmatpush1.bf16.msra.mxu0 %v4397
  %6245 = vmatprep.subr.bf16.mxu0 0
  %6246 = vmatpush1.bf16.msra.mxu0 %v4402
  %6247 = vmatprep.subr.bf16.mxu0 0
  %6248 = vmatpush1.bf16.msra.mxu0 %v4407
  %6249 = vmatprep.subr.bf16.mxu0 0
  %6250 = vmatpush1.bf16.msra.mxu0 %v4412
  %6251 = vmatprep.subr.bf16.mxu0 0
  %6252 = vmatpush1.bf16.msra.mxu0 %v4417
  %6253 = vmatprep.subr.bf16.mxu0 0
  %6254 = vmatpush1.bf16.msra.mxu0 %v4422
  %6255 = vmatprep.subr.bf16.mxu0 0
  %6256 = vmatpush1.bf16.msra.mxu0 %v4427
  %6257 = vmatprep.subr.bf16.mxu0 0
  %6258 = vmatpush1.bf16.msra.mxu0 %v4432
  %6259 = vmatprep.subr.bf16.mxu0 0
  %6260 = vmatpush1.bf16.msra.mxu0 %v4437
  %6261 = vmatprep.subr.bf16.mxu0 0
  %6262 = vmatpush1.bf16.msra.mxu0 %v4442
  %6263 = vmatprep.subr.bf16.mxu0 0
  %6264 = vmatpush1.bf16.msra.mxu0 %v4447
  %6265 = vmatprep.subr.bf16.mxu0 0
  %6266 = vmatpush1.bf16.msra.mxu0 %v4452
  %6267 = vmatprep.subr.bf16.mxu0 0
  %6268 = vmatpush1.bf16.msra.mxu0 %v4457
  %6269 = vmatprep.subr.bf16.mxu0 0
  %6270 = vmatpush1.bf16.msra.mxu0 %v4462
  %6271 = vmatprep.mubr.bf16.mxu0 %v1369
  %6272 = vmatmul.mubr.bf16.gmra.mrb[0].mxu0 %v1368
  %v6273 = vpop.f32.mrb[0].mxu0
  %v6274 = vadd.f32 %v6234, %v6273
  %v6275 = vpop.f32.mrb[0].mxu0
  %v6276 = vpop.f32.mrb[0].mxu0
  %v6277 = vpop.f32.mrb[0].mxu0
  %6278 = vdwg.mxu0
  %6279 = vmatprep.subr.bf16.mxu0 0
  %6280 = vmatpush1.bf16.msra.mxu0 %v4467
  %6281 = vmatprep.subr.bf16.mxu0 0
  %6282 = vmatpush1.bf16.msra.mxu0 %v4472
  %6283 = vmatprep.subr.bf16.mxu0 0
  %6284 = vmatpush1.bf16.msra.mxu0 %v4477
  %6285 = vmatprep.subr.bf16.mxu0 0
  %6286 = vmatpush1.bf16.msra.mxu0 %v4482
  %6287 = vmatprep.subr.bf16.mxu0 0
  %6288 = vmatpush1.bf16.msra.mxu0 %v4487
  %6289 = vmatprep.subr.bf16.mxu0 0
  %6290 = vmatpush1.bf16.msra.mxu0 %v4492
  %6291 = vmatprep.subr.bf16.mxu0 0
  %6292 = vmatpush1.bf16.msra.mxu0 %v4497
  %6293 = vmatprep.subr.bf16.mxu0 0
  %6294 = vmatpush1.bf16.msra.mxu0 %v4502
  %6295 = vmatprep.subr.bf16.mxu0 0
  %6296 = vmatpush1.bf16.msra.mxu0 %v4507
  %6297 = vmatprep.subr.bf16.mxu0 0
  %6298 = vmatpush1.bf16.msra.mxu0 %v4512
  %6299 = vmatprep.subr.bf16.mxu0 0
  %6300 = vmatpush1.bf16.msra.mxu0 %v4517
  %6301 = vmatprep.subr.bf16.mxu0 0
  %6302 = vmatpush1.bf16.msra.mxu0 %v4522
  %6303 = vmatprep.subr.bf16.mxu0 0
  %6304 = vmatpush1.bf16.msra.mxu0 %v4527
  %6305 = vmatprep.subr.bf16.mxu0 0
  %6306 = vmatpush1.bf16.msra.mxu0 %v4532
  %6307 = vmatprep.subr.bf16.mxu0 0
  %6308 = vmatpush1.bf16.msra.mxu0 %v4537
  %6309 = vmatprep.subr.bf16.mxu0 0
  %6310 = vmatpush1.bf16.msra.mxu0 %v4542
  %6311 = vmatprep.mubr.bf16.mxu0 %v1371
  %6312 = vmatmul.mubr.bf16.gmra.mrb[0].mxu0 %v1370
  %v6313 = vpop.f32.mrb[0].mxu0
  %v6314 = vadd.f32 %v6274, %v6313
  %v6315 = vpop.f32.mrb[0].mxu0
  %v6316 = vpop.f32.mrb[0].mxu0
  %v6317 = vpop.f32.mrb[0].mxu0
  %6318 = vdwg.mxu0
  %6319 = vmatprep.subr.bf16.mxu0 0
  %6320 = vmatpush1.bf16.msra.mxu0 %v4547
  %6321 = vmatprep.subr.bf16.mxu0 0
  %6322 = vmatpush1.bf16.msra.mxu0 %v4552
  %6323 = vmatprep.subr.bf16.mxu0 0
  %6324 = vmatpush1.bf16.msra.mxu0 %v4557
  %6325 = vmatprep.subr.bf16.mxu0 0
  %6326 = vmatpush1.bf16.msra.mxu0 %v4562
  %6327 = vmatprep.subr.bf16.mxu0 0
  %6328 = vmatpush1.bf16.msra.mxu0 %v4567
  %6329 = vmatprep.subr.bf16.mxu0 0
  %6330 = vmatpush1.bf16.msra.mxu0 %v4572
  %6331 = vmatprep.subr.bf16.mxu0 0
  %6332 = vmatpush1.bf16.msra.mxu0 %v4577
  %6333 = vmatprep.subr.bf16.mxu0 0
  %6334 = vmatpush1.bf16.msra.mxu0 %v4582
  %6335 = vmatprep.subr.bf16.mxu0 0
  %6336 = vmatpush1.bf16.msra.mxu0 %v4587
  %6337 = vmatprep.subr.bf16.mxu0 0
  %6338 = vmatpush1.bf16.msra.mxu0 %v4592
  %6339 = vmatprep.subr.bf16.mxu0 0
  %6340 = vmatpush1.bf16.msra.mxu0 %v4597
  %6341 = vmatprep.subr.bf16.mxu0 0
  %6342 = vmatpush1.bf16.msra.mxu0 %v4602
  %6343 = vmatprep.subr.bf16.mxu0 0
  %6344 = vmatpush1.bf16.msra.mxu0 %v4607
  %6345 = vmatprep.subr.bf16.mxu0 0
  %6346 = vmatpush1.bf16.msra.mxu0 %v4612
  %6347 = vmatprep.subr.bf16.mxu0 0
  %6348 = vmatpush1.bf16.msra.mxu0 %v4617
  %6349 = vmatprep.subr.bf16.mxu0 0
  %6350 = vmatpush1.bf16.msra.mxu0 %v4622
  %6351 = vmatprep.mubr.bf16.mxu0 %v1373
  %6352 = vmatmul.mubr.bf16.gmra.mrb[0].mxu0 %v1372
  %v6353 = vpop.f32.mrb[0].mxu0
  %v6354 = vadd.f32 %v6314, %v6353
  %v6355 = vpop.f32.mrb[0].mxu0
  %v6356 = vpop.f32.mrb[0].mxu0
  %v6357 = vpop.f32.mrb[0].mxu0
  %6358 = vdwg.mxu0
  %6359 = vmatprep.subr.bf16.mxu0 0
  %6360 = vmatpush1.bf16.msra.mxu0 %v4627
  %6361 = vmatprep.subr.bf16.mxu0 0
  %6362 = vmatpush1.bf16.msra.mxu0 %v4632
  %6363 = vmatprep.subr.bf16.mxu0 0
  %6364 = vmatpush1.bf16.msra.mxu0 %v4637
  %6365 = vmatprep.subr.bf16.mxu0 0
  %6366 = vmatpush1.bf16.msra.mxu0 %v4642
  %6367 = vmatprep.subr.bf16.mxu0 0
  %6368 = vmatpush1.bf16.msra.mxu0 %v4647
  %6369 = vmatprep.subr.bf16.mxu0 0
  %6370 = vmatpush1.bf16.msra.mxu0 %v4652
  %6371 = vmatprep.subr.bf16.mxu0 0
  %6372 = vmatpush1.bf16.msra.mxu0 %v4657
  %6373 = vmatprep.subr.bf16.mxu0 0
  %6374 = vmatpush1.bf16.msra.mxu0 %v4662
  %6375 = vmatprep.subr.bf16.mxu0 0
  %6376 = vmatpush1.bf16.msra.mxu0 %v4667
  %6377 = vmatprep.subr.bf16.mxu0 0
  %6378 = vmatpush1.bf16.msra.mxu0 %v4672
  %6379 = vmatprep.subr.bf16.mxu0 0
  %6380 = vmatpush1.bf16.msra.mxu0 %v4677
  %6381 = vmatprep.subr.bf16.mxu0 0
  %6382 = vmatpush1.bf16.msra.mxu0 %v4682
  %6383 = vmatprep.subr.bf16.mxu0 0
  %6384 = vmatpush1.bf16.msra.mxu0 %v4687
  %6385 = vmatprep.subr.bf16.mxu0 0
  %6386 = vmatpush1.bf16.msra.mxu0 %v4692
  %6387 = vmatprep.subr.bf16.mxu0 0
  %6388 = vmatpush1.bf16.msra.mxu0 %v4697
  %6389 = vmatprep.subr.bf16.mxu0 0
  %6390 = vmatpush1.bf16.msra.mxu0 %v4702
  %6391 = vmatprep.mubr.bf16.mxu0 %v1375
  %6392 = vmatmul.mubr.bf16.gmra.mrb[0].mxu0 %v1374
  %v6393 = vpop.f32.mrb[0].mxu0
  %v6394 = vadd.f32 %v6354, %v6393
  %v6395 = vpop.f32.mrb[0].mxu0
  %v6396 = vpop.f32.mrb[0].mxu0
  %v6397 = vpop.f32.mrb[0].mxu0
  %6398 = vdwg.mxu0
  %6399 = vmatprep.subr.bf16.mxu0 0
  %6400 = vmatpush1.bf16.msra.mxu0 %v4707
  %6401 = vmatprep.subr.bf16.mxu0 0
  %6402 = vmatpush1.bf16.msra.mxu0 %v4712
  %6403 = vmatprep.subr.bf16.mxu0 0
  %6404 = vmatpush1.bf16.msra.mxu0 %v4717
  %6405 = vmatprep.subr.bf16.mxu0 0
  %6406 = vmatpush1.bf16.msra.mxu0 %v4722
  %6407 = vmatprep.subr.bf16.mxu0 0
  %6408 = vmatpush1.bf16.msra.mxu0 %v4727
  %6409 = vmatprep.subr.bf16.mxu0 0
  %6410 = vmatpush1.bf16.msra.mxu0 %v4732
  %6411 = vmatprep.subr.bf16.mxu0 0
  %6412 = vmatpush1.bf16.msra.mxu0 %v4737
  %6413 = vmatprep.subr.bf16.mxu0 0
  %6414 = vmatpush1.bf16.msra.mxu0 %v4742
  %6415 = vmatprep.subr.bf16.mxu0 0
  %6416 = vmatpush1.bf16.msra.mxu0 %v4747
  %6417 = vmatprep.subr.bf16.mxu0 0
  %6418 = vmatpush1.bf16.msra.mxu0 %v4752
  %6419 = vmatprep.subr.bf16.mxu0 0
  %6420 = vmatpush1.bf16.msra.mxu0 %v4757
  %6421 = vmatprep.subr.bf16.mxu0 0
  %6422 = vmatpush1.bf16.msra.mxu0 %v4762
  %6423 = vmatprep.subr.bf16.mxu0 0
  %6424 = vmatpush1.bf16.msra.mxu0 %v4767
  %6425 = vmatprep.subr.bf16.mxu0 0
  %6426 = vmatpush1.bf16.msra.mxu0 %v4772
  %6427 = vmatprep.subr.bf16.mxu0 0
  %6428 = vmatpush1.bf16.msra.mxu0 %v4777
  %6429 = vmatprep.subr.bf16.mxu0 0
  %6430 = vmatpush1.bf16.msra.mxu0 %v4782
  %6431 = vmatprep.mubr.bf16.mxu0 %v1377
  %6432 = vmatmul.mubr.bf16.gmra.mrb[0].mxu0 %v1376
  %v6433 = vpop.f32.mrb[0].mxu0
  %v6434 = vadd.f32 %v6394, %v6433
  %v6435 = vpop.f32.mrb[0].mxu0
  %v6436 = vpop.f32.mrb[0].mxu0
  %v6437 = vpop.f32.mrb[0].mxu0
  %6438 = vdwg.mxu0
  %6439 = vmatprep.subr.bf16.mxu0 0
  %6440 = vmatpush1.bf16.msra.mxu0 %v4787
  %6441 = vmatprep.subr.bf16.mxu0 0
  %6442 = vmatpush1.bf16.msra.mxu0 %v4792
  %6443 = vmatprep.subr.bf16.mxu0 0
  %6444 = vmatpush1.bf16.msra.mxu0 %v4797
  %6445 = vmatprep.subr.bf16.mxu0 0
  %6446 = vmatpush1.bf16.msra.mxu0 %v4802
  %6447 = vmatprep.subr.bf16.mxu0 0
  %6448 = vmatpush1.bf16.msra.mxu0 %v4807
  %6449 = vmatprep.subr.bf16.mxu0 0
  %6450 = vmatpush1.bf16.msra.mxu0 %v4812
  %6451 = vmatprep.subr.bf16.mxu0 0
  %6452 = vmatpush1.bf16.msra.mxu0 %v4817
  %6453 = vmatprep.subr.bf16.mxu0 0
  %6454 = vmatpush1.bf16.msra.mxu0 %v4822
  %6455 = vmatprep.subr.bf16.mxu0 0
  %6456 = vmatpush1.bf16.msra.mxu0 %v4827
  %6457 = vmatprep.subr.bf16.mxu0 0
  %6458 = vmatpush1.bf16.msra.mxu0 %v4832
  %6459 = vmatprep.subr.bf16.mxu0 0
  %6460 = vmatpush1.bf16.msra.mxu0 %v4837
  %6461 = vmatprep.subr.bf16.mxu0 0
  %6462 = vmatpush1.bf16.msra.mxu0 %v4842
  %6463 = vmatprep.subr.bf16.mxu0 0
  %6464 = vmatpush1.bf16.msra.mxu0 %v4847
  %6465 = vmatprep.subr.bf16.mxu0 0
  %6466 = vmatpush1.bf16.msra.mxu0 %v4852
  %6467 = vmatprep.subr.bf16.mxu0 0
  %6468 = vmatpush1.bf16.msra.mxu0 %v4857
  %6469 = vmatprep.subr.bf16.mxu0 0
  %6470 = vmatpush1.bf16.msra.mxu0 %v4862
  %6471 = vmatprep.mubr.bf16.mxu0 %v1379
  %6472 = vmatmul.mubr.bf16.gmra.mrb[0].mxu0 %v1378
  %v6473 = vpop.f32.mrb[0].mxu0
  %v6474 = vadd.f32 %v6434, %v6473
  %v6475 = vpop.f32.mrb[0].mxu0
  %v6476 = vpop.f32.mrb[0].mxu0
  %v6477 = vpop.f32.mrb[0].mxu0
  %6478 = vdwg.mxu0
  %v6479 = vmax.f32 %v5825, 0.0
  %v6480 = vmax.f32 %v5827, 0.0
  %v6481 = vmax.f32 %v6153, 0.0
  %v6482 = vmax.f32 %v6155, 0.0
  %v6483 = vmax.f32 %v6474, 0.0
  %v6484 = vpack.c.bf16 %v6479, %v6479
  %v6485 = vpack.c.bf16 %v6480, %v6480
  %v6486 = vpack.c.bf16 %v6481, %v6481
  %v6487 = vpack.c.bf16 %v6482, %v6482
  %v6488 = vpack.c.bf16 %v6483, %v6483
  %v6489 = vld [vmem:[%s3] sm:$0xf]
  %v6490 = vld [vmem:[%s3 + $0x4] sm:$0xf]
  %v6491 = vld [vmem:[%s3 + $0x8] sm:$0xf]
  %v6492 = vld [vmem:[%s3 + $0xc] sm:$0xf]
  %v6493 = vld [vmem:[%s3 + $0x10] sm:$0xf]
  %v6494 = vld [vmem:[%s3 + $0x14] sm:$0xf]
  %v6495 = vld [vmem:[%s3 + $0x18] sm:$0xf]
  %v6496 = vld [vmem:[%s3 + $0x1c] sm:$0xf]
  %v6497 = vld [vmem:[%s3 + $0x20] sm:$0xf]
  %v6498 = vld [vmem:[%s3 + $0x24] sm:$0xf]
  %v6499 = vld [vmem:[%s3 + $0x28] sm:$0xf]
  %v6500 = vld [vmem:[%s3 + $0x2c] sm:$0xf]
  %v6501 = vld [vmem:[%s3 + $0x30] sm:$0xf]
  %v6502 = vld [vmem:[%s3 + $0x34] sm:$0xf]
  %v6503 = vld [vmem:[%s3 + $0x38] sm:$0xf]
  %v6504 = vld [vmem:[%s3 + $0x3c] sm:$0xf]
  %v6505 = vld [vmem:[%s3 + $0x40] sm:$0xf]
  %v6506 = vld [vmem:[%s3 + $0x44] sm:$0xf]
  %v6507 = vld [vmem:[%s3 + $0x48] sm:$0xf]
  %v6508 = vld [vmem:[%s3 + $0x4c] sm:$0xf]
  %v6509 = vld [vmem:[%s3 + $0x50] sm:$0xf]
  %v6510 = vld [vmem:[%s3 + $0x54] sm:$0xf]
  %v6511 = vld [vmem:[%s3 + $0x58] sm:$0xf]
  %v6512 = vld [vmem:[%s3 + $0x5c] sm:$0xf]
  %v6513 = vld [vmem:[%s3 + $0x60] sm:$0xf]
  %v6514 = vld [vmem:[%s3 + $0x64] sm:$0xf]
  %v6515 = vld [vmem:[%s3 + $0x68] sm:$0xf]
  %v6516 = vld [vmem:[%s3 + $0x6c] sm:$0xf]
  %v6517 = vld [vmem:[%s3 + $0x70] sm:$0xf]
  %v6518 = vld [vmem:[%s3 + $0x74] sm:$0xf]
  %v6519 = vld [vmem:[%s3 + $0x78] sm:$0xf]
  %v6520 = vld [vmem:[%s3 + $0x7c] sm:$0xf]
  %v6521 = vld [vmem:[%s3 + $0x80] sm:$0xf]
  %v6522 = vld [vmem:[%s3 + $0x84] sm:$0xf]
  %v6523 = vld [vmem:[%s3 + $0x88] sm:$0xf]
  %v6524 = vld [vmem:[%s3 + $0x8c] sm:$0xf]
  %v6525 = vld [vmem:[%s3 + $0x90] sm:$0xf]
  %v6526 = vld [vmem:[%s3 + $0x94] sm:$0xf]
  %v6527 = vld [vmem:[%s3 + $0x98] sm:$0xf]
  %v6528 = vld [vmem:[%s3 + $0x9c] sm:$0xf]
  %v6529 = vld [vmem:[%s3 + $0xa0] sm:$0xf]
  %v6530 = vld [vmem:[%s3 + $0xa4] sm:$0xf]
  %v6531 = vld [vmem:[%s3 + $0xa8] sm:$0xf]
  %v6532 = vld [vmem:[%s3 + $0xac] sm:$0xf]
  %v6533 = vld [vmem:[%s3 + $0xb0] sm:$0xf]
  %v6534 = vld [vmem:[%s3 + $0xb4] sm:$0xf]
  %v6535 = vld [vmem:[%s3 + $0xb8] sm:$0xf]
  %v6536 = vld [vmem:[%s3 + $0xbc] sm:$0xf]
  %v6537 = vld [vmem:[%s3 + $0xc0] sm:$0xf]
  %v6538 = vld [vmem:[%s3 + $0xc4] sm:$0xf]
  %v6539 = vld [vmem:[%s3 + $0xc8] sm:$0xf]
  %v6540 = vld [vmem:[%s3 + $0xcc] sm:$0xf]
  %v6541 = vld [vmem:[%s3 + $0xd0] sm:$0xf]
  %v6542 = vld [vmem:[%s3 + $0xd4] sm:$0xf]
  %v6543 = vld [vmem:[%s3 + $0xd8] sm:$0xf]
  %v6544 = vld [vmem:[%s3 + $0xdc] sm:$0xf]
  %v6545 = vld [vmem:[%s3 + $0xe0] sm:$0xf]
  %v6546 = vld [vmem:[%s3 + $0xe4] sm:$0xf]
  %v6547 = vld [vmem:[%s3 + $0xe8] sm:$0xf]
  %v6548 = vld [vmem:[%s3 + $0xec] sm:$0xf]
  %v6549 = vld [vmem:[%s3 + $0xf0] sm:$0xf]
  %v6550 = vld [vmem:[%s3 + $0xf4] sm:$0xf]
  %v6551 = vld [vmem:[%s3 + $0xf8] sm:$0xf]
  %v6552 = vld [vmem:[%s3 + $0xfc] sm:$0xf]
  %v6553 = vld [vmem:[%s3 + $0x100] sm:$0xf]
  %v6554 = vld [vmem:[%s3 + $0x104] sm:$0xf]
  %v6555 = vld [vmem:[%s3 + $0x108] sm:$0xf]
  %v6556 = vld [vmem:[%s3 + $0x10c] sm:$0xf]
  %v6557 = vld [vmem:[%s3 + $0x110] sm:$0xf]
  %v6558 = vld [vmem:[%s3 + $0x114] sm:$0xf]
  %v6559 = vld [vmem:[%s3 + $0x118] sm:$0xf]
  %v6560 = vld [vmem:[%s3 + $0x11c] sm:$0xf]
  %v6561 = vld [vmem:[%s7 + $0x7] sm:$0x1]
  %v6563 = vlaneseq
  %v6564 = vshrl.u32 %v6563, 7
  %v6565 = vsub.s32 0, %v6564
  %v6566 = vrot.slane %v6561, %v6565
  %v6640 = vunpack.c.l.b16 %v6489
  %v6641 = vunpack.c.l.b16 %v6490
  %v6642 = vunpack.c.l.b16 %v6491
  %v6643 = vunpack.c.l.b16 %v6492
  %v6644 = vunpack.c.l.b16 %v6493
  %v6645 = vunpack.c.l.b16 %v6494
  %v6646 = vunpack.c.l.b16 %v6495
  %v6647 = vunpack.c.l.b16 %v6496
  %v6648 = vunpack.c.l.b16 %v6497
  %v6649 = vunpack.c.l.b16 %v6498
  %v6650 = vunpack.c.l.b16 %v6499
  %v6651 = vunpack.c.l.b16 %v6500
  %v6652 = vunpack.c.l.b16 %v6501
  %v6653 = vunpack.c.l.b16 %v6502
  %v6654 = vunpack.c.l.b16 %v6503
  %v6655 = vunpack.c.l.b16 %v6504
  %v6656 = vunpack.c.l.b16 %v6505
  %v6657 = vunpack.c.l.b16 %v6506
  %v6658 = vunpack.c.l.b16 %v6507
  %v6659 = vunpack.c.l.b16 %v6508
  %v6660 = vunpack.c.l.b16 %v6509
  %v6661 = vunpack.c.l.b16 %v6510
  %v6662 = vunpack.c.l.b16 %v6511
  %v6663 = vunpack.c.l.b16 %v6512
  %v6664 = vunpack.c.l.b16 %v6513
  %v6665 = vunpack.c.l.b16 %v6514
  %v6666 = vunpack.c.l.b16 %v6515
  %v6667 = vunpack.c.l.b16 %v6516
  %v6668 = vunpack.c.l.b16 %v6517
  %v6669 = vunpack.c.l.b16 %v6518
  %v6670 = vunpack.c.l.b16 %v6519
  %v6671 = vunpack.c.l.b16 %v6520
  %v6672 = vunpack.c.l.b16 %v6521
  %v6673 = vunpack.c.l.b16 %v6522
  %v6674 = vunpack.c.l.b16 %v6523
  %v6675 = vunpack.c.l.b16 %v6524
  %v6676 = vunpack.c.l.b16 %v6525
  %v6677 = vunpack.c.l.b16 %v6526
  %v6678 = vunpack.c.l.b16 %v6527
  %v6679 = vunpack.c.l.b16 %v6528
  %v6680 = vunpack.c.l.b16 %v6529
  %v6681 = vunpack.c.l.b16 %v6530
  %v6682 = vunpack.c.l.b16 %v6531
  %v6683 = vunpack.c.l.b16 %v6532
  %v6684 = vunpack.c.l.b16 %v6533
  %v6685 = vunpack.c.l.b16 %v6534
  %v6686 = vunpack.c.l.b16 %v6535
  %v6687 = vunpack.c.l.b16 %v6536
  %v6688 = vunpack.c.l.b16 %v6537
  %v6689 = vunpack.c.l.b16 %v6538
  %v6690 = vunpack.c.l.b16 %v6539
  %v6691 = vunpack.c.l.b16 %v6540
  %v6692 = vunpack.c.l.b16 %v6541
  %v6693 = vunpack.c.l.b16 %v6542
  %v6694 = vunpack.c.l.b16 %v6543
  %v6695 = vunpack.c.l.b16 %v6544
  %v6696 = vunpack.c.l.b16 %v6545
  %v6697 = vunpack.c.l.b16 %v6546
  %v6698 = vunpack.c.l.b16 %v6547
  %v6699 = vunpack.c.l.b16 %v6548
  %v6700 = vunpack.c.l.b16 %v6549
  %v6701 = vunpack.c.l.b16 %v6550
  %v6702 = vunpack.c.l.b16 %v6551
  %v6703 = vunpack.c.l.b16 %v6552
  %v6704 = vunpack.c.l.b16 %v6553
  %v6705 = vunpack.c.l.b16 %v6554
  %v6706 = vunpack.c.l.b16 %v6555
  %v6707 = vunpack.c.l.b16 %v6556
  %v6708 = vunpack.c.l.b16 %v6557
  %v6709 = vunpack.c.l.b16 %v6558
  %v6710 = vunpack.c.l.b16 %v6559
  %v6711 = vunpack.c.l.b16 %v6560
  %v6712 = vpack.c.b16 %v6641, %v6640
  %v6713 = vpack.c.b16 %v6643, %v6642
  %v6714 = vpack.c.b16 %v6645, %v6644
  %v6715 = vpack.c.b16 %v6647, %v6646
  %v6716 = vpack.c.b16 %v6649, %v6648
  %v6717 = vpack.c.b16 %v6651, %v6650
  %v6718 = vpack.c.b16 %v6653, %v6652
  %v6719 = vpack.c.b16 %v6655, %v6654
  %v6720 = vpack.c.b16 %v6657, %v6656
  %v6721 = vpack.c.b16 %v6659, %v6658
  %v6722 = vpack.c.b16 %v6661, %v6660
  %v6723 = vpack.c.b16 %v6663, %v6662
  %v6724 = vpack.c.b16 %v6665, %v6664
  %v6725 = vpack.c.b16 %v6667, %v6666
  %v6726 = vpack.c.b16 %v6669, %v6668
  %v6727 = vpack.c.b16 %v6671, %v6670
  %v6728 = vpack.c.b16 %v6673, %v6672
  %v6729 = vpack.c.b16 %v6675, %v6674
  %v6730 = vpack.c.b16 %v6677, %v6676
  %v6731 = vpack.c.b16 %v6679, %v6678
  %v6732 = vpack.c.b16 %v6681, %v6680
  %v6733 = vpack.c.b16 %v6683, %v6682
  %v6734 = vpack.c.b16 %v6685, %v6684
  %v6735 = vpack.c.b16 %v6687, %v6686
  %v6736 = vpack.c.b16 %v6689, %v6688
  %v6737 = vpack.c.b16 %v6691, %v6690
  %v6738 = vpack.c.b16 %v6693, %v6692
  %v6739 = vpack.c.b16 %v6695, %v6694
  %v6740 = vpack.c.b16 %v6697, %v6696
  %v6741 = vpack.c.b16 %v6699, %v6698
  %v6742 = vpack.c.b16 %v6701, %v6700
  %v6743 = vpack.c.b16 %v6703, %v6702
  %v6744 = vpack.c.b16 %v6705, %v6704
  %v6745 = vpack.c.b16 %v6707, %v6706
  %v6746 = vpack.c.b16 %v6709, %v6708
  %v6747 = vpack.c.b16 %v6711, %v6710
  %vm6784 = vcmask 523264
  %v6786 = vsel %vm6784, %v6488, 0
  %6788 = vmatprep.subr.bf16.mxu0 0
  %6789 = vmatpush1.bf16.msra.mxu0 %v6712
  %6790 = vmatprep.subr.bf16.mxu0 0
  %6791 = vmatpush1.bf16.msra.mxu0 %v6713
  %6792 = vmatprep.subr.bf16.mxu0 0
  %6793 = vmatpush1.bf16.msra.mxu0 %v6714
  %6794 = vmatprep.subr.bf16.mxu0 0
  %6795 = vmatpush1.bf16.msra.mxu0 %v6715
  %6796 = vmatprep.subr.bf16.mxu0 0
  %6797 = vmatpush1.bf16.msra.mxu0 %v6716
  %6798 = vmatprep.subr.bf16.mxu0 0
  %6799 = vmatpush1.bf16.msra.mxu0 %v6717
  %6800 = vmatprep.subr.bf16.mxu0 0
  %6801 = vmatpush1.bf16.msra.mxu0 %v6718
  %6802 = vmatprep.subr.bf16.mxu0 0
  %6803 = vmatpush1.bf16.msra.mxu0 %v6719
  %6804 = vmatprep.subr.bf16.mxu0 0
  %6805 = vmatpush1.bf16.msra.mxu0 %v6720
  %6806 = vmatprep.subr.bf16.mxu0 0
  %6807 = vmatpush1.bf16.msra.mxu0 %v6721
  %6808 = vmatprep.subr.bf16.mxu0 0
  %6809 = vmatpush1.bf16.msra.mxu0 %v6722
  %6810 = vmatprep.subr.bf16.mxu0 0
  %6811 = vmatpush1.bf16.msra.mxu0 %v6723
  %6812 = vmatprep.subr.bf16.mxu0 0
  %6813 = vmatpush1.bf16.msra.mxu0 %v6724
  %6814 = vmatprep.subr.bf16.mxu0 0
  %6815 = vmatpush1.bf16.msra.mxu0 %v6725
  %6816 = vmatprep.subr.bf16.mxu0 0
  %6817 = vmatpush1.bf16.msra.mxu0 %v6726
  %6818 = vmatprep.subr.bf16.mxu0 0
  %6819 = vmatpush1.bf16.msra.mxu0 %v6727
  %6820 = vmatprep.mubr.bf16.mxu0 %v6485
  %6821 = vmatmul.mubr.bf16.gmra.mrb[0].mxu0 %v6484
  %v6822 = vpop.f32.mrb[0].mxu0
  %v6823 = vadd.f32 %v6566, %v6822
  %v6824 = vpop.f32.mrb[0].mxu0
  %v6825 = vpop.f32.mrb[0].mxu0
  %v6826 = vpop.f32.mrb[0].mxu0
  %6827 = vdwg.mxu0
  %6828 = vmatprep.subr.bf16.mxu0 0
  %6829 = vmatpush1.bf16.msra.mxu0 %v6728
  %6830 = vmatprep.subr.bf16.mxu0 0
  %6831 = vmatpush1.bf16.msra.mxu0 %v6729
  %6832 = vmatprep.subr.bf16.mxu0 0
  %6833 = vmatpush1.bf16.msra.mxu0 %v6730
  %6834 = vmatprep.subr.bf16.mxu0 0
  %6835 = vmatpush1.bf16.msra.mxu0 %v6731
  %6836 = vmatprep.subr.bf16.mxu0 0
  %6837 = vmatpush1.bf16.msra.mxu0 %v6732
  %6838 = vmatprep.subr.bf16.mxu0 0
  %6839 = vmatpush1.bf16.msra.mxu0 %v6733
  %6840 = vmatprep.subr.bf16.mxu0 0
  %6841 = vmatpush1.bf16.msra.mxu0 %v6734
  %6842 = vmatprep.subr.bf16.mxu0 0
  %6843 = vmatpush1.bf16.msra.mxu0 %v6735
  %6844 = vmatprep.subr.bf16.mxu0 0
  %6845 = vmatpush1.bf16.msra.mxu0 %v6736
  %6846 = vmatprep.subr.bf16.mxu0 0
  %6847 = vmatpush1.bf16.msra.mxu0 %v6737
  %6848 = vmatprep.subr.bf16.mxu0 0
  %6849 = vmatpush1.bf16.msra.mxu0 %v6738
  %6850 = vmatprep.subr.bf16.mxu0 0
  %6851 = vmatpush1.bf16.msra.mxu0 %v6739
  %6852 = vmatprep.subr.bf16.mxu0 0
  %6853 = vmatpush1.bf16.msra.mxu0 %v6740
  %6854 = vmatprep.subr.bf16.mxu0 0
  %6855 = vmatpush1.bf16.msra.mxu0 %v6741
  %6856 = vmatprep.subr.bf16.mxu0 0
  %6857 = vmatpush1.bf16.msra.mxu0 %v6742
  %6858 = vmatprep.subr.bf16.mxu0 0
  %6859 = vmatpush1.bf16.msra.mxu0 %v6743
  %6860 = vmatprep.mubr.bf16.mxu0 %v6487
  %6861 = vmatmul.mubr.bf16.gmra.mrb[0].mxu0 %v6486
  %v6862 = vpop.f32.mrb[0].mxu0
  %v6863 = vadd.f32 %v6823, %v6862
  %v6864 = vpop.f32.mrb[0].mxu0
  %v6865 = vpop.f32.mrb[0].mxu0
  %v6866 = vpop.f32.mrb[0].mxu0
  %6867 = vdwg.mxu0
  %6868 = vmatprep.subr.bf16.mxu0 0
  %6869 = vmatpush1.bf16.msra.mxu0 %v6744
  %6870 = vmatprep.subr.bf16.mxu0 0
  %6871 = vmatpush1.bf16.msra.mxu0 %v6745
  %6872 = vmatprep.subr.bf16.mxu0 0
  %6873 = vmatpush1.bf16.msra.mxu0 %v6746
  %6874 = vmatprep.subr.bf16.mxu0 0
  %6875 = vmatpush1.bf16.msra.mxu0 %v6747
  %6876 = vmatprep.subr.bf16.mxu0 0
  %6877 = vmatpush1.bf16.msra.mxu0 0
  %6878 = vmatprep.subr.bf16.mxu0 0
  %6879 = vmatpush1.bf16.msra.mxu0 0
  %6880 = vmatprep.subr.bf16.mxu0 0
  %6881 = vmatpush1.bf16.msra.mxu0 0
  %6882 = vmatprep.subr.bf16.mxu0 0
  %6883 = vmatpush1.bf16.msra.mxu0 0
  %6884 = vmatprep.subr.bf16.mxu0 0
  %6885 = vmatpush1.bf16.msra.mxu0 0
  %6886 = vmatprep.subr.bf16.mxu0 0
  %6887 = vmatpush1.bf16.msra.mxu0 0
  %6888 = vmatprep.subr.bf16.mxu0 0
  %6889 = vmatpush1.bf16.msra.mxu0 0
  %6890 = vmatprep.subr.bf16.mxu0 0
  %6891 = vmatpush1.bf16.msra.mxu0 0
  %6892 = vmatprep.subr.bf16.mxu0 0
  %6893 = vmatpush1.bf16.msra.mxu0 0
  %6894 = vmatprep.subr.bf16.mxu0 0
  %6895 = vmatpush1.bf16.msra.mxu0 0
  %6896 = vmatprep.subr.bf16.mxu0 0
  %6897 = vmatpush1.bf16.msra.mxu0 0
  %6898 = vmatprep.subr.bf16.mxu0 0
  %6899 = vmatpush1.bf16.msra.mxu0 0
  %6900 = vmatprep.mubr.bf16.mxu0 0
  %6901 = vmatmul.mubr.bf16.gmra.mrb[0].mxu0 %v6786
  %v6902 = vpop.f32.mrb[0].mxu0
  %v6903 = vadd.f32 %v6863, %v6902
  %v6904 = vpop.f32.mrb[0].mxu0
  %v6905 = vpop.f32.mrb[0].mxu0
  %v6906 = vpop.f32.mrb[0].mxu0
  %6907 = vdwg.mxu0
  %v6908 = vmax.f32 %v6903, 0.0
  %v6909 = vpack.c.bf16 %v6908, %v6908
  %v6910 = vld [vmem:[%s4] sm:$0xff]
  %v6911 = vld [vmem:[%s4 + $0x8] sm:$0xff]
  %v6912 = vld [vmem:[%s4 + $0x10] sm:$0xff]
  %v6913 = vld [vmem:[%s4 + $0x18] sm:$0xff]
  %v6914 = vld [vmem:[%s4 + $0x20] sm:$0xff]
  %v6915 = vld [vmem:[%s4 + $0x28] sm:$0xff]
  %v6916 = vld [vmem:[%s4 + $0x30] sm:$0xff]
  %v6917 = vld [vmem:[%s4 + $0x38] sm:$0xff]
  %v6918 = vld [vmem:[%s4 + $0x40] sm:$0xff]
  %v6919 = vld [vmem:[%s4 + $0x48] sm:$0xff]
  %v6920 = vld [vmem:[%s4 + $0x50] sm:$0xff]
  %v6921 = vld [vmem:[%s4 + $0x58] sm:$0xff]
  %v6922 = vld [vmem:[%s4 + $0x60] sm:$0xff]
  %v6923 = vld [vmem:[%s4 + $0x68] sm:$0xff]
  %v6924 = vld [vmem:[%s4 + $0x70] sm:$0xff]
  %v6925 = vld [vmem:[%s4 + $0x78] sm:$0xff]
  %v6926 = vld [vmem:[%s4 + $0x80] sm:$0xff]
  %v6927 = vld [vmem:[%s4 + $0x88] sm:$0xff]
  %v6928 = vld [vmem:[%s4 + $0x90] sm:$0xff]
  %v6929 = vld [vmem:[%s4 + $0x98] sm:$0xff]
  %v6930 = vld [vmem:[%s4 + $0xa0] sm:$0xff]
  %v6931 = vld [vmem:[%s4 + $0xa8] sm:$0xff]
  %v6932 = vld [vmem:[%s4 + $0xb0] sm:$0xff]
  %v6933 = vld [vmem:[%s4 + $0xb8] sm:$0xff]
  %v6934 = vld [vmem:[%s4 + $0xc0] sm:$0xff]
  %v6935 = vld [vmem:[%s4 + $0xc8] sm:$0xff]
  %v6936 = vld [vmem:[%s4 + $0xd0] sm:$0xff]
  %v6937 = vld [vmem:[%s4 + $0xd8] sm:$0xff]
  %v6938 = vld [vmem:[%s4 + $0xe0] sm:$0xff]
  %v6939 = vld [vmem:[%s4 + $0xe8] sm:$0xff]
  %v6940 = vld [vmem:[%s4 + $0xf0] sm:$0xff]
  %v6941 = vld [vmem:[%s4 + $0xf8] sm:$0xff]
  %v6942 = vld [vmem:[%s4 + $0x100] sm:$0xff]
  %v6943 = vld [vmem:[%s4 + $0x108] sm:$0xff]
  %v6944 = vld [vmem:[%s4 + $0x110] sm:$0xff]
  %v6945 = vld [vmem:[%s4 + $0x118] sm:$0xff]
  %v6946 = vld [vmem:[%s4 + $0x120] sm:$0xff]
  %v6947 = vld [vmem:[%s4 + $0x128] sm:$0xff]
  %v6948 = vld [vmem:[%s4 + $0x130] sm:$0xff]
  %v6949 = vld [vmem:[%s4 + $0x138] sm:$0xff]
  %v6950 = vld [vmem:[%s4 + $0x140] sm:$0xff]
  %v6951 = vld [vmem:[%s4 + $0x148] sm:$0xff]
  %v6952 = vld [vmem:[%s4 + $0x150] sm:$0xff]
  %v6953 = vld [vmem:[%s4 + $0x158] sm:$0xff]
  %v6954 = vld [vmem:[%s4 + $0x160] sm:$0xff]
  %v6955 = vld [vmem:[%s4 + $0x168] sm:$0xff]
  %v6956 = vld [vmem:[%s4 + $0x170] sm:$0xff]
  %v6957 = vld [vmem:[%s4 + $0x178] sm:$0xff]
  %v6958 = vld [vmem:[%s4 + $0x180] sm:$0xff]
  %v6959 = vld [vmem:[%s4 + $0x188] sm:$0xff]
  %v6960 = vld [vmem:[%s4 + $0x190] sm:$0xff]
  %v6961 = vld [vmem:[%s4 + $0x198] sm:$0xff]
  %v6962 = vld [vmem:[%s4 + $0x1a0] sm:$0xff]
  %v6963 = vld [vmem:[%s4 + $0x1a8] sm:$0xff]
  %v6964 = vld [vmem:[%s4 + $0x1b0] sm:$0xff]
  %v6965 = vld [vmem:[%s4 + $0x1b8] sm:$0xff]
  %v6966 = vld [vmem:[%s4 + $0x1c0] sm:$0xff]
  %v6967 = vld [vmem:[%s4 + $0x1c8] sm:$0xff]
  %v6968 = vld [vmem:[%s4 + $0x1d0] sm:$0xff]
  %v6969 = vld [vmem:[%s4 + $0x1d8] sm:$0xff]
  %v6970 = vld [vmem:[%s4 + $0x1e0] sm:$0xff]
  %v6971 = vld [vmem:[%s4 + $0x1e8] sm:$0xff]
  %v6972 = vld [vmem:[%s4 + $0x1f0] sm:$0xff]
  %v6973 = vld [vmem:[%s4 + $0x1f8] sm:$0xff]
  %v6974 = vld [vmem:[%s7 + $0x8] sm:$0xff]
  %v6976 = vlaneseq
  %v6977 = vshrl.u32 %v6976, 7
  %v6978 = vsub.s32 0, %v6977
  %v6979 = vrot.slane %v6974, %v6978
  %v6980 = vlaneseq
  %v6981 = vshrl.u32 %v6980, 7
  %v6982 = vsub.s32 1, %v6981
  %v6983 = vrot.slane %v6974, %v6982
  %v6984 = vlaneseq
  %v6985 = vshrl.u32 %v6984, 7
  %v6986 = vsub.s32 2, %v6985
  %v6987 = vrot.slane %v6974, %v6986
  %v6988 = vlaneseq
  %v6989 = vshrl.u32 %v6988, 7
  %v6990 = vsub.s32 3, %v6989
  %v6991 = vrot.slane %v6974, %v6990
  %v6992 = vlaneseq
  %v6993 = vshrl.u32 %v6992, 7
  %v6994 = vsub.s32 4, %v6993
  %v6995 = vrot.slane %v6974, %v6994
  %v6996 = vlaneseq
  %v6997 = vshrl.u32 %v6996, 7
  %v6998 = vsub.s32 5, %v6997
  %v6999 = vrot.slane %v6974, %v6998
  %v7000 = vlaneseq
  %v7001 = vshrl.u32 %v7000, 7
  %v7002 = vsub.s32 6, %v7001
  %v7003 = vrot.slane %v6974, %v7002
  %v7004 = vlaneseq
  %v7005 = vshrl.u32 %v7004, 7
  %v7006 = vsub.s32 7, %v7005
  %v7007 = vrot.slane %v6974, %v7006
  %v7080 = vunpack.c.l.b16 %v6910
  %v7081 = vunpack.c.h.b16 %v6910
  %v7082 = vunpack.c.l.b16 %v6911
  %v7083 = vunpack.c.h.b16 %v6911
  %v7084 = vunpack.c.l.b16 %v6912
  %v7085 = vunpack.c.h.b16 %v6912
  %v7086 = vunpack.c.l.b16 %v6913
  %v7087 = vunpack.c.h.b16 %v6913
  %v7088 = vunpack.c.l.b16 %v6914
  %v7089 = vunpack.c.h.b16 %v6914
  %v7090 = vunpack.c.l.b16 %v6915
  %v7091 = vunpack.c.h.b16 %v6915
  %v7092 = vunpack.c.l.b16 %v6916
  %v7093 = vunpack.c.h.b16 %v6916
  %v7094 = vunpack.c.l.b16 %v6917
  %v7095 = vunpack.c.h.b16 %v6917
  %v7096 = vunpack.c.l.b16 %v6918
  %v7097 = vunpack.c.h.b16 %v6918
  %v7098 = vunpack.c.l.b16 %v6919
  %v7099 = vunpack.c.h.b16 %v6919
  %v7100 = vunpack.c.l.b16 %v6920
  %v7101 = vunpack.c.h.b16 %v6920
  %v7102 = vunpack.c.l.b16 %v6921
  %v7103 = vunpack.c.h.b16 %v6921
  %v7104 = vunpack.c.l.b16 %v6922
  %v7105 = vunpack.c.h.b16 %v6922
  %v7106 = vunpack.c.l.b16 %v6923
  %v7107 = vunpack.c.h.b16 %v6923
  %v7108 = vunpack.c.l.b16 %v6924
  %v7109 = vunpack.c.h.b16 %v6924
  %v7110 = vunpack.c.l.b16 %v6925
  %v7111 = vunpack.c.h.b16 %v6925
  %v7112 = vunpack.c.l.b16 %v6926
  %v7113 = vunpack.c.h.b16 %v6926
  %v7114 = vunpack.c.l.b16 %v6927
  %v7115 = vunpack.c.h.b16 %v6927
  %v7116 = vunpack.c.l.b16 %v6928
  %v7117 = vunpack.c.h.b16 %v6928
  %v7118 = vunpack.c.l.b16 %v6929
  %v7119 = vunpack.c.h.b16 %v6929
  %v7120 = vunpack.c.l.b16 %v6930
  %v7121 = vunpack.c.h.b16 %v6930
  %v7122 = vunpack.c.l.b16 %v6931
  %v7123 = vunpack.c.h.b16 %v6931
  %v7124 = vunpack.c.l.b16 %v6932
  %v7125 = vunpack.c.h.b16 %v6932
  %v7126 = vunpack.c.l.b16 %v6933
  %v7127 = vunpack.c.h.b16 %v6933
  %v7128 = vunpack.c.l.b16 %v6934
  %v7129 = vunpack.c.h.b16 %v6934
  %v7130 = vunpack.c.l.b16 %v6935
  %v7131 = vunpack.c.h.b16 %v6935
  %v7132 = vunpack.c.l.b16 %v6936
  %v7133 = vunpack.c.h.b16 %v6936
  %v7134 = vunpack.c.l.b16 %v6937
  %v7135 = vunpack.c.h.b16 %v6937
  %v7136 = vunpack.c.l.b16 %v6938
  %v7137 = vunpack.c.h.b16 %v6938
  %v7138 = vunpack.c.l.b16 %v6939
  %v7139 = vunpack.c.h.b16 %v6939
  %v7140 = vunpack.c.l.b16 %v6940
  %v7141 = vunpack.c.h.b16 %v6940
  %v7142 = vunpack.c.l.b16 %v6941
  %v7143 = vunpack.c.h.b16 %v6941
  %v7144 = vunpack.c.l.b16 %v6942
  %v7145 = vunpack.c.h.b16 %v6942
  %v7146 = vunpack.c.l.b16 %v6943
  %v7147 = vunpack.c.h.b16 %v6943
  %v7148 = vunpack.c.l.b16 %v6944
  %v7149 = vunpack.c.h.b16 %v6944
  %v7150 = vunpack.c.l.b16 %v6945
  %v7151 = vunpack.c.h.b16 %v6945
  %v7152 = vunpack.c.l.b16 %v6946
  %v7153 = vunpack.c.h.b16 %v6946
  %v7154 = vunpack.c.l.b16 %v6947
  %v7155 = vunpack.c.h.b16 %v6947
  %v7156 = vunpack.c.l.b16 %v6948
  %v7157 = vunpack.c.h.b16 %v6948
  %v7158 = vunpack.c.l.b16 %v6949
  %v7159 = vunpack.c.h.b16 %v6949
  %v7160 = vunpack.c.l.b16 %v6950
  %v7161 = vunpack.c.h.b16 %v6950
  %v7162 = vunpack.c.l.b16 %v6951
  %v7163 = vunpack.c.h.b16 %v6951
  %v7164 = vunpack.c.l.b16 %v6952
  %v7165 = vunpack.c.h.b16 %v6952
  %v7166 = vunpack.c.l.b16 %v6953
  %v7167 = vunpack.c.h.b16 %v6953
  %v7168 = vunpack.c.l.b16 %v6954
  %v7169 = vunpack.c.h.b16 %v6954
  %v7170 = vunpack.c.l.b16 %v6955
  %v7171 = vunpack.c.h.b16 %v6955
  %v7172 = vunpack.c.l.b16 %v6956
  %v7173 = vunpack.c.h.b16 %v6956
  %v7174 = vunpack.c.l.b16 %v6957
  %v7175 = vunpack.c.h.b16 %v6957
  %v7176 = vunpack.c.l.b16 %v6958
  %v7177 = vunpack.c.h.b16 %v6958
  %v7178 = vunpack.c.l.b16 %v6959
  %v7179 = vunpack.c.h.b16 %v6959
  %v7180 = vunpack.c.l.b16 %v6960
  %v7181 = vunpack.c.h.b16 %v6960
  %v7182 = vunpack.c.l.b16 %v6961
  %v7183 = vunpack.c.h.b16 %v6961
  %v7184 = vunpack.c.l.b16 %v6962
  %v7185 = vunpack.c.h.b16 %v6962
  %v7186 = vunpack.c.l.b16 %v6963
  %v7187 = vunpack.c.h.b16 %v6963
  %v7188 = vunpack.c.l.b16 %v6964
  %v7189 = vunpack.c.h.b16 %v6964
  %v7190 = vunpack.c.l.b16 %v6965
  %v7191 = vunpack.c.h.b16 %v6965
  %v7192 = vunpack.c.l.b16 %v6966
  %v7193 = vunpack.c.h.b16 %v6966
  %v7194 = vunpack.c.l.b16 %v6967
  %v7195 = vunpack.c.h.b16 %v6967
  %v7196 = vunpack.c.l.b16 %v6968
  %v7197 = vunpack.c.h.b16 %v6968
  %v7198 = vunpack.c.l.b16 %v6969
  %v7199 = vunpack.c.h.b16 %v6969
  %v7200 = vunpack.c.l.b16 %v6970
  %v7201 = vunpack.c.h.b16 %v6970
  %v7202 = vunpack.c.l.b16 %v6971
  %v7203 = vunpack.c.h.b16 %v6971
  %v7204 = vunpack.c.l.b16 %v6972
  %v7205 = vunpack.c.h.b16 %v6972
  %v7206 = vunpack.c.l.b16 %v6973
  %v7207 = vunpack.c.h.b16 %v6973
  %v7208 = vpack.c.b16 %v7088, %v7080
  %v7209 = vpack.c.b16 %v7089, %v7081
  %v7210 = vpack.c.b16 %v7090, %v7082
  %v7211 = vpack.c.b16 %v7091, %v7083
  %v7212 = vpack.c.b16 %v7092, %v7084
  %v7213 = vpack.c.b16 %v7093, %v7085
  %v7214 = vpack.c.b16 %v7094, %v7086
  %v7215 = vpack.c.b16 %v7095, %v7087
  %v7216 = vpack.c.b16 %v7104, %v7096
  %v7217 = vpack.c.b16 %v7105, %v7097
  %v7218 = vpack.c.b16 %v7106, %v7098
  %v7219 = vpack.c.b16 %v7107, %v7099
  %v7220 = vpack.c.b16 %v7108, %v7100
  %v7221 = vpack.c.b16 %v7109, %v7101
  %v7222 = vpack.c.b16 %v7110, %v7102
  %v7223 = vpack.c.b16 %v7111, %v7103
  %v7224 = vpack.c.b16 %v7120, %v7112
  %v7225 = vpack.c.b16 %v7121, %v7113
  %v7226 = vpack.c.b16 %v7122, %v7114
  %v7227 = vpack.c.b16 %v7123, %v7115
  %v7228 = vpack.c.b16 %v7124, %v7116
  %v7229 = vpack.c.b16 %v7125, %v7117
  %v7230 = vpack.c.b16 %v7126, %v7118
  %v7231 = vpack.c.b16 %v7127, %v7119
  %v7232 = vpack.c.b16 %v7136, %v7128
  %v7233 = vpack.c.b16 %v7137, %v7129
  %v7234 = vpack.c.b16 %v7138, %v7130
  %v7235 = vpack.c.b16 %v7139, %v7131
  %v7236 = vpack.c.b16 %v7140, %v7132
  %v7237 = vpack.c.b16 %v7141, %v7133
  %v7238 = vpack.c.b16 %v7142, %v7134
  %v7239 = vpack.c.b16 %v7143, %v7135
  %v7240 = vpack.c.b16 %v7152, %v7144
  %v7241 = vpack.c.b16 %v7153, %v7145
  %v7242 = vpack.c.b16 %v7154, %v7146
  %v7243 = vpack.c.b16 %v7155, %v7147
  %v7244 = vpack.c.b16 %v7156, %v7148
  %v7245 = vpack.c.b16 %v7157, %v7149
  %v7246 = vpack.c.b16 %v7158, %v7150
  %v7247 = vpack.c.b16 %v7159, %v7151
  %v7248 = vpack.c.b16 %v7168, %v7160
  %v7249 = vpack.c.b16 %v7169, %v7161
  %v7250 = vpack.c.b16 %v7170, %v7162
  %v7251 = vpack.c.b16 %v7171, %v7163
  %v7252 = vpack.c.b16 %v7172, %v7164
  %v7253 = vpack.c.b16 %v7173, %v7165
  %v7254 = vpack.c.b16 %v7174, %v7166
  %v7255 = vpack.c.b16 %v7175, %v7167
  %v7256 = vpack.c.b16 %v7184, %v7176
  %v7257 = vpack.c.b16 %v7185, %v7177
  %v7258 = vpack.c.b16 %v7186, %v7178
  %v7259 = vpack.c.b16 %v7187, %v7179
  %v7260 = vpack.c.b16 %v7188, %v7180
  %v7261 = vpack.c.b16 %v7189, %v7181
  %v7262 = vpack.c.b16 %v7190, %v7182
  %v7263 = vpack.c.b16 %v7191, %v7183
  %v7264 = vpack.c.b16 %v7200, %v7192
  %v7265 = vpack.c.b16 %v7201, %v7193
  %v7266 = vpack.c.b16 %v7202, %v7194
  %v7267 = vpack.c.b16 %v7203, %v7195
  %v7268 = vpack.c.b16 %v7204, %v7196
  %v7269 = vpack.c.b16 %v7205, %v7197
  %v7270 = vpack.c.b16 %v7206, %v7198
  %v7271 = vpack.c.b16 %v7207, %v7199
  %7336 = vmatprep.subr.bf16.mxu0 %v7209
  %7337 = vmatpush1.bf16.msra.mxu0 %v7208
  %7338 = vmatprep.subr.bf16.mxu0 %v7217
  %7339 = vmatpush1.bf16.msra.mxu0 %v7216
  %7340 = vmatprep.subr.bf16.mxu0 %v7225
  %7341 = vmatpush1.bf16.msra.mxu0 %v7224
  %7342 = vmatprep.subr.bf16.mxu0 %v7233
  %7343 = vmatpush1.bf16.msra.mxu0 %v7232
  %7344 = vmatprep.subr.bf16.mxu0 %v7241
  %7345 = vmatpush1.bf16.msra.mxu0 %v7240
  %7346 = vmatprep.subr.bf16.mxu0 %v7249
  %7347 = vmatpush1.bf16.msra.mxu0 %v7248
  %7348 = vmatprep.subr.bf16.mxu0 %v7257
  %7349 = vmatpush1.bf16.msra.mxu0 %v7256
  %7350 = vmatprep.subr.bf16.mxu0 %v7265
  %7351 = vmatpush1.bf16.msra.mxu0 %v7264
  %7352 = vmatprep.subr.bf16.mxu0 0
  %7353 = vmatpush1.bf16.msra.mxu0 0
  %7354 = vmatprep.subr.bf16.mxu0 0
  %7355 = vmatpush1.bf16.msra.mxu0 0
  %7356 = vmatprep.subr.bf16.mxu0 0
  %7357 = vmatpush1.bf16.msra.mxu0 0
  %7358 = vmatprep.subr.bf16.mxu0 0
  %7359 = vmatpush1.bf16.msra.mxu0 0
  %7360 = vmatprep.subr.bf16.mxu0 0
  %7361 = vmatpush1.bf16.msra.mxu0 0
  %7362 = vmatprep.subr.bf16.mxu0 0
  %7363 = vmatpush1.bf16.msra.mxu0 0
  %7364 = vmatprep.subr.bf16.mxu0 0
  %7365 = vmatpush1.bf16.msra.mxu0 0
  %7366 = vmatprep.subr.bf16.mxu0 0
  %7367 = vmatpush1.bf16.msra.mxu0 0
  %7368 = vmatprep.mubr.bf16.mxu0 0
  %7369 = vmatmul.mubr.bf16.gmra.mrb[0].mxu0 %v6909
  %v7370 = vpop.f32.mrb[0].mxu0
  %v7371 = vadd.f32 %v6979, %v7370
  %v7372 = vpop.f32.mrb[0].mxu0
  %v7373 = vadd.f32 %v6983, %v7372
  %v7374 = vpop.f32.mrb[0].mxu0
  %v7375 = vpop.f32.mrb[0].mxu0
  %7376 = vdwg.mxu0
  %7377 = vmatprep.subr.bf16.mxu0 %v7211
  %7378 = vmatpush1.bf16.msra.mxu0 %v7210
  %7379 = vmatprep.subr.bf16.mxu0 %v7219
  %7380 = vmatpush1.bf16.msra.mxu0 %v7218
  %7381 = vmatprep.subr.bf16.mxu0 %v7227
  %7382 = vmatpush1.bf16.msra.mxu0 %v7226
  %7383 = vmatprep.subr.bf16.mxu0 %v7235
  %7384 = vmatpush1.bf16.msra.mxu0 %v7234
  %7385 = vmatprep.subr.bf16.mxu0 %v7243
  %7386 = vmatpush1.bf16.msra.mxu0 %v7242
  %7387 = vmatprep.subr.bf16.mxu0 %v7251
  %7388 = vmatpush1.bf16.msra.mxu0 %v7250
  %7389 = vmatprep.subr.bf16.mxu0 %v7259
  %7390 = vmatpush1.bf16.msra.mxu0 %v7258
  %7391 = vmatprep.subr.bf16.mxu0 %v7267
  %7392 = vmatpush1.bf16.msra.mxu0 %v7266
  %7393 = vmatprep.subr.bf16.mxu0 0
  %7394 = vmatpush1.bf16.msra.mxu0 0
  %7395 = vmatprep.subr.bf16.mxu0 0
  %7396 = vmatpush1.bf16.msra.mxu0 0
  %7397 = vmatprep.subr.bf16.mxu0 0
  %7398 = vmatpush1.bf16.msra.mxu0 0
  %7399 = vmatprep.subr.bf16.mxu0 0
  %7400 = vmatpush1.bf16.msra.mxu0 0
  %7401 = vmatprep.subr.bf16.mxu0 0
  %7402 = vmatpush1.bf16.msra.mxu0 0
  %7403 = vmatprep.subr.bf16.mxu0 0
  %7404 = vmatpush1.bf16.msra.mxu0 0
  %7405 = vmatprep.subr.bf16.mxu0 0
  %7406 = vmatpush1.bf16.msra.mxu0 0
  %7407 = vmatprep.subr.bf16.mxu0 0
  %7408 = vmatpush1.bf16.msra.mxu0 0
  %7409 = vmatprep.mubr.bf16.mxu0 0
  %7410 = vmatmul.mubr.bf16.gmra.mrb[0].mxu0 %v6909
  %v7411 = vpop.f32.mrb[0].mxu0
  %v7412 = vadd.f32 %v6987, %v7411
  %v7413 = vpop.f32.mrb[0].mxu0
  %v7414 = vadd.f32 %v6991, %v7413
  %v7415 = vpop.f32.mrb[0].mxu0
  %v7416 = vpop.f32.mrb[0].mxu0
  %7417 = vdwg.mxu0
  %7418 = vmatprep.subr.bf16.mxu0 %v7213
  %7419 = vmatpush1.bf16.msra.mxu0 %v7212
  %7420 = vmatprep.subr.bf16.mxu0 %v7221
  %7421 = vmatpush1.bf16.msra.mxu0 %v7220
  %7422 = vmatprep.subr.bf16.mxu0 %v7229
  %7423 = vmatpush1.bf16.msra.mxu0 %v7228
  %7424 = vmatprep.subr.bf16.mxu0 %v7237
  %7425 = vmatpush1.bf16.msra.mxu0 %v7236
  %7426 = vmatprep.subr.bf16.mxu0 %v7245
  %7427 = vmatpush1.bf16.msra.mxu0 %v7244
  %7428 = vmatprep.subr.bf16.mxu0 %v7253
  %7429 = vmatpush1.bf16.msra.mxu0 %v7252
  %7430 = vmatprep.subr.bf16.mxu0 %v7261
  %7431 = vmatpush1.bf16.msra.mxu0 %v7260
  %7432 = vmatprep.subr.bf16.mxu0 %v7269
  %7433 = vmatpush1.bf16.msra.mxu0 %v7268
  %7434 = vmatprep.subr.bf16.mxu0 0
  %7435 = vmatpush1.bf16.msra.mxu0 0
  %7436 = vmatprep.subr.bf16.mxu0 0
  %7437 = vmatpush1.bf16.msra.mxu0 0
  %7438 = vmatprep.subr.bf16.mxu0 0
  %7439 = vmatpush1.bf16.msra.mxu0 0
  %7440 = vmatprep.subr.bf16.mxu0 0
  %7441 = vmatpush1.bf16.msra.mxu0 0
  %7442 = vmatprep.subr.bf16.mxu0 0
  %7443 = vmatpush1.bf16.msra.mxu0 0
  %7444 = vmatprep.subr.bf16.mxu0 0
  %7445 = vmatpush1.bf16.msra.mxu0 0
  %7446 = vmatprep.subr.bf16.mxu0 0
  %7447 = vmatpush1.bf16.msra.mxu0 0
  %7448 = vmatprep.subr.bf16.mxu0 0
  %7449 = vmatpush1.bf16.msra.mxu0 0
  %7450 = vmatprep.mubr.bf16.mxu0 0
  %7451 = vmatmul.mubr.bf16.gmra.mrb[0].mxu0 %v6909
  %v7452 = vpop.f32.mrb[0].mxu0
  %v7453 = vadd.f32 %v6995, %v7452
  %v7454 = vpop.f32.mrb[0].mxu0
  %v7455 = vadd.f32 %v6999, %v7454
  %v7456 = vpop.f32.mrb[0].mxu0
  %v7457 = vpop.f32.mrb[0].mxu0
  %7458 = vdwg.mxu0
  %7459 = vmatprep.subr.bf16.mxu0 %v7215
  %7460 = vmatpush1.bf16.msra.mxu0 %v7214
  %7461 = vmatprep.subr.bf16.mxu0 %v7223
  %7462 = vmatpush1.bf16.msra.mxu0 %v7222
  %7463 = vmatprep.subr.bf16.mxu0 %v7231
  %7464 = vmatpush1.bf16.msra.mxu0 %v7230
  %7465 = vmatprep.subr.bf16.mxu0 %v7239
  %7466 = vmatpush1.bf16.msra.mxu0 %v7238
  %7467 = vmatprep.subr.bf16.mxu0 %v7247
  %7468 = vmatpush1.bf16.msra.mxu0 %v7246
  %7469 = vmatprep.subr.bf16.mxu0 %v7255
  %7470 = vmatpush1.bf16.msra.mxu0 %v7254
  %7471 = vmatprep.subr.bf16.mxu0 %v7263
  %7472 = vmatpush1.bf16.msra.mxu0 %v7262
  %7473 = vmatprep.subr.bf16.mxu0 %v7271
  %7474 = vmatpush1.bf16.msra.mxu0 %v7270
  %7475 = vmatprep.subr.bf16.mxu0 0
  %7476 = vmatpush1.bf16.msra.mxu0 0
  %7477 = vmatprep.subr.bf16.mxu0 0
  %7478 = vmatpush1.bf16.msra.mxu0 0
  %7479 = vmatprep.subr.bf16.mxu0 0
  %7480 = vmatpush1.bf16.msra.mxu0 0
  %7481 = vmatprep.subr.bf16.mxu0 0
  %7482 = vmatpush1.bf16.msra.mxu0 0
  %7483 = vmatprep.subr.bf16.mxu0 0
  %7484 = vmatpush1.bf16.msra.mxu0 0
  %7485 = vmatprep.subr.bf16.mxu0 0
  %7486 = vmatpush1.bf16.msra.mxu0 0
  %7487 = vmatprep.subr.bf16.mxu0 0
  %7488 = vmatpush1.bf16.msra.mxu0 0
  %7489 = vmatprep.subr.bf16.mxu0 0
  %7490 = vmatpush1.bf16.msra.mxu0 0
  %7491 = vmatprep.mubr.bf16.mxu0 0
  %7492 = vmatmul.mubr.bf16.gmra.mrb[0].mxu0 %v6909
  %v7493 = vpop.f32.mrb[0].mxu0
  %v7494 = vadd.f32 %v7003, %v7493
  %v7495 = vpop.f32.mrb[0].mxu0
  %v7496 = vadd.f32 %v7007, %v7495
  %v7497 = vpop.f32.mrb[0].mxu0
  %v7498 = vpop.f32.mrb[0].mxu0
  %7499 = vdwg.mxu0
  %v7500 = vmax.f32 %v7371, 0.0
  %v7501 = vmax.f32 %v7373, 0.0
  %v7502 = vmax.f32 %v7412, 0.0
  %v7503 = vmax.f32 %v7414, 0.0
  %v7504 = vmax.f32 %v7453, 0.0
  %v7505 = vmax.f32 %v7455, 0.0
  %v7506 = vmax.f32 %v7494, 0.0
  %v7507 = vmax.f32 %v7496, 0.0
  %v7508 = vpack.c.bf16 %v7500, %v7500
  %v7509 = vpack.c.bf16 %v7501, %v7501
  %v7510 = vpack.c.bf16 %v7502, %v7502
  %v7511 = vpack.c.bf16 %v7503, %v7503
  %v7512 = vpack.c.bf16 %v7504, %v7504
  %v7513 = vpack.c.bf16 %v7505, %v7505
  %v7514 = vpack.c.bf16 %v7506, %v7506
  %v7515 = vpack.c.bf16 %v7507, %v7507
  %v7516 = vld [vmem:[%s5] sm:$0xff]
  %v7517 = vld [vmem:[%s5 + $0x8] sm:$0xff]
  %v7518 = vld [vmem:[%s5 + $0x10] sm:$0xff]
  %v7519 = vld [vmem:[%s5 + $0x18] sm:$0xff]
  %v7520 = vld [vmem:[%s5 + $0x20] sm:$0xff]
  %v7521 = vld [vmem:[%s5 + $0x28] sm:$0xff]
  %v7522 = vld [vmem:[%s5 + $0x30] sm:$0xff]
  %v7523 = vld [vmem:[%s5 + $0x38] sm:$0xff]
  %v7524 = vld [vmem:[%s5 + $0x40] sm:$0xff]
  %v7525 = vld [vmem:[%s5 + $0x48] sm:$0xff]
  %v7526 = vld [vmem:[%s5 + $0x50] sm:$0xff]
  %v7527 = vld [vmem:[%s5 + $0x58] sm:$0xff]
  %v7528 = vld [vmem:[%s5 + $0x60] sm:$0xff]
  %v7529 = vld [vmem:[%s5 + $0x68] sm:$0xff]
  %v7530 = vld [vmem:[%s5 + $0x70] sm:$0xff]
  %v7531 = vld [vmem:[%s5 + $0x78] sm:$0xff]
  %v7532 = vld [vmem:[%s5 + $0x80] sm:$0xff]
  %v7533 = vld [vmem:[%s5 + $0x88] sm:$0xff]
  %v7534 = vld [vmem:[%s5 + $0x90] sm:$0xff]
  %v7535 = vld [vmem:[%s5 + $0x98] sm:$0xff]
  %v7536 = vld [vmem:[%s5 + $0xa0] sm:$0xff]
  %v7537 = vld [vmem:[%s5 + $0xa8] sm:$0xff]
  %v7538 = vld [vmem:[%s5 + $0xb0] sm:$0xff]
  %v7539 = vld [vmem:[%s5 + $0xb8] sm:$0xff]
  %v7540 = vld [vmem:[%s5 + $0xc0] sm:$0xff]
  %v7541 = vld [vmem:[%s5 + $0xc8] sm:$0xff]
  %v7542 = vld [vmem:[%s5 + $0xd0] sm:$0xff]
  %v7543 = vld [vmem:[%s5 + $0xd8] sm:$0xff]
  %v7544 = vld [vmem:[%s5 + $0xe0] sm:$0xff]
  %v7545 = vld [vmem:[%s5 + $0xe8] sm:$0xff]
  %v7546 = vld [vmem:[%s5 + $0xf0] sm:$0xff]
  %v7547 = vld [vmem:[%s5 + $0xf8] sm:$0xff]
  %v7548 = vld [vmem:[%s5 + $0x100] sm:$0xff]
  %v7549 = vld [vmem:[%s5 + $0x108] sm:$0xff]
  %v7550 = vld [vmem:[%s5 + $0x110] sm:$0xff]
  %v7551 = vld [vmem:[%s5 + $0x118] sm:$0xff]
  %v7552 = vld [vmem:[%s5 + $0x120] sm:$0xff]
  %v7553 = vld [vmem:[%s5 + $0x128] sm:$0xff]
  %v7554 = vld [vmem:[%s5 + $0x130] sm:$0xff]
  %v7555 = vld [vmem:[%s5 + $0x138] sm:$0xff]
  %v7556 = vld [vmem:[%s5 + $0x140] sm:$0xff]
  %v7557 = vld [vmem:[%s5 + $0x148] sm:$0xff]
  %v7558 = vld [vmem:[%s5 + $0x150] sm:$0xff]
  %v7559 = vld [vmem:[%s5 + $0x158] sm:$0xff]
  %v7560 = vld [vmem:[%s5 + $0x160] sm:$0xff]
  %v7561 = vld [vmem:[%s5 + $0x168] sm:$0xff]
  %v7562 = vld [vmem:[%s5 + $0x170] sm:$0xff]
  %v7563 = vld [vmem:[%s5 + $0x178] sm:$0xff]
  %v7564 = vld [vmem:[%s5 + $0x180] sm:$0xff]
  %v7565 = vld [vmem:[%s5 + $0x188] sm:$0xff]
  %v7566 = vld [vmem:[%s5 + $0x190] sm:$0xff]
  %v7567 = vld [vmem:[%s5 + $0x198] sm:$0xff]
  %v7568 = vld [vmem:[%s5 + $0x1a0] sm:$0xff]
  %v7569 = vld [vmem:[%s5 + $0x1a8] sm:$0xff]
  %v7570 = vld [vmem:[%s5 + $0x1b0] sm:$0xff]
  %v7571 = vld [vmem:[%s5 + $0x1b8] sm:$0xff]
  %v7572 = vld [vmem:[%s5 + $0x1c0] sm:$0xff]
  %v7573 = vld [vmem:[%s5 + $0x1c8] sm:$0xff]
  %v7574 = vld [vmem:[%s5 + $0x1d0] sm:$0xff]
  %v7575 = vld [vmem:[%s5 + $0x1d8] sm:$0xff]
  %v7576 = vld [vmem:[%s5 + $0x1e0] sm:$0xff]
  %v7577 = vld [vmem:[%s5 + $0x1e8] sm:$0xff]
  %v7578 = vld [vmem:[%s5 + $0x1f0] sm:$0xff]
  %v7579 = vld [vmem:[%s5 + $0x1f8] sm:$0xff]
  %v7580 = vld [vmem:[%s5 + $0x200] sm:$0xff]
  %v7581 = vld [vmem:[%s5 + $0x208] sm:$0xff]
  %v7582 = vld [vmem:[%s5 + $0x210] sm:$0xff]
  %v7583 = vld [vmem:[%s5 + $0x218] sm:$0xff]
  %v7584 = vld [vmem:[%s5 + $0x220] sm:$0xff]
  %v7585 = vld [vmem:[%s5 + $0x228] sm:$0xff]
  %v7586 = vld [vmem:[%s5 + $0x230] sm:$0xff]
  %v7587 = vld [vmem:[%s5 + $0x238] sm:$0xff]
  %v7588 = vld [vmem:[%s5 + $0x240] sm:$0xff]
  %v7589 = vld [vmem:[%s5 + $0x248] sm:$0xff]
  %v7590 = vld [vmem:[%s5 + $0x250] sm:$0xff]
  %v7591 = vld [vmem:[%s5 + $0x258] sm:$0xff]
  %v7592 = vld [vmem:[%s5 + $0x260] sm:$0xff]
  %v7593 = vld [vmem:[%s5 + $0x268] sm:$0xff]
  %v7594 = vld [vmem:[%s5 + $0x270] sm:$0xff]
  %v7595 = vld [vmem:[%s5 + $0x278] sm:$0xff]
  %v7596 = vld [vmem:[%s5 + $0x280] sm:$0xff]
  %v7597 = vld [vmem:[%s5 + $0x288] sm:$0xff]
  %v7598 = vld [vmem:[%s5 + $0x290] sm:$0xff]
  %v7599 = vld [vmem:[%s5 + $0x298] sm:$0xff]
  %v7600 = vld [vmem:[%s5 + $0x2a0] sm:$0xff]
  %v7601 = vld [vmem:[%s5 + $0x2a8] sm:$0xff]
  %v7602 = vld [vmem:[%s5 + $0x2b0] sm:$0xff]
  %v7603 = vld [vmem:[%s5 + $0x2b8] sm:$0xff]
  %v7604 = vld [vmem:[%s5 + $0x2c0] sm:$0xff]
  %v7605 = vld [vmem:[%s5 + $0x2c8] sm:$0xff]
  %v7606 = vld [vmem:[%s5 + $0x2d0] sm:$0xff]
  %v7607 = vld [vmem:[%s5 + $0x2d8] sm:$0xff]
  %v7608 = vld [vmem:[%s5 + $0x2e0] sm:$0xff]
  %v7609 = vld [vmem:[%s5 + $0x2e8] sm:$0xff]
  %v7610 = vld [vmem:[%s5 + $0x2f0] sm:$0xff]
  %v7611 = vld [vmem:[%s5 + $0x2f8] sm:$0xff]
  %v7612 = vld [vmem:[%s5 + $0x300] sm:$0xff]
  %v7613 = vld [vmem:[%s5 + $0x308] sm:$0xff]
  %v7614 = vld [vmem:[%s5 + $0x310] sm:$0xff]
  %v7615 = vld [vmem:[%s5 + $0x318] sm:$0xff]
  %v7616 = vld [vmem:[%s5 + $0x320] sm:$0xff]
  %v7617 = vld [vmem:[%s5 + $0x328] sm:$0xff]
  %v7618 = vld [vmem:[%s5 + $0x330] sm:$0xff]
  %v7619 = vld [vmem:[%s5 + $0x338] sm:$0xff]
  %v7620 = vld [vmem:[%s5 + $0x340] sm:$0xff]
  %v7621 = vld [vmem:[%s5 + $0x348] sm:$0xff]
  %v7622 = vld [vmem:[%s5 + $0x350] sm:$0xff]
  %v7623 = vld [vmem:[%s5 + $0x358] sm:$0xff]
  %v7624 = vld [vmem:[%s5 + $0x360] sm:$0xff]
  %v7625 = vld [vmem:[%s5 + $0x368] sm:$0xff]
  %v7626 = vld [vmem:[%s5 + $0x370] sm:$0xff]
  %v7627 = vld [vmem:[%s5 + $0x378] sm:$0xff]
  %v7628 = vld [vmem:[%s5 + $0x380] sm:$0xff]
  %v7629 = vld [vmem:[%s5 + $0x388] sm:$0xff]
  %v7630 = vld [vmem:[%s5 + $0x390] sm:$0xff]
  %v7631 = vld [vmem:[%s5 + $0x398] sm:$0xff]
  %v7632 = vld [vmem:[%s5 + $0x3a0] sm:$0xff]
  %v7633 = vld [vmem:[%s5 + $0x3a8] sm:$0xff]
  %v7634 = vld [vmem:[%s5 + $0x3b0] sm:$0xff]
  %v7635 = vld [vmem:[%s5 + $0x3b8] sm:$0xff]
  %v7636 = vld [vmem:[%s5 + $0x3c0] sm:$0xff]
  %v7637 = vld [vmem:[%s5 + $0x3c8] sm:$0xff]
  %v7638 = vld [vmem:[%s5 + $0x3d0] sm:$0xff]
  %v7639 = vld [vmem:[%s5 + $0x3d8] sm:$0xff]
  %v7640 = vld [vmem:[%s5 + $0x3e0] sm:$0xff]
  %v7641 = vld [vmem:[%s5 + $0x3e8] sm:$0xff]
  %v7642 = vld [vmem:[%s5 + $0x3f0] sm:$0xff]
  %v7643 = vld [vmem:[%s5 + $0x3f8] sm:$0xff]
  %v7644 = vld [vmem:[%s5 + $0x400] sm:$0xff]
  %v7645 = vld [vmem:[%s5 + $0x408] sm:$0xff]
  %v7646 = vld [vmem:[%s5 + $0x410] sm:$0xff]
  %v7647 = vld [vmem:[%s5 + $0x418] sm:$0xff]
  %v7648 = vld [vmem:[%s5 + $0x420] sm:$0xff]
  %v7649 = vld [vmem:[%s5 + $0x428] sm:$0xff]
  %v7650 = vld [vmem:[%s5 + $0x430] sm:$0xff]
  %v7651 = vld [vmem:[%s5 + $0x438] sm:$0xff]
  %v7652 = vld [vmem:[%s5 + $0x440] sm:$0xff]
  %v7653 = vld [vmem:[%s5 + $0x448] sm:$0xff]
  %v7654 = vld [vmem:[%s5 + $0x450] sm:$0xff]
  %v7655 = vld [vmem:[%s5 + $0x458] sm:$0xff]
  %v7656 = vld [vmem:[%s5 + $0x460] sm:$0xff]
  %v7657 = vld [vmem:[%s5 + $0x468] sm:$0xff]
  %v7658 = vld [vmem:[%s5 + $0x470] sm:$0xff]
  %v7659 = vld [vmem:[%s5 + $0x478] sm:$0xff]
  %v7660 = vld [vmem:[%s5 + $0x480] sm:$0xff]
  %v7661 = vld [vmem:[%s5 + $0x488] sm:$0xff]
  %v7662 = vld [vmem:[%s5 + $0x490] sm:$0xff]
  %v7663 = vld [vmem:[%s5 + $0x498] sm:$0xff]
  %v7664 = vld [vmem:[%s5 + $0x4a0] sm:$0xff]
  %v7665 = vld [vmem:[%s5 + $0x4a8] sm:$0xff]
  %v7666 = vld [vmem:[%s5 + $0x4b0] sm:$0xff]
  %v7667 = vld [vmem:[%s5 + $0x4b8] sm:$0xff]
  %v7668 = vld [vmem:[%s5 + $0x4c0] sm:$0xff]
  %v7669 = vld [vmem:[%s5 + $0x4c8] sm:$0xff]
  %v7670 = vld [vmem:[%s5 + $0x4d0] sm:$0xff]
  %v7671 = vld [vmem:[%s5 + $0x4d8] sm:$0xff]
  %v7672 = vld [vmem:[%s5 + $0x4e0] sm:$0xff]
  %v7673 = vld [vmem:[%s5 + $0x4e8] sm:$0xff]
  %v7674 = vld [vmem:[%s5 + $0x4f0] sm:$0xff]
  %v7675 = vld [vmem:[%s5 + $0x4f8] sm:$0xff]
  %v7676 = vld [vmem:[%s5 + $0x500] sm:$0xff]
  %v7677 = vld [vmem:[%s5 + $0x508] sm:$0xff]
  %v7678 = vld [vmem:[%s5 + $0x510] sm:$0xff]
  %v7679 = vld [vmem:[%s5 + $0x518] sm:$0xff]
  %v7680 = vld [vmem:[%s5 + $0x520] sm:$0xff]
  %v7681 = vld [vmem:[%s5 + $0x528] sm:$0xff]
  %v7682 = vld [vmem:[%s5 + $0x530] sm:$0xff]
  %v7683 = vld [vmem:[%s5 + $0x538] sm:$0xff]
  %v7684 = vld [vmem:[%s5 + $0x540] sm:$0xff]
  %v7685 = vld [vmem:[%s5 + $0x548] sm:$0xff]
  %v7686 = vld [vmem:[%s5 + $0x550] sm:$0xff]
  %v7687 = vld [vmem:[%s5 + $0x558] sm:$0xff]
  %v7688 = vld [vmem:[%s5 + $0x560] sm:$0xff]
  %v7689 = vld [vmem:[%s5 + $0x568] sm:$0xff]
  %v7690 = vld [vmem:[%s5 + $0x570] sm:$0xff]
  %v7691 = vld [vmem:[%s5 + $0x578] sm:$0xff]
  %v7692 = vld [vmem:[%s5 + $0x580] sm:$0xff]
  %v7693 = vld [vmem:[%s5 + $0x588] sm:$0xff]
  %v7694 = vld [vmem:[%s5 + $0x590] sm:$0xff]
  %v7695 = vld [vmem:[%s5 + $0x598] sm:$0xff]
  %v7696 = vld [vmem:[%s5 + $0x5a0] sm:$0xff]
  %v7697 = vld [vmem:[%s5 + $0x5a8] sm:$0xff]
  %v7698 = vld [vmem:[%s5 + $0x5b0] sm:$0xff]
  %v7699 = vld [vmem:[%s5 + $0x5b8] sm:$0xff]
  %v7700 = vld [vmem:[%s5 + $0x5c0] sm:$0xff]
  %v7701 = vld [vmem:[%s5 + $0x5c8] sm:$0xff]
  %v7702 = vld [vmem:[%s5 + $0x5d0] sm:$0xff]
  %v7703 = vld [vmem:[%s5 + $0x5d8] sm:$0xff]
  %v7704 = vld [vmem:[%s5 + $0x5e0] sm:$0xff]
  %v7705 = vld [vmem:[%s5 + $0x5e8] sm:$0xff]
  %v7706 = vld [vmem:[%s5 + $0x5f0] sm:$0xff]
  %v7707 = vld [vmem:[%s5 + $0x5f8] sm:$0xff]
  %v7708 = vld [vmem:[%s5 + $0x600] sm:$0xff]
  %v7709 = vld [vmem:[%s5 + $0x608] sm:$0xff]
  %v7710 = vld [vmem:[%s5 + $0x610] sm:$0xff]
  %v7711 = vld [vmem:[%s5 + $0x618] sm:$0xff]
  %v7712 = vld [vmem:[%s5 + $0x620] sm:$0xff]
  %v7713 = vld [vmem:[%s5 + $0x628] sm:$0xff]
  %v7714 = vld [vmem:[%s5 + $0x630] sm:$0xff]
  %v7715 = vld [vmem:[%s5 + $0x638] sm:$0xff]
  %v7716 = vld [vmem:[%s5 + $0x640] sm:$0xff]
  %v7717 = vld [vmem:[%s5 + $0x648] sm:$0xff]
  %v7718 = vld [vmem:[%s5 + $0x650] sm:$0xff]
  %v7719 = vld [vmem:[%s5 + $0x658] sm:$0xff]
  %v7720 = vld [vmem:[%s5 + $0x660] sm:$0xff]
  %v7721 = vld [vmem:[%s5 + $0x668] sm:$0xff]
  %v7722 = vld [vmem:[%s5 + $0x670] sm:$0xff]
  %v7723 = vld [vmem:[%s5 + $0x678] sm:$0xff]
  %v7724 = vld [vmem:[%s5 + $0x680] sm:$0xff]
  %v7725 = vld [vmem:[%s5 + $0x688] sm:$0xff]
  %v7726 = vld [vmem:[%s5 + $0x690] sm:$0xff]
  %v7727 = vld [vmem:[%s5 + $0x698] sm:$0xff]
  %v7728 = vld [vmem:[%s5 + $0x6a0] sm:$0xff]
  %v7729 = vld [vmem:[%s5 + $0x6a8] sm:$0xff]
  %v7730 = vld [vmem:[%s5 + $0x6b0] sm:$0xff]
  %v7731 = vld [vmem:[%s5 + $0x6b8] sm:$0xff]
  %v7732 = vld [vmem:[%s5 + $0x6c0] sm:$0xff]
  %v7733 = vld [vmem:[%s5 + $0x6c8] sm:$0xff]
  %v7734 = vld [vmem:[%s5 + $0x6d0] sm:$0xff]
  %v7735 = vld [vmem:[%s5 + $0x6d8] sm:$0xff]
  %v7736 = vld [vmem:[%s5 + $0x6e0] sm:$0xff]
  %v7737 = vld [vmem:[%s5 + $0x6e8] sm:$0xff]
  %v7738 = vld [vmem:[%s5 + $0x6f0] sm:$0xff]
  %v7739 = vld [vmem:[%s5 + $0x6f8] sm:$0xff]
  %v7740 = vld [vmem:[%s5 + $0x700] sm:$0xff]
  %v7741 = vld [vmem:[%s5 + $0x708] sm:$0xff]
  %v7742 = vld [vmem:[%s5 + $0x710] sm:$0xff]
  %v7743 = vld [vmem:[%s5 + $0x718] sm:$0xff]
  %v7744 = vld [vmem:[%s5 + $0x720] sm:$0xff]
  %v7745 = vld [vmem:[%s5 + $0x728] sm:$0xff]
  %v7746 = vld [vmem:[%s5 + $0x730] sm:$0xff]
  %v7747 = vld [vmem:[%s5 + $0x738] sm:$0xff]
  %v7748 = vld [vmem:[%s5 + $0x740] sm:$0xff]
  %v7749 = vld [vmem:[%s5 + $0x748] sm:$0xff]
  %v7750 = vld [vmem:[%s5 + $0x750] sm:$0xff]
  %v7751 = vld [vmem:[%s5 + $0x758] sm:$0xff]
  %v7752 = vld [vmem:[%s5 + $0x760] sm:$0xff]
  %v7753 = vld [vmem:[%s5 + $0x768] sm:$0xff]
  %v7754 = vld [vmem:[%s5 + $0x770] sm:$0xff]
  %v7755 = vld [vmem:[%s5 + $0x778] sm:$0xff]
  %v7756 = vld [vmem:[%s5 + $0x780] sm:$0xff]
  %v7757 = vld [vmem:[%s5 + $0x788] sm:$0xff]
  %v7758 = vld [vmem:[%s5 + $0x790] sm:$0xff]
  %v7759 = vld [vmem:[%s5 + $0x798] sm:$0xff]
  %v7760 = vld [vmem:[%s5 + $0x7a0] sm:$0xff]
  %v7761 = vld [vmem:[%s5 + $0x7a8] sm:$0xff]
  %v7762 = vld [vmem:[%s5 + $0x7b0] sm:$0xff]
  %v7763 = vld [vmem:[%s5 + $0x7b8] sm:$0xff]
  %v7764 = vld [vmem:[%s5 + $0x7c0] sm:$0xff]
  %v7765 = vld [vmem:[%s5 + $0x7c8] sm:$0xff]
  %v7766 = vld [vmem:[%s5 + $0x7d0] sm:$0xff]
  %v7767 = vld [vmem:[%s5 + $0x7d8] sm:$0xff]
  %v7768 = vld [vmem:[%s5 + $0x7e0] sm:$0xff]
  %v7769 = vld [vmem:[%s5 + $0x7e8] sm:$0xff]
  %v7770 = vld [vmem:[%s5 + $0x7f0] sm:$0xff]
  %v7771 = vld [vmem:[%s5 + $0x7f8] sm:$0xff]
  %v7772 = vld [vmem:[%s7 + $0x10] sm:$0xf]
  %v7774 = vlaneseq
  %v7775 = vshrl.u32 %v7774, 7
  %v7776 = vsub.s32 0, %v7775
  %v7777 = vrot.slane %v7772, %v7776
  %v7778 = vlaneseq
  %v7779 = vshrl.u32 %v7778, 7
  %v7780 = vsub.s32 1, %v7779
  %v7781 = vrot.slane %v7772, %v7780
  %v7782 = vlaneseq
  %v7783 = vshrl.u32 %v7782, 7
  %v7784 = vsub.s32 2, %v7783
  %v7785 = vrot.slane %v7772, %v7784
  %v7786 = vlaneseq
  %v7787 = vshrl.u32 %v7786, 7
  %v7788 = vsub.s32 3, %v7787
  %v7789 = vrot.slane %v7772, %v7788
  %v8050 = vunpack.c.l.b16 %v7516
  %v8051 = vunpack.c.h.b16 %v7516
  %v8052 = vunpack.c.l.b16 %v7517
  %v8053 = vunpack.c.h.b16 %v7517
  %v8054 = vunpack.c.l.b16 %v7518
  %v8055 = vunpack.c.h.b16 %v7518
  %v8056 = vunpack.c.l.b16 %v7519
  %v8057 = vunpack.c.h.b16 %v7519
  %v8058 = vunpack.c.l.b16 %v7520
  %v8059 = vunpack.c.h.b16 %v7520
  %v8060 = vunpack.c.l.b16 %v7521
  %v8061 = vunpack.c.h.b16 %v7521
  %v8062 = vunpack.c.l.b16 %v7522
  %v8063 = vunpack.c.h.b16 %v7522
  %v8064 = vunpack.c.l.b16 %v7523
  %v8065 = vunpack.c.h.b16 %v7523
  %v8066 = vunpack.c.l.b16 %v7524
  %v8067 = vunpack.c.h.b16 %v7524
  %v8068 = vunpack.c.l.b16 %v7525
  %v8069 = vunpack.c.h.b16 %v7525
  %v8070 = vunpack.c.l.b16 %v7526
  %v8071 = vunpack.c.h.b16 %v7526
  %v8072 = vunpack.c.l.b16 %v7527
  %v8073 = vunpack.c.h.b16 %v7527
  %v8074 = vunpack.c.l.b16 %v7528
  %v8075 = vunpack.c.h.b16 %v7528
  %v8076 = vunpack.c.l.b16 %v7529
  %v8077 = vunpack.c.h.b16 %v7529
  %v8078 = vunpack.c.l.b16 %v7530
  %v8079 = vunpack.c.h.b16 %v7530
  %v8080 = vunpack.c.l.b16 %v7531
  %v8081 = vunpack.c.h.b16 %v7531
  %v8082 = vunpack.c.l.b16 %v7532
  %v8083 = vunpack.c.h.b16 %v7532
  %v8084 = vunpack.c.l.b16 %v7533
  %v8085 = vunpack.c.h.b16 %v7533
  %v8086 = vunpack.c.l.b16 %v7534
  %v8087 = vunpack.c.h.b16 %v7534
  %v8088 = vunpack.c.l.b16 %v7535
  %v8089 = vunpack.c.h.b16 %v7535
  %v8090 = vunpack.c.l.b16 %v7536
  %v8091 = vunpack.c.h.b16 %v7536
  %v8092 = vunpack.c.l.b16 %v7537
  %v8093 = vunpack.c.h.b16 %v7537
  %v8094 = vunpack.c.l.b16 %v7538
  %v8095 = vunpack.c.h.b16 %v7538
  %v8096 = vunpack.c.l.b16 %v7539
  %v8097 = vunpack.c.h.b16 %v7539
  %v8098 = vunpack.c.l.b16 %v7540
  %v8099 = vunpack.c.h.b16 %v7540
  %v8100 = vunpack.c.l.b16 %v7541
  %v8101 = vunpack.c.h.b16 %v7541
  %v8102 = vunpack.c.l.b16 %v7542
  %v8103 = vunpack.c.h.b16 %v7542
  %v8104 = vunpack.c.l.b16 %v7543
  %v8105 = vunpack.c.h.b16 %v7543
  %v8106 = vunpack.c.l.b16 %v7544
  %v8107 = vunpack.c.h.b16 %v7544
  %v8108 = vunpack.c.l.b16 %v7545
  %v8109 = vunpack.c.h.b16 %v7545
  %v8110 = vunpack.c.l.b16 %v7546
  %v8111 = vunpack.c.h.b16 %v7546
  %v8112 = vunpack.c.l.b16 %v7547
  %v8113 = vunpack.c.h.b16 %v7547
  %v8114 = vunpack.c.l.b16 %v7548
  %v8115 = vunpack.c.h.b16 %v7548
  %v8116 = vunpack.c.l.b16 %v7549
  %v8117 = vunpack.c.h.b16 %v7549
  %v8118 = vunpack.c.l.b16 %v7550
  %v8119 = vunpack.c.h.b16 %v7550
  %v8120 = vunpack.c.l.b16 %v7551
  %v8121 = vunpack.c.h.b16 %v7551
  %v8122 = vunpack.c.l.b16 %v7552
  %v8123 = vunpack.c.h.b16 %v7552
  %v8124 = vunpack.c.l.b16 %v7553
  %v8125 = vunpack.c.h.b16 %v7553
  %v8126 = vunpack.c.l.b16 %v7554
  %v8127 = vunpack.c.h.b16 %v7554
  %v8128 = vunpack.c.l.b16 %v7555
  %v8129 = vunpack.c.h.b16 %v7555
  %v8130 = vunpack.c.l.b16 %v7556
  %v8131 = vunpack.c.h.b16 %v7556
  %v8132 = vunpack.c.l.b16 %v7557
  %v8133 = vunpack.c.h.b16 %v7557
  %v8134 = vunpack.c.l.b16 %v7558
  %v8135 = vunpack.c.h.b16 %v7558
  %v8136 = vunpack.c.l.b16 %v7559
  %v8137 = vunpack.c.h.b16 %v7559
  %v8138 = vunpack.c.l.b16 %v7560
  %v8139 = vunpack.c.h.b16 %v7560
  %v8140 = vunpack.c.l.b16 %v7561
  %v8141 = vunpack.c.h.b16 %v7561
  %v8142 = vunpack.c.l.b16 %v7562
  %v8143 = vunpack.c.h.b16 %v7562
  %v8144 = vunpack.c.l.b16 %v7563
  %v8145 = vunpack.c.h.b16 %v7563
  %v8146 = vunpack.c.l.b16 %v7564
  %v8147 = vunpack.c.h.b16 %v7564
  %v8148 = vunpack.c.l.b16 %v7565
  %v8149 = vunpack.c.h.b16 %v7565
  %v8150 = vunpack.c.l.b16 %v7566
  %v8151 = vunpack.c.h.b16 %v7566
  %v8152 = vunpack.c.l.b16 %v7567
  %v8153 = vunpack.c.h.b16 %v7567
  %v8154 = vunpack.c.l.b16 %v7568
  %v8155 = vunpack.c.h.b16 %v7568
  %v8156 = vunpack.c.l.b16 %v7569
  %v8157 = vunpack.c.h.b16 %v7569
  %v8158 = vunpack.c.l.b16 %v7570
  %v8159 = vunpack.c.h.b16 %v7570
  %v8160 = vunpack.c.l.b16 %v7571
  %v8161 = vunpack.c.h.b16 %v7571
  %v8162 = vunpack.c.l.b16 %v7572
  %v8163 = vunpack.c.h.b16 %v7572
  %v8164 = vunpack.c.l.b16 %v7573
  %v8165 = vunpack.c.h.b16 %v7573
  %v8166 = vunpack.c.l.b16 %v7574
  %v8167 = vunpack.c.h.b16 %v7574
  %v8168 = vunpack.c.l.b16 %v7575
  %v8169 = vunpack.c.h.b16 %v7575
  %v8170 = vunpack.c.l.b16 %v7576
  %v8171 = vunpack.c.h.b16 %v7576
  %v8172 = vunpack.c.l.b16 %v7577
  %v8173 = vunpack.c.h.b16 %v7577
  %v8174 = vunpack.c.l.b16 %v7578
  %v8175 = vunpack.c.h.b16 %v7578
  %v8176 = vunpack.c.l.b16 %v7579
  %v8177 = vunpack.c.h.b16 %v7579
  %v8178 = vunpack.c.l.b16 %v7580
  %v8179 = vunpack.c.h.b16 %v7580
  %v8180 = vunpack.c.l.b16 %v7581
  %v8181 = vunpack.c.h.b16 %v7581
  %v8182 = vunpack.c.l.b16 %v7582
  %v8183 = vunpack.c.h.b16 %v7582
  %v8184 = vunpack.c.l.b16 %v7583
  %v8185 = vunpack.c.h.b16 %v7583
  %v8186 = vunpack.c.l.b16 %v7584
  %v8187 = vunpack.c.h.b16 %v7584
  %v8188 = vunpack.c.l.b16 %v7585
  %v8189 = vunpack.c.h.b16 %v7585
  %v8190 = vunpack.c.l.b16 %v7586
  %v8191 = vunpack.c.h.b16 %v7586
  %v8192 = vunpack.c.l.b16 %v7587
  %v8193 = vunpack.c.h.b16 %v7587
  %v8194 = vunpack.c.l.b16 %v7588
  %v8195 = vunpack.c.h.b16 %v7588
  %v8196 = vunpack.c.l.b16 %v7589
  %v8197 = vunpack.c.h.b16 %v7589
  %v8198 = vunpack.c.l.b16 %v7590
  %v8199 = vunpack.c.h.b16 %v7590
  %v8200 = vunpack.c.l.b16 %v7591
  %v8201 = vunpack.c.h.b16 %v7591
  %v8202 = vunpack.c.l.b16 %v7592
  %v8203 = vunpack.c.h.b16 %v7592
  %v8204 = vunpack.c.l.b16 %v7593
  %v8205 = vunpack.c.h.b16 %v7593
  %v8206 = vunpack.c.l.b16 %v7594
  %v8207 = vunpack.c.h.b16 %v7594
  %v8208 = vunpack.c.l.b16 %v7595
  %v8209 = vunpack.c.h.b16 %v7595
  %v8210 = vunpack.c.l.b16 %v7596
  %v8211 = vunpack.c.h.b16 %v7596
  %v8212 = vunpack.c.l.b16 %v7597
  %v8213 = vunpack.c.h.b16 %v7597
  %v8214 = vunpack.c.l.b16 %v7598
  %v8215 = vunpack.c.h.b16 %v7598
  %v8216 = vunpack.c.l.b16 %v7599
  %v8217 = vunpack.c.h.b16 %v7599
  %v8218 = vunpack.c.l.b16 %v7600
  %v8219 = vunpack.c.h.b16 %v7600
  %v8220 = vunpack.c.l.b16 %v7601
  %v8221 = vunpack.c.h.b16 %v7601
  %v8222 = vunpack.c.l.b16 %v7602
  %v8223 = vunpack.c.h.b16 %v7602
  %v8224 = vunpack.c.l.b16 %v7603
  %v8225 = vunpack.c.h.b16 %v7603
  %v8226 = vunpack.c.l.b16 %v7604
  %v8227 = vunpack.c.h.b16 %v7604
  %v8228 = vunpack.c.l.b16 %v7605
  %v8229 = vunpack.c.h.b16 %v7605
  %v8230 = vunpack.c.l.b16 %v7606
  %v8231 = vunpack.c.h.b16 %v7606
  %v8232 = vunpack.c.l.b16 %v7607
  %v8233 = vunpack.c.h.b16 %v7607
  %v8234 = vunpack.c.l.b16 %v7608
  %v8235 = vunpack.c.h.b16 %v7608
  %v8236 = vunpack.c.l.b16 %v7609
  %v8237 = vunpack.c.h.b16 %v7609
  %v8238 = vunpack.c.l.b16 %v7610
  %v8239 = vunpack.c.h.b16 %v7610
  %v8240 = vunpack.c.l.b16 %v7611
  %v8241 = vunpack.c.h.b16 %v7611
  %v8242 = vunpack.c.l.b16 %v7612
  %v8243 = vunpack.c.h.b16 %v7612
  %v8244 = vunpack.c.l.b16 %v7613
  %v8245 = vunpack.c.h.b16 %v7613
  %v8246 = vunpack.c.l.b16 %v7614
  %v8247 = vunpack.c.h.b16 %v7614
  %v8248 = vunpack.c.l.b16 %v7615
  %v8249 = vunpack.c.h.b16 %v7615
  %v8250 = vunpack.c.l.b16 %v7616
  %v8251 = vunpack.c.h.b16 %v7616
  %v8252 = vunpack.c.l.b16 %v7617
  %v8253 = vunpack.c.h.b16 %v7617
  %v8254 = vunpack.c.l.b16 %v7618
  %v8255 = vunpack.c.h.b16 %v7618
  %v8256 = vunpack.c.l.b16 %v7619
  %v8257 = vunpack.c.h.b16 %v7619
  %v8258 = vunpack.c.l.b16 %v7620
  %v8259 = vunpack.c.h.b16 %v7620
  %v8260 = vunpack.c.l.b16 %v7621
  %v8261 = vunpack.c.h.b16 %v7621
  %v8262 = vunpack.c.l.b16 %v7622
  %v8263 = vunpack.c.h.b16 %v7622
  %v8264 = vunpack.c.l.b16 %v7623
  %v8265 = vunpack.c.h.b16 %v7623
  %v8266 = vunpack.c.l.b16 %v7624
  %v8267 = vunpack.c.h.b16 %v7624
  %v8268 = vunpack.c.l.b16 %v7625
  %v8269 = vunpack.c.h.b16 %v7625
  %v8270 = vunpack.c.l.b16 %v7626
  %v8271 = vunpack.c.h.b16 %v7626
  %v8272 = vunpack.c.l.b16 %v7627
  %v8273 = vunpack.c.h.b16 %v7627
  %v8274 = vunpack.c.l.b16 %v7628
  %v8275 = vunpack.c.h.b16 %v7628
  %v8276 = vunpack.c.l.b16 %v7629
  %v8277 = vunpack.c.h.b16 %v7629
  %v8278 = vunpack.c.l.b16 %v7630
  %v8279 = vunpack.c.h.b16 %v7630
  %v8280 = vunpack.c.l.b16 %v7631
  %v8281 = vunpack.c.h.b16 %v7631
  %v8282 = vunpack.c.l.b16 %v7632
  %v8283 = vunpack.c.h.b16 %v7632
  %v8284 = vunpack.c.l.b16 %v7633
  %v8285 = vunpack.c.h.b16 %v7633
  %v8286 = vunpack.c.l.b16 %v7634
  %v8287 = vunpack.c.h.b16 %v7634
  %v8288 = vunpack.c.l.b16 %v7635
  %v8289 = vunpack.c.h.b16 %v7635
  %v8290 = vunpack.c.l.b16 %v7636
  %v8291 = vunpack.c.h.b16 %v7636
  %v8292 = vunpack.c.l.b16 %v7637
  %v8293 = vunpack.c.h.b16 %v7637
  %v8294 = vunpack.c.l.b16 %v7638
  %v8295 = vunpack.c.h.b16 %v7638
  %v8296 = vunpack.c.l.b16 %v7639
  %v8297 = vunpack.c.h.b16 %v7639
  %v8298 = vunpack.c.l.b16 %v7640
  %v8299 = vunpack.c.h.b16 %v7640
  %v8300 = vunpack.c.l.b16 %v7641
  %v8301 = vunpack.c.h.b16 %v7641
  %v8302 = vunpack.c.l.b16 %v7642
  %v8303 = vunpack.c.h.b16 %v7642
  %v8304 = vunpack.c.l.b16 %v7643
  %v8305 = vunpack.c.h.b16 %v7643
  %v8306 = vunpack.c.l.b16 %v7644
  %v8307 = vunpack.c.h.b16 %v7644
  %v8308 = vunpack.c.l.b16 %v7645
  %v8309 = vunpack.c.h.b16 %v7645
  %v8310 = vunpack.c.l.b16 %v7646
  %v8311 = vunpack.c.h.b16 %v7646
  %v8312 = vunpack.c.l.b16 %v7647
  %v8313 = vunpack.c.h.b16 %v7647
  %v8314 = vunpack.c.l.b16 %v7648
  %v8315 = vunpack.c.h.b16 %v7648
  %v8316 = vunpack.c.l.b16 %v7649
  %v8317 = vunpack.c.h.b16 %v7649
  %v8318 = vunpack.c.l.b16 %v7650
  %v8319 = vunpack.c.h.b16 %v7650
  %v8320 = vunpack.c.l.b16 %v7651
  %v8321 = vunpack.c.h.b16 %v7651
  %v8322 = vunpack.c.l.b16 %v7652
  %v8323 = vunpack.c.h.b16 %v7652
  %v8324 = vunpack.c.l.b16 %v7653
  %v8325 = vunpack.c.h.b16 %v7653
  %v8326 = vunpack.c.l.b16 %v7654
  %v8327 = vunpack.c.h.b16 %v7654
  %v8328 = vunpack.c.l.b16 %v7655
  %v8329 = vunpack.c.h.b16 %v7655
  %v8330 = vunpack.c.l.b16 %v7656
  %v8331 = vunpack.c.h.b16 %v7656
  %v8332 = vunpack.c.l.b16 %v7657
  %v8333 = vunpack.c.h.b16 %v7657
  %v8334 = vunpack.c.l.b16 %v7658
  %v8335 = vunpack.c.h.b16 %v7658
  %v8336 = vunpack.c.l.b16 %v7659
  %v8337 = vunpack.c.h.b16 %v7659
  %v8338 = vunpack.c.l.b16 %v7660
  %v8339 = vunpack.c.h.b16 %v7660
  %v8340 = vunpack.c.l.b16 %v7661
  %v8341 = vunpack.c.h.b16 %v7661
  %v8342 = vunpack.c.l.b16 %v7662
  %v8343 = vunpack.c.h.b16 %v7662
  %v8344 = vunpack.c.l.b16 %v7663
  %v8345 = vunpack.c.h.b16 %v7663
  %v8346 = vunpack.c.l.b16 %v7664
  %v8347 = vunpack.c.h.b16 %v7664
  %v8348 = vunpack.c.l.b16 %v7665
  %v8349 = vunpack.c.h.b16 %v7665
  %v8350 = vunpack.c.l.b16 %v7666
  %v8351 = vunpack.c.h.b16 %v7666
  %v8352 = vunpack.c.l.b16 %v7667
  %v8353 = vunpack.c.h.b16 %v7667
  %v8354 = vunpack.c.l.b16 %v7668
  %v8355 = vunpack.c.h.b16 %v7668
  %v8356 = vunpack.c.l.b16 %v7669
  %v8357 = vunpack.c.h.b16 %v7669
  %v8358 = vunpack.c.l.b16 %v7670
  %v8359 = vunpack.c.h.b16 %v7670
  %v8360 = vunpack.c.l.b16 %v7671
  %v8361 = vunpack.c.h.b16 %v7671
  %v8362 = vunpack.c.l.b16 %v7672
  %v8363 = vunpack.c.h.b16 %v7672
  %v8364 = vunpack.c.l.b16 %v7673
  %v8365 = vunpack.c.h.b16 %v7673
  %v8366 = vunpack.c.l.b16 %v7674
  %v8367 = vunpack.c.h.b16 %v7674
  %v8368 = vunpack.c.l.b16 %v7675
  %v8369 = vunpack.c.h.b16 %v7675
  %v8370 = vunpack.c.l.b16 %v7676
  %v8371 = vunpack.c.h.b16 %v7676
  %v8372 = vunpack.c.l.b16 %v7677
  %v8373 = vunpack.c.h.b16 %v7677
  %v8374 = vunpack.c.l.b16 %v7678
  %v8375 = vunpack.c.h.b16 %v7678
  %v8376 = vunpack.c.l.b16 %v7679
  %v8377 = vunpack.c.h.b16 %v7679
  %v8378 = vunpack.c.l.b16 %v7680
  %v8379 = vunpack.c.h.b16 %v7680
  %v8380 = vunpack.c.l.b16 %v7681
  %v8381 = vunpack.c.h.b16 %v7681
  %v8382 = vunpack.c.l.b16 %v7682
  %v8383 = vunpack.c.h.b16 %v7682
  %v8384 = vunpack.c.l.b16 %v7683
  %v8385 = vunpack.c.h.b16 %v7683
  %v8386 = vunpack.c.l.b16 %v7684
  %v8387 = vunpack.c.h.b16 %v7684
  %v8388 = vunpack.c.l.b16 %v7685
  %v8389 = vunpack.c.h.b16 %v7685
  %v8390 = vunpack.c.l.b16 %v7686
  %v8391 = vunpack.c.h.b16 %v7686
  %v8392 = vunpack.c.l.b16 %v7687
  %v8393 = vunpack.c.h.b16 %v7687
  %v8394 = vunpack.c.l.b16 %v7688
  %v8395 = vunpack.c.h.b16 %v7688
  %v8396 = vunpack.c.l.b16 %v7689
  %v8397 = vunpack.c.h.b16 %v7689
  %v8398 = vunpack.c.l.b16 %v7690
  %v8399 = vunpack.c.h.b16 %v7690
  %v8400 = vunpack.c.l.b16 %v7691
  %v8401 = vunpack.c.h.b16 %v7691
  %v8402 = vunpack.c.l.b16 %v7692
  %v8403 = vunpack.c.h.b16 %v7692
  %v8404 = vunpack.c.l.b16 %v7693
  %v8405 = vunpack.c.h.b16 %v7693
  %v8406 = vunpack.c.l.b16 %v7694
  %v8407 = vunpack.c.h.b16 %v7694
  %v8408 = vunpack.c.l.b16 %v7695
  %v8409 = vunpack.c.h.b16 %v7695
  %v8410 = vunpack.c.l.b16 %v7696
  %v8411 = vunpack.c.h.b16 %v7696
  %v8412 = vunpack.c.l.b16 %v7697
  %v8413 = vunpack.c.h.b16 %v7697
  %v8414 = vunpack.c.l.b16 %v7698
  %v8415 = vunpack.c.h.b16 %v7698
  %v8416 = vunpack.c.l.b16 %v7699
  %v8417 = vunpack.c.h.b16 %v7699
  %v8418 = vunpack.c.l.b16 %v7700
  %v8419 = vunpack.c.h.b16 %v7700
  %v8420 = vunpack.c.l.b16 %v7701
  %v8421 = vunpack.c.h.b16 %v7701
  %v8422 = vunpack.c.l.b16 %v7702
  %v8423 = vunpack.c.h.b16 %v7702
  %v8424 = vunpack.c.l.b16 %v7703
  %v8425 = vunpack.c.h.b16 %v7703
  %v8426 = vunpack.c.l.b16 %v7704
  %v8427 = vunpack.c.h.b16 %v7704
  %v8428 = vunpack.c.l.b16 %v7705
  %v8429 = vunpack.c.h.b16 %v7705
  %v8430 = vunpack.c.l.b16 %v7706
  %v8431 = vunpack.c.h.b16 %v7706
  %v8432 = vunpack.c.l.b16 %v7707
  %v8433 = vunpack.c.h.b16 %v7707
  %v8434 = vunpack.c.l.b16 %v7708
  %v8435 = vunpack.c.h.b16 %v7708
  %v8436 = vunpack.c.l.b16 %v7709
  %v8437 = vunpack.c.h.b16 %v7709
  %v8438 = vunpack.c.l.b16 %v7710
  %v8439 = vunpack.c.h.b16 %v7710
  %v8440 = vunpack.c.l.b16 %v7711
  %v8441 = vunpack.c.h.b16 %v7711
  %v8442 = vunpack.c.l.b16 %v7712
  %v8443 = vunpack.c.h.b16 %v7712
  %v8444 = vunpack.c.l.b16 %v7713
  %v8445 = vunpack.c.h.b16 %v7713
  %v8446 = vunpack.c.l.b16 %v7714
  %v8447 = vunpack.c.h.b16 %v7714
  %v8448 = vunpack.c.l.b16 %v7715
  %v8449 = vunpack.c.h.b16 %v7715
  %v8450 = vunpack.c.l.b16 %v7716
  %v8451 = vunpack.c.h.b16 %v7716
  %v8452 = vunpack.c.l.b16 %v7717
  %v8453 = vunpack.c.h.b16 %v7717
  %v8454 = vunpack.c.l.b16 %v7718
  %v8455 = vunpack.c.h.b16 %v7718
  %v8456 = vunpack.c.l.b16 %v7719
  %v8457 = vunpack.c.h.b16 %v7719
  %v8458 = vunpack.c.l.b16 %v7720
  %v8459 = vunpack.c.h.b16 %v7720
  %v8460 = vunpack.c.l.b16 %v7721
  %v8461 = vunpack.c.h.b16 %v7721
  %v8462 = vunpack.c.l.b16 %v7722
  %v8463 = vunpack.c.h.b16 %v7722
  %v8464 = vunpack.c.l.b16 %v7723
  %v8465 = vunpack.c.h.b16 %v7723
  %v8466 = vunpack.c.l.b16 %v7724
  %v8467 = vunpack.c.h.b16 %v7724
  %v8468 = vunpack.c.l.b16 %v7725
  %v8469 = vunpack.c.h.b16 %v7725
  %v8470 = vunpack.c.l.b16 %v7726
  %v8471 = vunpack.c.h.b16 %v7726
  %v8472 = vunpack.c.l.b16 %v7727
  %v8473 = vunpack.c.h.b16 %v7727
  %v8474 = vunpack.c.l.b16 %v7728
  %v8475 = vunpack.c.h.b16 %v7728
  %v8476 = vunpack.c.l.b16 %v7729
  %v8477 = vunpack.c.h.b16 %v7729
  %v8478 = vunpack.c.l.b16 %v7730
  %v8479 = vunpack.c.h.b16 %v7730
  %v8480 = vunpack.c.l.b16 %v7731
  %v8481 = vunpack.c.h.b16 %v7731
  %v8482 = vunpack.c.l.b16 %v7732
  %v8483 = vunpack.c.h.b16 %v7732
  %v8484 = vunpack.c.l.b16 %v7733
  %v8485 = vunpack.c.h.b16 %v7733
  %v8486 = vunpack.c.l.b16 %v7734
  %v8487 = vunpack.c.h.b16 %v7734
  %v8488 = vunpack.c.l.b16 %v7735
  %v8489 = vunpack.c.h.b16 %v7735
  %v8490 = vunpack.c.l.b16 %v7736
  %v8491 = vunpack.c.h.b16 %v7736
  %v8492 = vunpack.c.l.b16 %v7737
  %v8493 = vunpack.c.h.b16 %v7737
  %v8494 = vunpack.c.l.b16 %v7738
  %v8495 = vunpack.c.h.b16 %v7738
  %v8496 = vunpack.c.l.b16 %v7739
  %v8497 = vunpack.c.h.b16 %v7739
  %v8498 = vunpack.c.l.b16 %v7740
  %v8499 = vunpack.c.h.b16 %v7740
  %v8500 = vunpack.c.l.b16 %v7741
  %v8501 = vunpack.c.h.b16 %v7741
  %v8502 = vunpack.c.l.b16 %v7742
  %v8503 = vunpack.c.h.b16 %v7742
  %v8504 = vunpack.c.l.b16 %v7743
  %v8505 = vunpack.c.h.b16 %v7743
  %v8506 = vunpack.c.l.b16 %v7744
  %v8507 = vunpack.c.h.b16 %v7744
  %v8508 = vunpack.c.l.b16 %v7745
  %v8509 = vunpack.c.h.b16 %v7745
  %v8510 = vunpack.c.l.b16 %v7746
  %v8511 = vunpack.c.h.b16 %v7746
  %v8512 = vunpack.c.l.b16 %v7747
  %v8513 = vunpack.c.h.b16 %v7747
  %v8514 = vunpack.c.l.b16 %v7748
  %v8515 = vunpack.c.h.b16 %v7748
  %v8516 = vunpack.c.l.b16 %v7749
  %v8517 = vunpack.c.h.b16 %v7749
  %v8518 = vunpack.c.l.b16 %v7750
  %v8519 = vunpack.c.h.b16 %v7750
  %v8520 = vunpack.c.l.b16 %v7751
  %v8521 = vunpack.c.h.b16 %v7751
  %v8522 = vunpack.c.l.b16 %v7752
  %v8523 = vunpack.c.h.b16 %v7752
  %v8524 = vunpack.c.l.b16 %v7753
  %v8525 = vunpack.c.h.b16 %v7753
  %v8526 = vunpack.c.l.b16 %v7754
  %v8527 = vunpack.c.h.b16 %v7754
  %v8528 = vunpack.c.l.b16 %v7755
  %v8529 = vunpack.c.h.b16 %v7755
  %v8530 = vunpack.c.l.b16 %v7756
  %v8531 = vunpack.c.h.b16 %v7756
  %v8532 = vunpack.c.l.b16 %v7757
  %v8533 = vunpack.c.h.b16 %v7757
  %v8534 = vunpack.c.l.b16 %v7758
  %v8535 = vunpack.c.h.b16 %v7758
  %v8536 = vunpack.c.l.b16 %v7759
  %v8537 = vunpack.c.h.b16 %v7759
  %v8538 = vunpack.c.l.b16 %v7760
  %v8539 = vunpack.c.h.b16 %v7760
  %v8540 = vunpack.c.l.b16 %v7761
  %v8541 = vunpack.c.h.b16 %v7761
  %v8542 = vunpack.c.l.b16 %v7762
  %v8543 = vunpack.c.h.b16 %v7762
  %v8544 = vunpack.c.l.b16 %v7763
  %v8545 = vunpack.c.h.b16 %v7763
  %v8546 = vunpack.c.l.b16 %v7764
  %v8547 = vunpack.c.h.b16 %v7764
  %v8548 = vunpack.c.l.b16 %v7765
  %v8549 = vunpack.c.h.b16 %v7765
  %v8550 = vunpack.c.l.b16 %v7766
  %v8551 = vunpack.c.h.b16 %v7766
  %v8552 = vunpack.c.l.b16 %v7767
  %v8553 = vunpack.c.h.b16 %v7767
  %v8554 = vunpack.c.l.b16 %v7768
  %v8555 = vunpack.c.h.b16 %v7768
  %v8556 = vunpack.c.l.b16 %v7769
  %v8557 = vunpack.c.h.b16 %v7769
  %v8558 = vunpack.c.l.b16 %v7770
  %v8559 = vunpack.c.h.b16 %v7770
  %v8560 = vunpack.c.l.b16 %v7771
  %v8561 = vunpack.c.h.b16 %v7771
  %v8562 = vpack.c.b16 %v8054, %v8050
  %v8563 = vpack.c.b16 %v8055, %v8051
  %v8564 = vpack.c.b16 %v8056, %v8052
  %v8565 = vpack.c.b16 %v8057, %v8053
  %v8566 = vpack.c.b16 %v8062, %v8058
  %v8567 = vpack.c.b16 %v8063, %v8059
  %v8568 = vpack.c.b16 %v8064, %v8060
  %v8569 = vpack.c.b16 %v8065, %v8061
  %v8570 = vpack.c.b16 %v8070, %v8066
  %v8571 = vpack.c.b16 %v8071, %v8067
  %v8572 = vpack.c.b16 %v8072, %v8068
  %v8573 = vpack.c.b16 %v8073, %v8069
  %v8574 = vpack.c.b16 %v8078, %v8074
  %v8575 = vpack.c.b16 %v8079, %v8075
  %v8576 = vpack.c.b16 %v8080, %v8076
  %v8577 = vpack.c.b16 %v8081, %v8077
  %v8578 = vpack.c.b16 %v8086, %v8082
  %v8579 = vpack.c.b16 %v8087, %v8083
  %v8580 = vpack.c.b16 %v8088, %v8084
  %v8581 = vpack.c.b16 %v8089, %v8085
  %v8582 = vpack.c.b16 %v8094, %v8090
  %v8583 = vpack.c.b16 %v8095, %v8091
  %v8584 = vpack.c.b16 %v8096, %v8092
  %v8585 = vpack.c.b16 %v8097, %v8093
  %v8586 = vpack.c.b16 %v8102, %v8098
  %v8587 = vpack.c.b16 %v8103, %v8099
  %v8588 = vpack.c.b16 %v8104, %v8100
  %v8589 = vpack.c.b16 %v8105, %v8101
  %v8590 = vpack.c.b16 %v8110, %v8106
  %v8591 = vpack.c.b16 %v8111, %v8107
  %v8592 = vpack.c.b16 %v8112, %v8108
  %v8593 = vpack.c.b16 %v8113, %v8109
  %v8594 = vpack.c.b16 %v8118, %v8114
  %v8595 = vpack.c.b16 %v8119, %v8115
  %v8596 = vpack.c.b16 %v8120, %v8116
  %v8597 = vpack.c.b16 %v8121, %v8117
  %v8598 = vpack.c.b16 %v8126, %v8122
  %v8599 = vpack.c.b16 %v8127, %v8123
  %v8600 = vpack.c.b16 %v8128, %v8124
  %v8601 = vpack.c.b16 %v8129, %v8125
  %v8602 = vpack.c.b16 %v8134, %v8130
  %v8603 = vpack.c.b16 %v8135, %v8131
  %v8604 = vpack.c.b16 %v8136, %v8132
  %v8605 = vpack.c.b16 %v8137, %v8133
  %v8606 = vpack.c.b16 %v8142, %v8138
  %v8607 = vpack.c.b16 %v8143, %v8139
  %v8608 = vpack.c.b16 %v8144, %v8140
  %v8609 = vpack.c.b16 %v8145, %v8141
  %v8610 = vpack.c.b16 %v8150, %v8146
  %v8611 = vpack.c.b16 %v8151, %v8147
  %v8612 = vpack.c.b16 %v8152, %v8148
  %v8613 = vpack.c.b16 %v8153, %v8149
  %v8614 = vpack.c.b16 %v8158, %v8154
  %v8615 = vpack.c.b16 %v8159, %v8155
  %v8616 = vpack.c.b16 %v8160, %v8156
  %v8617 = vpack.c.b16 %v8161, %v8157
  %v8618 = vpack.c.b16 %v8166, %v8162
  %v8619 = vpack.c.b16 %v8167, %v8163
  %v8620 = vpack.c.b16 %v8168, %v8164
  %v8621 = vpack.c.b16 %v8169, %v8165
  %v8622 = vpack.c.b16 %v8174, %v8170
  %v8623 = vpack.c.b16 %v8175, %v8171
  %v8624 = vpack.c.b16 %v8176, %v8172
  %v8625 = vpack.c.b16 %v8177, %v8173
  %v8626 = vpack.c.b16 %v8182, %v8178
  %v8627 = vpack.c.b16 %v8183, %v8179
  %v8628 = vpack.c.b16 %v8184, %v8180
  %v8629 = vpack.c.b16 %v8185, %v8181
  %v8630 = vpack.c.b16 %v8190, %v8186
  %v8631 = vpack.c.b16 %v8191, %v8187
  %v8632 = vpack.c.b16 %v8192, %v8188
  %v8633 = vpack.c.b16 %v8193, %v8189
  %v8634 = vpack.c.b16 %v8198, %v8194
  %v8635 = vpack.c.b16 %v8199, %v8195
  %v8636 = vpack.c.b16 %v8200, %v8196
  %v8637 = vpack.c.b16 %v8201, %v8197
  %v8638 = vpack.c.b16 %v8206, %v8202
  %v8639 = vpack.c.b16 %v8207, %v8203
  %v8640 = vpack.c.b16 %v8208, %v8204
  %v8641 = vpack.c.b16 %v8209, %v8205
  %v8642 = vpack.c.b16 %v8214, %v8210
  %v8643 = vpack.c.b16 %v8215, %v8211
  %v8644 = vpack.c.b16 %v8216, %v8212
  %v8645 = vpack.c.b16 %v8217, %v8213
  %v8646 = vpack.c.b16 %v8222, %v8218
  %v8647 = vpack.c.b16 %v8223, %v8219
  %v8648 = vpack.c.b16 %v8224, %v8220
  %v8649 = vpack.c.b16 %v8225, %v8221
  %v8650 = vpack.c.b16 %v8230, %v8226
  %v8651 = vpack.c.b16 %v8231, %v8227
  %v8652 = vpack.c.b16 %v8232, %v8228
  %v8653 = vpack.c.b16 %v8233, %v8229
  %v8654 = vpack.c.b16 %v8238, %v8234
  %v8655 = vpack.c.b16 %v8239, %v8235
  %v8656 = vpack.c.b16 %v8240, %v8236
  %v8657 = vpack.c.b16 %v8241, %v8237
  %v8658 = vpack.c.b16 %v8246, %v8242
  %v8659 = vpack.c.b16 %v8247, %v8243
  %v8660 = vpack.c.b16 %v8248, %v8244
  %v8661 = vpack.c.b16 %v8249, %v8245
  %v8662 = vpack.c.b16 %v8254, %v8250
  %v8663 = vpack.c.b16 %v8255, %v8251
  %v8664 = vpack.c.b16 %v8256, %v8252
  %v8665 = vpack.c.b16 %v8257, %v8253
  %v8666 = vpack.c.b16 %v8262, %v8258
  %v8667 = vpack.c.b16 %v8263, %v8259
  %v8668 = vpack.c.b16 %v8264, %v8260
  %v8669 = vpack.c.b16 %v8265, %v8261
  %v8670 = vpack.c.b16 %v8270, %v8266
  %v8671 = vpack.c.b16 %v8271, %v8267
  %v8672 = vpack.c.b16 %v8272, %v8268
  %v8673 = vpack.c.b16 %v8273, %v8269
  %v8674 = vpack.c.b16 %v8278, %v8274
  %v8675 = vpack.c.b16 %v8279, %v8275
  %v8676 = vpack.c.b16 %v8280, %v8276
  %v8677 = vpack.c.b16 %v8281, %v8277
  %v8678 = vpack.c.b16 %v8286, %v8282
  %v8679 = vpack.c.b16 %v8287, %v8283
  %v8680 = vpack.c.b16 %v8288, %v8284
  %v8681 = vpack.c.b16 %v8289, %v8285
  %v8682 = vpack.c.b16 %v8294, %v8290
  %v8683 = vpack.c.b16 %v8295, %v8291
  %v8684 = vpack.c.b16 %v8296, %v8292
  %v8685 = vpack.c.b16 %v8297, %v8293
  %v8686 = vpack.c.b16 %v8302, %v8298
  %v8687 = vpack.c.b16 %v8303, %v8299
  %v8688 = vpack.c.b16 %v8304, %v8300
  %v8689 = vpack.c.b16 %v8305, %v8301
  %v8690 = vpack.c.b16 %v8310, %v8306
  %v8691 = vpack.c.b16 %v8311, %v8307
  %v8692 = vpack.c.b16 %v8312, %v8308
  %v8693 = vpack.c.b16 %v8313, %v8309
  %v8694 = vpack.c.b16 %v8318, %v8314
  %v8695 = vpack.c.b16 %v8319, %v8315
  %v8696 = vpack.c.b16 %v8320, %v8316
  %v8697 = vpack.c.b16 %v8321, %v8317
  %v8698 = vpack.c.b16 %v8326, %v8322
  %v8699 = vpack.c.b16 %v8327, %v8323
  %v8700 = vpack.c.b16 %v8328, %v8324
  %v8701 = vpack.c.b16 %v8329, %v8325
  %v8702 = vpack.c.b16 %v8334, %v8330
  %v8703 = vpack.c.b16 %v8335, %v8331
  %v8704 = vpack.c.b16 %v8336, %v8332
  %v8705 = vpack.c.b16 %v8337, %v8333
  %v8706 = vpack.c.b16 %v8342, %v8338
  %v8707 = vpack.c.b16 %v8343, %v8339
  %v8708 = vpack.c.b16 %v8344, %v8340
  %v8709 = vpack.c.b16 %v8345, %v8341
  %v8710 = vpack.c.b16 %v8350, %v8346
  %v8711 = vpack.c.b16 %v8351, %v8347
  %v8712 = vpack.c.b16 %v8352, %v8348
  %v8713 = vpack.c.b16 %v8353, %v8349
  %v8714 = vpack.c.b16 %v8358, %v8354
  %v8715 = vpack.c.b16 %v8359, %v8355
  %v8716 = vpack.c.b16 %v8360, %v8356
  %v8717 = vpack.c.b16 %v8361, %v8357
  %v8718 = vpack.c.b16 %v8366, %v8362
  %v8719 = vpack.c.b16 %v8367, %v8363
  %v8720 = vpack.c.b16 %v8368, %v8364
  %v8721 = vpack.c.b16 %v8369, %v8365
  %v8722 = vpack.c.b16 %v8374, %v8370
  %v8723 = vpack.c.b16 %v8375, %v8371
  %v8724 = vpack.c.b16 %v8376, %v8372
  %v8725 = vpack.c.b16 %v8377, %v8373
  %v8726 = vpack.c.b16 %v8382, %v8378
  %v8727 = vpack.c.b16 %v8383, %v8379
  %v8728 = vpack.c.b16 %v8384, %v8380
  %v8729 = vpack.c.b16 %v8385, %v8381
  %v8730 = vpack.c.b16 %v8390, %v8386
  %v8731 = vpack.c.b16 %v8391, %v8387
  %v8732 = vpack.c.b16 %v8392, %v8388
  %v8733 = vpack.c.b16 %v8393, %v8389
  %v8734 = vpack.c.b16 %v8398, %v8394
  %v8735 = vpack.c.b16 %v8399, %v8395
  %v8736 = vpack.c.b16 %v8400, %v8396
  %v8737 = vpack.c.b16 %v8401, %v8397
  %v8738 = vpack.c.b16 %v8406, %v8402
  %v8739 = vpack.c.b16 %v8407, %v8403
  %v8740 = vpack.c.b16 %v8408, %v8404
  %v8741 = vpack.c.b16 %v8409, %v8405
  %v8742 = vpack.c.b16 %v8414, %v8410
  %v8743 = vpack.c.b16 %v8415, %v8411
  %v8744 = vpack.c.b16 %v8416, %v8412
  %v8745 = vpack.c.b16 %v8417, %v8413
  %v8746 = vpack.c.b16 %v8422, %v8418
  %v8747 = vpack.c.b16 %v8423, %v8419
  %v8748 = vpack.c.b16 %v8424, %v8420
  %v8749 = vpack.c.b16 %v8425, %v8421
  %v8750 = vpack.c.b16 %v8430, %v8426
  %v8751 = vpack.c.b16 %v8431, %v8427
  %v8752 = vpack.c.b16 %v8432, %v8428
  %v8753 = vpack.c.b16 %v8433, %v8429
  %v8754 = vpack.c.b16 %v8438, %v8434
  %v8755 = vpack.c.b16 %v8439, %v8435
  %v8756 = vpack.c.b16 %v8440, %v8436
  %v8757 = vpack.c.b16 %v8441, %v8437
  %v8758 = vpack.c.b16 %v8446, %v8442
  %v8759 = vpack.c.b16 %v8447, %v8443
  %v8760 = vpack.c.b16 %v8448, %v8444
  %v8761 = vpack.c.b16 %v8449, %v8445
  %v8762 = vpack.c.b16 %v8454, %v8450
  %v8763 = vpack.c.b16 %v8455, %v8451
  %v8764 = vpack.c.b16 %v8456, %v8452
  %v8765 = vpack.c.b16 %v8457, %v8453
  %v8766 = vpack.c.b16 %v8462, %v8458
  %v8767 = vpack.c.b16 %v8463, %v8459
  %v8768 = vpack.c.b16 %v8464, %v8460
  %v8769 = vpack.c.b16 %v8465, %v8461
  %v8770 = vpack.c.b16 %v8470, %v8466
  %v8771 = vpack.c.b16 %v8471, %v8467
  %v8772 = vpack.c.b16 %v8472, %v8468
  %v8773 = vpack.c.b16 %v8473, %v8469
  %v8774 = vpack.c.b16 %v8478, %v8474
  %v8775 = vpack.c.b16 %v8479, %v8475
  %v8776 = vpack.c.b16 %v8480, %v8476
  %v8777 = vpack.c.b16 %v8481, %v8477
  %v8778 = vpack.c.b16 %v8486, %v8482
  %v8779 = vpack.c.b16 %v8487, %v8483
  %v8780 = vpack.c.b16 %v8488, %v8484
  %v8781 = vpack.c.b16 %v8489, %v8485
  %v8782 = vpack.c.b16 %v8494, %v8490
  %v8783 = vpack.c.b16 %v8495, %v8491
  %v8784 = vpack.c.b16 %v8496, %v8492
  %v8785 = vpack.c.b16 %v8497, %v8493
  %v8786 = vpack.c.b16 %v8502, %v8498
  %v8787 = vpack.c.b16 %v8503, %v8499
  %v8788 = vpack.c.b16 %v8504, %v8500
  %v8789 = vpack.c.b16 %v8505, %v8501
  %v8790 = vpack.c.b16 %v8510, %v8506
  %v8791 = vpack.c.b16 %v8511, %v8507
  %v8792 = vpack.c.b16 %v8512, %v8508
  %v8793 = vpack.c.b16 %v8513, %v8509
  %v8794 = vpack.c.b16 %v8518, %v8514
  %v8795 = vpack.c.b16 %v8519, %v8515
  %v8796 = vpack.c.b16 %v8520, %v8516
  %v8797 = vpack.c.b16 %v8521, %v8517
  %v8798 = vpack.c.b16 %v8526, %v8522
  %v8799 = vpack.c.b16 %v8527, %v8523
  %v8800 = vpack.c.b16 %v8528, %v8524
  %v8801 = vpack.c.b16 %v8529, %v8525
  %v8802 = vpack.c.b16 %v8534, %v8530
  %v8803 = vpack.c.b16 %v8535, %v8531
  %v8804 = vpack.c.b16 %v8536, %v8532
  %v8805 = vpack.c.b16 %v8537, %v8533
  %v8806 = vpack.c.b16 %v8542, %v8538
  %v8807 = vpack.c.b16 %v8543, %v8539
  %v8808 = vpack.c.b16 %v8544, %v8540
  %v8809 = vpack.c.b16 %v8545, %v8541
  %v8810 = vpack.c.b16 %v8550, %v8546
  %v8811 = vpack.c.b16 %v8551, %v8547
  %v8812 = vpack.c.b16 %v8552, %v8548
  %v8813 = vpack.c.b16 %v8553, %v8549
  %v8814 = vpack.c.b16 %v8558, %v8554
  %v8815 = vpack.c.b16 %v8559, %v8555
  %v8816 = vpack.c.b16 %v8560, %v8556
  %v8817 = vpack.c.b16 %v8561, %v8557
  %9074 = vmatprep.subr.bf16.mxu0 %v8563
  %9075 = vmatpush1.bf16.msra.mxu0 %v8562
  %9076 = vmatprep.subr.bf16.mxu0 %v8567
  %9077 = vmatpush1.bf16.msra.mxu0 %v8566
  %9078 = vmatprep.subr.bf16.mxu0 %v8571
  %9079 = vmatpush1.bf16.msra.mxu0 %v8570
  %9080 = vmatprep.subr.bf16.mxu0 %v8575
  %9081 = vmatpush1.bf16.msra.mxu0 %v8574
  %9082 = vmatprep.subr.bf16.mxu0 %v8579
  %9083 = vmatpush1.bf16.msra.mxu0 %v8578
  %9084 = vmatprep.subr.bf16.mxu0 %v8583
  %9085 = vmatpush1.bf16.msra.mxu0 %v8582
  %9086 = vmatprep.subr.bf16.mxu0 %v8587
  %9087 = vmatpush1.bf16.msra.mxu0 %v8586
  %9088 = vmatprep.subr.bf16.mxu0 %v8591
  %9089 = vmatpush1.bf16.msra.mxu0 %v8590
  %9090 = vmatprep.subr.bf16.mxu0 %v8595
  %9091 = vmatpush1.bf16.msra.mxu0 %v8594
  %9092 = vmatprep.subr.bf16.mxu0 %v8599
  %9093 = vmatpush1.bf16.msra.mxu0 %v8598
  %9094 = vmatprep.subr.bf16.mxu0 %v8603
  %9095 = vmatpush1.bf16.msra.mxu0 %v8602
  %9096 = vmatprep.subr.bf16.mxu0 %v8607
  %9097 = vmatpush1.bf16.msra.mxu0 %v8606
  %9098 = vmatprep.subr.bf16.mxu0 %v8611
  %9099 = vmatpush1.bf16.msra.mxu0 %v8610
  %9100 = vmatprep.subr.bf16.mxu0 %v8615
  %9101 = vmatpush1.bf16.msra.mxu0 %v8614
  %9102 = vmatprep.subr.bf16.mxu0 %v8619
  %9103 = vmatpush1.bf16.msra.mxu0 %v8618
  %9104 = vmatprep.subr.bf16.mxu0 %v8623
  %9105 = vmatpush1.bf16.msra.mxu0 %v8622
  %9106 = vmatprep.mubr.bf16.mxu0 %v7509
  %9107 = vmatmul.mubr.bf16.gmra.mrb[0].mxu0 %v7508
  %v9108 = vpop.f32.mrb[0].mxu0
  %v9109 = vadd.f32 %v7777, %v9108
  %v9110 = vpop.f32.mrb[0].mxu0
  %v9111 = vadd.f32 %v7781, %v9110
  %v9112 = vpop.f32.mrb[0].mxu0
  %v9113 = vpop.f32.mrb[0].mxu0
  %9114 = vdwg.mxu0
  %9115 = vmatprep.subr.bf16.mxu0 %v8627
  %9116 = vmatpush1.bf16.msra.mxu0 %v8626
  %9117 = vmatprep.subr.bf16.mxu0 %v8631
  %9118 = vmatpush1.bf16.msra.mxu0 %v8630
  %9119 = vmatprep.subr.bf16.mxu0 %v8635
  %9120 = vmatpush1.bf16.msra.mxu0 %v8634
  %9121 = vmatprep.subr.bf16.mxu0 %v8639
  %9122 = vmatpush1.bf16.msra.mxu0 %v8638
  %9123 = vmatprep.subr.bf16.mxu0 %v8643
  %9124 = vmatpush1.bf16.msra.mxu0 %v8642
  %9125 = vmatprep.subr.bf16.mxu0 %v8647
  %9126 = vmatpush1.bf16.msra.mxu0 %v8646
  %9127 = vmatprep.subr.bf16.mxu0 %v8651
  %9128 = vmatpush1.bf16.msra.mxu0 %v8650
  %9129 = vmatprep.subr.bf16.mxu0 %v8655
  %9130 = vmatpush1.bf16.msra.mxu0 %v8654
  %9131 = vmatprep.subr.bf16.mxu0 %v8659
  %9132 = vmatpush1.bf16.msra.mxu0 %v8658
  %9133 = vmatprep.subr.bf16.mxu0 %v8663
  %9134 = vmatpush1.bf16.msra.mxu0 %v8662
  %9135 = vmatprep.subr.bf16.mxu0 %v8667
  %9136 = vmatpush1.bf16.msra.mxu0 %v8666
  %9137 = vmatprep.subr.bf16.mxu0 %v8671
  %9138 = vmatpush1.bf16.msra.mxu0 %v8670
  %9139 = vmatprep.subr.bf16.mxu0 %v8675
  %9140 = vmatpush1.bf16.msra.mxu0 %v8674
  %9141 = vmatprep.subr.bf16.mxu0 %v8679
  %9142 = vmatpush1.bf16.msra.mxu0 %v8678
  %9143 = vmatprep.subr.bf16.mxu0 %v8683
  %9144 = vmatpush1.bf16.msra.mxu0 %v8682
  %9145 = vmatprep.subr.bf16.mxu0 %v8687
  %9146 = vmatpush1.bf16.msra.mxu0 %v8686
  %9147 = vmatprep.mubr.bf16.mxu0 %v7511
  %9148 = vmatmul.mubr.bf16.gmra.mrb[0].mxu0 %v7510
  %v9149 = vpop.f32.mrb[0].mxu0
  %v9150 = vadd.f32 %v9109, %v9149
  %v9151 = vpop.f32.mrb[0].mxu0
  %v9152 = vadd.f32 %v9111, %v9151
  %v9153 = vpop.f32.mrb[0].mxu0
  %v9154 = vpop.f32.mrb[0].mxu0
  %9155 = vdwg.mxu0
  %9156 = vmatprep.subr.bf16.mxu0 %v8691
  %9157 = vmatpush1.bf16.msra.mxu0 %v8690
  %9158 = vmatprep.subr.bf16.mxu0 %v8695
  %9159 = vmatpush1.bf16.msra.mxu0 %v8694
  %9160 = vmatprep.subr.bf16.mxu0 %v8699
  %9161 = vmatpush1.bf16.msra.mxu0 %v8698
  %9162 = vmatprep.subr.bf16.mxu0 %v8703
  %9163 = vmatpush1.bf16.msra.mxu0 %v8702
  %9164 = vmatprep.subr.bf16.mxu0 %v8707
  %9165 = vmatpush1.bf16.msra.mxu0 %v8706
  %9166 = vmatprep.subr.bf16.mxu0 %v8711
  %9167 = vmatpush1.bf16.msra.mxu0 %v8710
  %9168 = vmatprep.subr.bf16.mxu0 %v8715
  %9169 = vmatpush1.bf16.msra.mxu0 %v8714
  %9170 = vmatprep.subr.bf16.mxu0 %v8719
  %9171 = vmatpush1.bf16.msra.mxu0 %v8718
  %9172 = vmatprep.subr.bf16.mxu0 %v8723
  %9173 = vmatpush1.bf16.msra.mxu0 %v8722
  %9174 = vmatprep.subr.bf16.mxu0 %v8727
  %9175 = vmatpush1.bf16.msra.mxu0 %v8726
  %9176 = vmatprep.subr.bf16.mxu0 %v8731
  %9177 = vmatpush1.bf16.msra.mxu0 %v8730
  %9178 = vmatprep.subr.bf16.mxu0 %v8735
  %9179 = vmatpush1.bf16.msra.mxu0 %v8734
  %9180 = vmatprep.subr.bf16.mxu0 %v8739
  %9181 = vmatpush1.bf16.msra.mxu0 %v8738
  %9182 = vmatprep.subr.bf16.mxu0 %v8743
  %9183 = vmatpush1.bf16.msra.mxu0 %v8742
  %9184 = vmatprep.subr.bf16.mxu0 %v8747
  %9185 = vmatpush1.bf16.msra.mxu0 %v8746
  %9186 = vmatprep.subr.bf16.mxu0 %v8751
  %9187 = vmatpush1.bf16.msra.mxu0 %v8750
  %9188 = vmatprep.mubr.bf16.mxu0 %v7513
  %9189 = vmatmul.mubr.bf16.gmra.mrb[0].mxu0 %v7512
  %v9190 = vpop.f32.mrb[0].mxu0
  %v9191 = vadd.f32 %v9150, %v9190
  %v9192 = vpop.f32.mrb[0].mxu0
  %v9193 = vadd.f32 %v9152, %v9192
  %v9194 = vpop.f32.mrb[0].mxu0
  %v9195 = vpop.f32.mrb[0].mxu0
  %9196 = vdwg.mxu0
  %9197 = vmatprep.subr.bf16.mxu0 %v8755
  %9198 = vmatpush1.bf16.msra.mxu0 %v8754
  %9199 = vmatprep.subr.bf16.mxu0 %v8759
  %9200 = vmatpush1.bf16.msra.mxu0 %v8758
  %9201 = vmatprep.subr.bf16.mxu0 %v8763
  %9202 = vmatpush1.bf16.msra.mxu0 %v8762
  %9203 = vmatprep.subr.bf16.mxu0 %v8767
  %9204 = vmatpush1.bf16.msra.mxu0 %v8766
  %9205 = vmatprep.subr.bf16.mxu0 %v8771
  %9206 = vmatpush1.bf16.msra.mxu0 %v8770
  %9207 = vmatprep.subr.bf16.mxu0 %v8775
  %9208 = vmatpush1.bf16.msra.mxu0 %v8774
  %9209 = vmatprep.subr.bf16.mxu0 %v8779
  %9210 = vmatpush1.bf16.msra.mxu0 %v8778
  %9211 = vmatprep.subr.bf16.mxu0 %v8783
  %9212 = vmatpush1.bf16.msra.mxu0 %v8782
  %9213 = vmatprep.subr.bf16.mxu0 %v8787
  %9214 = vmatpush1.bf16.msra.mxu0 %v8786
  %9215 = vmatprep.subr.bf16.mxu0 %v8791
  %9216 = vmatpush1.bf16.msra.mxu0 %v8790
  %9217 = vmatprep.subr.bf16.mxu0 %v8795
  %9218 = vmatpush1.bf16.msra.mxu0 %v8794
  %9219 = vmatprep.subr.bf16.mxu0 %v8799
  %9220 = vmatpush1.bf16.msra.mxu0 %v8798
  %9221 = vmatprep.subr.bf16.mxu0 %v8803
  %9222 = vmatpush1.bf16.msra.mxu0 %v8802
  %9223 = vmatprep.subr.bf16.mxu0 %v8807
  %9224 = vmatpush1.bf16.msra.mxu0 %v8806
  %9225 = vmatprep.subr.bf16.mxu0 %v8811
  %9226 = vmatpush1.bf16.msra.mxu0 %v8810
  %9227 = vmatprep.subr.bf16.mxu0 %v8815
  %9228 = vmatpush1.bf16.msra.mxu0 %v8814
  %9229 = vmatprep.mubr.bf16.mxu0 %v7515
  %9230 = vmatmul.mubr.bf16.gmra.mrb[0].mxu0 %v7514
  %v9231 = vpop.f32.mrb[0].mxu0
  %v9232 = vadd.f32 %v9191, %v9231
  %v9233 = vpop.f32.mrb[0].mxu0
  %v9234 = vadd.f32 %v9193, %v9233
  %v9235 = vpop.f32.mrb[0].mxu0
  %v9236 = vpop.f32.mrb[0].mxu0
  %9237 = vdwg.mxu0
  %9238 = vmatprep.subr.bf16.mxu0 %v8565
  %9239 = vmatpush1.bf16.msra.mxu0 %v8564
  %9240 = vmatprep.subr.bf16.mxu0 %v8569
  %9241 = vmatpush1.bf16.msra.mxu0 %v8568
  %9242 = vmatprep.subr.bf16.mxu0 %v8573
  %9243 = vmatpush1.bf16.msra.mxu0 %v8572
  %9244 = vmatprep.subr.bf16.mxu0 %v8577
  %9245 = vmatpush1.bf16.msra.mxu0 %v8576
  %9246 = vmatprep.subr.bf16.mxu0 %v8581
  %9247 = vmatpush1.bf16.msra.mxu0 %v8580
  %9248 = vmatprep.subr.bf16.mxu0 %v8585
  %9249 = vmatpush1.bf16.msra.mxu0 %v8584
  %9250 = vmatprep.subr.bf16.mxu0 %v8589
  %9251 = vmatpush1.bf16.msra.mxu0 %v8588
  %9252 = vmatprep.subr.bf16.mxu0 %v8593
  %9253 = vmatpush1.bf16.msra.mxu0 %v8592
  %9254 = vmatprep.subr.bf16.mxu0 %v8597
  %9255 = vmatpush1.bf16.msra.mxu0 %v8596
  %9256 = vmatprep.subr.bf16.mxu0 %v8601
  %9257 = vmatpush1.bf16.msra.mxu0 %v8600
  %9258 = vmatprep.subr.bf16.mxu0 %v8605
  %9259 = vmatpush1.bf16.msra.mxu0 %v8604
  %9260 = vmatprep.subr.bf16.mxu0 %v8609
  %9261 = vmatpush1.bf16.msra.mxu0 %v8608
  %9262 = vmatprep.subr.bf16.mxu0 %v8613
  %9263 = vmatpush1.bf16.msra.mxu0 %v8612
  %9264 = vmatprep.subr.bf16.mxu0 %v8617
  %9265 = vmatpush1.bf16.msra.mxu0 %v8616
  %9266 = vmatprep.subr.bf16.mxu0 %v8621
  %9267 = vmatpush1.bf16.msra.mxu0 %v8620
  %9268 = vmatprep.subr.bf16.mxu0 %v8625
  %9269 = vmatpush1.bf16.msra.mxu0 %v8624
  %9270 = vmatprep.mubr.bf16.mxu0 %v7509
  %9271 = vmatmul.mubr.bf16.gmra.mrb[0].mxu0 %v7508
  %v9272 = vpop.f32.mrb[0].mxu0
  %v9273 = vadd.f32 %v7785, %v9272
  %v9274 = vpop.f32.mrb[0].mxu0
  %v9275 = vadd.f32 %v7789, %v9274
  %v9276 = vpop.f32.mrb[0].mxu0
  %v9277 = vpop.f32.mrb[0].mxu0
  %9278 = vdwg.mxu0
  %9279 = vmatprep.subr.bf16.mxu0 %v8629
  %9280 = vmatpush1.bf16.msra.mxu0 %v8628
  %9281 = vmatprep.subr.bf16.mxu0 %v8633
  %9282 = vmatpush1.bf16.msra.mxu0 %v8632
  %9283 = vmatprep.subr.bf16.mxu0 %v8637
  %9284 = vmatpush1.bf16.msra.mxu0 %v8636
  %9285 = vmatprep.subr.bf16.mxu0 %v8641
  %9286 = vmatpush1.bf16.msra.mxu0 %v8640
  %9287 = vmatprep.subr.bf16.mxu0 %v8645
  %9288 = vmatpush1.bf16.msra.mxu0 %v8644
  %9289 = vmatprep.subr.bf16.mxu0 %v8649
  %9290 = vmatpush1.bf16.msra.mxu0 %v8648
  %9291 = vmatprep.subr.bf16.mxu0 %v8653
  %9292 = vmatpush1.bf16.msra.mxu0 %v8652
  %9293 = vmatprep.subr.bf16.mxu0 %v8657
  %9294 = vmatpush1.bf16.msra.mxu0 %v8656
  %9295 = vmatprep.subr.bf16.mxu0 %v8661
  %9296 = vmatpush1.bf16.msra.mxu0 %v8660
  %9297 = vmatprep.subr.bf16.mxu0 %v8665
  %9298 = vmatpush1.bf16.msra.mxu0 %v8664
  %9299 = vmatprep.subr.bf16.mxu0 %v8669
  %9300 = vmatpush1.bf16.msra.mxu0 %v8668
  %9301 = vmatprep.subr.bf16.mxu0 %v8673
  %9302 = vmatpush1.bf16.msra.mxu0 %v8672
  %9303 = vmatprep.subr.bf16.mxu0 %v8677
  %9304 = vmatpush1.bf16.msra.mxu0 %v8676
  %9305 = vmatprep.subr.bf16.mxu0 %v8681
  %9306 = vmatpush1.bf16.msra.mxu0 %v8680
  %9307 = vmatprep.subr.bf16.mxu0 %v8685
  %9308 = vmatpush1.bf16.msra.mxu0 %v8684
  %9309 = vmatprep.subr.bf16.mxu0 %v8689
  %9310 = vmatpush1.bf16.msra.mxu0 %v8688
  %9311 = vmatprep.mubr.bf16.mxu0 %v7511
  %9312 = vmatmul.mubr.bf16.gmra.mrb[0].mxu0 %v7510
  %v9313 = vpop.f32.mrb[0].mxu0
  %v9314 = vadd.f32 %v9273, %v9313
  %v9315 = vpop.f32.mrb[0].mxu0
  %v9316 = vadd.f32 %v9275, %v9315
  %v9317 = vpop.f32.mrb[0].mxu0
  %v9318 = vpop.f32.mrb[0].mxu0
  %9319 = vdwg.mxu0
  %9320 = vmatprep.subr.bf16.mxu0 %v8693
  %9321 = vmatpush1.bf16.msra.mxu0 %v8692
  %9322 = vmatprep.subr.bf16.mxu0 %v8697
  %9323 = vmatpush1.bf16.msra.mxu0 %v8696
  %9324 = vmatprep.subr.bf16.mxu0 %v8701
  %9325 = vmatpush1.bf16.msra.mxu0 %v8700
  %9326 = vmatprep.subr.bf16.mxu0 %v8705
  %9327 = vmatpush1.bf16.msra.mxu0 %v8704
  %9328 = vmatprep.subr.bf16.mxu0 %v8709
  %9329 = vmatpush1.bf16.msra.mxu0 %v8708
  %9330 = vmatprep.subr.bf16.mxu0 %v8713
  %9331 = vmatpush1.bf16.msra.mxu0 %v8712
  %9332 = vmatprep.subr.bf16.mxu0 %v8717
  %9333 = vmatpush1.bf16.msra.mxu0 %v8716
  %9334 = vmatprep.subr.bf16.mxu0 %v8721
  %9335 = vmatpush1.bf16.msra.mxu0 %v8720
  %9336 = vmatprep.subr.bf16.mxu0 %v8725
  %9337 = vmatpush1.bf16.msra.mxu0 %v8724
  %9338 = vmatprep.subr.bf16.mxu0 %v8729
  %9339 = vmatpush1.bf16.msra.mxu0 %v8728
  %9340 = vmatprep.subr.bf16.mxu0 %v8733
  %9341 = vmatpush1.bf16.msra.mxu0 %v8732
  %9342 = vmatprep.subr.bf16.mxu0 %v8737
  %9343 = vmatpush1.bf16.msra.mxu0 %v8736
  %9344 = vmatprep.subr.bf16.mxu0 %v8741
  %9345 = vmatpush1.bf16.msra.mxu0 %v8740
  %9346 = vmatprep.subr.bf16.mxu0 %v8745
  %9347 = vmatpush1.bf16.msra.mxu0 %v8744
  %9348 = vmatprep.subr.bf16.mxu0 %v8749
  %9349 = vmatpush1.bf16.msra.mxu0 %v8748
  %9350 = vmatprep.subr.bf16.mxu0 %v8753
  %9351 = vmatpush1.bf16.msra.mxu0 %v8752
  %9352 = vmatprep.mubr.bf16.mxu0 %v7513
  %9353 = vmatmul.mubr.bf16.gmra.mrb[0].mxu0 %v7512
  %v9354 = vpop.f32.mrb[0].mxu0
  %v9355 = vadd.f32 %v9314, %v9354
  %v9356 = vpop.f32.mrb[0].mxu0
  %v9357 = vadd.f32 %v9316, %v9356
  %v9358 = vpop.f32.mrb[0].mxu0
  %v9359 = vpop.f32.mrb[0].mxu0
  %9360 = vdwg.mxu0
  %9361 = vmatprep.subr.bf16.mxu0 %v8757
  %9362 = vmatpush1.bf16.msra.mxu0 %v8756
  %9363 = vmatprep.subr.bf16.mxu0 %v8761
  %9364 = vmatpush1.bf16.msra.mxu0 %v8760
  %9365 = vmatprep.subr.bf16.mxu0 %v8765
  %9366 = vmatpush1.bf16.msra.mxu0 %v8764
  %9367 = vmatprep.subr.bf16.mxu0 %v8769
  %9368 = vmatpush1.bf16.msra.mxu0 %v8768
  %9369 = vmatprep.subr.bf16.mxu0 %v8773
  %9370 = vmatpush1.bf16.msra.mxu0 %v8772
  %9371 = vmatprep.subr.bf16.mxu0 %v8777
  %9372 = vmatpush1.bf16.msra.mxu0 %v8776
  %9373 = vmatprep.subr.bf16.mxu0 %v8781
  %9374 = vmatpush1.bf16.msra.mxu0 %v8780
  %9375 = vmatprep.subr.bf16.mxu0 %v8785
  %9376 = vmatpush1.bf16.msra.mxu0 %v8784
  %9377 = vmatprep.subr.bf16.mxu0 %v8789
  %9378 = vmatpush1.bf16.msra.mxu0 %v8788
  %9379 = vmatprep.subr.bf16.mxu0 %v8793
  %9380 = vmatpush1.bf16.msra.mxu0 %v8792
  %9381 = vmatprep.subr.bf16.mxu0 %v8797
  %9382 = vmatpush1.bf16.msra.mxu0 %v8796
  %9383 = vmatprep.subr.bf16.mxu0 %v8801
  %9384 = vmatpush1.bf16.msra.mxu0 %v8800
  %9385 = vmatprep.subr.bf16.mxu0 %v8805
  %9386 = vmatpush1.bf16.msra.mxu0 %v8804
  %9387 = vmatprep.subr.bf16.mxu0 %v8809
  %9388 = vmatpush1.bf16.msra.mxu0 %v8808
  %9389 = vmatprep.subr.bf16.mxu0 %v8813
  %9390 = vmatpush1.bf16.msra.mxu0 %v8812
  %9391 = vmatprep.subr.bf16.mxu0 %v8817
  %9392 = vmatpush1.bf16.msra.mxu0 %v8816
  %9393 = vmatprep.mubr.bf16.mxu0 %v7515
  %9394 = vmatmul.mubr.bf16.gmra.mrb[0].mxu0 %v7514
  %v9395 = vpop.f32.mrb[0].mxu0
  %v9396 = vadd.f32 %v9355, %v9395
  %v9397 = vpop.f32.mrb[0].mxu0
  %v9398 = vadd.f32 %v9357, %v9397
  %v9399 = vpop.f32.mrb[0].mxu0
  %v9400 = vpop.f32.mrb[0].mxu0
  %9401 = vdwg.mxu0
  %v9402 = vmax.f32 %v9232, 0.0
  %v9403 = vmax.f32 %v9234, 0.0
  %v9404 = vmax.f32 %v9396, 0.0
  %v9405 = vmax.f32 %v9398, 0.0
  %v9406 = vpack.c.bf16 %v9402, %v9402
  %v9407 = vpack.c.bf16 %v9403, %v9403
  %v9408 = vpack.c.bf16 %v9404, %v9404
  %v9409 = vpack.c.bf16 %v9405, %v9405
  %v9410 = vld [vmem:[%s6] sm:$0xf]
  %v9411 = vld [vmem:[%s6 + $0x4] sm:$0xf]
  %v9412 = vld [vmem:[%s6 + $0x8] sm:$0xf]
  %v9413 = vld [vmem:[%s6 + $0xc] sm:$0xf]
  %v9414 = vld [vmem:[%s6 + $0x10] sm:$0xf]
  %v9415 = vld [vmem:[%s6 + $0x14] sm:$0xf]
  %v9416 = vld [vmem:[%s6 + $0x18] sm:$0xf]
  %v9417 = vld [vmem:[%s6 + $0x1c] sm:$0xf]
  %v9418 = vld [vmem:[%s6 + $0x20] sm:$0xf]
  %v9419 = vld [vmem:[%s6 + $0x24] sm:$0xf]
  %v9420 = vld [vmem:[%s6 + $0x28] sm:$0xf]
  %v9421 = vld [vmem:[%s6 + $0x2c] sm:$0xf]
  %v9422 = vld [vmem:[%s6 + $0x30] sm:$0xf]
  %v9423 = vld [vmem:[%s6 + $0x34] sm:$0xf]
  %v9424 = vld [vmem:[%s6 + $0x38] sm:$0xf]
  %v9425 = vld [vmem:[%s6 + $0x3c] sm:$0xf]
  %v9426 = vld [vmem:[%s6 + $0x40] sm:$0xf]
  %v9427 = vld [vmem:[%s6 + $0x44] sm:$0xf]
  %v9428 = vld [vmem:[%s6 + $0x48] sm:$0xf]
  %v9429 = vld [vmem:[%s6 + $0x4c] sm:$0xf]
  %v9430 = vld [vmem:[%s6 + $0x50] sm:$0xf]
  %v9431 = vld [vmem:[%s6 + $0x54] sm:$0xf]
  %v9432 = vld [vmem:[%s6 + $0x58] sm:$0xf]
  %v9433 = vld [vmem:[%s6 + $0x5c] sm:$0xf]
  %v9434 = vld [vmem:[%s6 + $0x60] sm:$0xf]
  %v9435 = vld [vmem:[%s6 + $0x64] sm:$0xf]
  %v9436 = vld [vmem:[%s6 + $0x68] sm:$0xf]
  %v9437 = vld [vmem:[%s6 + $0x6c] sm:$0xf]
  %v9438 = vld [vmem:[%s6 + $0x70] sm:$0xf]
  %v9439 = vld [vmem:[%s6 + $0x74] sm:$0xf]
  %v9440 = vld [vmem:[%s6 + $0x78] sm:$0xf]
  %v9441 = vld [vmem:[%s6 + $0x7c] sm:$0xf]
  %v9442 = vld [vmem:[%s6 + $0x80] sm:$0xf]
  %v9443 = vld [vmem:[%s6 + $0x84] sm:$0xf]
  %v9444 = vld [vmem:[%s6 + $0x88] sm:$0xf]
  %v9445 = vld [vmem:[%s6 + $0x8c] sm:$0xf]
  %v9446 = vld [vmem:[%s6 + $0x90] sm:$0xf]
  %v9447 = vld [vmem:[%s6 + $0x94] sm:$0xf]
  %v9448 = vld [vmem:[%s6 + $0x98] sm:$0xf]
  %v9449 = vld [vmem:[%s6 + $0x9c] sm:$0xf]
  %v9450 = vld [vmem:[%s6 + $0xa0] sm:$0xf]
  %v9451 = vld [vmem:[%s6 + $0xa4] sm:$0xf]
  %v9452 = vld [vmem:[%s6 + $0xa8] sm:$0xf]
  %v9453 = vld [vmem:[%s6 + $0xac] sm:$0xf]
  %v9454 = vld [vmem:[%s6 + $0xb0] sm:$0xf]
  %v9455 = vld [vmem:[%s6 + $0xb4] sm:$0xf]
  %v9456 = vld [vmem:[%s6 + $0xb8] sm:$0xf]
  %v9457 = vld [vmem:[%s6 + $0xbc] sm:$0xf]
  %v9458 = vld [vmem:[%s6 + $0xc0] sm:$0xf]
  %v9459 = vld [vmem:[%s6 + $0xc4] sm:$0xf]
  %v9460 = vld [vmem:[%s6 + $0xc8] sm:$0xf]
  %v9461 = vld [vmem:[%s6 + $0xcc] sm:$0xf]
  %v9462 = vld [vmem:[%s6 + $0xd0] sm:$0xf]
  %v9463 = vld [vmem:[%s6 + $0xd4] sm:$0xf]
  %v9464 = vld [vmem:[%s6 + $0xd8] sm:$0xf]
  %v9465 = vld [vmem:[%s6 + $0xdc] sm:$0xf]
  %v9466 = vld [vmem:[%s6 + $0xe0] sm:$0xf]
  %v9467 = vld [vmem:[%s6 + $0xe4] sm:$0xf]
  %v9468 = vld [vmem:[%s6 + $0xe8] sm:$0xf]
  %v9469 = vld [vmem:[%s6 + $0xec] sm:$0xf]
  %v9470 = vld [vmem:[%s6 + $0xf0] sm:$0xf]
  %v9471 = vld [vmem:[%s6 + $0xf4] sm:$0xf]
  %v9472 = vld [vmem:[%s6 + $0xf8] sm:$0xf]
  %v9473 = vld [vmem:[%s6 + $0xfc] sm:$0xf]
  %v9474 = vld [vmem:[%s7 + $0x14] sm:$0x1]
  %v9476 = vlaneseq
  %v9477 = vshrl.u32 %v9476, 7
  %v9478 = vsub.s32 0, %v9477
  %v9479 = vrot.slane %v9474, %v9478
  %v9545 = vunpack.c.l.b16 %v9410
  %v9546 = vunpack.c.l.b16 %v9411
  %v9547 = vunpack.c.l.b16 %v9412
  %v9548 = vunpack.c.l.b16 %v9413
  %v9549 = vunpack.c.l.b16 %v9414
  %v9550 = vunpack.c.l.b16 %v9415
  %v9551 = vunpack.c.l.b16 %v9416
  %v9552 = vunpack.c.l.b16 %v9417
  %v9553 = vunpack.c.l.b16 %v9418
  %v9554 = vunpack.c.l.b16 %v9419
  %v9555 = vunpack.c.l.b16 %v9420
  %v9556 = vunpack.c.l.b16 %v9421
  %v9557 = vunpack.c.l.b16 %v9422
  %v9558 = vunpack.c.l.b16 %v9423
  %v9559 = vunpack.c.l.b16 %v9424
  %v9560 = vunpack.c.l.b16 %v9425
  %v9561 = vunpack.c.l.b16 %v9426
  %v9562 = vunpack.c.l.b16 %v9427
  %v9563 = vunpack.c.l.b16 %v9428
  %v9564 = vunpack.c.l.b16 %v9429
  %v9565 = vunpack.c.l.b16 %v9430
  %v9566 = vunpack.c.l.b16 %v9431
  %v9567 = vunpack.c.l.b16 %v9432
  %v9568 = vunpack.c.l.b16 %v9433
  %v9569 = vunpack.c.l.b16 %v9434
  %v9570 = vunpack.c.l.b16 %v9435
  %v9571 = vunpack.c.l.b16 %v9436
  %v9572 = vunpack.c.l.b16 %v9437
  %v9573 = vunpack.c.l.b16 %v9438
  %v9574 = vunpack.c.l.b16 %v9439
  %v9575 = vunpack.c.l.b16 %v9440
  %v9576 = vunpack.c.l.b16 %v9441
  %v9577 = vunpack.c.l.b16 %v9442
  %v9578 = vunpack.c.l.b16 %v9443
  %v9579 = vunpack.c.l.b16 %v9444
  %v9580 = vunpack.c.l.b16 %v9445
  %v9581 = vunpack.c.l.b16 %v9446
  %v9582 = vunpack.c.l.b16 %v9447
  %v9583 = vunpack.c.l.b16 %v9448
  %v9584 = vunpack.c.l.b16 %v9449
  %v9585 = vunpack.c.l.b16 %v9450
  %v9586 = vunpack.c.l.b16 %v9451
  %v9587 = vunpack.c.l.b16 %v9452
  %v9588 = vunpack.c.l.b16 %v9453
  %v9589 = vunpack.c.l.b16 %v9454
  %v9590 = vunpack.c.l.b16 %v9455
  %v9591 = vunpack.c.l.b16 %v9456
  %v9592 = vunpack.c.l.b16 %v9457
  %v9593 = vunpack.c.l.b16 %v9458
  %v9594 = vunpack.c.l.b16 %v9459
  %v9595 = vunpack.c.l.b16 %v9460
  %v9596 = vunpack.c.l.b16 %v9461
  %v9597 = vunpack.c.l.b16 %v9462
  %v9598 = vunpack.c.l.b16 %v9463
  %v9599 = vunpack.c.l.b16 %v9464
  %v9600 = vunpack.c.l.b16 %v9465
  %v9601 = vunpack.c.l.b16 %v9466
  %v9602 = vunpack.c.l.b16 %v9467
  %v9603 = vunpack.c.l.b16 %v9468
  %v9604 = vunpack.c.l.b16 %v9469
  %v9605 = vunpack.c.l.b16 %v9470
  %v9606 = vunpack.c.l.b16 %v9471
  %v9607 = vunpack.c.l.b16 %v9472
  %v9608 = vunpack.c.l.b16 %v9473
  %v9609 = vpack.c.b16 %v9546, %v9545
  %v9610 = vpack.c.b16 %v9548, %v9547
  %v9611 = vpack.c.b16 %v9550, %v9549
  %v9612 = vpack.c.b16 %v9552, %v9551
  %v9613 = vpack.c.b16 %v9554, %v9553
  %v9614 = vpack.c.b16 %v9556, %v9555
  %v9615 = vpack.c.b16 %v9558, %v9557
  %v9616 = vpack.c.b16 %v9560, %v9559
  %v9617 = vpack.c.b16 %v9562, %v9561
  %v9618 = vpack.c.b16 %v9564, %v9563
  %v9619 = vpack.c.b16 %v9566, %v9565
  %v9620 = vpack.c.b16 %v9568, %v9567
  %v9621 = vpack.c.b16 %v9570, %v9569
  %v9622 = vpack.c.b16 %v9572, %v9571
  %v9623 = vpack.c.b16 %v9574, %v9573
  %v9624 = vpack.c.b16 %v9576, %v9575
  %v9625 = vpack.c.b16 %v9578, %v9577
  %v9626 = vpack.c.b16 %v9580, %v9579
  %v9627 = vpack.c.b16 %v9582, %v9581
  %v9628 = vpack.c.b16 %v9584, %v9583
  %v9629 = vpack.c.b16 %v9586, %v9585
  %v9630 = vpack.c.b16 %v9588, %v9587
  %v9631 = vpack.c.b16 %v9590, %v9589
  %v9632 = vpack.c.b16 %v9592, %v9591
  %v9633 = vpack.c.b16 %v9594, %v9593
  %v9634 = vpack.c.b16 %v9596, %v9595
  %v9635 = vpack.c.b16 %v9598, %v9597
  %v9636 = vpack.c.b16 %v9600, %v9599
  %v9637 = vpack.c.b16 %v9602, %v9601
  %v9638 = vpack.c.b16 %v9604, %v9603
  %v9639 = vpack.c.b16 %v9606, %v9605
  %v9640 = vpack.c.b16 %v9608, %v9607
  %9673 = vmatprep.subr.bf16.mxu0 0
  %9674 = vmatpush1.bf16.msra.mxu0 %v9609
  %9675 = vmatprep.subr.bf16.mxu0 0
  %9676 = vmatpush1.bf16.msra.mxu0 %v9610
  %9677 = vmatprep.subr.bf16.mxu0 0
  %9678 = vmatpush1.bf16.msra.mxu0 %v9611
  %9679 = vmatprep.subr.bf16.mxu0 0
  %9680 = vmatpush1.bf16.msra.mxu0 %v9612
  %9681 = vmatprep.subr.bf16.mxu0 0
  %9682 = vmatpush1.bf16.msra.mxu0 %v9613
  %9683 = vmatprep.subr.bf16.mxu0 0
  %9684 = vmatpush1.bf16.msra.mxu0 %v9614
  %9685 = vmatprep.subr.bf16.mxu0 0
  %9686 = vmatpush1.bf16.msra.mxu0 %v9615
  %9687 = vmatprep.subr.bf16.mxu0 0
  %9688 = vmatpush1.bf16.msra.mxu0 %v9616
  %9689 = vmatprep.subr.bf16.mxu0 0
  %9690 = vmatpush1.bf16.msra.mxu0 %v9617
  %9691 = vmatprep.subr.bf16.mxu0 0
  %9692 = vmatpush1.bf16.msra.mxu0 %v9618
  %9693 = vmatprep.subr.bf16.mxu0 0
  %9694 = vmatpush1.bf16.msra.mxu0 %v9619
  %9695 = vmatprep.subr.bf16.mxu0 0
  %9696 = vmatpush1.bf16.msra.mxu0 %v9620
  %9697 = vmatprep.subr.bf16.mxu0 0
  %9698 = vmatpush1.bf16.msra.mxu0 %v9621
  %9699 = vmatprep.subr.bf16.mxu0 0
  %9700 = vmatpush1.bf16.msra.mxu0 %v9622
  %9701 = vmatprep.subr.bf16.mxu0 0
  %9702 = vmatpush1.bf16.msra.mxu0 %v9623
  %9703 = vmatprep.subr.bf16.mxu0 0
  %9704 = vmatpush1.bf16.msra.mxu0 %v9624
  %9705 = vmatprep.mubr.bf16.mxu0 %v9407
  %9706 = vmatmul.mubr.bf16.gmra.mrb[0].mxu0 %v9406
  %v9707 = vpop.f32.mrb[0].mxu0
  %v9708 = vadd.f32 %v9479, %v9707
  %v9709 = vpop.f32.mrb[0].mxu0
  %v9710 = vpop.f32.mrb[0].mxu0
  %v9711 = vpop.f32.mrb[0].mxu0
  %9712 = vdwg.mxu0
  %9713 = vmatprep.subr.bf16.mxu0 0
  %9714 = vmatpush1.bf16.msra.mxu0 %v9625
  %9715 = vmatprep.subr.bf16.mxu0 0
  %9716 = vmatpush1.bf16.msra.mxu0 %v9626
  %9717 = vmatprep.subr.bf16.mxu0 0
  %9718 = vmatpush1.bf16.msra.mxu0 %v9627
  %9719 = vmatprep.subr.bf16.mxu0 0
  %9720 = vmatpush1.bf16.msra.mxu0 %v9628
  %9721 = vmatprep.subr.bf16.mxu0 0
  %9722 = vmatpush1.bf16.msra.mxu0 %v9629
  %9723 = vmatprep.subr.bf16.mxu0 0
  %9724 = vmatpush1.bf16.msra.mxu0 %v9630
  %9725 = vmatprep.subr.bf16.mxu0 0
  %9726 = vmatpush1.bf16.msra.mxu0 %v9631
  %9727 = vmatprep.subr.bf16.mxu0 0
  %9728 = vmatpush1.bf16.msra.mxu0 %v9632
  %9729 = vmatprep.subr.bf16.mxu0 0
  %9730 = vmatpush1.bf16.msra.mxu0 %v9633
  %9731 = vmatprep.subr.bf16.mxu0 0
  %9732 = vmatpush1.bf16.msra.mxu0 %v9634
  %9733 = vmatprep.subr.bf16.mxu0 0
  %9734 = vmatpush1.bf16.msra.mxu0 %v9635
  %9735 = vmatprep.subr.bf16.mxu0 0
  %9736 = vmatpush1.bf16.msra.mxu0 %v9636
  %9737 = vmatprep.subr.bf16.mxu0 0
  %9738 = vmatpush1.bf16.msra.mxu0 %v9637
  %9739 = vmatprep.subr.bf16.mxu0 0
  %9740 = vmatpush1.bf16.msra.mxu0 %v9638
  %9741 = vmatprep.subr.bf16.mxu0 0
  %9742 = vmatpush1.bf16.msra.mxu0 %v9639
  %9743 = vmatprep.subr.bf16.mxu0 0
  %9744 = vmatpush1.bf16.msra.mxu0 %v9640
  %9745 = vmatprep.mubr.bf16.mxu0 %v9409
  %9746 = vmatmul.mubr.bf16.gmra.mrb[0].mxu0 %v9408
  %v9747 = vpop.f32.mrb[0].mxu0
  %v9748 = vadd.f32 %v9708, %v9747
  %v9749 = vpop.f32.mrb[0].mxu0
  %v9750 = vpop.f32.mrb[0].mxu0
  %v9751 = vpop.f32.mrb[0].mxu0
  %9752 = vdwg.mxu0
  %9753 = vst [vmem:[%s8] sm:$0x3] %v9748
  // Predicated region
  $region34: #{dueling_dqn_forward.1} parent=0 // pred_check
    _
  $region35: #{dueling_dqn_forward.1} parent=0 // pred_check_branch
    %9755 = sbr.rel (0) target = $region37
  $region36: #{dueling_dqn_forward.1} parent=0 // pred_region
    _
  $region37: #{dueling_dqn_forward.1} parent=0 // pred_fallthru
    _
  // Predicated region
  $region38: #{dueling_dqn_forward.1} parent=0 // pred_check
    _
  $region39: #{dueling_dqn_forward.1} parent=0 // pred_check_branch
    %9757 = sbr.rel (0) target = $region41
  $region40: #{dueling_dqn_forward.1} parent=0 // pred_region
    _
  $region41: #{dueling_dqn_forward.1} parent=0 // pred_fallthru
    _

</llo_original>
